<compile_context>
chip_gen: v5e
topology: v5e:2x2
jax: 0.10.0
libtpu: 0.0.40
codegen_flags: <defaults>
</compile_context>

<pallas_src>
import functools

import jax
import jax.numpy as jnp
from jax.experimental import pallas as pl
from jax.experimental.pallas import tpu as pltpu


# ----------------------------------------------------------------------------
# In-kernel math helpers (pure functions on values)
# ----------------------------------------------------------------------------

def _layernorm(x, g, b, eps=1e-5):
    # x: (n, d) f32; g, b: (1, d)
    mean = jnp.mean(x, axis=-1, keepdims=True)
    xc = x - mean
    var = jnp.mean(xc * xc, axis=-1, keepdims=True)
    return xc * jax.lax.rsqrt(var + eps) * g + b


def _mha(xq, contexts, wq, wk_t, wv, wo, bo, *, heads, dim_head, scale):
    """Multi-head attention with a joint softmax over a list of contexts.

    xq:        (n, d) layer-normed queries.
    contexts:  list of (m_i, d) key/value sources; softmax is joint over all
               of them -> implements kv_include_self without any concat.
    wq, wv:    (d, heads*dim_head) fused projection weights.
    wk_t:      (heads*dim_head, d) pre-transposed K weights (K is produced
               directly as (heads*dim_head, m): no per-head K transpose).
    wo:        (heads*dim_head, d) fused output projection.
    bo:        (1, d) output bias.
    Returns (n, d).
    """
    q = jnp.dot(xq, wq, preferred_element_type=jnp.float32)          # (n, H*dh)
    kts = [jnp.dot(wk_t, jnp.transpose(ctx),
                   preferred_element_type=jnp.float32) for ctx in contexts]
    vs = [jnp.dot(ctx, wv, preferred_element_type=jnp.float32) for ctx in contexts]

    head_outs = []
    for h in range(heads):                      # heads is tiny & static
        lo = h * dim_head
        qh = q[:, lo:lo + dim_head]                                  # (n, dh)
        dots = [jnp.dot(qh, kt[lo:lo + dim_head, :],
                        preferred_element_type=jnp.float32) * scale
                for kt in kts]                                       # (n, m_i)
        # Joint (numerically stable) softmax across all contexts.
        mx = jnp.max(dots[0], axis=-1, keepdims=True)
        for dts in dots[1:]:
            mx = jnp.maximum(mx, jnp.max(dts, axis=-1, keepdims=True))
        es = [jnp.exp(dts - mx) for dts in dots]
        denom = jnp.sum(es[0], axis=-1, keepdims=True)
        for e in es[1:]:
            denom = denom + jnp.sum(e, axis=-1, keepdims=True)
        o = jnp.dot(es[0], vs[0][:, lo:lo + dim_head],
                    preferred_element_type=jnp.float32)
        for e, v in zip(es[1:], vs[1:]):
            o = o + jnp.dot(e, v[:, lo:lo + dim_head],
                            preferred_element_type=jnp.float32)
        head_outs.append(o / denom)                                  # (n, dh)

    out = head_outs[0] if heads == 1 else jnp.concatenate(head_outs, axis=-1)
    return jnp.dot(out, wo, preferred_element_type=jnp.float32) + bo


# ----------------------------------------------------------------------------
# Parameter flattening (kernel arg order must match on both sides)
# ----------------------------------------------------------------------------

_ATTN_KEYS = ("ln_g", "ln_b", "wq", "wk_t", "wv", "wo", "bo")
_FF_KEYS = ("ln_g", "ln_b", "w1", "b1", "w2", "b2")
_GROUPS = (("sm_attn", _ATTN_KEYS), ("sm_ff", _FF_KEYS),
           ("lg_attn", _ATTN_KEYS), ("lg_ff", _FF_KEYS),
           ("x_sm", _ATTN_KEYS), ("x_lg", _ATTN_KEYS))


def _flatten_params(params):
    return [params[g][k] for g, keys in _GROUPS for k in keys]


def _unpack_param_refs(refs):
    it = iter(refs)
    return {g: {k: next(it) for k in keys} for g, keys in _GROUPS}


# ----------------------------------------------------------------------------
# Fused whole-encoder kernel
# ----------------------------------------------------------------------------

def _encoder_kernel(sm_ref, lg_ref, *rest, heads, dim_head, scale,
                    depth, sm_enc_layers, lg_enc_layers, cross_layers):
    sm_out_ref, lg_out_ref = rest[-2], rest[-1]
    p = _unpack_param_refs(rest[:-2])

    sm = sm_ref[0].astype(jnp.float32)          # (n_sm, d)
    lg = lg_ref[0].astype(jnp.float32)          # (n_lg, d)

    def attn(xn, contexts, a, idx):
        return _mha(xn, contexts, a["wq"][idx], a["wk_t"][idx], a["wv"][idx],
                    a["wo"][idx], a["bo"][idx],
                    heads=heads, dim_head=dim_head, scale=scale)

    def transformer_layer(x, a, f, idx):
        # PreNorm multi-head self-attention + residual (fused).
        xn = _layernorm(x, a["ln_g"][idx], a["ln_b"][idx])
        x = x + attn(xn, [xn], a, idx)
        # PreNorm GELU MLP + residual (fused).
        xn = _layernorm(x, f["ln_g"][idx], f["ln_b"][idx])
        h = jnp.dot(xn, f["w1"][idx], preferred_element_type=jnp.float32) + f["b1"][idx]
        # TODO(synk): PyTorch nn.GELU defaults to the exact erf form; Mosaic
        # erf lowering is not guaranteed, so the tanh approximation is used.
        h = jax.nn.gelu(h, approximate=True)
        return x + jnp.dot(h, f["w2"][idx], preferred_element_type=jnp.float32) + f["b2"][idx]

    for dd in range(depth):
        # sm encoder (built with depth=lg_depth in the PyTorch reference).
        for li in range(sm_enc_layers):
            sm = transformer_layer(sm, p["sm_attn"], p["sm_ff"],
                                   dd * sm_enc_layers + li)
        # lg encoder (built with depth=sm_depth in the PyTorch reference).
        for li in range(lg_enc_layers):
            lg = transformer_layer(lg, p["lg_attn"], p["lg_ff"],
                                   dd * lg_enc_layers + li)

        # CrossTransformer: both directions, all cross layers, fully fused.
        sm_cls, sm_patch = sm[:1], sm[1:]
        lg_cls, lg_patch = lg[:1], lg[1:]
        for ci in range(cross_layers):
            idx = dd * cross_layers + ci
            # sm cls attends lg patches; kv includes the normed sm cls itself
            # (joint softmax over the two score blocks == kv_include_self).
            a = p["x_sm"]
            xn = _layernorm(sm_cls, a["ln_g"][idx], a["ln_b"][idx])
            sm_cls = sm_cls + attn(xn, [xn, lg_patch], a, idx)
            # lg cls attends sm patches; kv includes the normed lg cls itself.
            c = p["x_lg"]
            xn = _layernorm(lg_cls, c["ln_g"][idx], c["ln_b"][idx])
            lg_cls = lg_cls + attn(xn, [xn, sm_patch], c, idx)
        sm = jnp.concatenate([sm_cls, sm_patch], axis=0)
        lg = jnp.concatenate([lg_cls, lg_patch], axis=0)

    # Single write of each full token block at the very end.
    sm_out_ref[0] = sm.astype(sm_out_ref.dtype)
    lg_out_ref[0] = lg.astype(lg_out_ref.dtype)


# ----------------------------------------------------------------------------
# pallas_call wrapper
# ----------------------------------------------------------------------------

def multi_scale_encoder(sm_tokens, lg_tokens, params, *, heads, dim_head,
                        depth, sm_enc_layers, lg_enc_layers, cross_layers):
    B, n_sm, d = sm_tokens.shape
    n_lg = lg_tokens.shape[1]
    scale = float(dim_head) ** (-0.5)

    flat = _flatten_params(params)
    kernel = functools.partial(
        _encoder_kernel, heads=heads, dim_head=dim_head, scale=scale,
        depth=depth, sm_enc_layers=sm_enc_layers, lg_enc_layers=lg_enc_layers,
        cross_layers=cross_layers)

    def tok_spec(n):
        return pl.BlockSpec((1, n, d), lambda b: (b, 0, 0))

    def full_spec(arr):
        # Full-array block, constant index map -> DMA'd once, VMEM resident
        # across the whole (parallel) batch grid; no per-b weight re-stream.
        return pl.BlockSpec(arr.shape, lambda b, _nd=arr.ndim: (0,) * _nd)

    in_specs = [tok_spec(n_sm), tok_spec(n_lg)] + [full_spec(a) for a in flat]
    out_specs = (tok_spec(n_sm), tok_spec(n_lg))

    # NOTE: at these toy dims VMEM usage is trivial even on v7x (64 MiB); at
    # production sizes re-derive the resident-weight budget / set
    # vmem_limit_bytes in CompilerParams.
    return pl.pallas_call(
        kernel,
        out_shape=(jax.ShapeDtypeStruct((B, n_sm, d), sm_tokens.dtype),
                   jax.ShapeDtypeStruct((B, n_lg, d), lg_tokens.dtype)),
        grid=(B,),
        in_specs=in_specs,
        out_specs=out_specs,
        compiler_params=pltpu.CompilerParams(dimension_semantics=("parallel",)),
    )(sm_tokens, lg_tokens, *flat)


# ----------------------------------------------------------------------------
# Parameter initialization + packing into the stacked / fused kernel layout
# ----------------------------------------------------------------------------

def _pack_attn(plist, inner):
    stk = lambda fn: jnp.stack([fn(p) for p in plist], axis=0)
    return dict(
        ln_g=stk(lambda p: p["ln_g"]),
        ln_b=stk(lambda p: p["ln_b"]),
        wq=stk(lambda p: p["wq"]),                                  # (d, inner)
        wk_t=stk(lambda p: jnp.transpose(p["wkv"][:, :inner])),     # (inner, d)
        wv=stk(lambda p: p["wkv"][:, inner:]),                      # (d, inner)
        wo=stk(lambda p: p["wo"]),                                  # (inner, d)
        bo=stk(lambda p: p["bo"]),
    )


def _pack_ff(plist):
    stk = lambda fn: jnp.stack([fn(p) for p in plist], axis=0)
    return dict(
        ln_g=stk(lambda p: p["ln_g"]), ln_b=stk(lambda p: p["ln_b"]),
        w1=stk(lambda p: p["w1"]), b1=stk(lambda p: p["b1"]),
        w2=stk(lambda p: p["w2"]), b2=stk(lambda p: p["b2"]),
    )


def init_params(key, *, dim, depth, lg_depth, sm_depth, cross_depth,
                heads, dim_head, mlp_dim):
    inner = heads * dim_head
    counter = [0]

    def lin(i, o):
        counter[0] += 1
        return jax.random.normal(jax.random.fold_in(key, counter[0]),
                                 (i, o), jnp.float32) * 0.02

    def attn_raw():
        return dict(
            ln_g=jnp.ones((1, dim), jnp.float32),
            ln_b=jnp.zeros((1, dim), jnp.float32),
            wq=lin(dim, inner),
            wkv=lin(dim, 2 * inner),
            wo=lin(inner, dim),
            bo=jnp.zeros((1, dim), jnp.float32),
        )

    def ff_raw():
        return dict(
            ln_g=jnp.ones((1, dim), jnp.float32),
            ln_b=jnp.zeros((1, dim), jnp.float32),
            w1=lin(dim, mlp_dim),
            b1=jnp.zeros((1, mlp_dim), jnp.float32),
            w2=lin(mlp_dim, dim),
            b2=jnp.zeros((1, dim), jnp.float32),
        )

    sm_attn, sm_ff, lg_attn, lg_ff, x_sm, x_lg = ([] for _ in range(6))
    for _ in range(depth):
        # NOTE: faithful to the PyTorch source -- the Transformer applied to
        # sm_tokens is built with depth=lg_depth and the one applied to
        # lg_tokens with depth=sm_depth.
        for _ in range(lg_depth):
            sm_attn.append(attn_raw()); sm_ff.append(ff_raw())
        for _ in range(sm_depth):
            lg_attn.append(attn_raw()); lg_ff.append(ff_raw())
        for _ in range(cross_depth):
            x_sm.append(attn_raw()); x_lg.append(attn_raw())

    return dict(
        sm_attn=_pack_attn(sm_attn, inner), sm_ff=_pack_ff(sm_ff),
        lg_attn=_pack_attn(lg_attn, inner), lg_ff=_pack_ff(lg_ff),
        x_sm=_pack_attn(x_sm, inner), x_lg=_pack_attn(x_lg, inner),
    )


# ----------------------------------------------------------------------------
# Main
# ----------------------------------------------------------------------------

if __name__ == "__main__":
    B = 2
    dim = 32
    heads = 2
    dim_head = 16
    mlp_dim = 64
    depth = 2
    lg_depth = 2
    sm_depth = 1
    cross_depth = 1
    n_sm = 9    # 1 cls token + 8 patch tokens
    n_lg = 17   # 1 cls token + 16 patch tokens

    key = jax.random.PRNGKey(0)
    k_sm, k_lg, k_params = jax.random.split(key, 3)
    sm_tokens = jax.random.normal(k_sm, (B, n_sm, dim), jnp.float32)
    lg_tokens = jax.random.normal(k_lg, (B, n_lg, dim), jnp.float32)

    params = init_params(
        k_params, dim=dim, depth=depth, lg_depth=lg_depth, sm_depth=sm_depth,
        cross_depth=cross_depth, heads=heads, dim_head=dim_head, mlp_dim=mlp_dim)

    fwd = jax.jit(functools.partial(
        multi_scale_encoder, heads=heads, dim_head=dim_head, depth=depth,
        sm_enc_layers=lg_depth, lg_enc_layers=sm_depth, cross_layers=cross_depth))
    sm_out, lg_out = fwd(sm_tokens, lg_tokens, params)
    jax.block_until_ready((sm_out, lg_out))

    assert sm_out.shape == (B, n_sm, dim)
    assert lg_out.shape == (B, n_lg, dim)
    assert bool(jnp.all(jnp.isfinite(sm_out))) and bool(jnp.all(jnp.isfinite(lg_out)))
    print("KERNEL_OK")
</pallas_src>

<mosaic_0001>
module attributes {stable_mosaic.version = 11 : i64} {
  func.func @_encoder_kernel(%arg0: i32, %arg1: memref<1x9x32xf32, #tpu.memory_space<vmem>>, %arg2: memref<1x17x32xf32, #tpu.memory_space<vmem>>, %arg3: memref<4x1x32xf32, #tpu.memory_space<vmem>>, %arg4: memref<4x1x32xf32, #tpu.memory_space<vmem>>, %arg5: memref<4x32x32xf32, #tpu.memory_space<vmem>>, %arg6: memref<4x32x32xf32, #tpu.memory_space<vmem>>, %arg7: memref<4x32x32xf32, #tpu.memory_space<vmem>>, %arg8: memref<4x32x32xf32, #tpu.memory_space<vmem>>, %arg9: memref<4x1x32xf32, #tpu.memory_space<vmem>>, %arg10: memref<4x1x32xf32, #tpu.memory_space<vmem>>, %arg11: memref<4x1x32xf32, #tpu.memory_space<vmem>>, %arg12: memref<4x32x64xf32, #tpu.memory_space<vmem>>, %arg13: memref<4x1x64xf32, #tpu.memory_space<vmem>>, %arg14: memref<4x64x32xf32, #tpu.memory_space<vmem>>, %arg15: memref<4x1x32xf32, #tpu.memory_space<vmem>>, %arg16: memref<2x1x32xf32, #tpu.memory_space<vmem>>, %arg17: memref<2x1x32xf32, #tpu.memory_space<vmem>>, %arg18: memref<2x32x32xf32, #tpu.memory_space<vmem>>, %arg19: memref<2x32x32xf32, #tpu.memory_space<vmem>>, %arg20: memref<2x32x32xf32, #tpu.memory_space<vmem>>, %arg21: memref<2x32x32xf32, #tpu.memory_space<vmem>>, %arg22: memref<2x1x32xf32, #tpu.memory_space<vmem>>, %arg23: memref<2x1x32xf32, #tpu.memory_space<vmem>>, %arg24: memref<2x1x32xf32, #tpu.memory_space<vmem>>, %arg25: memref<2x32x64xf32, #tpu.memory_space<vmem>>, %arg26: memref<2x1x64xf32, #tpu.memory_space<vmem>>, %arg27: memref<2x64x32xf32, #tpu.memory_space<vmem>>, %arg28: memref<2x1x32xf32, #tpu.memory_space<vmem>>, %arg29: memref<2x1x32xf32, #tpu.memory_space<vmem>>, %arg30: memref<2x1x32xf32, #tpu.memory_space<vmem>>, %arg31: memref<2x32x32xf32, #tpu.memory_space<vmem>>, %arg32: memref<2x32x32xf32, #tpu.memory_space<vmem>>, %arg33: memref<2x32x32xf32, #tpu.memory_space<vmem>>, %arg34: memref<2x32x32xf32, #tpu.memory_space<vmem>>, %arg35: memref<2x1x32xf32, #tpu.memory_space<vmem>>, %arg36: memref<2x1x32xf32, #tpu.memory_space<vmem>>, %arg37: memref<2x1x32xf32, #tpu.memory_space<vmem>>, %arg38: memref<2x32x32xf32, #tpu.memory_space<vmem>>, %arg39: memref<2x32x32xf32, #tpu.memory_space<vmem>>, %arg40: memref<2x32x32xf32, #tpu.memory_space<vmem>>, %arg41: memref<2x32x32xf32, #tpu.memory_space<vmem>>, %arg42: memref<2x1x32xf32, #tpu.memory_space<vmem>>, %arg43: memref<1x9x32xf32, #tpu.memory_space<vmem>>, %arg44: memref<1x17x32xf32, #tpu.memory_space<vmem>>) attributes {dimension_semantics = [#tpu.dimension_semantics<parallel>], iteration_bounds = array<i64: 2>, scalar_prefetch = 0 : i64, scratch_operands = 0 : i64, tpu.core_type = #tpu.core_type<tc>, window_params = [{transform_indices = @transform_0, window_bounds = array<i64: 1, 9, 32>}, {transform_indices = @transform_1, window_bounds = array<i64: 1, 17, 32>}, {pipeline_mode = #tpu.pipeline_mode<synchronous>, transform_indices = @transform_2, window_bounds = array<i64: 4, 1, 32>}, {pipeline_mode = #tpu.pipeline_mode<synchronous>, transform_indices = @transform_3, window_bounds = array<i64: 4, 1, 32>}, {pipeline_mode = #tpu.pipeline_mode<synchronous>, transform_indices = @transform_4, window_bounds = array<i64: 4, 32, 32>}, {pipeline_mode = #tpu.pipeline_mode<synchronous>, transform_indices = @transform_5, window_bounds = array<i64: 4, 32, 32>}, {pipeline_mode = #tpu.pipeline_mode<synchronous>, transform_indices = @transform_6, window_bounds = array<i64: 4, 32, 32>}, {pipeline_mode = #tpu.pipeline_mode<synchronous>, transform_indices = @transform_7, window_bounds = array<i64: 4, 32, 32>}, {pipeline_mode = #tpu.pipeline_mode<synchronous>, transform_indices = @transform_8, window_bounds = array<i64: 4, 1, 32>}, {pipeline_mode = #tpu.pipeline_mode<synchronous>, transform_indices = @transform_9, window_bounds = array<i64: 4, 1, 32>}, {pipeline_mode = #tpu.pipeline_mode<synchronous>, transform_indices = @transform_10, window_bounds = array<i64: 4, 1, 32>}, {pipeline_mode = #tpu.pipeline_mode<synchronous>, transform_indices = @transform_11, window_bounds = array<i64: 4, 32, 64>}, {pipeline_mode = #tpu.pipeline_mode<synchronous>, transform_indices = @transform_12, window_bounds = array<i64: 4, 1, 64>}, {pipeline_mode = #tpu.pipeline_mode<synchronous>, transform_indices = @transform_13, window_bounds = array<i64: 4, 64, 32>}, {pipeline_mode = #tpu.pipeline_mode<synchronous>, transform_indices = @transform_14, window_bounds = array<i64: 4, 1, 32>}, {pipeline_mode = #tpu.pipeline_mode<synchronous>, transform_indices = @transform_15, window_bounds = array<i64: 2, 1, 32>}, {pipeline_mode = #tpu.pipeline_mode<synchronous>, transform_indices = @transform_16, window_bounds = array<i64: 2, 1, 32>}, {pipeline_mode = #tpu.pipeline_mode<synchronous>, transform_indices = @transform_17, window_bounds = array<i64: 2, 32, 32>}, {pipeline_mode = #tpu.pipeline_mode<synchronous>, transform_indices = @transform_18, window_bounds = array<i64: 2, 32, 32>}, {pipeline_mode = #tpu.pipeline_mode<synchronous>, transform_indices = @transform_19, window_bounds = array<i64: 2, 32, 32>}, {pipeline_mode = #tpu.pipeline_mode<synchronous>, transform_indices = @transform_20, window_bounds = array<i64: 2, 32, 32>}, {pipeline_mode = #tpu.pipeline_mode<synchronous>, transform_indices = @transform_21, window_bounds = array<i64: 2, 1, 32>}, {pipeline_mode = #tpu.pipeline_mode<synchronous>, transform_indices = @transform_22, window_bounds = array<i64: 2, 1, 32>}, {pipeline_mode = #tpu.pipeline_mode<synchronous>, transform_indices = @transform_23, window_bounds = array<i64: 2, 1, 32>}, {pipeline_mode = #tpu.pipeline_mode<synchronous>, transform_indices = @transform_24, window_bounds = array<i64: 2, 32, 64>}, {pipeline_mode = #tpu.pipeline_mode<synchronous>, transform_indices = @transform_25, window_bounds = array<i64: 2, 1, 64>}, {pipeline_mode = #tpu.pipeline_mode<synchronous>, transform_indices = @transform_26, window_bounds = array<i64: 2, 64, 32>}, {pipeline_mode = #tpu.pipeline_mode<synchronous>, transform_indices = @transform_27, window_bounds = array<i64: 2, 1, 32>}, {pipeline_mode = #tpu.pipeline_mode<synchronous>, transform_indices = @transform_28, window_bounds = array<i64: 2, 1, 32>}, {pipeline_mode = #tpu.pipeline_mode<synchronous>, transform_indices = @transform_29, window_bounds = array<i64: 2, 1, 32>}, {pipeline_mode = #tpu.pipeline_mode<synchronous>, transform_indices = @transform_30, window_bounds = array<i64: 2, 32, 32>}, {pipeline_mode = #tpu.pipeline_mode<synchronous>, transform_indices = @transform_31, window_bounds = array<i64: 2, 32, 32>}, {pipeline_mode = #tpu.pipeline_mode<synchronous>, transform_indices = @transform_32, window_bounds = array<i64: 2, 32, 32>}, {pipeline_mode = #tpu.pipeline_mode<synchronous>, transform_indices = @transform_33, window_bounds = array<i64: 2, 32, 32>}, {pipeline_mode = #tpu.pipeline_mode<synchronous>, transform_indices = @transform_34, window_bounds = array<i64: 2, 1, 32>}, {pipeline_mode = #tpu.pipeline_mode<synchronous>, transform_indices = @transform_35, window_bounds = array<i64: 2, 1, 32>}, {pipeline_mode = #tpu.pipeline_mode<synchronous>, transform_indices = @transform_36, window_bounds = array<i64: 2, 1, 32>}, {pipeline_mode = #tpu.pipeline_mode<synchronous>, transform_indices = @transform_37, window_bounds = array<i64: 2, 32, 32>}, {pipeline_mode = #tpu.pipeline_mode<synchronous>, transform_indices = @transform_38, window_bounds = array<i64: 2, 32, 32>}, {pipeline_mode = #tpu.pipeline_mode<synchronous>, transform_indices = @transform_39, window_bounds = array<i64: 2, 32, 32>}, {pipeline_mode = #tpu.pipeline_mode<synchronous>, transform_indices = @transform_40, window_bounds = array<i64: 2, 32, 32>}, {pipeline_mode = #tpu.pipeline_mode<synchronous>, transform_indices = @transform_41, window_bounds = array<i64: 2, 1, 32>}, {transform_indices = @transform_42, window_bounds = array<i64: 1, 9, 32>}, {transform_indices = @transform_43, window_bounds = array<i64: 1, 17, 32>}]} {
    %c0 = arith.constant 0 : index
    %c0_0 = arith.constant 0 : index
    %c0_1 = arith.constant 0 : index
    %0 = vector.load %arg1[%c0, %c0_0, %c0_1] : memref<1x9x32xf32, #tpu.memory_space<vmem>>, vector<1x9x32xf32>
    %1 = vector.shape_cast %0 : vector<1x9x32xf32> to vector<9x32xf32>
    %c0_2 = arith.constant 0 : index
    %c0_3 = arith.constant 0 : index
    %c0_4 = arith.constant 0 : index
    %2 = vector.load %arg2[%c0_2, %c0_3, %c0_4] : memref<1x17x32xf32, #tpu.memory_space<vmem>>, vector<1x17x32xf32>
    %3 = vector.shape_cast %2 : vector<1x17x32xf32> to vector<17x32xf32>
    %c0_5 = arith.constant 0 : index
    %c0_6 = arith.constant 0 : index
    %c0_7 = arith.constant 0 : index
    %4 = vector.load %arg3[%c0_5, %c0_6, %c0_7] : memref<4x1x32xf32, #tpu.memory_space<vmem>>, vector<1x1x32xf32>
    %5 = vector.shape_cast %4 : vector<1x1x32xf32> to vector<1x32xf32>
    %c0_8 = arith.constant 0 : index
    %c0_9 = arith.constant 0 : index
    %c0_10 = arith.constant 0 : index
    %6 = vector.load %arg4[%c0_8, %c0_9, %c0_10] : memref<4x1x32xf32, #tpu.memory_space<vmem>>, vector<1x1x32xf32>
    %7 = vector.shape_cast %6 : vector<1x1x32xf32> to vector<1x32xf32>
    %cst = arith.constant dense<0.000000e+00> : vector<9xf32>
    %8 = vector.multi_reduction <add>, %1, %cst [1] : vector<9x32xf32> to vector<9xf32>
    %9 = vector.shape_cast %8 : vector<9xf32> to vector<9x1xf32>
    %cst_11 = arith.constant 3.200000e+01 : f32
    %10 = vector.broadcast %cst_11 : f32 to vector<9x1xf32>
    %11 = arith.divf %9, %10 : vector<9x1xf32>
    %12 = vector.broadcast %11 : vector<9x1xf32> to vector<9x32xf32>
    %13 = arith.subf %1, %12 : vector<9x32xf32>
    %14 = arith.mulf %13, %13 : vector<9x32xf32>
    %cst_12 = arith.constant dense<0.000000e+00> : vector<9xf32>
    %15 = vector.multi_reduction <add>, %14, %cst_12 [1] : vector<9x32xf32> to vector<9xf32>
    %16 = vector.shape_cast %15 : vector<9xf32> to vector<9x1xf32>
    %cst_13 = arith.constant 3.200000e+01 : f32
    %17 = vector.broadcast %cst_13 : f32 to vector<9x1xf32>
    %18 = arith.divf %16, %17 : vector<9x1xf32>
    %cst_14 = arith.constant 9.99999974E-6 : f32
    %19 = vector.broadcast %cst_14 : f32 to vector<9x1xf32>
    %20 = arith.addf %18, %19 : vector<9x1xf32>
    %21 = math.rsqrt %20 : vector<9x1xf32>
    %22 = vector.broadcast %21 : vector<9x1xf32> to vector<9x32xf32>
    %23 = arith.mulf %13, %22 : vector<9x32xf32>
    %24 = vector.broadcast %5 : vector<1x32xf32> to vector<9x32xf32>
    %25 = arith.mulf %23, %24 : vector<9x32xf32>
    %26 = vector.broadcast %7 : vector<1x32xf32> to vector<9x32xf32>
    %27 = arith.addf %25, %26 : vector<9x32xf32>
    %c0_15 = arith.constant 0 : index
    %c0_16 = arith.constant 0 : index
    %c0_17 = arith.constant 0 : index
    %28 = vector.load %arg5[%c0_15, %c0_16, %c0_17] : memref<4x32x32xf32, #tpu.memory_space<vmem>>, vector<1x32x32xf32>
    %29 = vector.shape_cast %28 : vector<1x32x32xf32> to vector<32x32xf32>
    %c0_18 = arith.constant 0 : index
    %c0_19 = arith.constant 0 : index
    %c0_20 = arith.constant 0 : index
    %30 = vector.load %arg6[%c0_18, %c0_19, %c0_20] : memref<4x32x32xf32, #tpu.memory_space<vmem>>, vector<1x32x32xf32>
    %31 = vector.shape_cast %30 : vector<1x32x32xf32> to vector<32x32xf32>
    %c0_21 = arith.constant 0 : index
    %c0_22 = arith.constant 0 : index
    %c0_23 = arith.constant 0 : index
    %32 = vector.load %arg7[%c0_21, %c0_22, %c0_23] : memref<4x32x32xf32, #tpu.memory_space<vmem>>, vector<1x32x32xf32>
    %33 = vector.shape_cast %32 : vector<1x32x32xf32> to vector<32x32xf32>
    %c0_24 = arith.constant 0 : index
    %c0_25 = arith.constant 0 : index
    %c0_26 = arith.constant 0 : index
    %34 = vector.load %arg8[%c0_24, %c0_25, %c0_26] : memref<4x32x32xf32, #tpu.memory_space<vmem>>, vector<1x32x32xf32>
    %35 = vector.shape_cast %34 : vector<1x32x32xf32> to vector<32x32xf32>
    %c0_27 = arith.constant 0 : index
    %c0_28 = arith.constant 0 : index
    %c0_29 = arith.constant 0 : index
    %36 = vector.load %arg9[%c0_27, %c0_28, %c0_29] : memref<4x1x32xf32, #tpu.memory_space<vmem>>, vector<1x1x32xf32>
    %37 = vector.shape_cast %36 : vector<1x1x32xf32> to vector<1x32xf32>
    %cst_30 = arith.constant dense<0.000000e+00> : vector<9x32xf32>
    %38 = tpu.matmul %27, %29, %cst_30 {dimension_numbers = #tpu.dot_dimension_numbers<[1], [0], [0], [1], [0, 0, 1, 1], [], []>} : vector<9x32xf32>, vector<32x32xf32>, vector<9x32xf32> -> vector<9x32xf32>
    %39 = tpu.transpose %27, [1, 0] : vector<9x32xf32> -> vector<32x9xf32>
    %cst_31 = arith.constant dense<0.000000e+00> : vector<32x9xf32>
    %40 = tpu.matmul %31, %39, %cst_31 {dimension_numbers = #tpu.dot_dimension_numbers<[1], [0], [0], [1], [0, 0, 1, 1], [], []>} : vector<32x32xf32>, vector<32x9xf32>, vector<32x9xf32> -> vector<32x9xf32>
    %cst_32 = arith.constant dense<0.000000e+00> : vector<9x32xf32>
    %41 = tpu.matmul %27, %33, %cst_32 {dimension_numbers = #tpu.dot_dimension_numbers<[1], [0], [0], [1], [0, 0, 1, 1], [], []>} : vector<9x32xf32>, vector<32x32xf32>, vector<9x32xf32> -> vector<9x32xf32>
    %42 = vector.extract_strided_slice %38 {offsets = [0, 0], sizes = [9, 16], strides = [1, 1]} : vector<9x32xf32> to vector<9x16xf32>
    %43 = vector.extract_strided_slice %40 {offsets = [0, 0], sizes = [16, 9], strides = [1, 1]} : vector<32x9xf32> to vector<16x9xf32>
    %cst_33 = arith.constant dense<0.000000e+00> : vector<9x9xf32>
    %44 = tpu.matmul %42, %43, %cst_33 {dimension_numbers = #tpu.dot_dimension_numbers<[1], [0], [0], [1], [0, 0, 1, 1], [], []>} : vector<9x16xf32>, vector<16x9xf32>, vector<9x9xf32> -> vector<9x9xf32>
    %cst_34 = arith.constant 2.500000e-01 : f32
    %45 = vector.broadcast %cst_34 : f32 to vector<9x9xf32>
    %46 = arith.mulf %44, %45 : vector<9x9xf32>
    %cst_35 = arith.constant dense<0xFF800000> : vector<9xf32>
    %47 = vector.multi_reduction <maximumf>, %46, %cst_35 [1] : vector<9x9xf32> to vector<9xf32>
    %48 = vector.shape_cast %47 : vector<9xf32> to vector<9x1xf32>
    %49 = vector.broadcast %48 : vector<9x1xf32> to vector<9x9xf32>
    %50 = arith.subf %46, %49 : vector<9x9xf32>
    %51 = math.exp %50 : vector<9x9xf32>
    %cst_36 = arith.constant dense<0.000000e+00> : vector<9xf32>
    %52 = vector.multi_reduction <add>, %51, %cst_36 [1] : vector<9x9xf32> to vector<9xf32>
    %53 = vector.shape_cast %52 : vector<9xf32> to vector<9x1xf32>
    %54 = vector.extract_strided_slice %41 {offsets = [0, 0], sizes = [9, 16], strides = [1, 1]} : vector<9x32xf32> to vector<9x16xf32>
    %cst_37 = arith.constant dense<0.000000e+00> : vector<9x16xf32>
    %55 = tpu.matmul %51, %54, %cst_37 {dimension_numbers = #tpu.dot_dimension_numbers<[1], [0], [0], [1], [0, 0, 1, 1], [], []>} : vector<9x9xf32>, vector<9x16xf32>, vector<9x16xf32> -> vector<9x16xf32>
    %56 = vector.broadcast %53 : vector<9x1xf32> to vector<9x16xf32>
    %57 = arith.divf %55, %56 : vector<9x16xf32>
    %58 = vector.extract_strided_slice %38 {offsets = [0, 16], sizes = [9, 16], strides = [1, 1]} : vector<9x32xf32> to vector<9x16xf32>
    %59 = vector.extract_strided_slice %40 {offsets = [16, 0], sizes = [16, 9], strides = [1, 1]} : vector<32x9xf32> to vector<16x9xf32>
    %cst_38 = arith.constant dense<0.000000e+00> : vector<9x9xf32>
    %60 = tpu.matmul %58, %59, %cst_38 {dimension_numbers = #tpu.dot_dimension_numbers<[1], [0], [0], [1], [0, 0, 1, 1], [], []>} : vector<9x16xf32>, vector<16x9xf32>, vector<9x9xf32> -> vector<9x9xf32>
    %cst_39 = arith.constant 2.500000e-01 : f32
    %61 = vector.broadcast %cst_39 : f32 to vector<9x9xf32>
    %62 = arith.mulf %60, %61 : vector<9x9xf32>
    %cst_40 = arith.constant dense<0xFF800000> : vector<9xf32>
    %63 = vector.multi_reduction <maximumf>, %62, %cst_40 [1] : vector<9x9xf32> to vector<9xf32>
    %64 = vector.shape_cast %63 : vector<9xf32> to vector<9x1xf32>
    %65 = vector.broadcast %64 : vector<9x1xf32> to vector<9x9xf32>
    %66 = arith.subf %62, %65 : vector<9x9xf32>
    %67 = math.exp %66 : vector<9x9xf32>
    %cst_41 = arith.constant dense<0.000000e+00> : vector<9xf32>
    %68 = vector.multi_reduction <add>, %67, %cst_41 [1] : vector<9x9xf32> to vector<9xf32>
    %69 = vector.shape_cast %68 : vector<9xf32> to vector<9x1xf32>
    %70 = vector.extract_strided_slice %41 {offsets = [0, 16], sizes = [9, 16], strides = [1, 1]} : vector<9x32xf32> to vector<9x16xf32>
    %cst_42 = arith.constant dense<0.000000e+00> : vector<9x16xf32>
    %71 = tpu.matmul %67, %70, %cst_42 {dimension_numbers = #tpu.dot_dimension_numbers<[1], [0], [0], [1], [0, 0, 1, 1], [], []>} : vector<9x9xf32>, vector<9x16xf32>, vector<9x16xf32> -> vector<9x16xf32>
    %72 = vector.broadcast %69 : vector<9x1xf32> to vector<9x16xf32>
    %73 = arith.divf %71, %72 : vector<9x16xf32>
    %74 = tpu.concatenate %57, %73 in 1 : vector<9x16xf32>, vector<9x16xf32> -> vector<9x32xf32>
    %cst_43 = arith.constant dense<0.000000e+00> : vector<9x32xf32>
    %75 = tpu.matmul %74, %35, %cst_43 {dimension_numbers = #tpu.dot_dimension_numbers<[1], [0], [0], [1], [0, 0, 1, 1], [], []>} : vector<9x32xf32>, vector<32x32xf32>, vector<9x32xf32> -> vector<9x32xf32>
    %76 = vector.broadcast %37 : vector<1x32xf32> to vector<9x32xf32>
    %77 = arith.addf %75, %76 : vector<9x32xf32>
    %78 = arith.addf %1, %77 : vector<9x32xf32>
    %c0_44 = arith.constant 0 : index
    %c0_45 = arith.constant 0 : index
    %c0_46 = arith.constant 0 : index
    %79 = vector.load %arg10[%c0_44, %c0_45, %c0_46] : memref<4x1x32xf32, #tpu.memory_space<vmem>>, vector<1x1x32xf32>
    %80 = vector.shape_cast %79 : vector<1x1x32xf32> to vector<1x32xf32>
    %c0_47 = arith.constant 0 : index
    %c0_48 = arith.constant 0 : index
    %c0_49 = arith.constant 0 : index
    %81 = vector.load %arg11[%c0_47, %c0_48, %c0_49] : memref<4x1x32xf32, #tpu.memory_space<vmem>>, vector<1x1x32xf32>
    %82 = vector.shape_cast %81 : vector<1x1x32xf32> to vector<1x32xf32>
    %cst_50 = arith.constant dense<0.000000e+00> : vector<9xf32>
    %83 = vector.multi_reduction <add>, %78, %cst_50 [1] : vector<9x32xf32> to vector<9xf32>
    %84 = vector.shape_cast %83 : vector<9xf32> to vector<9x1xf32>
    %cst_51 = arith.constant 3.200000e+01 : f32
    %85 = vector.broadcast %cst_51 : f32 to vector<9x1xf32>
    %86 = arith.divf %84, %85 : vector<9x1xf32>
    %87 = vector.broadcast %86 : vector<9x1xf32> to vector<9x32xf32>
    %88 = arith.subf %78, %87 : vector<9x32xf32>
    %89 = arith.mulf %88, %88 : vector<9x32xf32>
    %cst_52 = arith.constant dense<0.000000e+00> : vector<9xf32>
    %90 = vector.multi_reduction <add>, %89, %cst_52 [1] : vector<9x32xf32> to vector<9xf32>
    %91 = vector.shape_cast %90 : vector<9xf32> to vector<9x1xf32>
    %cst_53 = arith.constant 3.200000e+01 : f32
    %92 = vector.broadcast %cst_53 : f32 to vector<9x1xf32>
    %93 = arith.divf %91, %92 : vector<9x1xf32>
    %cst_54 = arith.constant 9.99999974E-6 : f32
    %94 = vector.broadcast %cst_54 : f32 to vector<9x1xf32>
    %95 = arith.addf %93, %94 : vector<9x1xf32>
    %96 = math.rsqrt %95 : vector<9x1xf32>
    %97 = vector.broadcast %96 : vector<9x1xf32> to vector<9x32xf32>
    %98 = arith.mulf %88, %97 : vector<9x32xf32>
    %99 = vector.broadcast %80 : vector<1x32xf32> to vector<9x32xf32>
    %100 = arith.mulf %98, %99 : vector<9x32xf32>
    %101 = vector.broadcast %82 : vector<1x32xf32> to vector<9x32xf32>
    %102 = arith.addf %100, %101 : vector<9x32xf32>
    %c0_55 = arith.constant 0 : index
    %c0_56 = arith.constant 0 : index
    %c0_57 = arith.constant 0 : index
    %103 = vector.load %arg12[%c0_55, %c0_56, %c0_57] : memref<4x32x64xf32, #tpu.memory_space<vmem>>, vector<1x32x64xf32>
    %104 = vector.shape_cast %103 : vector<1x32x64xf32> to vector<32x64xf32>
    %cst_58 = arith.constant dense<0.000000e+00> : vector<9x64xf32>
    %105 = tpu.matmul %102, %104, %cst_58 {dimension_numbers = #tpu.dot_dimension_numbers<[1], [0], [0], [1], [0, 0, 1, 1], [], []>} : vector<9x32xf32>, vector<32x64xf32>, vector<9x64xf32> -> vector<9x64xf32>
    %c0_59 = arith.constant 0 : index
    %c0_60 = arith.constant 0 : index
    %c0_61 = arith.constant 0 : index
    %106 = vector.load %arg13[%c0_59, %c0_60, %c0_61] : memref<4x1x64xf32, #tpu.memory_space<vmem>>, vector<1x1x64xf32>
    %107 = vector.shape_cast %106 : vector<1x1x64xf32> to vector<1x64xf32>
    %108 = vector.broadcast %107 : vector<1x64xf32> to vector<9x64xf32>
    %109 = arith.addf %105, %108 : vector<9x64xf32>
    %110 = arith.mulf %109, %109 : vector<9x64xf32>
    %111 = arith.mulf %109, %110 : vector<9x64xf32>
    %cst_62 = arith.constant 4.471500e-02 : f32
    %112 = vector.broadcast %cst_62 : f32 to vector<9x64xf32>
    %113 = arith.mulf %112, %111 : vector<9x64xf32>
    %114 = arith.addf %109, %113 : vector<9x64xf32>
    %cst_63 = arith.constant 0.797884583 : f32
    %115 = vector.broadcast %cst_63 : f32 to vector<9x64xf32>
    %116 = arith.mulf %115, %114 : vector<9x64xf32>
    %117 = math.tanh %116 : vector<9x64xf32>
    %cst_64 = arith.constant 1.000000e+00 : f32
    %118 = vector.broadcast %cst_64 : f32 to vector<9x64xf32>
    %119 = arith.addf %118, %117 : vector<9x64xf32>
    %cst_65 = arith.constant 5.000000e-01 : f32
    %120 = vector.broadcast %cst_65 : f32 to vector<9x64xf32>
    %121 = arith.mulf %120, %119 : vector<9x64xf32>
    %122 = arith.mulf %109, %121 : vector<9x64xf32>
    %c0_66 = arith.constant 0 : index
    %c0_67 = arith.constant 0 : index
    %c0_68 = arith.constant 0 : index
    %123 = vector.load %arg14[%c0_66, %c0_67, %c0_68] : memref<4x64x32xf32, #tpu.memory_space<vmem>>, vector<1x64x32xf32>
    %124 = vector.shape_cast %123 : vector<1x64x32xf32> to vector<64x32xf32>
    %cst_69 = arith.constant dense<0.000000e+00> : vector<9x32xf32>
    %125 = tpu.matmul %122, %124, %cst_69 {dimension_numbers = #tpu.dot_dimension_numbers<[1], [0], [0], [1], [0, 0, 1, 1], [], []>} : vector<9x64xf32>, vector<64x32xf32>, vector<9x32xf32> -> vector<9x32xf32>
    %126 = arith.addf %78, %125 : vector<9x32xf32>
    %c0_70 = arith.constant 0 : index
    %c0_71 = arith.constant 0 : index
    %c0_72 = arith.constant 0 : index
    %127 = vector.load %arg15[%c0_70, %c0_71, %c0_72] : memref<4x1x32xf32, #tpu.memory_space<vmem>>, vector<1x1x32xf32>
    %128 = vector.shape_cast %127 : vector<1x1x32xf32> to vector<1x32xf32>
    %129 = vector.broadcast %128 : vector<1x32xf32> to vector<9x32xf32>
    %130 = arith.addf %126, %129 : vector<9x32xf32>
    %c1 = arith.constant 1 : index
    %c0_73 = arith.constant 0 : index
    %c0_74 = arith.constant 0 : index
    %131 = vector.load %arg3[%c1, %c0_73, %c0_74] : memref<4x1x32xf32, #tpu.memory_space<vmem>>, vector<1x1x32xf32>
    %132 = vector.shape_cast %131 : vector<1x1x32xf32> to vector<1x32xf32>
    %c1_75 = arith.constant 1 : index
    %c0_76 = arith.constant 0 : index
    %c0_77 = arith.constant 0 : index
    %133 = vector.load %arg4[%c1_75, %c0_76, %c0_77] : memref<4x1x32xf32, #tpu.memory_space<vmem>>, vector<1x1x32xf32>
    %134 = vector.shape_cast %133 : vector<1x1x32xf32> to vector<1x32xf32>
    %cst_78 = arith.constant dense<0.000000e+00> : vector<9xf32>
    %135 = vector.multi_reduction <add>, %130, %cst_78 [1] : vector<9x32xf32> to vector<9xf32>
    %136 = vector.shape_cast %135 : vector<9xf32> to vector<9x1xf32>
    %cst_79 = arith.constant 3.200000e+01 : f32
    %137 = vector.broadcast %cst_79 : f32 to vector<9x1xf32>
    %138 = arith.divf %136, %137 : vector<9x1xf32>
    %139 = vector.broadcast %138 : vector<9x1xf32> to vector<9x32xf32>
    %140 = arith.subf %130, %139 : vector<9x32xf32>
    %141 = arith.mulf %140, %140 : vector<9x32xf32>
    %cst_80 = arith.constant dense<0.000000e+00> : vector<9xf32>
    %142 = vector.multi_reduction <add>, %141, %cst_80 [1] : vector<9x32xf32> to vector<9xf32>
    %143 = vector.shape_cast %142 : vector<9xf32> to vector<9x1xf32>
    %cst_81 = arith.constant 3.200000e+01 : f32
    %144 = vector.broadcast %cst_81 : f32 to vector<9x1xf32>
    %145 = arith.divf %143, %144 : vector<9x1xf32>
    %cst_82 = arith.constant 9.99999974E-6 : f32
    %146 = vector.broadcast %cst_82 : f32 to vector<9x1xf32>
    %147 = arith.addf %145, %146 : vector<9x1xf32>
    %148 = math.rsqrt %147 : vector<9x1xf32>
    %149 = vector.broadcast %148 : vector<9x1xf32> to vector<9x32xf32>
    %150 = arith.mulf %140, %149 : vector<9x32xf32>
    %151 = vector.broadcast %132 : vector<1x32xf32> to vector<9x32xf32>
    %152 = arith.mulf %150, %151 : vector<9x32xf32>
    %153 = vector.broadcast %134 : vector<1x32xf32> to vector<9x32xf32>
    %154 = arith.addf %152, %153 : vector<9x32xf32>
    %c1_83 = arith.constant 1 : index
    %c0_84 = arith.constant 0 : index
    %c0_85 = arith.constant 0 : index
    %155 = vector.load %arg5[%c1_83, %c0_84, %c0_85] : memref<4x32x32xf32, #tpu.memory_space<vmem>>, vector<1x32x32xf32>
    %156 = vector.shape_cast %155 : vector<1x32x32xf32> to vector<32x32xf32>
    %c1_86 = arith.constant 1 : index
    %c0_87 = arith.constant 0 : index
    %c0_88 = arith.constant 0 : index
    %157 = vector.load %arg6[%c1_86, %c0_87, %c0_88] : memref<4x32x32xf32, #tpu.memory_space<vmem>>, vector<1x32x32xf32>
    %158 = vector.shape_cast %157 : vector<1x32x32xf32> to vector<32x32xf32>
    %c1_89 = arith.constant 1 : index
    %c0_90 = arith.constant 0 : index
    %c0_91 = arith.constant 0 : index
    %159 = vector.load %arg7[%c1_89, %c0_90, %c0_91] : memref<4x32x32xf32, #tpu.memory_space<vmem>>, vector<1x32x32xf32>
    %160 = vector.shape_cast %159 : vector<1x32x32xf32> to vector<32x32xf32>
    %c1_92 = arith.constant 1 : index
    %c0_93 = arith.constant 0 : index
    %c0_94 = arith.constant 0 : index
    %161 = vector.load %arg8[%c1_92, %c0_93, %c0_94] : memref<4x32x32xf32, #tpu.memory_space<vmem>>, vector<1x32x32xf32>
    %162 = vector.shape_cast %161 : vector<1x32x32xf32> to vector<32x32xf32>
    %c1_95 = arith.constant 1 : index
    %c0_96 = arith.constant 0 : index
    %c0_97 = arith.constant 0 : index
    %163 = vector.load %arg9[%c1_95, %c0_96, %c0_97] : memref<4x1x32xf32, #tpu.memory_space<vmem>>, vector<1x1x32xf32>
    %164 = vector.shape_cast %163 : vector<1x1x32xf32> to vector<1x32xf32>
    %cst_98 = arith.constant dense<0.000000e+00> : vector<9x32xf32>
    %165 = tpu.matmul %154, %156, %cst_98 {dimension_numbers = #tpu.dot_dimension_numbers<[1], [0], [0], [1], [0, 0, 1, 1], [], []>} : vector<9x32xf32>, vector<32x32xf32>, vector<9x32xf32> -> vector<9x32xf32>
    %166 = tpu.transpose %154, [1, 0] : vector<9x32xf32> -> vector<32x9xf32>
    %cst_99 = arith.constant dense<0.000000e+00> : vector<32x9xf32>
    %167 = tpu.matmul %158, %166, %cst_99 {dimension_numbers = #tpu.dot_dimension_numbers<[1], [0], [0], [1], [0, 0, 1, 1], [], []>} : vector<32x32xf32>, vector<32x9xf32>, vector<32x9xf32> -> vector<32x9xf32>
    %cst_100 = arith.constant dense<0.000000e+00> : vector<9x32xf32>
    %168 = tpu.matmul %154, %160, %cst_100 {dimension_numbers = #tpu.dot_dimension_numbers<[1], [0], [0], [1], [0, 0, 1, 1], [], []>} : vector<9x32xf32>, vector<32x32xf32>, vector<9x32xf32> -> vector<9x32xf32>
    %169 = vector.extract_strided_slice %165 {offsets = [0, 0], sizes = [9, 16], strides = [1, 1]} : vector<9x32xf32> to vector<9x16xf32>
    %170 = vector.extract_strided_slice %167 {offsets = [0, 0], sizes = [16, 9], strides = [1, 1]} : vector<32x9xf32> to vector<16x9xf32>
    %cst_101 = arith.constant dense<0.000000e+00> : vector<9x9xf32>
    %171 = tpu.matmul %169, %170, %cst_101 {dimension_numbers = #tpu.dot_dimension_numbers<[1], [0], [0], [1], [0, 0, 1, 1], [], []>} : vector<9x16xf32>, vector<16x9xf32>, vector<9x9xf32> -> vector<9x9xf32>
    %cst_102 = arith.constant 2.500000e-01 : f32
    %172 = vector.broadcast %cst_102 : f32 to vector<9x9xf32>
    %173 = arith.mulf %171, %172 : vector<9x9xf32>
    %cst_103 = arith.constant dense<0xFF800000> : vector<9xf32>
    %174 = vector.multi_reduction <maximumf>, %173, %cst_103 [1] : vector<9x9xf32> to vector<9xf32>
    %175 = vector.shape_cast %174 : vector<9xf32> to vector<9x1xf32>
    %176 = vector.broadcast %175 : vector<9x1xf32> to vector<9x9xf32>
    %177 = arith.subf %173, %176 : vector<9x9xf32>
    %178 = math.exp %177 : vector<9x9xf32>
    %cst_104 = arith.constant dense<0.000000e+00> : vector<9xf32>
    %179 = vector.multi_reduction <add>, %178, %cst_104 [1] : vector<9x9xf32> to vector<9xf32>
    %180 = vector.shape_cast %179 : vector<9xf32> to vector<9x1xf32>
    %181 = vector.extract_strided_slice %168 {offsets = [0, 0], sizes = [9, 16], strides = [1, 1]} : vector<9x32xf32> to vector<9x16xf32>
    %cst_105 = arith.constant dense<0.000000e+00> : vector<9x16xf32>
    %182 = tpu.matmul %178, %181, %cst_105 {dimension_numbers = #tpu.dot_dimension_numbers<[1], [0], [0], [1], [0, 0, 1, 1], [], []>} : vector<9x9xf32>, vector<9x16xf32>, vector<9x16xf32> -> vector<9x16xf32>
    %183 = vector.broadcast %180 : vector<9x1xf32> to vector<9x16xf32>
    %184 = arith.divf %182, %183 : vector<9x16xf32>
    %185 = vector.extract_strided_slice %165 {offsets = [0, 16], sizes = [9, 16], strides = [1, 1]} : vector<9x32xf32> to vector<9x16xf32>
    %186 = vector.extract_strided_slice %167 {offsets = [16, 0], sizes = [16, 9], strides = [1, 1]} : vector<32x9xf32> to vector<16x9xf32>
    %cst_106 = arith.constant dense<0.000000e+00> : vector<9x9xf32>
    %187 = tpu.matmul %185, %186, %cst_106 {dimension_numbers = #tpu.dot_dimension_numbers<[1], [0], [0], [1], [0, 0, 1, 1], [], []>} : vector<9x16xf32>, vector<16x9xf32>, vector<9x9xf32> -> vector<9x9xf32>
    %cst_107 = arith.constant 2.500000e-01 : f32
    %188 = vector.broadcast %cst_107 : f32 to vector<9x9xf32>
    %189 = arith.mulf %187, %188 : vector<9x9xf32>
    %cst_108 = arith.constant dense<0xFF800000> : vector<9xf32>
    %190 = vector.multi_reduction <maximumf>, %189, %cst_108 [1] : vector<9x9xf32> to vector<9xf32>
    %191 = vector.shape_cast %190 : vector<9xf32> to vector<9x1xf32>
    %192 = vector.broadcast %191 : vector<9x1xf32> to vector<9x9xf32>
    %193 = arith.subf %189, %192 : vector<9x9xf32>
    %194 = math.exp %193 : vector<9x9xf32>
    %cst_109 = arith.constant dense<0.000000e+00> : vector<9xf32>
    %195 = vector.multi_reduction <add>, %194, %cst_109 [1] : vector<9x9xf32> to vector<9xf32>
    %196 = vector.shape_cast %195 : vector<9xf32> to vector<9x1xf32>
    %197 = vector.extract_strided_slice %168 {offsets = [0, 16], sizes = [9, 16], strides = [1, 1]} : vector<9x32xf32> to vector<9x16xf32>
    %cst_110 = arith.constant dense<0.000000e+00> : vector<9x16xf32>
    %198 = tpu.matmul %194, %197, %cst_110 {dimension_numbers = #tpu.dot_dimension_numbers<[1], [0], [0], [1], [0, 0, 1, 1], [], []>} : vector<9x9xf32>, vector<9x16xf32>, vector<9x16xf32> -> vector<9x16xf32>
    %199 = vector.broadcast %196 : vector<9x1xf32> to vector<9x16xf32>
    %200 = arith.divf %198, %199 : vector<9x16xf32>
    %201 = tpu.concatenate %184, %200 in 1 : vector<9x16xf32>, vector<9x16xf32> -> vector<9x32xf32>
    %cst_111 = arith.constant dense<0.000000e+00> : vector<9x32xf32>
    %202 = tpu.matmul %201, %162, %cst_111 {dimension_numbers = #tpu.dot_dimension_numbers<[1], [0], [0], [1], [0, 0, 1, 1], [], []>} : vector<9x32xf32>, vector<32x32xf32>, vector<9x32xf32> -> vector<9x32xf32>
    %203 = vector.broadcast %164 : vector<1x32xf32> to vector<9x32xf32>
    %204 = arith.addf %202, %203 : vector<9x32xf32>
    %205 = arith.addf %130, %204 : vector<9x32xf32>
    %c1_112 = arith.constant 1 : index
    %c0_113 = arith.constant 0 : index
    %c0_114 = arith.constant 0 : index
    %206 = vector.load %arg10[%c1_112, %c0_113, %c0_114] : memref<4x1x32xf32, #tpu.memory_space<vmem>>, vector<1x1x32xf32>
    %207 = vector.shape_cast %206 : vector<1x1x32xf32> to vector<1x32xf32>
    %c1_115 = arith.constant 1 : index
    %c0_116 = arith.constant 0 : index
    %c0_117 = arith.constant 0 : index
    %208 = vector.load %arg11[%c1_115, %c0_116, %c0_117] : memref<4x1x32xf32, #tpu.memory_space<vmem>>, vector<1x1x32xf32>
    %209 = vector.shape_cast %208 : vector<1x1x32xf32> to vector<1x32xf32>
    %cst_118 = arith.constant dense<0.000000e+00> : vector<9xf32>
    %210 = vector.multi_reduction <add>, %205, %cst_118 [1] : vector<9x32xf32> to vector<9xf32>
    %211 = vector.shape_cast %210 : vector<9xf32> to vector<9x1xf32>
    %cst_119 = arith.constant 3.200000e+01 : f32
    %212 = vector.broadcast %cst_119 : f32 to vector<9x1xf32>
    %213 = arith.divf %211, %212 : vector<9x1xf32>
    %214 = vector.broadcast %213 : vector<9x1xf32> to vector<9x32xf32>
    %215 = arith.subf %205, %214 : vector<9x32xf32>
    %216 = arith.mulf %215, %215 : vector<9x32xf32>
    %cst_120 = arith.constant dense<0.000000e+00> : vector<9xf32>
    %217 = vector.multi_reduction <add>, %216, %cst_120 [1] : vector<9x32xf32> to vector<9xf32>
    %218 = vector.shape_cast %217 : vector<9xf32> to vector<9x1xf32>
    %cst_121 = arith.constant 3.200000e+01 : f32
    %219 = vector.broadcast %cst_121 : f32 to vector<9x1xf32>
    %220 = arith.divf %218, %219 : vector<9x1xf32>
    %cst_122 = arith.constant 9.99999974E-6 : f32
    %221 = vector.broadcast %cst_122 : f32 to vector<9x1xf32>
    %222 = arith.addf %220, %221 : vector<9x1xf32>
    %223 = math.rsqrt %222 : vector<9x1xf32>
    %224 = vector.broadcast %223 : vector<9x1xf32> to vector<9x32xf32>
    %225 = arith.mulf %215, %224 : vector<9x32xf32>
    %226 = vector.broadcast %207 : vector<1x32xf32> to vector<9x32xf32>
    %227 = arith.mulf %225, %226 : vector<9x32xf32>
    %228 = vector.broadcast %209 : vector<1x32xf32> to vector<9x32xf32>
    %229 = arith.addf %227, %228 : vector<9x32xf32>
    %c1_123 = arith.constant 1 : index
    %c0_124 = arith.constant 0 : index
    %c0_125 = arith.constant 0 : index
    %230 = vector.load %arg12[%c1_123, %c0_124, %c0_125] : memref<4x32x64xf32, #tpu.memory_space<vmem>>, vector<1x32x64xf32>
    %231 = vector.shape_cast %230 : vector<1x32x64xf32> to vector<32x64xf32>
    %cst_126 = arith.constant dense<0.000000e+00> : vector<9x64xf32>
    %232 = tpu.matmul %229, %231, %cst_126 {dimension_numbers = #tpu.dot_dimension_numbers<[1], [0], [0], [1], [0, 0, 1, 1], [], []>} : vector<9x32xf32>, vector<32x64xf32>, vector<9x64xf32> -> vector<9x64xf32>
    %c1_127 = arith.constant 1 : index
    %c0_128 = arith.constant 0 : index
    %c0_129 = arith.constant 0 : index
    %233 = vector.load %arg13[%c1_127, %c0_128, %c0_129] : memref<4x1x64xf32, #tpu.memory_space<vmem>>, vector<1x1x64xf32>
    %234 = vector.shape_cast %233 : vector<1x1x64xf32> to vector<1x64xf32>
    %235 = vector.broadcast %234 : vector<1x64xf32> to vector<9x64xf32>
    %236 = arith.addf %232, %235 : vector<9x64xf32>
    %237 = arith.mulf %236, %236 : vector<9x64xf32>
    %238 = arith.mulf %236, %237 : vector<9x64xf32>
    %cst_130 = arith.constant 4.471500e-02 : f32
    %239 = vector.broadcast %cst_130 : f32 to vector<9x64xf32>
    %240 = arith.mulf %239, %238 : vector<9x64xf32>
    %241 = arith.addf %236, %240 : vector<9x64xf32>
    %cst_131 = arith.constant 0.797884583 : f32
    %242 = vector.broadcast %cst_131 : f32 to vector<9x64xf32>
    %243 = arith.mulf %242, %241 : vector<9x64xf32>
    %244 = math.tanh %243 : vector<9x64xf32>
    %cst_132 = arith.constant 1.000000e+00 : f32
    %245 = vector.broadcast %cst_132 : f32 to vector<9x64xf32>
    %246 = arith.addf %245, %244 : vector<9x64xf32>
    %cst_133 = arith.constant 5.000000e-01 : f32
    %247 = vector.broadcast %cst_133 : f32 to vector<9x64xf32>
    %248 = arith.mulf %247, %246 : vector<9x64xf32>
    %249 = arith.mulf %236, %248 : vector<9x64xf32>
    %c1_134 = arith.constant 1 : index
    %c0_135 = arith.constant 0 : index
    %c0_136 = arith.constant 0 : index
    %250 = vector.load %arg14[%c1_134, %c0_135, %c0_136] : memref<4x64x32xf32, #tpu.memory_space<vmem>>, vector<1x64x32xf32>
    %251 = vector.shape_cast %250 : vector<1x64x32xf32> to vector<64x32xf32>
    %cst_137 = arith.constant dense<0.000000e+00> : vector<9x32xf32>
    %252 = tpu.matmul %249, %251, %cst_137 {dimension_numbers = #tpu.dot_dimension_numbers<[1], [0], [0], [1], [0, 0, 1, 1], [], []>} : vector<9x64xf32>, vector<64x32xf32>, vector<9x32xf32> -> vector<9x32xf32>
    %253 = arith.addf %205, %252 : vector<9x32xf32>
    %c1_138 = arith.constant 1 : index
    %c0_139 = arith.constant 0 : index
    %c0_140 = arith.constant 0 : index
    %254 = vector.load %arg15[%c1_138, %c0_139, %c0_140] : memref<4x1x32xf32, #tpu.memory_space<vmem>>, vector<1x1x32xf32>
    %255 = vector.shape_cast %254 : vector<1x1x32xf32> to vector<1x32xf32>
    %256 = vector.broadcast %255 : vector<1x32xf32> to vector<9x32xf32>
    %257 = arith.addf %253, %256 : vector<9x32xf32>
    %c0_141 = arith.constant 0 : index
    %c0_142 = arith.constant 0 : index
    %c0_143 = arith.constant 0 : index
    %258 = vector.load %arg16[%c0_141, %c0_142, %c0_143] : memref<2x1x32xf32, #tpu.memory_space<vmem>>, vector<1x1x32xf32>
    %259 = vector.shape_cast %258 : vector<1x1x32xf32> to vector<1x32xf32>
    %c0_144 = arith.constant 0 : index
    %c0_145 = arith.constant 0 : index
    %c0_146 = arith.constant 0 : index
    %260 = vector.load %arg17[%c0_144, %c0_145, %c0_146] : memref<2x1x32xf32, #tpu.memory_space<vmem>>, vector<1x1x32xf32>
    %261 = vector.shape_cast %260 : vector<1x1x32xf32> to vector<1x32xf32>
    %cst_147 = arith.constant dense<0.000000e+00> : vector<17xf32>
    %262 = vector.multi_reduction <add>, %3, %cst_147 [1] : vector<17x32xf32> to vector<17xf32>
    %263 = vector.shape_cast %262 : vector<17xf32> to vector<17x1xf32>
    %cst_148 = arith.constant 3.200000e+01 : f32
    %264 = vector.broadcast %cst_148 : f32 to vector<17x1xf32>
    %265 = arith.divf %263, %264 : vector<17x1xf32>
    %266 = vector.broadcast %265 : vector<17x1xf32> to vector<17x32xf32>
    %267 = arith.subf %3, %266 : vector<17x32xf32>
    %268 = arith.mulf %267, %267 : vector<17x32xf32>
    %cst_149 = arith.constant dense<0.000000e+00> : vector<17xf32>
    %269 = vector.multi_reduction <add>, %268, %cst_149 [1] : vector<17x32xf32> to vector<17xf32>
    %270 = vector.shape_cast %269 : vector<17xf32> to vector<17x1xf32>
    %cst_150 = arith.constant 3.200000e+01 : f32
    %271 = vector.broadcast %cst_150 : f32 to vector<17x1xf32>
    %272 = arith.divf %270, %271 : vector<17x1xf32>
    %cst_151 = arith.constant 9.99999974E-6 : f32
    %273 = vector.broadcast %cst_151 : f32 to vector<17x1xf32>
    %274 = arith.addf %272, %273 : vector<17x1xf32>
    %275 = math.rsqrt %274 : vector<17x1xf32>
    %276 = vector.broadcast %275 : vector<17x1xf32> to vector<17x32xf32>
    %277 = arith.mulf %267, %276 : vector<17x32xf32>
    %278 = vector.broadcast %259 : vector<1x32xf32> to vector<17x32xf32>
    %279 = arith.mulf %277, %278 : vector<17x32xf32>
    %280 = vector.broadcast %261 : vector<1x32xf32> to vector<17x32xf32>
    %281 = arith.addf %279, %280 : vector<17x32xf32>
    %c0_152 = arith.constant 0 : index
    %c0_153 = arith.constant 0 : index
    %c0_154 = arith.constant 0 : index
    %282 = vector.load %arg18[%c0_152, %c0_153, %c0_154] : memref<2x32x32xf32, #tpu.memory_space<vmem>>, vector<1x32x32xf32>
    %283 = vector.shape_cast %282 : vector<1x32x32xf32> to vector<32x32xf32>
    %c0_155 = arith.constant 0 : index
    %c0_156 = arith.constant 0 : index
    %c0_157 = arith.constant 0 : index
    %284 = vector.load %arg19[%c0_155, %c0_156, %c0_157] : memref<2x32x32xf32, #tpu.memory_space<vmem>>, vector<1x32x32xf32>
    %285 = vector.shape_cast %284 : vector<1x32x32xf32> to vector<32x32xf32>
    %c0_158 = arith.constant 0 : index
    %c0_159 = arith.constant 0 : index
    %c0_160 = arith.constant 0 : index
    %286 = vector.load %arg20[%c0_158, %c0_159, %c0_160] : memref<2x32x32xf32, #tpu.memory_space<vmem>>, vector<1x32x32xf32>
    %287 = vector.shape_cast %286 : vector<1x32x32xf32> to vector<32x32xf32>
    %c0_161 = arith.constant 0 : index
    %c0_162 = arith.constant 0 : index
    %c0_163 = arith.constant 0 : index
    %288 = vector.load %arg21[%c0_161, %c0_162, %c0_163] : memref<2x32x32xf32, #tpu.memory_space<vmem>>, vector<1x32x32xf32>
    %289 = vector.shape_cast %288 : vector<1x32x32xf32> to vector<32x32xf32>
    %c0_164 = arith.constant 0 : index
    %c0_165 = arith.constant 0 : index
    %c0_166 = arith.constant 0 : index
    %290 = vector.load %arg22[%c0_164, %c0_165, %c0_166] : memref<2x1x32xf32, #tpu.memory_space<vmem>>, vector<1x1x32xf32>
    %291 = vector.shape_cast %290 : vector<1x1x32xf32> to vector<1x32xf32>
    %cst_167 = arith.constant dense<0.000000e+00> : vector<17x32xf32>
    %292 = tpu.matmul %281, %283, %cst_167 {dimension_numbers = #tpu.dot_dimension_numbers<[1], [0], [0], [1], [0, 0, 1, 1], [], []>} : vector<17x32xf32>, vector<32x32xf32>, vector<17x32xf32> -> vector<17x32xf32>
    %293 = tpu.transpose %281, [1, 0] : vector<17x32xf32> -> vector<32x17xf32>
    %cst_168 = arith.constant dense<0.000000e+00> : vector<32x17xf32>
    %294 = tpu.matmul %285, %293, %cst_168 {dimension_numbers = #tpu.dot_dimension_numbers<[1], [0], [0], [1], [0, 0, 1, 1], [], []>} : vector<32x32xf32>, vector<32x17xf32>, vector<32x17xf32> -> vector<32x17xf32>
    %cst_169 = arith.constant dense<0.000000e+00> : vector<17x32xf32>
    %295 = tpu.matmul %281, %287, %cst_169 {dimension_numbers = #tpu.dot_dimension_numbers<[1], [0], [0], [1], [0, 0, 1, 1], [], []>} : vector<17x32xf32>, vector<32x32xf32>, vector<17x32xf32> -> vector<17x32xf32>
    %296 = vector.extract_strided_slice %292 {offsets = [0, 0], sizes = [17, 16], strides = [1, 1]} : vector<17x32xf32> to vector<17x16xf32>
    %297 = vector.extract_strided_slice %294 {offsets = [0, 0], sizes = [16, 17], strides = [1, 1]} : vector<32x17xf32> to vector<16x17xf32>
    %cst_170 = arith.constant dense<0.000000e+00> : vector<17x17xf32>
    %298 = tpu.matmul %296, %297, %cst_170 {dimension_numbers = #tpu.dot_dimension_numbers<[1], [0], [0], [1], [0, 0, 1, 1], [], []>} : vector<17x16xf32>, vector<16x17xf32>, vector<17x17xf32> -> vector<17x17xf32>
    %cst_171 = arith.constant 2.500000e-01 : f32
    %299 = vector.broadcast %cst_171 : f32 to vector<17x17xf32>
    %300 = arith.mulf %298, %299 : vector<17x17xf32>
    %cst_172 = arith.constant dense<0xFF800000> : vector<17xf32>
    %301 = vector.multi_reduction <maximumf>, %300, %cst_172 [1] : vector<17x17xf32> to vector<17xf32>
    %302 = vector.shape_cast %301 : vector<17xf32> to vector<17x1xf32>
    %303 = vector.broadcast %302 : vector<17x1xf32> to vector<17x17xf32>
    %304 = arith.subf %300, %303 : vector<17x17xf32>
    %305 = math.exp %304 : vector<17x17xf32>
    %cst_173 = arith.constant dense<0.000000e+00> : vector<17xf32>
    %306 = vector.multi_reduction <add>, %305, %cst_173 [1] : vector<17x17xf32> to vector<17xf32>
    %307 = vector.shape_cast %306 : vector<17xf32> to vector<17x1xf32>
    %308 = vector.extract_strided_slice %295 {offsets = [0, 0], sizes = [17, 16], strides = [1, 1]} : vector<17x32xf32> to vector<17x16xf32>
    %cst_174 = arith.constant dense<0.000000e+00> : vector<17x16xf32>
    %309 = tpu.matmul %305, %308, %cst_174 {dimension_numbers = #tpu.dot_dimension_numbers<[1], [0], [0], [1], [0, 0, 1, 1], [], []>} : vector<17x17xf32>, vector<17x16xf32>, vector<17x16xf32> -> vector<17x16xf32>
    %310 = vector.broadcast %307 : vector<17x1xf32> to vector<17x16xf32>
    %311 = arith.divf %309, %310 : vector<17x16xf32>
    %312 = vector.extract_strided_slice %292 {offsets = [0, 16], sizes = [17, 16], strides = [1, 1]} : vector<17x32xf32> to vector<17x16xf32>
    %313 = vector.extract_strided_slice %294 {offsets = [16, 0], sizes = [16, 17], strides = [1, 1]} : vector<32x17xf32> to vector<16x17xf32>
    %cst_175 = arith.constant dense<0.000000e+00> : vector<17x17xf32>
    %314 = tpu.matmul %312, %313, %cst_175 {dimension_numbers = #tpu.dot_dimension_numbers<[1], [0], [0], [1], [0, 0, 1, 1], [], []>} : vector<17x16xf32>, vector<16x17xf32>, vector<17x17xf32> -> vector<17x17xf32>
    %cst_176 = arith.constant 2.500000e-01 : f32
    %315 = vector.broadcast %cst_176 : f32 to vector<17x17xf32>
    %316 = arith.mulf %314, %315 : vector<17x17xf32>
    %cst_177 = arith.constant dense<0xFF800000> : vector<17xf32>
    %317 = vector.multi_reduction <maximumf>, %316, %cst_177 [1] : vector<17x17xf32> to vector<17xf32>
    %318 = vector.shape_cast %317 : vector<17xf32> to vector<17x1xf32>
    %319 = vector.broadcast %318 : vector<17x1xf32> to vector<17x17xf32>
    %320 = arith.subf %316, %319 : vector<17x17xf32>
    %321 = math.exp %320 : vector<17x17xf32>
    %cst_178 = arith.constant dense<0.000000e+00> : vector<17xf32>
    %322 = vector.multi_reduction <add>, %321, %cst_178 [1] : vector<17x17xf32> to vector<17xf32>
    %323 = vector.shape_cast %322 : vector<17xf32> to vector<17x1xf32>
    %324 = vector.extract_strided_slice %295 {offsets = [0, 16], sizes = [17, 16], strides = [1, 1]} : vector<17x32xf32> to vector<17x16xf32>
    %cst_179 = arith.constant dense<0.000000e+00> : vector<17x16xf32>
    %325 = tpu.matmul %321, %324, %cst_179 {dimension_numbers = #tpu.dot_dimension_numbers<[1], [0], [0], [1], [0, 0, 1, 1], [], []>} : vector<17x17xf32>, vector<17x16xf32>, vector<17x16xf32> -> vector<17x16xf32>
    %326 = vector.broadcast %323 : vector<17x1xf32> to vector<17x16xf32>
    %327 = arith.divf %325, %326 : vector<17x16xf32>
    %328 = tpu.concatenate %311, %327 in 1 : vector<17x16xf32>, vector<17x16xf32> -> vector<17x32xf32>
    %cst_180 = arith.constant dense<0.000000e+00> : vector<17x32xf32>
    %329 = tpu.matmul %328, %289, %cst_180 {dimension_numbers = #tpu.dot_dimension_numbers<[1], [0], [0], [1], [0, 0, 1, 1], [], []>} : vector<17x32xf32>, vector<32x32xf32>, vector<17x32xf32> -> vector<17x32xf32>
    %330 = vector.broadcast %291 : vector<1x32xf32> to vector<17x32xf32>
    %331 = arith.addf %329, %330 : vector<17x32xf32>
    %332 = arith.addf %3, %331 : vector<17x32xf32>
    %c0_181 = arith.constant 0 : index
    %c0_182 = arith.constant 0 : index
    %c0_183 = arith.constant 0 : index
    %333 = vector.load %arg23[%c0_181, %c0_182, %c0_183] : memref<2x1x32xf32, #tpu.memory_space<vmem>>, vector<1x1x32xf32>
    %334 = vector.shape_cast %333 : vector<1x1x32xf32> to vector<1x32xf32>
    %c0_184 = arith.constant 0 : index
    %c0_185 = arith.constant 0 : index
    %c0_186 = arith.constant 0 : index
    %335 = vector.load %arg24[%c0_184, %c0_185, %c0_186] : memref<2x1x32xf32, #tpu.memory_space<vmem>>, vector<1x1x32xf32>
    %336 = vector.shape_cast %335 : vector<1x1x32xf32> to vector<1x32xf32>
    %cst_187 = arith.constant dense<0.000000e+00> : vector<17xf32>
    %337 = vector.multi_reduction <add>, %332, %cst_187 [1] : vector<17x32xf32> to vector<17xf32>
    %338 = vector.shape_cast %337 : vector<17xf32> to vector<17x1xf32>
    %cst_188 = arith.constant 3.200000e+01 : f32
    %339 = vector.broadcast %cst_188 : f32 to vector<17x1xf32>
    %340 = arith.divf %338, %339 : vector<17x1xf32>
    %341 = vector.broadcast %340 : vector<17x1xf32> to vector<17x32xf32>
    %342 = arith.subf %332, %341 : vector<17x32xf32>
    %343 = arith.mulf %342, %342 : vector<17x32xf32>
    %cst_189 = arith.constant dense<0.000000e+00> : vector<17xf32>
    %344 = vector.multi_reduction <add>, %343, %cst_189 [1] : vector<17x32xf32> to vector<17xf32>
    %345 = vector.shape_cast %344 : vector<17xf32> to vector<17x1xf32>
    %cst_190 = arith.constant 3.200000e+01 : f32
    %346 = vector.broadcast %cst_190 : f32 to vector<17x1xf32>
    %347 = arith.divf %345, %346 : vector<17x1xf32>
    %cst_191 = arith.constant 9.99999974E-6 : f32
    %348 = vector.broadcast %cst_191 : f32 to vector<17x1xf32>
    %349 = arith.addf %347, %348 : vector<17x1xf32>
    %350 = math.rsqrt %349 : vector<17x1xf32>
    %351 = vector.broadcast %350 : vector<17x1xf32> to vector<17x32xf32>
    %352 = arith.mulf %342, %351 : vector<17x32xf32>
    %353 = vector.broadcast %334 : vector<1x32xf32> to vector<17x32xf32>
    %354 = arith.mulf %352, %353 : vector<17x32xf32>
    %355 = vector.broadcast %336 : vector<1x32xf32> to vector<17x32xf32>
    %356 = arith.addf %354, %355 : vector<17x32xf32>
    %c0_192 = arith.constant 0 : index
    %c0_193 = arith.constant 0 : index
    %c0_194 = arith.constant 0 : index
    %357 = vector.load %arg25[%c0_192, %c0_193, %c0_194] : memref<2x32x64xf32, #tpu.memory_space<vmem>>, vector<1x32x64xf32>
    %358 = vector.shape_cast %357 : vector<1x32x64xf32> to vector<32x64xf32>
    %cst_195 = arith.constant dense<0.000000e+00> : vector<17x64xf32>
    %359 = tpu.matmul %356, %358, %cst_195 {dimension_numbers = #tpu.dot_dimension_numbers<[1], [0], [0], [1], [0, 0, 1, 1], [], []>} : vector<17x32xf32>, vector<32x64xf32>, vector<17x64xf32> -> vector<17x64xf32>
    %c0_196 = arith.constant 0 : index
    %c0_197 = arith.constant 0 : index
    %c0_198 = arith.constant 0 : index
    %360 = vector.load %arg26[%c0_196, %c0_197, %c0_198] : memref<2x1x64xf32, #tpu.memory_space<vmem>>, vector<1x1x64xf32>
    %361 = vector.shape_cast %360 : vector<1x1x64xf32> to vector<1x64xf32>
    %362 = vector.broadcast %361 : vector<1x64xf32> to vector<17x64xf32>
    %363 = arith.addf %359, %362 : vector<17x64xf32>
    %364 = arith.mulf %363, %363 : vector<17x64xf32>
    %365 = arith.mulf %363, %364 : vector<17x64xf32>
    %cst_199 = arith.constant 4.471500e-02 : f32
    %366 = vector.broadcast %cst_199 : f32 to vector<17x64xf32>
    %367 = arith.mulf %366, %365 : vector<17x64xf32>
    %368 = arith.addf %363, %367 : vector<17x64xf32>
    %cst_200 = arith.constant 0.797884583 : f32
    %369 = vector.broadcast %cst_200 : f32 to vector<17x64xf32>
    %370 = arith.mulf %369, %368 : vector<17x64xf32>
    %371 = math.tanh %370 : vector<17x64xf32>
    %cst_201 = arith.constant 1.000000e+00 : f32
    %372 = vector.broadcast %cst_201 : f32 to vector<17x64xf32>
    %373 = arith.addf %372, %371 : vector<17x64xf32>
    %cst_202 = arith.constant 5.000000e-01 : f32
    %374 = vector.broadcast %cst_202 : f32 to vector<17x64xf32>
    %375 = arith.mulf %374, %373 : vector<17x64xf32>
    %376 = arith.mulf %363, %375 : vector<17x64xf32>
    %c0_203 = arith.constant 0 : index
    %c0_204 = arith.constant 0 : index
    %c0_205 = arith.constant 0 : index
    %377 = vector.load %arg27[%c0_203, %c0_204, %c0_205] : memref<2x64x32xf32, #tpu.memory_space<vmem>>, vector<1x64x32xf32>
    %378 = vector.shape_cast %377 : vector<1x64x32xf32> to vector<64x32xf32>
    %cst_206 = arith.constant dense<0.000000e+00> : vector<17x32xf32>
    %379 = tpu.matmul %376, %378, %cst_206 {dimension_numbers = #tpu.dot_dimension_numbers<[1], [0], [0], [1], [0, 0, 1, 1], [], []>} : vector<17x64xf32>, vector<64x32xf32>, vector<17x32xf32> -> vector<17x32xf32>
    %380 = arith.addf %332, %379 : vector<17x32xf32>
    %c0_207 = arith.constant 0 : index
    %c0_208 = arith.constant 0 : index
    %c0_209 = arith.constant 0 : index
    %381 = vector.load %arg28[%c0_207, %c0_208, %c0_209] : memref<2x1x32xf32, #tpu.memory_space<vmem>>, vector<1x1x32xf32>
    %382 = vector.shape_cast %381 : vector<1x1x32xf32> to vector<1x32xf32>
    %383 = vector.broadcast %382 : vector<1x32xf32> to vector<17x32xf32>
    %384 = arith.addf %380, %383 : vector<17x32xf32>
    %385 = vector.extract_strided_slice %257 {offsets = [0, 0], sizes = [1, 32], strides = [1, 1]} : vector<9x32xf32> to vector<1x32xf32>
    %386 = vector.extract_strided_slice %257 {offsets = [1, 0], sizes = [8, 32], strides = [1, 1]} : vector<9x32xf32> to vector<8x32xf32>
    %387 = vector.extract_strided_slice %384 {offsets = [0, 0], sizes = [1, 32], strides = [1, 1]} : vector<17x32xf32> to vector<1x32xf32>
    %388 = vector.extract_strided_slice %384 {offsets = [1, 0], sizes = [16, 32], strides = [1, 1]} : vector<17x32xf32> to vector<16x32xf32>
    %c0_210 = arith.constant 0 : index
    %c0_211 = arith.constant 0 : index
    %c0_212 = arith.constant 0 : index
    %389 = vector.load %arg29[%c0_210, %c0_211, %c0_212] : memref<2x1x32xf32, #tpu.memory_space<vmem>>, vector<1x1x32xf32>
    %390 = vector.shape_cast %389 : vector<1x1x32xf32> to vector<1x32xf32>
    %c0_213 = arith.constant 0 : index
    %c0_214 = arith.constant 0 : index
    %c0_215 = arith.constant 0 : index
    %391 = vector.load %arg30[%c0_213, %c0_214, %c0_215] : memref<2x1x32xf32, #tpu.memory_space<vmem>>, vector<1x1x32xf32>
    %392 = vector.shape_cast %391 : vector<1x1x32xf32> to vector<1x32xf32>
    %cst_216 = arith.constant dense<0.000000e+00> : vector<1xf32>
    %393 = vector.multi_reduction <add>, %385, %cst_216 [1] : vector<1x32xf32> to vector<1xf32>
    %394 = vector.shape_cast %393 : vector<1xf32> to vector<1x1xf32>
    %cst_217 = arith.constant 3.200000e+01 : f32
    %395 = vector.broadcast %cst_217 : f32 to vector<1x1xf32>
    %396 = arith.divf %394, %395 : vector<1x1xf32>
    %397 = vector.broadcast %396 : vector<1x1xf32> to vector<1x32xf32>
    %398 = arith.subf %385, %397 : vector<1x32xf32>
    %399 = arith.mulf %398, %398 : vector<1x32xf32>
    %cst_218 = arith.constant dense<0.000000e+00> : vector<1xf32>
    %400 = vector.multi_reduction <add>, %399, %cst_218 [1] : vector<1x32xf32> to vector<1xf32>
    %401 = vector.shape_cast %400 : vector<1xf32> to vector<1x1xf32>
    %cst_219 = arith.constant 3.200000e+01 : f32
    %402 = vector.broadcast %cst_219 : f32 to vector<1x1xf32>
    %403 = arith.divf %401, %402 : vector<1x1xf32>
    %cst_220 = arith.constant 9.99999974E-6 : f32
    %404 = vector.broadcast %cst_220 : f32 to vector<1x1xf32>
    %405 = arith.addf %403, %404 : vector<1x1xf32>
    %406 = math.rsqrt %405 : vector<1x1xf32>
    %407 = vector.broadcast %406 : vector<1x1xf32> to vector<1x32xf32>
    %408 = arith.mulf %398, %407 : vector<1x32xf32>
    %409 = arith.mulf %408, %390 : vector<1x32xf32>
    %410 = arith.addf %409, %392 : vector<1x32xf32>
    %c0_221 = arith.constant 0 : index
    %c0_222 = arith.constant 0 : index
    %c0_223 = arith.constant 0 : index
    %411 = vector.load %arg31[%c0_221, %c0_222, %c0_223] : memref<2x32x32xf32, #tpu.memory_space<vmem>>, vector<1x32x32xf32>
    %412 = vector.shape_cast %411 : vector<1x32x32xf32> to vector<32x32xf32>
    %c0_224 = arith.constant 0 : index
    %c0_225 = arith.constant 0 : index
    %c0_226 = arith.constant 0 : index
    %413 = vector.load %arg32[%c0_224, %c0_225, %c0_226] : memref<2x32x32xf32, #tpu.memory_space<vmem>>, vector<1x32x32xf32>
    %414 = vector.shape_cast %413 : vector<1x32x32xf32> to vector<32x32xf32>
    %c0_227 = arith.constant 0 : index
    %c0_228 = arith.constant 0 : index
    %c0_229 = arith.constant 0 : index
    %415 = vector.load %arg33[%c0_227, %c0_228, %c0_229] : memref<2x32x32xf32, #tpu.memory_space<vmem>>, vector<1x32x32xf32>
    %416 = vector.shape_cast %415 : vector<1x32x32xf32> to vector<32x32xf32>
    %c0_230 = arith.constant 0 : index
    %c0_231 = arith.constant 0 : index
    %c0_232 = arith.constant 0 : index
    %417 = vector.load %arg34[%c0_230, %c0_231, %c0_232] : memref<2x32x32xf32, #tpu.memory_space<vmem>>, vector<1x32x32xf32>
    %418 = vector.shape_cast %417 : vector<1x32x32xf32> to vector<32x32xf32>
    %c0_233 = arith.constant 0 : index
    %c0_234 = arith.constant 0 : index
    %c0_235 = arith.constant 0 : index
    %419 = vector.load %arg35[%c0_233, %c0_234, %c0_235] : memref<2x1x32xf32, #tpu.memory_space<vmem>>, vector<1x1x32xf32>
    %420 = vector.shape_cast %419 : vector<1x1x32xf32> to vector<1x32xf32>
    %cst_236 = arith.constant dense<0.000000e+00> : vector<1x32xf32>
    %421 = tpu.matmul %410, %412, %cst_236 {dimension_numbers = #tpu.dot_dimension_numbers<[1], [0], [0], [1], [0, 0, 1, 1], [], []>} : vector<1x32xf32>, vector<32x32xf32>, vector<1x32xf32> -> vector<1x32xf32>
    %422 = tpu.transpose %410, [1, 0] : vector<1x32xf32> -> vector<32x1xf32>
    %cst_237 = arith.constant dense<0.000000e+00> : vector<32x1xf32>
    %423 = tpu.matmul %414, %422, %cst_237 {dimension_numbers = #tpu.dot_dimension_numbers<[1], [0], [0], [1], [0, 0, 1, 1], [], []>} : vector<32x32xf32>, vector<32x1xf32>, vector<32x1xf32> -> vector<32x1xf32>
    %424 = tpu.transpose %388, [1, 0] : vector<16x32xf32> -> vector<32x16xf32>
    %cst_238 = arith.constant dense<0.000000e+00> : vector<32x16xf32>
    %425 = tpu.matmul %414, %424, %cst_238 {dimension_numbers = #tpu.dot_dimension_numbers<[1], [0], [0], [1], [0, 0, 1, 1], [], []>} : vector<32x32xf32>, vector<32x16xf32>, vector<32x16xf32> -> vector<32x16xf32>
    %cst_239 = arith.constant dense<0.000000e+00> : vector<1x32xf32>
    %426 = tpu.matmul %410, %416, %cst_239 {dimension_numbers = #tpu.dot_dimension_numbers<[1], [0], [0], [1], [0, 0, 1, 1], [], []>} : vector<1x32xf32>, vector<32x32xf32>, vector<1x32xf32> -> vector<1x32xf32>
    %cst_240 = arith.constant dense<0.000000e+00> : vector<16x32xf32>
    %427 = tpu.matmul %388, %416, %cst_240 {dimension_numbers = #tpu.dot_dimension_numbers<[1], [0], [0], [1], [0, 0, 1, 1], [], []>} : vector<16x32xf32>, vector<32x32xf32>, vector<16x32xf32> -> vector<16x32xf32>
    %428 = vector.extract_strided_slice %421 {offsets = [0, 0], sizes = [1, 16], strides = [1, 1]} : vector<1x32xf32> to vector<1x16xf32>
    %429 = vector.extract_strided_slice %423 {offsets = [0, 0], sizes = [16, 1], strides = [1, 1]} : vector<32x1xf32> to vector<16x1xf32>
    %cst_241 = arith.constant dense<0.000000e+00> : vector<1x1xf32>
    %430 = tpu.matmul %428, %429, %cst_241 {dimension_numbers = #tpu.dot_dimension_numbers<[1], [0], [0], [1], [0, 0, 1, 1], [], []>} : vector<1x16xf32>, vector<16x1xf32>, vector<1x1xf32> -> vector<1x1xf32>
    %cst_242 = arith.constant 2.500000e-01 : f32
    %431 = vector.broadcast %cst_242 : f32 to vector<1x1xf32>
    %432 = arith.mulf %430, %431 : vector<1x1xf32>
    %433 = vector.extract_strided_slice %425 {offsets = [0, 0], sizes = [16, 16], strides = [1, 1]} : vector<32x16xf32> to vector<16x16xf32>
    %cst_243 = arith.constant dense<0.000000e+00> : vector<1x16xf32>
    %434 = tpu.matmul %428, %433, %cst_243 {dimension_numbers = #tpu.dot_dimension_numbers<[1], [0], [0], [1], [0, 0, 1, 1], [], []>} : vector<1x16xf32>, vector<16x16xf32>, vector<1x16xf32> -> vector<1x16xf32>
    %cst_244 = arith.constant 2.500000e-01 : f32
    %435 = vector.broadcast %cst_244 : f32 to vector<1x16xf32>
    %436 = arith.mulf %434, %435 : vector<1x16xf32>
    %cst_245 = arith.constant dense<0xFF800000> : vector<1xf32>
    %437 = vector.multi_reduction <maximumf>, %432, %cst_245 [1] : vector<1x1xf32> to vector<1xf32>
    %438 = vector.shape_cast %437 : vector<1xf32> to vector<1x1xf32>
    %cst_246 = arith.constant dense<0xFF800000> : vector<1xf32>
    %439 = vector.multi_reduction <maximumf>, %436, %cst_246 [1] : vector<1x16xf32> to vector<1xf32>
    %440 = vector.shape_cast %439 : vector<1xf32> to vector<1x1xf32>
    %441 = arith.maximumf %438, %440 : vector<1x1xf32>
    %442 = arith.subf %432, %441 : vector<1x1xf32>
    %443 = math.exp %442 : vector<1x1xf32>
    %444 = vector.broadcast %441 : vector<1x1xf32> to vector<1x16xf32>
    %445 = arith.subf %436, %444 : vector<1x16xf32>
    %446 = math.exp %445 : vector<1x16xf32>
    %cst_247 = arith.constant dense<0.000000e+00> : vector<1xf32>
    %447 = vector.multi_reduction <add>, %443, %cst_247 [1] : vector<1x1xf32> to vector<1xf32>
    %448 = vector.shape_cast %447 : vector<1xf32> to vector<1x1xf32>
    %cst_248 = arith.constant dense<0.000000e+00> : vector<1xf32>
    %449 = vector.multi_reduction <add>, %446, %cst_248 [1] : vector<1x16xf32> to vector<1xf32>
    %450 = vector.shape_cast %449 : vector<1xf32> to vector<1x1xf32>
    %451 = arith.addf %448, %450 : vector<1x1xf32>
    %452 = vector.extract_strided_slice %426 {offsets = [0, 0], sizes = [1, 16], strides = [1, 1]} : vector<1x32xf32> to vector<1x16xf32>
    %cst_249 = arith.constant dense<0.000000e+00> : vector<1x16xf32>
    %453 = tpu.matmul %443, %452, %cst_249 {dimension_numbers = #tpu.dot_dimension_numbers<[1], [0], [0], [1], [0, 0, 1, 1], [], []>} : vector<1x1xf32>, vector<1x16xf32>, vector<1x16xf32> -> vector<1x16xf32>
    %454 = vector.extract_strided_slice %427 {offsets = [0, 0], sizes = [16, 16], strides = [1, 1]} : vector<16x32xf32> to vector<16x16xf32>
    %cst_250 = arith.constant dense<0.000000e+00> : vector<1x16xf32>
    %455 = tpu.matmul %446, %454, %cst_250 {dimension_numbers = #tpu.dot_dimension_numbers<[1], [0], [0], [1], [0, 0, 1, 1], [], []>} : vector<1x16xf32>, vector<16x16xf32>, vector<1x16xf32> -> vector<1x16xf32>
    %456 = arith.addf %453, %455 : vector<1x16xf32>
    %457 = vector.broadcast %451 : vector<1x1xf32> to vector<1x16xf32>
    %458 = arith.divf %456, %457 : vector<1x16xf32>
    %459 = vector.extract_strided_slice %421 {offsets = [0, 16], sizes = [1, 16], strides = [1, 1]} : vector<1x32xf32> to vector<1x16xf32>
    %460 = vector.extract_strided_slice %423 {offsets = [16, 0], sizes = [16, 1], strides = [1, 1]} : vector<32x1xf32> to vector<16x1xf32>
    %cst_251 = arith.constant dense<0.000000e+00> : vector<1x1xf32>
    %461 = tpu.matmul %459, %460, %cst_251 {dimension_numbers = #tpu.dot_dimension_numbers<[1], [0], [0], [1], [0, 0, 1, 1], [], []>} : vector<1x16xf32>, vector<16x1xf32>, vector<1x1xf32> -> vector<1x1xf32>
    %cst_252 = arith.constant 2.500000e-01 : f32
    %462 = vector.broadcast %cst_252 : f32 to vector<1x1xf32>
    %463 = arith.mulf %461, %462 : vector<1x1xf32>
    %464 = vector.extract_strided_slice %425 {offsets = [16, 0], sizes = [16, 16], strides = [1, 1]} : vector<32x16xf32> to vector<16x16xf32>
    %cst_253 = arith.constant dense<0.000000e+00> : vector<1x16xf32>
    %465 = tpu.matmul %459, %464, %cst_253 {dimension_numbers = #tpu.dot_dimension_numbers<[1], [0], [0], [1], [0, 0, 1, 1], [], []>} : vector<1x16xf32>, vector<16x16xf32>, vector<1x16xf32> -> vector<1x16xf32>
    %cst_254 = arith.constant 2.500000e-01 : f32
    %466 = vector.broadcast %cst_254 : f32 to vector<1x16xf32>
    %467 = arith.mulf %465, %466 : vector<1x16xf32>
    %cst_255 = arith.constant dense<0xFF800000> : vector<1xf32>
    %468 = vector.multi_reduction <maximumf>, %463, %cst_255 [1] : vector<1x1xf32> to vector<1xf32>
    %469 = vector.shape_cast %468 : vector<1xf32> to vector<1x1xf32>
    %cst_256 = arith.constant dense<0xFF800000> : vector<1xf32>
    %470 = vector.multi_reduction <maximumf>, %467, %cst_256 [1] : vector<1x16xf32> to vector<1xf32>
    %471 = vector.shape_cast %470 : vector<1xf32> to vector<1x1xf32>
    %472 = arith.maximumf %469, %471 : vector<1x1xf32>
    %473 = arith.subf %463, %472 : vector<1x1xf32>
    %474 = math.exp %473 : vector<1x1xf32>
    %475 = vector.broadcast %472 : vector<1x1xf32> to vector<1x16xf32>
    %476 = arith.subf %467, %475 : vector<1x16xf32>
    %477 = math.exp %476 : vector<1x16xf32>
    %cst_257 = arith.constant dense<0.000000e+00> : vector<1xf32>
    %478 = vector.multi_reduction <add>, %474, %cst_257 [1] : vector<1x1xf32> to vector<1xf32>
    %479 = vector.shape_cast %478 : vector<1xf32> to vector<1x1xf32>
    %cst_258 = arith.constant dense<0.000000e+00> : vector<1xf32>
    %480 = vector.multi_reduction <add>, %477, %cst_258 [1] : vector<1x16xf32> to vector<1xf32>
    %481 = vector.shape_cast %480 : vector<1xf32> to vector<1x1xf32>
    %482 = arith.addf %479, %481 : vector<1x1xf32>
    %483 = vector.extract_strided_slice %426 {offsets = [0, 16], sizes = [1, 16], strides = [1, 1]} : vector<1x32xf32> to vector<1x16xf32>
    %cst_259 = arith.constant dense<0.000000e+00> : vector<1x16xf32>
    %484 = tpu.matmul %474, %483, %cst_259 {dimension_numbers = #tpu.dot_dimension_numbers<[1], [0], [0], [1], [0, 0, 1, 1], [], []>} : vector<1x1xf32>, vector<1x16xf32>, vector<1x16xf32> -> vector<1x16xf32>
    %485 = vector.extract_strided_slice %427 {offsets = [0, 16], sizes = [16, 16], strides = [1, 1]} : vector<16x32xf32> to vector<16x16xf32>
    %cst_260 = arith.constant dense<0.000000e+00> : vector<1x16xf32>
    %486 = tpu.matmul %477, %485, %cst_260 {dimension_numbers = #tpu.dot_dimension_numbers<[1], [0], [0], [1], [0, 0, 1, 1], [], []>} : vector<1x16xf32>, vector<16x16xf32>, vector<1x16xf32> -> vector<1x16xf32>
    %487 = arith.addf %484, %486 : vector<1x16xf32>
    %488 = vector.broadcast %482 : vector<1x1xf32> to vector<1x16xf32>
    %489 = arith.divf %487, %488 : vector<1x16xf32>
    %490 = tpu.concatenate %458, %489 in 1 : vector<1x16xf32>, vector<1x16xf32> -> vector<1x32xf32>
    %cst_261 = arith.constant dense<0.000000e+00> : vector<1x32xf32>
    %491 = tpu.matmul %490, %418, %cst_261 {dimension_numbers = #tpu.dot_dimension_numbers<[1], [0], [0], [1], [0, 0, 1, 1], [], []>} : vector<1x32xf32>, vector<32x32xf32>, vector<1x32xf32> -> vector<1x32xf32>
    %492 = arith.addf %491, %420 : vector<1x32xf32>
    %493 = arith.addf %385, %492 : vector<1x32xf32>
    %c0_262 = arith.constant 0 : index
    %c0_263 = arith.constant 0 : index
    %c0_264 = arith.constant 0 : index
    %494 = vector.load %arg36[%c0_262, %c0_263, %c0_264] : memref<2x1x32xf32, #tpu.memory_space<vmem>>, vector<1x1x32xf32>
    %495 = vector.shape_cast %494 : vector<1x1x32xf32> to vector<1x32xf32>
    %c0_265 = arith.constant 0 : index
    %c0_266 = arith.constant 0 : index
    %c0_267 = arith.constant 0 : index
    %496 = vector.load %arg37[%c0_265, %c0_266, %c0_267] : memref<2x1x32xf32, #tpu.memory_space<vmem>>, vector<1x1x32xf32>
    %497 = vector.shape_cast %496 : vector<1x1x32xf32> to vector<1x32xf32>
    %cst_268 = arith.constant dense<0.000000e+00> : vector<1xf32>
    %498 = vector.multi_reduction <add>, %387, %cst_268 [1] : vector<1x32xf32> to vector<1xf32>
    %499 = vector.shape_cast %498 : vector<1xf32> to vector<1x1xf32>
    %cst_269 = arith.constant 3.200000e+01 : f32
    %500 = vector.broadcast %cst_269 : f32 to vector<1x1xf32>
    %501 = arith.divf %499, %500 : vector<1x1xf32>
    %502 = vector.broadcast %501 : vector<1x1xf32> to vector<1x32xf32>
    %503 = arith.subf %387, %502 : vector<1x32xf32>
    %504 = arith.mulf %503, %503 : vector<1x32xf32>
    %cst_270 = arith.constant dense<0.000000e+00> : vector<1xf32>
    %505 = vector.multi_reduction <add>, %504, %cst_270 [1] : vector<1x32xf32> to vector<1xf32>
    %506 = vector.shape_cast %505 : vector<1xf32> to vector<1x1xf32>
    %cst_271 = arith.constant 3.200000e+01 : f32
    %507 = vector.broadcast %cst_271 : f32 to vector<1x1xf32>
    %508 = arith.divf %506, %507 : vector<1x1xf32>
    %cst_272 = arith.constant 9.99999974E-6 : f32
    %509 = vector.broadcast %cst_272 : f32 to vector<1x1xf32>
    %510 = arith.addf %508, %509 : vector<1x1xf32>
    %511 = math.rsqrt %510 : vector<1x1xf32>
    %512 = vector.broadcast %511 : vector<1x1xf32> to vector<1x32xf32>
    %513 = arith.mulf %503, %512 : vector<1x32xf32>
    %514 = arith.mulf %513, %495 : vector<1x32xf32>
    %515 = arith.addf %514, %497 : vector<1x32xf32>
    %c0_273 = arith.constant 0 : index
    %c0_274 = arith.constant 0 : index
    %c0_275 = arith.constant 0 : index
    %516 = vector.load %arg38[%c0_273, %c0_274, %c0_275] : memref<2x32x32xf32, #tpu.memory_space<vmem>>, vector<1x32x32xf32>
    %517 = vector.shape_cast %516 : vector<1x32x32xf32> to vector<32x32xf32>
    %c0_276 = arith.constant 0 : index
    %c0_277 = arith.constant 0 : index
    %c0_278 = arith.constant 0 : index
    %518 = vector.load %arg39[%c0_276, %c0_277, %c0_278] : memref<2x32x32xf32, #tpu.memory_space<vmem>>, vector<1x32x32xf32>
    %519 = vector.shape_cast %518 : vector<1x32x32xf32> to vector<32x32xf32>
    %c0_279 = arith.constant 0 : index
    %c0_280 = arith.constant 0 : index
    %c0_281 = arith.constant 0 : index
    %520 = vector.load %arg40[%c0_279, %c0_280, %c0_281] : memref<2x32x32xf32, #tpu.memory_space<vmem>>, vector<1x32x32xf32>
    %521 = vector.shape_cast %520 : vector<1x32x32xf32> to vector<32x32xf32>
    %c0_282 = arith.constant 0 : index
    %c0_283 = arith.constant 0 : index
    %c0_284 = arith.constant 0 : index
    %522 = vector.load %arg41[%c0_282, %c0_283, %c0_284] : memref<2x32x32xf32, #tpu.memory_space<vmem>>, vector<1x32x32xf32>
    %523 = vector.shape_cast %522 : vector<1x32x32xf32> to vector<32x32xf32>
    %c0_285 = arith.constant 0 : index
    %c0_286 = arith.constant 0 : index
    %c0_287 = arith.constant 0 : index
    %524 = vector.load %arg42[%c0_285, %c0_286, %c0_287] : memref<2x1x32xf32, #tpu.memory_space<vmem>>, vector<1x1x32xf32>
    %525 = vector.shape_cast %524 : vector<1x1x32xf32> to vector<1x32xf32>
    %cst_288 = arith.constant dense<0.000000e+00> : vector<1x32xf32>
    %526 = tpu.matmul %515, %517, %cst_288 {dimension_numbers = #tpu.dot_dimension_numbers<[1], [0], [0], [1], [0, 0, 1, 1], [], []>} : vector<1x32xf32>, vector<32x32xf32>, vector<1x32xf32> -> vector<1x32xf32>
    %527 = tpu.transpose %515, [1, 0] : vector<1x32xf32> -> vector<32x1xf32>
    %cst_289 = arith.constant dense<0.000000e+00> : vector<32x1xf32>
    %528 = tpu.matmul %519, %527, %cst_289 {dimension_numbers = #tpu.dot_dimension_numbers<[1], [0], [0], [1], [0, 0, 1, 1], [], []>} : vector<32x32xf32>, vector<32x1xf32>, vector<32x1xf32> -> vector<32x1xf32>
    %529 = tpu.transpose %386, [1, 0] : vector<8x32xf32> -> vector<32x8xf32>
    %cst_290 = arith.constant dense<0.000000e+00> : vector<32x8xf32>
    %530 = tpu.matmul %519, %529, %cst_290 {dimension_numbers = #tpu.dot_dimension_numbers<[1], [0], [0], [1], [0, 0, 1, 1], [], []>} : vector<32x32xf32>, vector<32x8xf32>, vector<32x8xf32> -> vector<32x8xf32>
    %cst_291 = arith.constant dense<0.000000e+00> : vector<1x32xf32>
    %531 = tpu.matmul %515, %521, %cst_291 {dimension_numbers = #tpu.dot_dimension_numbers<[1], [0], [0], [1], [0, 0, 1, 1], [], []>} : vector<1x32xf32>, vector<32x32xf32>, vector<1x32xf32> -> vector<1x32xf32>
    %cst_292 = arith.constant dense<0.000000e+00> : vector<8x32xf32>
    %532 = tpu.matmul %386, %521, %cst_292 {dimension_numbers = #tpu.dot_dimension_numbers<[1], [0], [0], [1], [0, 0, 1, 1], [], []>} : vector<8x32xf32>, vector<32x32xf32>, vector<8x32xf32> -> vector<8x32xf32>
    %533 = vector.extract_strided_slice %526 {offsets = [0, 0], sizes = [1, 16], strides = [1, 1]} : vector<1x32xf32> to vector<1x16xf32>
    %534 = vector.extract_strided_slice %528 {offsets = [0, 0], sizes = [16, 1], strides = [1, 1]} : vector<32x1xf32> to vector<16x1xf32>
    %cst_293 = arith.constant dense<0.000000e+00> : vector<1x1xf32>
    %535 = tpu.matmul %533, %534, %cst_293 {dimension_numbers = #tpu.dot_dimension_numbers<[1], [0], [0], [1], [0, 0, 1, 1], [], []>} : vector<1x16xf32>, vector<16x1xf32>, vector<1x1xf32> -> vector<1x1xf32>
    %cst_294 = arith.constant 2.500000e-01 : f32
    %536 = vector.broadcast %cst_294 : f32 to vector<1x1xf32>
    %537 = arith.mulf %535, %536 : vector<1x1xf32>
    %538 = vector.extract_strided_slice %530 {offsets = [0, 0], sizes = [16, 8], strides = [1, 1]} : vector<32x8xf32> to vector<16x8xf32>
    %cst_295 = arith.constant dense<0.000000e+00> : vector<1x8xf32>
    %539 = tpu.matmul %533, %538, %cst_295 {dimension_numbers = #tpu.dot_dimension_numbers<[1], [0], [0], [1], [0, 0, 1, 1], [], []>} : vector<1x16xf32>, vector<16x8xf32>, vector<1x8xf32> -> vector<1x8xf32>
    %cst_296 = arith.constant 2.500000e-01 : f32
    %540 = vector.broadcast %cst_296 : f32 to vector<1x8xf32>
    %541 = arith.mulf %539, %540 : vector<1x8xf32>
    %cst_297 = arith.constant dense<0xFF800000> : vector<1xf32>
    %542 = vector.multi_reduction <maximumf>, %537, %cst_297 [1] : vector<1x1xf32> to vector<1xf32>
    %543 = vector.shape_cast %542 : vector<1xf32> to vector<1x1xf32>
    %cst_298 = arith.constant dense<0xFF800000> : vector<1xf32>
    %544 = vector.multi_reduction <maximumf>, %541, %cst_298 [1] : vector<1x8xf32> to vector<1xf32>
    %545 = vector.shape_cast %544 : vector<1xf32> to vector<1x1xf32>
    %546 = arith.maximumf %543, %545 : vector<1x1xf32>
    %547 = arith.subf %537, %546 : vector<1x1xf32>
    %548 = math.exp %547 : vector<1x1xf32>
    %549 = vector.broadcast %546 : vector<1x1xf32> to vector<1x8xf32>
    %550 = arith.subf %541, %549 : vector<1x8xf32>
    %551 = math.exp %550 : vector<1x8xf32>
    %cst_299 = arith.constant dense<0.000000e+00> : vector<1xf32>
    %552 = vector.multi_reduction <add>, %548, %cst_299 [1] : vector<1x1xf32> to vector<1xf32>
    %553 = vector.shape_cast %552 : vector<1xf32> to vector<1x1xf32>
    %cst_300 = arith.constant dense<0.000000e+00> : vector<1xf32>
    %554 = vector.multi_reduction <add>, %551, %cst_300 [1] : vector<1x8xf32> to vector<1xf32>
    %555 = vector.shape_cast %554 : vector<1xf32> to vector<1x1xf32>
    %556 = arith.addf %553, %555 : vector<1x1xf32>
    %557 = vector.extract_strided_slice %531 {offsets = [0, 0], sizes = [1, 16], strides = [1, 1]} : vector<1x32xf32> to vector<1x16xf32>
    %cst_301 = arith.constant dense<0.000000e+00> : vector<1x16xf32>
    %558 = tpu.matmul %548, %557, %cst_301 {dimension_numbers = #tpu.dot_dimension_numbers<[1], [0], [0], [1], [0, 0, 1, 1], [], []>} : vector<1x1xf32>, vector<1x16xf32>, vector<1x16xf32> -> vector<1x16xf32>
    %559 = vector.extract_strided_slice %532 {offsets = [0, 0], sizes = [8, 16], strides = [1, 1]} : vector<8x32xf32> to vector<8x16xf32>
    %cst_302 = arith.constant dense<0.000000e+00> : vector<1x16xf32>
    %560 = tpu.matmul %551, %559, %cst_302 {dimension_numbers = #tpu.dot_dimension_numbers<[1], [0], [0], [1], [0, 0, 1, 1], [], []>} : vector<1x8xf32>, vector<8x16xf32>, vector<1x16xf32> -> vector<1x16xf32>
    %561 = arith.addf %558, %560 : vector<1x16xf32>
    %562 = vector.broadcast %556 : vector<1x1xf32> to vector<1x16xf32>
    %563 = arith.divf %561, %562 : vector<1x16xf32>
    %564 = vector.extract_strided_slice %526 {offsets = [0, 16], sizes = [1, 16], strides = [1, 1]} : vector<1x32xf32> to vector<1x16xf32>
    %565 = vector.extract_strided_slice %528 {offsets = [16, 0], sizes = [16, 1], strides = [1, 1]} : vector<32x1xf32> to vector<16x1xf32>
    %cst_303 = arith.constant dense<0.000000e+00> : vector<1x1xf32>
    %566 = tpu.matmul %564, %565, %cst_303 {dimension_numbers = #tpu.dot_dimension_numbers<[1], [0], [0], [1], [0, 0, 1, 1], [], []>} : vector<1x16xf32>, vector<16x1xf32>, vector<1x1xf32> -> vector<1x1xf32>
    %cst_304 = arith.constant 2.500000e-01 : f32
    %567 = vector.broadcast %cst_304 : f32 to vector<1x1xf32>
    %568 = arith.mulf %566, %567 : vector<1x1xf32>
    %569 = vector.extract_strided_slice %530 {offsets = [16, 0], sizes = [16, 8], strides = [1, 1]} : vector<32x8xf32> to vector<16x8xf32>
    %cst_305 = arith.constant dense<0.000000e+00> : vector<1x8xf32>
    %570 = tpu.matmul %564, %569, %cst_305 {dimension_numbers = #tpu.dot_dimension_numbers<[1], [0], [0], [1], [0, 0, 1, 1], [], []>} : vector<1x16xf32>, vector<16x8xf32>, vector<1x8xf32> -> vector<1x8xf32>
    %cst_306 = arith.constant 2.500000e-01 : f32
    %571 = vector.broadcast %cst_306 : f32 to vector<1x8xf32>
    %572 = arith.mulf %570, %571 : vector<1x8xf32>
    %cst_307 = arith.constant dense<0xFF800000> : vector<1xf32>
    %573 = vector.multi_reduction <maximumf>, %568, %cst_307 [1] : vector<1x1xf32> to vector<1xf32>
    %574 = vector.shape_cast %573 : vector<1xf32> to vector<1x1xf32>
    %cst_308 = arith.constant dense<0xFF800000> : vector<1xf32>
    %575 = vector.multi_reduction <maximumf>, %572, %cst_308 [1] : vector<1x8xf32> to vector<1xf32>
    %576 = vector.shape_cast %575 : vector<1xf32> to vector<1x1xf32>
    %577 = arith.maximumf %574, %576 : vector<1x1xf32>
    %578 = arith.subf %568, %577 : vector<1x1xf32>
    %579 = math.exp %578 : vector<1x1xf32>
    %580 = vector.broadcast %577 : vector<1x1xf32> to vector<1x8xf32>
    %581 = arith.subf %572, %580 : vector<1x8xf32>
    %582 = math.exp %581 : vector<1x8xf32>
    %cst_309 = arith.constant dense<0.000000e+00> : vector<1xf32>
    %583 = vector.multi_reduction <add>, %579, %cst_309 [1] : vector<1x1xf32> to vector<1xf32>
    %584 = vector.shape_cast %583 : vector<1xf32> to vector<1x1xf32>
    %cst_310 = arith.constant dense<0.000000e+00> : vector<1xf32>
    %585 = vector.multi_reduction <add>, %582, %cst_310 [1] : vector<1x8xf32> to vector<1xf32>
    %586 = vector.shape_cast %585 : vector<1xf32> to vector<1x1xf32>
    %587 = arith.addf %584, %586 : vector<1x1xf32>
    %588 = vector.extract_strided_slice %531 {offsets = [0, 16], sizes = [1, 16], strides = [1, 1]} : vector<1x32xf32> to vector<1x16xf32>
    %cst_311 = arith.constant dense<0.000000e+00> : vector<1x16xf32>
    %589 = tpu.matmul %579, %588, %cst_311 {dimension_numbers = #tpu.dot_dimension_numbers<[1], [0], [0], [1], [0, 0, 1, 1], [], []>} : vector<1x1xf32>, vector<1x16xf32>, vector<1x16xf32> -> vector<1x16xf32>
    %590 = vector.extract_strided_slice %532 {offsets = [0, 16], sizes = [8, 16], strides = [1, 1]} : vector<8x32xf32> to vector<8x16xf32>
    %cst_312 = arith.constant dense<0.000000e+00> : vector<1x16xf32>
    %591 = tpu.matmul %582, %590, %cst_312 {dimension_numbers = #tpu.dot_dimension_numbers<[1], [0], [0], [1], [0, 0, 1, 1], [], []>} : vector<1x8xf32>, vector<8x16xf32>, vector<1x16xf32> -> vector<1x16xf32>
    %592 = arith.addf %589, %591 : vector<1x16xf32>
    %593 = vector.broadcast %587 : vector<1x1xf32> to vector<1x16xf32>
    %594 = arith.divf %592, %593 : vector<1x16xf32>
    %595 = tpu.concatenate %563, %594 in 1 : vector<1x16xf32>, vector<1x16xf32> -> vector<1x32xf32>
    %cst_313 = arith.constant dense<0.000000e+00> : vector<1x32xf32>
    %596 = tpu.matmul %595, %523, %cst_313 {dimension_numbers = #tpu.dot_dimension_numbers<[1], [0], [0], [1], [0, 0, 1, 1], [], []>} : vector<1x32xf32>, vector<32x32xf32>, vector<1x32xf32> -> vector<1x32xf32>
    %597 = arith.addf %596, %525 : vector<1x32xf32>
    %598 = arith.addf %387, %597 : vector<1x32xf32>
    %599 = tpu.concatenate %493, %386 in 0 : vector<1x32xf32>, vector<8x32xf32> -> vector<9x32xf32>
    %600 = tpu.concatenate %598, %388 in 0 : vector<1x32xf32>, vector<16x32xf32> -> vector<17x32xf32>
    %c2 = arith.constant 2 : index
    %c0_314 = arith.constant 0 : index
    %c0_315 = arith.constant 0 : index
    %601 = vector.load %arg3[%c2, %c0_314, %c0_315] : memref<4x1x32xf32, #tpu.memory_space<vmem>>, vector<1x1x32xf32>
    %602 = vector.shape_cast %601 : vector<1x1x32xf32> to vector<1x32xf32>
    %c2_316 = arith.constant 2 : index
    %c0_317 = arith.constant 0 : index
    %c0_318 = arith.constant 0 : index
    %603 = vector.load %arg4[%c2_316, %c0_317, %c0_318] : memref<4x1x32xf32, #tpu.memory_space<vmem>>, vector<1x1x32xf32>
    %604 = vector.shape_cast %603 : vector<1x1x32xf32> to vector<1x32xf32>
    %cst_319 = arith.constant dense<0.000000e+00> : vector<9xf32>
    %605 = vector.multi_reduction <add>, %599, %cst_319 [1] : vector<9x32xf32> to vector<9xf32>
    %606 = vector.shape_cast %605 : vector<9xf32> to vector<9x1xf32>
    %cst_320 = arith.constant 3.200000e+01 : f32
    %607 = vector.broadcast %cst_320 : f32 to vector<9x1xf32>
    %608 = arith.divf %606, %607 : vector<9x1xf32>
    %609 = vector.broadcast %608 : vector<9x1xf32> to vector<9x32xf32>
    %610 = arith.subf %599, %609 : vector<9x32xf32>
    %611 = arith.mulf %610, %610 : vector<9x32xf32>
    %cst_321 = arith.constant dense<0.000000e+00> : vector<9xf32>
    %612 = vector.multi_reduction <add>, %611, %cst_321 [1] : vector<9x32xf32> to vector<9xf32>
    %613 = vector.shape_cast %612 : vector<9xf32> to vector<9x1xf32>
    %cst_322 = arith.constant 3.200000e+01 : f32
    %614 = vector.broadcast %cst_322 : f32 to vector<9x1xf32>
    %615 = arith.divf %613, %614 : vector<9x1xf32>
    %cst_323 = arith.constant 9.99999974E-6 : f32
    %616 = vector.broadcast %cst_323 : f32 to vector<9x1xf32>
    %617 = arith.addf %615, %616 : vector<9x1xf32>
    %618 = math.rsqrt %617 : vector<9x1xf32>
    %619 = vector.broadcast %618 : vector<9x1xf32> to vector<9x32xf32>
    %620 = arith.mulf %610, %619 : vector<9x32xf32>
    %621 = vector.broadcast %602 : vector<1x32xf32> to vector<9x32xf32>
    %622 = arith.mulf %620, %621 : vector<9x32xf32>
    %623 = vector.broadcast %604 : vector<1x32xf32> to vector<9x32xf32>
    %624 = arith.addf %622, %623 : vector<9x32xf32>
    %c2_324 = arith.constant 2 : index
    %c0_325 = arith.constant 0 : index
    %c0_326 = arith.constant 0 : index
    %625 = vector.load %arg5[%c2_324, %c0_325, %c0_326] : memref<4x32x32xf32, #tpu.memory_space<vmem>>, vector<1x32x32xf32>
    %626 = vector.shape_cast %625 : vector<1x32x32xf32> to vector<32x32xf32>
    %c2_327 = arith.constant 2 : index
    %c0_328 = arith.constant 0 : index
    %c0_329 = arith.constant 0 : index
    %627 = vector.load %arg6[%c2_327, %c0_328, %c0_329] : memref<4x32x32xf32, #tpu.memory_space<vmem>>, vector<1x32x32xf32>
    %628 = vector.shape_cast %627 : vector<1x32x32xf32> to vector<32x32xf32>
    %c2_330 = arith.constant 2 : index
    %c0_331 = arith.constant 0 : index
    %c0_332 = arith.constant 0 : index
    %629 = vector.load %arg7[%c2_330, %c0_331, %c0_332] : memref<4x32x32xf32, #tpu.memory_space<vmem>>, vector<1x32x32xf32>
    %630 = vector.shape_cast %629 : vector<1x32x32xf32> to vector<32x32xf32>
    %c2_333 = arith.constant 2 : index
    %c0_334 = arith.constant 0 : index
    %c0_335 = arith.constant 0 : index
    %631 = vector.load %arg8[%c2_333, %c0_334, %c0_335] : memref<4x32x32xf32, #tpu.memory_space<vmem>>, vector<1x32x32xf32>
    %632 = vector.shape_cast %631 : vector<1x32x32xf32> to vector<32x32xf32>
    %c2_336 = arith.constant 2 : index
    %c0_337 = arith.constant 0 : index
    %c0_338 = arith.constant 0 : index
    %633 = vector.load %arg9[%c2_336, %c0_337, %c0_338] : memref<4x1x32xf32, #tpu.memory_space<vmem>>, vector<1x1x32xf32>
    %634 = vector.shape_cast %633 : vector<1x1x32xf32> to vector<1x32xf32>
    %cst_339 = arith.constant dense<0.000000e+00> : vector<9x32xf32>
    %635 = tpu.matmul %624, %626, %cst_339 {dimension_numbers = #tpu.dot_dimension_numbers<[1], [0], [0], [1], [0, 0, 1, 1], [], []>} : vector<9x32xf32>, vector<32x32xf32>, vector<9x32xf32> -> vector<9x32xf32>
    %636 = tpu.transpose %624, [1, 0] : vector<9x32xf32> -> vector<32x9xf32>
    %cst_340 = arith.constant dense<0.000000e+00> : vector<32x9xf32>
    %637 = tpu.matmul %628, %636, %cst_340 {dimension_numbers = #tpu.dot_dimension_numbers<[1], [0], [0], [1], [0, 0, 1, 1], [], []>} : vector<32x32xf32>, vector<32x9xf32>, vector<32x9xf32> -> vector<32x9xf32>
    %cst_341 = arith.constant dense<0.000000e+00> : vector<9x32xf32>
    %638 = tpu.matmul %624, %630, %cst_341 {dimension_numbers = #tpu.dot_dimension_numbers<[1], [0], [0], [1], [0, 0, 1, 1], [], []>} : vector<9x32xf32>, vector<32x32xf32>, vector<9x32xf32> -> vector<9x32xf32>
    %639 = vector.extract_strided_slice %635 {offsets = [0, 0], sizes = [9, 16], strides = [1, 1]} : vector<9x32xf32> to vector<9x16xf32>
    %640 = vector.extract_strided_slice %637 {offsets = [0, 0], sizes = [16, 9], strides = [1, 1]} : vector<32x9xf32> to vector<16x9xf32>
    %cst_342 = arith.constant dense<0.000000e+00> : vector<9x9xf32>
    %641 = tpu.matmul %639, %640, %cst_342 {dimension_numbers = #tpu.dot_dimension_numbers<[1], [0], [0], [1], [0, 0, 1, 1], [], []>} : vector<9x16xf32>, vector<16x9xf32>, vector<9x9xf32> -> vector<9x9xf32>
    %cst_343 = arith.constant 2.500000e-01 : f32
    %642 = vector.broadcast %cst_343 : f32 to vector<9x9xf32>
    %643 = arith.mulf %641, %642 : vector<9x9xf32>
    %cst_344 = arith.constant dense<0xFF800000> : vector<9xf32>
    %644 = vector.multi_reduction <maximumf>, %643, %cst_344 [1] : vector<9x9xf32> to vector<9xf32>
    %645 = vector.shape_cast %644 : vector<9xf32> to vector<9x1xf32>
    %646 = vector.broadcast %645 : vector<9x1xf32> to vector<9x9xf32>
    %647 = arith.subf %643, %646 : vector<9x9xf32>
    %648 = math.exp %647 : vector<9x9xf32>
    %cst_345 = arith.constant dense<0.000000e+00> : vector<9xf32>
    %649 = vector.multi_reduction <add>, %648, %cst_345 [1] : vector<9x9xf32> to vector<9xf32>
    %650 = vector.shape_cast %649 : vector<9xf32> to vector<9x1xf32>
    %651 = vector.extract_strided_slice %638 {offsets = [0, 0], sizes = [9, 16], strides = [1, 1]} : vector<9x32xf32> to vector<9x16xf32>
    %cst_346 = arith.constant dense<0.000000e+00> : vector<9x16xf32>
    %652 = tpu.matmul %648, %651, %cst_346 {dimension_numbers = #tpu.dot_dimension_numbers<[1], [0], [0], [1], [0, 0, 1, 1], [], []>} : vector<9x9xf32>, vector<9x16xf32>, vector<9x16xf32> -> vector<9x16xf32>
    %653 = vector.broadcast %650 : vector<9x1xf32> to vector<9x16xf32>
    %654 = arith.divf %652, %653 : vector<9x16xf32>
    %655 = vector.extract_strided_slice %635 {offsets = [0, 16], sizes = [9, 16], strides = [1, 1]} : vector<9x32xf32> to vector<9x16xf32>
    %656 = vector.extract_strided_slice %637 {offsets = [16, 0], sizes = [16, 9], strides = [1, 1]} : vector<32x9xf32> to vector<16x9xf32>
    %cst_347 = arith.constant dense<0.000000e+00> : vector<9x9xf32>
    %657 = tpu.matmul %655, %656, %cst_347 {dimension_numbers = #tpu.dot_dimension_numbers<[1], [0], [0], [1], [0, 0, 1, 1], [], []>} : vector<9x16xf32>, vector<16x9xf32>, vector<9x9xf32> -> vector<9x9xf32>
    %cst_348 = arith.constant 2.500000e-01 : f32
    %658 = vector.broadcast %cst_348 : f32 to vector<9x9xf32>
    %659 = arith.mulf %657, %658 : vector<9x9xf32>
    %cst_349 = arith.constant dense<0xFF800000> : vector<9xf32>
    %660 = vector.multi_reduction <maximumf>, %659, %cst_349 [1] : vector<9x9xf32> to vector<9xf32>
    %661 = vector.shape_cast %660 : vector<9xf32> to vector<9x1xf32>
    %662 = vector.broadcast %661 : vector<9x1xf32> to vector<9x9xf32>
    %663 = arith.subf %659, %662 : vector<9x9xf32>
    %664 = math.exp %663 : vector<9x9xf32>
    %cst_350 = arith.constant dense<0.000000e+00> : vector<9xf32>
    %665 = vector.multi_reduction <add>, %664, %cst_350 [1] : vector<9x9xf32> to vector<9xf32>
    %666 = vector.shape_cast %665 : vector<9xf32> to vector<9x1xf32>
    %667 = vector.extract_strided_slice %638 {offsets = [0, 16], sizes = [9, 16], strides = [1, 1]} : vector<9x32xf32> to vector<9x16xf32>
    %cst_351 = arith.constant dense<0.000000e+00> : vector<9x16xf32>
    %668 = tpu.matmul %664, %667, %cst_351 {dimension_numbers = #tpu.dot_dimension_numbers<[1], [0], [0], [1], [0, 0, 1, 1], [], []>} : vector<9x9xf32>, vector<9x16xf32>, vector<9x16xf32> -> vector<9x16xf32>
    %669 = vector.broadcast %666 : vector<9x1xf32> to vector<9x16xf32>
    %670 = arith.divf %668, %669 : vector<9x16xf32>
    %671 = tpu.concatenate %654, %670 in 1 : vector<9x16xf32>, vector<9x16xf32> -> vector<9x32xf32>
    %cst_352 = arith.constant dense<0.000000e+00> : vector<9x32xf32>
    %672 = tpu.matmul %671, %632, %cst_352 {dimension_numbers = #tpu.dot_dimension_numbers<[1], [0], [0], [1], [0, 0, 1, 1], [], []>} : vector<9x32xf32>, vector<32x32xf32>, vector<9x32xf32> -> vector<9x32xf32>
    %673 = vector.broadcast %634 : vector<1x32xf32> to vector<9x32xf32>
    %674 = arith.addf %672, %673 : vector<9x32xf32>
    %675 = arith.addf %599, %674 : vector<9x32xf32>
    %c2_353 = arith.constant 2 : index
    %c0_354 = arith.constant 0 : index
    %c0_355 = arith.constant 0 : index
    %676 = vector.load %arg10[%c2_353, %c0_354, %c0_355] : memref<4x1x32xf32, #tpu.memory_space<vmem>>, vector<1x1x32xf32>
    %677 = vector.shape_cast %676 : vector<1x1x32xf32> to vector<1x32xf32>
    %c2_356 = arith.constant 2 : index
    %c0_357 = arith.constant 0 : index
    %c0_358 = arith.constant 0 : index
    %678 = vector.load %arg11[%c2_356, %c0_357, %c0_358] : memref<4x1x32xf32, #tpu.memory_space<vmem>>, vector<1x1x32xf32>
    %679 = vector.shape_cast %678 : vector<1x1x32xf32> to vector<1x32xf32>
    %cst_359 = arith.constant dense<0.000000e+00> : vector<9xf32>
    %680 = vector.multi_reduction <add>, %675, %cst_359 [1] : vector<9x32xf32> to vector<9xf32>
    %681 = vector.shape_cast %680 : vector<9xf32> to vector<9x1xf32>
    %cst_360 = arith.constant 3.200000e+01 : f32
    %682 = vector.broadcast %cst_360 : f32 to vector<9x1xf32>
    %683 = arith.divf %681, %682 : vector<9x1xf32>
    %684 = vector.broadcast %683 : vector<9x1xf32> to vector<9x32xf32>
    %685 = arith.subf %675, %684 : vector<9x32xf32>
    %686 = arith.mulf %685, %685 : vector<9x32xf32>
    %cst_361 = arith.constant dense<0.000000e+00> : vector<9xf32>
    %687 = vector.multi_reduction <add>, %686, %cst_361 [1] : vector<9x32xf32> to vector<9xf32>
    %688 = vector.shape_cast %687 : vector<9xf32> to vector<9x1xf32>
    %cst_362 = arith.constant 3.200000e+01 : f32
    %689 = vector.broadcast %cst_362 : f32 to vector<9x1xf32>
    %690 = arith.divf %688, %689 : vector<9x1xf32>
    %cst_363 = arith.constant 9.99999974E-6 : f32
    %691 = vector.broadcast %cst_363 : f32 to vector<9x1xf32>
    %692 = arith.addf %690, %691 : vector<9x1xf32>
    %693 = math.rsqrt %692 : vector<9x1xf32>
    %694 = vector.broadcast %693 : vector<9x1xf32> to vector<9x32xf32>
    %695 = arith.mulf %685, %694 : vector<9x32xf32>
    %696 = vector.broadcast %677 : vector<1x32xf32> to vector<9x32xf32>
    %697 = arith.mulf %695, %696 : vector<9x32xf32>
    %698 = vector.broadcast %679 : vector<1x32xf32> to vector<9x32xf32>
    %699 = arith.addf %697, %698 : vector<9x32xf32>
    %c2_364 = arith.constant 2 : index
    %c0_365 = arith.constant 0 : index
    %c0_366 = arith.constant 0 : index
    %700 = vector.load %arg12[%c2_364, %c0_365, %c0_366] : memref<4x32x64xf32, #tpu.memory_space<vmem>>, vector<1x32x64xf32>
    %701 = vector.shape_cast %700 : vector<1x32x64xf32> to vector<32x64xf32>
    %cst_367 = arith.constant dense<0.000000e+00> : vector<9x64xf32>
    %702 = tpu.matmul %699, %701, %cst_367 {dimension_numbers = #tpu.dot_dimension_numbers<[1], [0], [0], [1], [0, 0, 1, 1], [], []>} : vector<9x32xf32>, vector<32x64xf32>, vector<9x64xf32> -> vector<9x64xf32>
    %c2_368 = arith.constant 2 : index
    %c0_369 = arith.constant 0 : index
    %c0_370 = arith.constant 0 : index
    %703 = vector.load %arg13[%c2_368, %c0_369, %c0_370] : memref<4x1x64xf32, #tpu.memory_space<vmem>>, vector<1x1x64xf32>
    %704 = vector.shape_cast %703 : vector<1x1x64xf32> to vector<1x64xf32>
    %705 = vector.broadcast %704 : vector<1x64xf32> to vector<9x64xf32>
    %706 = arith.addf %702, %705 : vector<9x64xf32>
    %707 = arith.mulf %706, %706 : vector<9x64xf32>
    %708 = arith.mulf %706, %707 : vector<9x64xf32>
    %cst_371 = arith.constant 4.471500e-02 : f32
    %709 = vector.broadcast %cst_371 : f32 to vector<9x64xf32>
    %710 = arith.mulf %709, %708 : vector<9x64xf32>
    %711 = arith.addf %706, %710 : vector<9x64xf32>
    %cst_372 = arith.constant 0.797884583 : f32
    %712 = vector.broadcast %cst_372 : f32 to vector<9x64xf32>
    %713 = arith.mulf %712, %711 : vector<9x64xf32>
    %714 = math.tanh %713 : vector<9x64xf32>
    %cst_373 = arith.constant 1.000000e+00 : f32
    %715 = vector.broadcast %cst_373 : f32 to vector<9x64xf32>
    %716 = arith.addf %715, %714 : vector<9x64xf32>
    %cst_374 = arith.constant 5.000000e-01 : f32
    %717 = vector.broadcast %cst_374 : f32 to vector<9x64xf32>
    %718 = arith.mulf %717, %716 : vector<9x64xf32>
    %719 = arith.mulf %706, %718 : vector<9x64xf32>
    %c2_375 = arith.constant 2 : index
    %c0_376 = arith.constant 0 : index
    %c0_377 = arith.constant 0 : index
    %720 = vector.load %arg14[%c2_375, %c0_376, %c0_377] : memref<4x64x32xf32, #tpu.memory_space<vmem>>, vector<1x64x32xf32>
    %721 = vector.shape_cast %720 : vector<1x64x32xf32> to vector<64x32xf32>
    %cst_378 = arith.constant dense<0.000000e+00> : vector<9x32xf32>
    %722 = tpu.matmul %719, %721, %cst_378 {dimension_numbers = #tpu.dot_dimension_numbers<[1], [0], [0], [1], [0, 0, 1, 1], [], []>} : vector<9x64xf32>, vector<64x32xf32>, vector<9x32xf32> -> vector<9x32xf32>
    %723 = arith.addf %675, %722 : vector<9x32xf32>
    %c2_379 = arith.constant 2 : index
    %c0_380 = arith.constant 0 : index
    %c0_381 = arith.constant 0 : index
    %724 = vector.load %arg15[%c2_379, %c0_380, %c0_381] : memref<4x1x32xf32, #tpu.memory_space<vmem>>, vector<1x1x32xf32>
    %725 = vector.shape_cast %724 : vector<1x1x32xf32> to vector<1x32xf32>
    %726 = vector.broadcast %725 : vector<1x32xf32> to vector<9x32xf32>
    %727 = arith.addf %723, %726 : vector<9x32xf32>
    %c3 = arith.constant 3 : index
    %c0_382 = arith.constant 0 : index
    %c0_383 = arith.constant 0 : index
    %728 = vector.load %arg3[%c3, %c0_382, %c0_383] : memref<4x1x32xf32, #tpu.memory_space<vmem>>, vector<1x1x32xf32>
    %729 = vector.shape_cast %728 : vector<1x1x32xf32> to vector<1x32xf32>
    %c3_384 = arith.constant 3 : index
    %c0_385 = arith.constant 0 : index
    %c0_386 = arith.constant 0 : index
    %730 = vector.load %arg4[%c3_384, %c0_385, %c0_386] : memref<4x1x32xf32, #tpu.memory_space<vmem>>, vector<1x1x32xf32>
    %731 = vector.shape_cast %730 : vector<1x1x32xf32> to vector<1x32xf32>
    %cst_387 = arith.constant dense<0.000000e+00> : vector<9xf32>
    %732 = vector.multi_reduction <add>, %727, %cst_387 [1] : vector<9x32xf32> to vector<9xf32>
    %733 = vector.shape_cast %732 : vector<9xf32> to vector<9x1xf32>
    %cst_388 = arith.constant 3.200000e+01 : f32
    %734 = vector.broadcast %cst_388 : f32 to vector<9x1xf32>
    %735 = arith.divf %733, %734 : vector<9x1xf32>
    %736 = vector.broadcast %735 : vector<9x1xf32> to vector<9x32xf32>
    %737 = arith.subf %727, %736 : vector<9x32xf32>
    %738 = arith.mulf %737, %737 : vector<9x32xf32>
    %cst_389 = arith.constant dense<0.000000e+00> : vector<9xf32>
    %739 = vector.multi_reduction <add>, %738, %cst_389 [1] : vector<9x32xf32> to vector<9xf32>
    %740 = vector.shape_cast %739 : vector<9xf32> to vector<9x1xf32>
    %cst_390 = arith.constant 3.200000e+01 : f32
    %741 = vector.broadcast %cst_390 : f32 to vector<9x1xf32>
    %742 = arith.divf %740, %741 : vector<9x1xf32>
    %cst_391 = arith.constant 9.99999974E-6 : f32
    %743 = vector.broadcast %cst_391 : f32 to vector<9x1xf32>
    %744 = arith.addf %742, %743 : vector<9x1xf32>
    %745 = math.rsqrt %744 : vector<9x1xf32>
    %746 = vector.broadcast %745 : vector<9x1xf32> to vector<9x32xf32>
    %747 = arith.mulf %737, %746 : vector<9x32xf32>
    %748 = vector.broadcast %729 : vector<1x32xf32> to vector<9x32xf32>
    %749 = arith.mulf %747, %748 : vector<9x32xf32>
    %750 = vector.broadcast %731 : vector<1x32xf32> to vector<9x32xf32>
    %751 = arith.addf %749, %750 : vector<9x32xf32>
    %c3_392 = arith.constant 3 : index
    %c0_393 = arith.constant 0 : index
    %c0_394 = arith.constant 0 : index
    %752 = vector.load %arg5[%c3_392, %c0_393, %c0_394] : memref<4x32x32xf32, #tpu.memory_space<vmem>>, vector<1x32x32xf32>
    %753 = vector.shape_cast %752 : vector<1x32x32xf32> to vector<32x32xf32>
    %c3_395 = arith.constant 3 : index
    %c0_396 = arith.constant 0 : index
    %c0_397 = arith.constant 0 : index
    %754 = vector.load %arg6[%c3_395, %c0_396, %c0_397] : memref<4x32x32xf32, #tpu.memory_space<vmem>>, vector<1x32x32xf32>
    %755 = vector.shape_cast %754 : vector<1x32x32xf32> to vector<32x32xf32>
    %c3_398 = arith.constant 3 : index
    %c0_399 = arith.constant 0 : index
    %c0_400 = arith.constant 0 : index
    %756 = vector.load %arg7[%c3_398, %c0_399, %c0_400] : memref<4x32x32xf32, #tpu.memory_space<vmem>>, vector<1x32x32xf32>
    %757 = vector.shape_cast %756 : vector<1x32x32xf32> to vector<32x32xf32>
    %c3_401 = arith.constant 3 : index
    %c0_402 = arith.constant 0 : index
    %c0_403 = arith.constant 0 : index
    %758 = vector.load %arg8[%c3_401, %c0_402, %c0_403] : memref<4x32x32xf32, #tpu.memory_space<vmem>>, vector<1x32x32xf32>
    %759 = vector.shape_cast %758 : vector<1x32x32xf32> to vector<32x32xf32>
    %c3_404 = arith.constant 3 : index
    %c0_405 = arith.constant 0 : index
    %c0_406 = arith.constant 0 : index
    %760 = vector.load %arg9[%c3_404, %c0_405, %c0_406] : memref<4x1x32xf32, #tpu.memory_space<vmem>>, vector<1x1x32xf32>
    %761 = vector.shape_cast %760 : vector<1x1x32xf32> to vector<1x32xf32>
    %cst_407 = arith.constant dense<0.000000e+00> : vector<9x32xf32>
    %762 = tpu.matmul %751, %753, %cst_407 {dimension_numbers = #tpu.dot_dimension_numbers<[1], [0], [0], [1], [0, 0, 1, 1], [], []>} : vector<9x32xf32>, vector<32x32xf32>, vector<9x32xf32> -> vector<9x32xf32>
    %763 = tpu.transpose %751, [1, 0] : vector<9x32xf32> -> vector<32x9xf32>
    %cst_408 = arith.constant dense<0.000000e+00> : vector<32x9xf32>
    %764 = tpu.matmul %755, %763, %cst_408 {dimension_numbers = #tpu.dot_dimension_numbers<[1], [0], [0], [1], [0, 0, 1, 1], [], []>} : vector<32x32xf32>, vector<32x9xf32>, vector<32x9xf32> -> vector<32x9xf32>
    %cst_409 = arith.constant dense<0.000000e+00> : vector<9x32xf32>
    %765 = tpu.matmul %751, %757, %cst_409 {dimension_numbers = #tpu.dot_dimension_numbers<[1], [0], [0], [1], [0, 0, 1, 1], [], []>} : vector<9x32xf32>, vector<32x32xf32>, vector<9x32xf32> -> vector<9x32xf32>
    %766 = vector.extract_strided_slice %762 {offsets = [0, 0], sizes = [9, 16], strides = [1, 1]} : vector<9x32xf32> to vector<9x16xf32>
    %767 = vector.extract_strided_slice %764 {offsets = [0, 0], sizes = [16, 9], strides = [1, 1]} : vector<32x9xf32> to vector<16x9xf32>
    %cst_410 = arith.constant dense<0.000000e+00> : vector<9x9xf32>
    %768 = tpu.matmul %766, %767, %cst_410 {dimension_numbers = #tpu.dot_dimension_numbers<[1], [0], [0], [1], [0, 0, 1, 1], [], []>} : vector<9x16xf32>, vector<16x9xf32>, vector<9x9xf32> -> vector<9x9xf32>
    %cst_411 = arith.constant 2.500000e-01 : f32
    %769 = vector.broadcast %cst_411 : f32 to vector<9x9xf32>
    %770 = arith.mulf %768, %769 : vector<9x9xf32>
    %cst_412 = arith.constant dense<0xFF800000> : vector<9xf32>
    %771 = vector.multi_reduction <maximumf>, %770, %cst_412 [1] : vector<9x9xf32> to vector<9xf32>
    %772 = vector.shape_cast %771 : vector<9xf32> to vector<9x1xf32>
    %773 = vector.broadcast %772 : vector<9x1xf32> to vector<9x9xf32>
    %774 = arith.subf %770, %773 : vector<9x9xf32>
    %775 = math.exp %774 : vector<9x9xf32>
    %cst_413 = arith.constant dense<0.000000e+00> : vector<9xf32>
    %776 = vector.multi_reduction <add>, %775, %cst_413 [1] : vector<9x9xf32> to vector<9xf32>
    %777 = vector.shape_cast %776 : vector<9xf32> to vector<9x1xf32>
    %778 = vector.extract_strided_slice %765 {offsets = [0, 0], sizes = [9, 16], strides = [1, 1]} : vector<9x32xf32> to vector<9x16xf32>
    %cst_414 = arith.constant dense<0.000000e+00> : vector<9x16xf32>
    %779 = tpu.matmul %775, %778, %cst_414 {dimension_numbers = #tpu.dot_dimension_numbers<[1], [0], [0], [1], [0, 0, 1, 1], [], []>} : vector<9x9xf32>, vector<9x16xf32>, vector<9x16xf32> -> vector<9x16xf32>
    %780 = vector.broadcast %777 : vector<9x1xf32> to vector<9x16xf32>
    %781 = arith.divf %779, %780 : vector<9x16xf32>
    %782 = vector.extract_strided_slice %762 {offsets = [0, 16], sizes = [9, 16], strides = [1, 1]} : vector<9x32xf32> to vector<9x16xf32>
    %783 = vector.extract_strided_slice %764 {offsets = [16, 0], sizes = [16, 9], strides = [1, 1]} : vector<32x9xf32> to vector<16x9xf32>
    %cst_415 = arith.constant dense<0.000000e+00> : vector<9x9xf32>
    %784 = tpu.matmul %782, %783, %cst_415 {dimension_numbers = #tpu.dot_dimension_numbers<[1], [0], [0], [1], [0, 0, 1, 1], [], []>} : vector<9x16xf32>, vector<16x9xf32>, vector<9x9xf32> -> vector<9x9xf32>
    %cst_416 = arith.constant 2.500000e-01 : f32
    %785 = vector.broadcast %cst_416 : f32 to vector<9x9xf32>
    %786 = arith.mulf %784, %785 : vector<9x9xf32>
    %cst_417 = arith.constant dense<0xFF800000> : vector<9xf32>
    %787 = vector.multi_reduction <maximumf>, %786, %cst_417 [1] : vector<9x9xf32> to vector<9xf32>
    %788 = vector.shape_cast %787 : vector<9xf32> to vector<9x1xf32>
    %789 = vector.broadcast %788 : vector<9x1xf32> to vector<9x9xf32>
    %790 = arith.subf %786, %789 : vector<9x9xf32>
    %791 = math.exp %790 : vector<9x9xf32>
    %cst_418 = arith.constant dense<0.000000e+00> : vector<9xf32>
    %792 = vector.multi_reduction <add>, %791, %cst_418 [1] : vector<9x9xf32> to vector<9xf32>
    %793 = vector.shape_cast %792 : vector<9xf32> to vector<9x1xf32>
    %794 = vector.extract_strided_slice %765 {offsets = [0, 16], sizes = [9, 16], strides = [1, 1]} : vector<9x32xf32> to vector<9x16xf32>
    %cst_419 = arith.constant dense<0.000000e+00> : vector<9x16xf32>
    %795 = tpu.matmul %791, %794, %cst_419 {dimension_numbers = #tpu.dot_dimension_numbers<[1], [0], [0], [1], [0, 0, 1, 1], [], []>} : vector<9x9xf32>, vector<9x16xf32>, vector<9x16xf32> -> vector<9x16xf32>
    %796 = vector.broadcast %793 : vector<9x1xf32> to vector<9x16xf32>
    %797 = arith.divf %795, %796 : vector<9x16xf32>
    %798 = tpu.concatenate %781, %797 in 1 : vector<9x16xf32>, vector<9x16xf32> -> vector<9x32xf32>
    %cst_420 = arith.constant dense<0.000000e+00> : vector<9x32xf32>
    %799 = tpu.matmul %798, %759, %cst_420 {dimension_numbers = #tpu.dot_dimension_numbers<[1], [0], [0], [1], [0, 0, 1, 1], [], []>} : vector<9x32xf32>, vector<32x32xf32>, vector<9x32xf32> -> vector<9x32xf32>
    %800 = vector.broadcast %761 : vector<1x32xf32> to vector<9x32xf32>
    %801 = arith.addf %799, %800 : vector<9x32xf32>
    %802 = arith.addf %727, %801 : vector<9x32xf32>
    %c3_421 = arith.constant 3 : index
    %c0_422 = arith.constant 0 : index
    %c0_423 = arith.constant 0 : index
    %803 = vector.load %arg10[%c3_421, %c0_422, %c0_423] : memref<4x1x32xf32, #tpu.memory_space<vmem>>, vector<1x1x32xf32>
    %804 = vector.shape_cast %803 : vector<1x1x32xf32> to vector<1x32xf32>
    %c3_424 = arith.constant 3 : index
    %c0_425 = arith.constant 0 : index
    %c0_426 = arith.constant 0 : index
    %805 = vector.load %arg11[%c3_424, %c0_425, %c0_426] : memref<4x1x32xf32, #tpu.memory_space<vmem>>, vector<1x1x32xf32>
    %806 = vector.shape_cast %805 : vector<1x1x32xf32> to vector<1x32xf32>
    %cst_427 = arith.constant dense<0.000000e+00> : vector<9xf32>
    %807 = vector.multi_reduction <add>, %802, %cst_427 [1] : vector<9x32xf32> to vector<9xf32>
    %808 = vector.shape_cast %807 : vector<9xf32> to vector<9x1xf32>
    %cst_428 = arith.constant 3.200000e+01 : f32
    %809 = vector.broadcast %cst_428 : f32 to vector<9x1xf32>
    %810 = arith.divf %808, %809 : vector<9x1xf32>
    %811 = vector.broadcast %810 : vector<9x1xf32> to vector<9x32xf32>
    %812 = arith.subf %802, %811 : vector<9x32xf32>
    %813 = arith.mulf %812, %812 : vector<9x32xf32>
    %cst_429 = arith.constant dense<0.000000e+00> : vector<9xf32>
    %814 = vector.multi_reduction <add>, %813, %cst_429 [1] : vector<9x32xf32> to vector<9xf32>
    %815 = vector.shape_cast %814 : vector<9xf32> to vector<9x1xf32>
    %cst_430 = arith.constant 3.200000e+01 : f32
    %816 = vector.broadcast %cst_430 : f32 to vector<9x1xf32>
    %817 = arith.divf %815, %816 : vector<9x1xf32>
    %cst_431 = arith.constant 9.99999974E-6 : f32
    %818 = vector.broadcast %cst_431 : f32 to vector<9x1xf32>
    %819 = arith.addf %817, %818 : vector<9x1xf32>
    %820 = math.rsqrt %819 : vector<9x1xf32>
    %821 = vector.broadcast %820 : vector<9x1xf32> to vector<9x32xf32>
    %822 = arith.mulf %812, %821 : vector<9x32xf32>
    %823 = vector.broadcast %804 : vector<1x32xf32> to vector<9x32xf32>
    %824 = arith.mulf %822, %823 : vector<9x32xf32>
    %825 = vector.broadcast %806 : vector<1x32xf32> to vector<9x32xf32>
    %826 = arith.addf %824, %825 : vector<9x32xf32>
    %c3_432 = arith.constant 3 : index
    %c0_433 = arith.constant 0 : index
    %c0_434 = arith.constant 0 : index
    %827 = vector.load %arg12[%c3_432, %c0_433, %c0_434] : memref<4x32x64xf32, #tpu.memory_space<vmem>>, vector<1x32x64xf32>
    %828 = vector.shape_cast %827 : vector<1x32x64xf32> to vector<32x64xf32>
    %cst_435 = arith.constant dense<0.000000e+00> : vector<9x64xf32>
    %829 = tpu.matmul %826, %828, %cst_435 {dimension_numbers = #tpu.dot_dimension_numbers<[1], [0], [0], [1], [0, 0, 1, 1], [], []>} : vector<9x32xf32>, vector<32x64xf32>, vector<9x64xf32> -> vector<9x64xf32>
    %c3_436 = arith.constant 3 : index
    %c0_437 = arith.constant 0 : index
    %c0_438 = arith.constant 0 : index
    %830 = vector.load %arg13[%c3_436, %c0_437, %c0_438] : memref<4x1x64xf32, #tpu.memory_space<vmem>>, vector<1x1x64xf32>
    %831 = vector.shape_cast %830 : vector<1x1x64xf32> to vector<1x64xf32>
    %832 = vector.broadcast %831 : vector<1x64xf32> to vector<9x64xf32>
    %833 = arith.addf %829, %832 : vector<9x64xf32>
    %834 = arith.mulf %833, %833 : vector<9x64xf32>
    %835 = arith.mulf %833, %834 : vector<9x64xf32>
    %cst_439 = arith.constant 4.471500e-02 : f32
    %836 = vector.broadcast %cst_439 : f32 to vector<9x64xf32>
    %837 = arith.mulf %836, %835 : vector<9x64xf32>
    %838 = arith.addf %833, %837 : vector<9x64xf32>
    %cst_440 = arith.constant 0.797884583 : f32
    %839 = vector.broadcast %cst_440 : f32 to vector<9x64xf32>
    %840 = arith.mulf %839, %838 : vector<9x64xf32>
    %841 = math.tanh %840 : vector<9x64xf32>
    %cst_441 = arith.constant 1.000000e+00 : f32
    %842 = vector.broadcast %cst_441 : f32 to vector<9x64xf32>
    %843 = arith.addf %842, %841 : vector<9x64xf32>
    %cst_442 = arith.constant 5.000000e-01 : f32
    %844 = vector.broadcast %cst_442 : f32 to vector<9x64xf32>
    %845 = arith.mulf %844, %843 : vector<9x64xf32>
    %846 = arith.mulf %833, %845 : vector<9x64xf32>
    %c3_443 = arith.constant 3 : index
    %c0_444 = arith.constant 0 : index
    %c0_445 = arith.constant 0 : index
    %847 = vector.load %arg14[%c3_443, %c0_444, %c0_445] : memref<4x64x32xf32, #tpu.memory_space<vmem>>, vector<1x64x32xf32>
    %848 = vector.shape_cast %847 : vector<1x64x32xf32> to vector<64x32xf32>
    %cst_446 = arith.constant dense<0.000000e+00> : vector<9x32xf32>
    %849 = tpu.matmul %846, %848, %cst_446 {dimension_numbers = #tpu.dot_dimension_numbers<[1], [0], [0], [1], [0, 0, 1, 1], [], []>} : vector<9x64xf32>, vector<64x32xf32>, vector<9x32xf32> -> vector<9x32xf32>
    %850 = arith.addf %802, %849 : vector<9x32xf32>
    %c3_447 = arith.constant 3 : index
    %c0_448 = arith.constant 0 : index
    %c0_449 = arith.constant 0 : index
    %851 = vector.load %arg15[%c3_447, %c0_448, %c0_449] : memref<4x1x32xf32, #tpu.memory_space<vmem>>, vector<1x1x32xf32>
    %852 = vector.shape_cast %851 : vector<1x1x32xf32> to vector<1x32xf32>
    %853 = vector.broadcast %852 : vector<1x32xf32> to vector<9x32xf32>
    %854 = arith.addf %850, %853 : vector<9x32xf32>
    %c1_450 = arith.constant 1 : index
    %c0_451 = arith.constant 0 : index
    %c0_452 = arith.constant 0 : index
    %855 = vector.load %arg16[%c1_450, %c0_451, %c0_452] : memref<2x1x32xf32, #tpu.memory_space<vmem>>, vector<1x1x32xf32>
    %856 = vector.shape_cast %855 : vector<1x1x32xf32> to vector<1x32xf32>
    %c1_453 = arith.constant 1 : index
    %c0_454 = arith.constant 0 : index
    %c0_455 = arith.constant 0 : index
    %857 = vector.load %arg17[%c1_453, %c0_454, %c0_455] : memref<2x1x32xf32, #tpu.memory_space<vmem>>, vector<1x1x32xf32>
    %858 = vector.shape_cast %857 : vector<1x1x32xf32> to vector<1x32xf32>
    %cst_456 = arith.constant dense<0.000000e+00> : vector<17xf32>
    %859 = vector.multi_reduction <add>, %600, %cst_456 [1] : vector<17x32xf32> to vector<17xf32>
    %860 = vector.shape_cast %859 : vector<17xf32> to vector<17x1xf32>
    %cst_457 = arith.constant 3.200000e+01 : f32
    %861 = vector.broadcast %cst_457 : f32 to vector<17x1xf32>
    %862 = arith.divf %860, %861 : vector<17x1xf32>
    %863 = vector.broadcast %862 : vector<17x1xf32> to vector<17x32xf32>
    %864 = arith.subf %600, %863 : vector<17x32xf32>
    %865 = arith.mulf %864, %864 : vector<17x32xf32>
    %cst_458 = arith.constant dense<0.000000e+00> : vector<17xf32>
    %866 = vector.multi_reduction <add>, %865, %cst_458 [1] : vector<17x32xf32> to vector<17xf32>
    %867 = vector.shape_cast %866 : vector<17xf32> to vector<17x1xf32>
    %cst_459 = arith.constant 3.200000e+01 : f32
    %868 = vector.broadcast %cst_459 : f32 to vector<17x1xf32>
    %869 = arith.divf %867, %868 : vector<17x1xf32>
    %cst_460 = arith.constant 9.99999974E-6 : f32
    %870 = vector.broadcast %cst_460 : f32 to vector<17x1xf32>
    %871 = arith.addf %869, %870 : vector<17x1xf32>
    %872 = math.rsqrt %871 : vector<17x1xf32>
    %873 = vector.broadcast %872 : vector<17x1xf32> to vector<17x32xf32>
    %874 = arith.mulf %864, %873 : vector<17x32xf32>
    %875 = vector.broadcast %856 : vector<1x32xf32> to vector<17x32xf32>
    %876 = arith.mulf %874, %875 : vector<17x32xf32>
    %877 = vector.broadcast %858 : vector<1x32xf32> to vector<17x32xf32>
    %878 = arith.addf %876, %877 : vector<17x32xf32>
    %c1_461 = arith.constant 1 : index
    %c0_462 = arith.constant 0 : index
    %c0_463 = arith.constant 0 : index
    %879 = vector.load %arg18[%c1_461, %c0_462, %c0_463] : memref<2x32x32xf32, #tpu.memory_space<vmem>>, vector<1x32x32xf32>
    %880 = vector.shape_cast %879 : vector<1x32x32xf32> to vector<32x32xf32>
    %c1_464 = arith.constant 1 : index
    %c0_465 = arith.constant 0 : index
    %c0_466 = arith.constant 0 : index
    %881 = vector.load %arg19[%c1_464, %c0_465, %c0_466] : memref<2x32x32xf32, #tpu.memory_space<vmem>>, vector<1x32x32xf32>
    %882 = vector.shape_cast %881 : vector<1x32x32xf32> to vector<32x32xf32>
    %c1_467 = arith.constant 1 : index
    %c0_468 = arith.constant 0 : index
    %c0_469 = arith.constant 0 : index
    %883 = vector.load %arg20[%c1_467, %c0_468, %c0_469] : memref<2x32x32xf32, #tpu.memory_space<vmem>>, vector<1x32x32xf32>
    %884 = vector.shape_cast %883 : vector<1x32x32xf32> to vector<32x32xf32>
    %c1_470 = arith.constant 1 : index
    %c0_471 = arith.constant 0 : index
    %c0_472 = arith.constant 0 : index
    %885 = vector.load %arg21[%c1_470, %c0_471, %c0_472] : memref<2x32x32xf32, #tpu.memory_space<vmem>>, vector<1x32x32xf32>
    %886 = vector.shape_cast %885 : vector<1x32x32xf32> to vector<32x32xf32>
    %c1_473 = arith.constant 1 : index
    %c0_474 = arith.constant 0 : index
    %c0_475 = arith.constant 0 : index
    %887 = vector.load %arg22[%c1_473, %c0_474, %c0_475] : memref<2x1x32xf32, #tpu.memory_space<vmem>>, vector<1x1x32xf32>
    %888 = vector.shape_cast %887 : vector<1x1x32xf32> to vector<1x32xf32>
    %cst_476 = arith.constant dense<0.000000e+00> : vector<17x32xf32>
    %889 = tpu.matmul %878, %880, %cst_476 {dimension_numbers = #tpu.dot_dimension_numbers<[1], [0], [0], [1], [0, 0, 1, 1], [], []>} : vector<17x32xf32>, vector<32x32xf32>, vector<17x32xf32> -> vector<17x32xf32>
    %890 = tpu.transpose %878, [1, 0] : vector<17x32xf32> -> vector<32x17xf32>
    %cst_477 = arith.constant dense<0.000000e+00> : vector<32x17xf32>
    %891 = tpu.matmul %882, %890, %cst_477 {dimension_numbers = #tpu.dot_dimension_numbers<[1], [0], [0], [1], [0, 0, 1, 1], [], []>} : vector<32x32xf32>, vector<32x17xf32>, vector<32x17xf32> -> vector<32x17xf32>
    %cst_478 = arith.constant dense<0.000000e+00> : vector<17x32xf32>
    %892 = tpu.matmul %878, %884, %cst_478 {dimension_numbers = #tpu.dot_dimension_numbers<[1], [0], [0], [1], [0, 0, 1, 1], [], []>} : vector<17x32xf32>, vector<32x32xf32>, vector<17x32xf32> -> vector<17x32xf32>
    %893 = vector.extract_strided_slice %889 {offsets = [0, 0], sizes = [17, 16], strides = [1, 1]} : vector<17x32xf32> to vector<17x16xf32>
    %894 = vector.extract_strided_slice %891 {offsets = [0, 0], sizes = [16, 17], strides = [1, 1]} : vector<32x17xf32> to vector<16x17xf32>
    %cst_479 = arith.constant dense<0.000000e+00> : vector<17x17xf32>
    %895 = tpu.matmul %893, %894, %cst_479 {dimension_numbers = #tpu.dot_dimension_numbers<[1], [0], [0], [1], [0, 0, 1, 1], [], []>} : vector<17x16xf32>, vector<16x17xf32>, vector<17x17xf32> -> vector<17x17xf32>
    %cst_480 = arith.constant 2.500000e-01 : f32
    %896 = vector.broadcast %cst_480 : f32 to vector<17x17xf32>
    %897 = arith.mulf %895, %896 : vector<17x17xf32>
    %cst_481 = arith.constant dense<0xFF800000> : vector<17xf32>
    %898 = vector.multi_reduction <maximumf>, %897, %cst_481 [1] : vector<17x17xf32> to vector<17xf32>
    %899 = vector.shape_cast %898 : vector<17xf32> to vector<17x1xf32>
    %900 = vector.broadcast %899 : vector<17x1xf32> to vector<17x17xf32>
    %901 = arith.subf %897, %900 : vector<17x17xf32>
    %902 = math.exp %901 : vector<17x17xf32>
    %cst_482 = arith.constant dense<0.000000e+00> : vector<17xf32>
    %903 = vector.multi_reduction <add>, %902, %cst_482 [1] : vector<17x17xf32> to vector<17xf32>
    %904 = vector.shape_cast %903 : vector<17xf32> to vector<17x1xf32>
    %905 = vector.extract_strided_slice %892 {offsets = [0, 0], sizes = [17, 16], strides = [1, 1]} : vector<17x32xf32> to vector<17x16xf32>
    %cst_483 = arith.constant dense<0.000000e+00> : vector<17x16xf32>
    %906 = tpu.matmul %902, %905, %cst_483 {dimension_numbers = #tpu.dot_dimension_numbers<[1], [0], [0], [1], [0, 0, 1, 1], [], []>} : vector<17x17xf32>, vector<17x16xf32>, vector<17x16xf32> -> vector<17x16xf32>
    %907 = vector.broadcast %904 : vector<17x1xf32> to vector<17x16xf32>
    %908 = arith.divf %906, %907 : vector<17x16xf32>
    %909 = vector.extract_strided_slice %889 {offsets = [0, 16], sizes = [17, 16], strides = [1, 1]} : vector<17x32xf32> to vector<17x16xf32>
    %910 = vector.extract_strided_slice %891 {offsets = [16, 0], sizes = [16, 17], strides = [1, 1]} : vector<32x17xf32> to vector<16x17xf32>
    %cst_484 = arith.constant dense<0.000000e+00> : vector<17x17xf32>
    %911 = tpu.matmul %909, %910, %cst_484 {dimension_numbers = #tpu.dot_dimension_numbers<[1], [0], [0], [1], [0, 0, 1, 1], [], []>} : vector<17x16xf32>, vector<16x17xf32>, vector<17x17xf32> -> vector<17x17xf32>
    %cst_485 = arith.constant 2.500000e-01 : f32
    %912 = vector.broadcast %cst_485 : f32 to vector<17x17xf32>
    %913 = arith.mulf %911, %912 : vector<17x17xf32>
    %cst_486 = arith.constant dense<0xFF800000> : vector<17xf32>
    %914 = vector.multi_reduction <maximumf>, %913, %cst_486 [1] : vector<17x17xf32> to vector<17xf32>
    %915 = vector.shape_cast %914 : vector<17xf32> to vector<17x1xf32>
    %916 = vector.broadcast %915 : vector<17x1xf32> to vector<17x17xf32>
    %917 = arith.subf %913, %916 : vector<17x17xf32>
    %918 = math.exp %917 : vector<17x17xf32>
    %cst_487 = arith.constant dense<0.000000e+00> : vector<17xf32>
    %919 = vector.multi_reduction <add>, %918, %cst_487 [1] : vector<17x17xf32> to vector<17xf32>
    %920 = vector.shape_cast %919 : vector<17xf32> to vector<17x1xf32>
    %921 = vector.extract_strided_slice %892 {offsets = [0, 16], sizes = [17, 16], strides = [1, 1]} : vector<17x32xf32> to vector<17x16xf32>
    %cst_488 = arith.constant dense<0.000000e+00> : vector<17x16xf32>
    %922 = tpu.matmul %918, %921, %cst_488 {dimension_numbers = #tpu.dot_dimension_numbers<[1], [0], [0], [1], [0, 0, 1, 1], [], []>} : vector<17x17xf32>, vector<17x16xf32>, vector<17x16xf32> -> vector<17x16xf32>
    %923 = vector.broadcast %920 : vector<17x1xf32> to vector<17x16xf32>
    %924 = arith.divf %922, %923 : vector<17x16xf32>
    %925 = tpu.concatenate %908, %924 in 1 : vector<17x16xf32>, vector<17x16xf32> -> vector<17x32xf32>
    %cst_489 = arith.constant dense<0.000000e+00> : vector<17x32xf32>
    %926 = tpu.matmul %925, %886, %cst_489 {dimension_numbers = #tpu.dot_dimension_numbers<[1], [0], [0], [1], [0, 0, 1, 1], [], []>} : vector<17x32xf32>, vector<32x32xf32>, vector<17x32xf32> -> vector<17x32xf32>
    %927 = vector.broadcast %888 : vector<1x32xf32> to vector<17x32xf32>
    %928 = arith.addf %926, %927 : vector<17x32xf32>
    %929 = arith.addf %600, %928 : vector<17x32xf32>
    %c1_490 = arith.constant 1 : index
    %c0_491 = arith.constant 0 : index
    %c0_492 = arith.constant 0 : index
    %930 = vector.load %arg23[%c1_490, %c0_491, %c0_492] : memref<2x1x32xf32, #tpu.memory_space<vmem>>, vector<1x1x32xf32>
    %931 = vector.shape_cast %930 : vector<1x1x32xf32> to vector<1x32xf32>
    %c1_493 = arith.constant 1 : index
    %c0_494 = arith.constant 0 : index
    %c0_495 = arith.constant 0 : index
    %932 = vector.load %arg24[%c1_493, %c0_494, %c0_495] : memref<2x1x32xf32, #tpu.memory_space<vmem>>, vector<1x1x32xf32>
    %933 = vector.shape_cast %932 : vector<1x1x32xf32> to vector<1x32xf32>
    %cst_496 = arith.constant dense<0.000000e+00> : vector<17xf32>
    %934 = vector.multi_reduction <add>, %929, %cst_496 [1] : vector<17x32xf32> to vector<17xf32>
    %935 = vector.shape_cast %934 : vector<17xf32> to vector<17x1xf32>
    %cst_497 = arith.constant 3.200000e+01 : f32
    %936 = vector.broadcast %cst_497 : f32 to vector<17x1xf32>
    %937 = arith.divf %935, %936 : vector<17x1xf32>
    %938 = vector.broadcast %937 : vector<17x1xf32> to vector<17x32xf32>
    %939 = arith.subf %929, %938 : vector<17x32xf32>
    %940 = arith.mulf %939, %939 : vector<17x32xf32>
    %cst_498 = arith.constant dense<0.000000e+00> : vector<17xf32>
    %941 = vector.multi_reduction <add>, %940, %cst_498 [1] : vector<17x32xf32> to vector<17xf32>
    %942 = vector.shape_cast %941 : vector<17xf32> to vector<17x1xf32>
    %cst_499 = arith.constant 3.200000e+01 : f32
    %943 = vector.broadcast %cst_499 : f32 to vector<17x1xf32>
    %944 = arith.divf %942, %943 : vector<17x1xf32>
    %cst_500 = arith.constant 9.99999974E-6 : f32
    %945 = vector.broadcast %cst_500 : f32 to vector<17x1xf32>
    %946 = arith.addf %944, %945 : vector<17x1xf32>
    %947 = math.rsqrt %946 : vector<17x1xf32>
    %948 = vector.broadcast %947 : vector<17x1xf32> to vector<17x32xf32>
    %949 = arith.mulf %939, %948 : vector<17x32xf32>
    %950 = vector.broadcast %931 : vector<1x32xf32> to vector<17x32xf32>
    %951 = arith.mulf %949, %950 : vector<17x32xf32>
    %952 = vector.broadcast %933 : vector<1x32xf32> to vector<17x32xf32>
    %953 = arith.addf %951, %952 : vector<17x32xf32>
    %c1_501 = arith.constant 1 : index
    %c0_502 = arith.constant 0 : index
    %c0_503 = arith.constant 0 : index
    %954 = vector.load %arg25[%c1_501, %c0_502, %c0_503] : memref<2x32x64xf32, #tpu.memory_space<vmem>>, vector<1x32x64xf32>
    %955 = vector.shape_cast %954 : vector<1x32x64xf32> to vector<32x64xf32>
    %cst_504 = arith.constant dense<0.000000e+00> : vector<17x64xf32>
    %956 = tpu.matmul %953, %955, %cst_504 {dimension_numbers = #tpu.dot_dimension_numbers<[1], [0], [0], [1], [0, 0, 1, 1], [], []>} : vector<17x32xf32>, vector<32x64xf32>, vector<17x64xf32> -> vector<17x64xf32>
    %c1_505 = arith.constant 1 : index
    %c0_506 = arith.constant 0 : index
    %c0_507 = arith.constant 0 : index
    %957 = vector.load %arg26[%c1_505, %c0_506, %c0_507] : memref<2x1x64xf32, #tpu.memory_space<vmem>>, vector<1x1x64xf32>
    %958 = vector.shape_cast %957 : vector<1x1x64xf32> to vector<1x64xf32>
    %959 = vector.broadcast %958 : vector<1x64xf32> to vector<17x64xf32>
    %960 = arith.addf %956, %959 : vector<17x64xf32>
    %961 = arith.mulf %960, %960 : vector<17x64xf32>
    %962 = arith.mulf %960, %961 : vector<17x64xf32>
    %cst_508 = arith.constant 4.471500e-02 : f32
    %963 = vector.broadcast %cst_508 : f32 to vector<17x64xf32>
    %964 = arith.mulf %963, %962 : vector<17x64xf32>
    %965 = arith.addf %960, %964 : vector<17x64xf32>
    %cst_509 = arith.constant 0.797884583 : f32
    %966 = vector.broadcast %cst_509 : f32 to vector<17x64xf32>
    %967 = arith.mulf %966, %965 : vector<17x64xf32>
    %968 = math.tanh %967 : vector<17x64xf32>
    %cst_510 = arith.constant 1.000000e+00 : f32
    %969 = vector.broadcast %cst_510 : f32 to vector<17x64xf32>
    %970 = arith.addf %969, %968 : vector<17x64xf32>
    %cst_511 = arith.constant 5.000000e-01 : f32
    %971 = vector.broadcast %cst_511 : f32 to vector<17x64xf32>
    %972 = arith.mulf %971, %970 : vector<17x64xf32>
    %973 = arith.mulf %960, %972 : vector<17x64xf32>
    %c1_512 = arith.constant 1 : index
    %c0_513 = arith.constant 0 : index
    %c0_514 = arith.constant 0 : index
    %974 = vector.load %arg27[%c1_512, %c0_513, %c0_514] : memref<2x64x32xf32, #tpu.memory_space<vmem>>, vector<1x64x32xf32>
    %975 = vector.shape_cast %974 : vector<1x64x32xf32> to vector<64x32xf32>
    %cst_515 = arith.constant dense<0.000000e+00> : vector<17x32xf32>
    %976 = tpu.matmul %973, %975, %cst_515 {dimension_numbers = #tpu.dot_dimension_numbers<[1], [0], [0], [1], [0, 0, 1, 1], [], []>} : vector<17x64xf32>, vector<64x32xf32>, vector<17x32xf32> -> vector<17x32xf32>
    %977 = arith.addf %929, %976 : vector<17x32xf32>
    %c1_516 = arith.constant 1 : index
    %c0_517 = arith.constant 0 : index
    %c0_518 = arith.constant 0 : index
    %978 = vector.load %arg28[%c1_516, %c0_517, %c0_518] : memref<2x1x32xf32, #tpu.memory_space<vmem>>, vector<1x1x32xf32>
    %979 = vector.shape_cast %978 : vector<1x1x32xf32> to vector<1x32xf32>
    %980 = vector.broadcast %979 : vector<1x32xf32> to vector<17x32xf32>
    %981 = arith.addf %977, %980 : vector<17x32xf32>
    %982 = vector.extract_strided_slice %854 {offsets = [0, 0], sizes = [1, 32], strides = [1, 1]} : vector<9x32xf32> to vector<1x32xf32>
    %983 = vector.extract_strided_slice %854 {offsets = [1, 0], sizes = [8, 32], strides = [1, 1]} : vector<9x32xf32> to vector<8x32xf32>
    %984 = vector.extract_strided_slice %981 {offsets = [0, 0], sizes = [1, 32], strides = [1, 1]} : vector<17x32xf32> to vector<1x32xf32>
    %985 = vector.extract_strided_slice %981 {offsets = [1, 0], sizes = [16, 32], strides = [1, 1]} : vector<17x32xf32> to vector<16x32xf32>
    %c1_519 = arith.constant 1 : index
    %c0_520 = arith.constant 0 : index
    %c0_521 = arith.constant 0 : index
    %986 = vector.load %arg29[%c1_519, %c0_520, %c0_521] : memref<2x1x32xf32, #tpu.memory_space<vmem>>, vector<1x1x32xf32>
    %987 = vector.shape_cast %986 : vector<1x1x32xf32> to vector<1x32xf32>
    %c1_522 = arith.constant 1 : index
    %c0_523 = arith.constant 0 : index
    %c0_524 = arith.constant 0 : index
    %988 = vector.load %arg30[%c1_522, %c0_523, %c0_524] : memref<2x1x32xf32, #tpu.memory_space<vmem>>, vector<1x1x32xf32>
    %989 = vector.shape_cast %988 : vector<1x1x32xf32> to vector<1x32xf32>
    %cst_525 = arith.constant dense<0.000000e+00> : vector<1xf32>
    %990 = vector.multi_reduction <add>, %982, %cst_525 [1] : vector<1x32xf32> to vector<1xf32>
    %991 = vector.shape_cast %990 : vector<1xf32> to vector<1x1xf32>
    %cst_526 = arith.constant 3.200000e+01 : f32
    %992 = vector.broadcast %cst_526 : f32 to vector<1x1xf32>
    %993 = arith.divf %991, %992 : vector<1x1xf32>
    %994 = vector.broadcast %993 : vector<1x1xf32> to vector<1x32xf32>
    %995 = arith.subf %982, %994 : vector<1x32xf32>
    %996 = arith.mulf %995, %995 : vector<1x32xf32>
    %cst_527 = arith.constant dense<0.000000e+00> : vector<1xf32>
    %997 = vector.multi_reduction <add>, %996, %cst_527 [1] : vector<1x32xf32> to vector<1xf32>
    %998 = vector.shape_cast %997 : vector<1xf32> to vector<1x1xf32>
    %cst_528 = arith.constant 3.200000e+01 : f32
    %999 = vector.broadcast %cst_528 : f32 to vector<1x1xf32>
    %1000 = arith.divf %998, %999 : vector<1x1xf32>
    %cst_529 = arith.constant 9.99999974E-6 : f32
    %1001 = vector.broadcast %cst_529 : f32 to vector<1x1xf32>
    %1002 = arith.addf %1000, %1001 : vector<1x1xf32>
    %1003 = math.rsqrt %1002 : vector<1x1xf32>
    %1004 = vector.broadcast %1003 : vector<1x1xf32> to vector<1x32xf32>
    %1005 = arith.mulf %995, %1004 : vector<1x32xf32>
    %1006 = arith.mulf %1005, %987 : vector<1x32xf32>
    %1007 = arith.addf %1006, %989 : vector<1x32xf32>
    %c1_530 = arith.constant 1 : index
    %c0_531 = arith.constant 0 : index
    %c0_532 = arith.constant 0 : index
    %1008 = vector.load %arg31[%c1_530, %c0_531, %c0_532] : memref<2x32x32xf32, #tpu.memory_space<vmem>>, vector<1x32x32xf32>
    %1009 = vector.shape_cast %1008 : vector<1x32x32xf32> to vector<32x32xf32>
    %c1_533 = arith.constant 1 : index
    %c0_534 = arith.constant 0 : index
    %c0_535 = arith.constant 0 : index
    %1010 = vector.load %arg32[%c1_533, %c0_534, %c0_535] : memref<2x32x32xf32, #tpu.memory_space<vmem>>, vector<1x32x32xf32>
    %1011 = vector.shape_cast %1010 : vector<1x32x32xf32> to vector<32x32xf32>
    %c1_536 = arith.constant 1 : index
    %c0_537 = arith.constant 0 : index
    %c0_538 = arith.constant 0 : index
    %1012 = vector.load %arg33[%c1_536, %c0_537, %c0_538] : memref<2x32x32xf32, #tpu.memory_space<vmem>>, vector<1x32x32xf32>
    %1013 = vector.shape_cast %1012 : vector<1x32x32xf32> to vector<32x32xf32>
    %c1_539 = arith.constant 1 : index
    %c0_540 = arith.constant 0 : index
    %c0_541 = arith.constant 0 : index
    %1014 = vector.load %arg34[%c1_539, %c0_540, %c0_541] : memref<2x32x32xf32, #tpu.memory_space<vmem>>, vector<1x32x32xf32>
    %1015 = vector.shape_cast %1014 : vector<1x32x32xf32> to vector<32x32xf32>
    %c1_542 = arith.constant 1 : index
    %c0_543 = arith.constant 0 : index
    %c0_544 = arith.constant 0 : index
    %1016 = vector.load %arg35[%c1_542, %c0_543, %c0_544] : memref<2x1x32xf32, #tpu.memory_space<vmem>>, vector<1x1x32xf32>
    %1017 = vector.shape_cast %1016 : vector<1x1x32xf32> to vector<1x32xf32>
    %cst_545 = arith.constant dense<0.000000e+00> : vector<1x32xf32>
    %1018 = tpu.matmul %1007, %1009, %cst_545 {dimension_numbers = #tpu.dot_dimension_numbers<[1], [0], [0], [1], [0, 0, 1, 1], [], []>} : vector<1x32xf32>, vector<32x32xf32>, vector<1x32xf32> -> vector<1x32xf32>
    %1019 = tpu.transpose %1007, [1, 0] : vector<1x32xf32> -> vector<32x1xf32>
    %cst_546 = arith.constant dense<0.000000e+00> : vector<32x1xf32>
    %1020 = tpu.matmul %1011, %1019, %cst_546 {dimension_numbers = #tpu.dot_dimension_numbers<[1], [0], [0], [1], [0, 0, 1, 1], [], []>} : vector<32x32xf32>, vector<32x1xf32>, vector<32x1xf32> -> vector<32x1xf32>
    %1021 = tpu.transpose %985, [1, 0] : vector<16x32xf32> -> vector<32x16xf32>
    %cst_547 = arith.constant dense<0.000000e+00> : vector<32x16xf32>
    %1022 = tpu.matmul %1011, %1021, %cst_547 {dimension_numbers = #tpu.dot_dimension_numbers<[1], [0], [0], [1], [0, 0, 1, 1], [], []>} : vector<32x32xf32>, vector<32x16xf32>, vector<32x16xf32> -> vector<32x16xf32>
    %cst_548 = arith.constant dense<0.000000e+00> : vector<1x32xf32>
    %1023 = tpu.matmul %1007, %1013, %cst_548 {dimension_numbers = #tpu.dot_dimension_numbers<[1], [0], [0], [1], [0, 0, 1, 1], [], []>} : vector<1x32xf32>, vector<32x32xf32>, vector<1x32xf32> -> vector<1x32xf32>
    %cst_549 = arith.constant dense<0.000000e+00> : vector<16x32xf32>
    %1024 = tpu.matmul %985, %1013, %cst_549 {dimension_numbers = #tpu.dot_dimension_numbers<[1], [0], [0], [1], [0, 0, 1, 1], [], []>} : vector<16x32xf32>, vector<32x32xf32>, vector<16x32xf32> -> vector<16x32xf32>
    %1025 = vector.extract_strided_slice %1018 {offsets = [0, 0], sizes = [1, 16], strides = [1, 1]} : vector<1x32xf32> to vector<1x16xf32>
    %1026 = vector.extract_strided_slice %1020 {offsets = [0, 0], sizes = [16, 1], strides = [1, 1]} : vector<32x1xf32> to vector<16x1xf32>
    %cst_550 = arith.constant dense<0.000000e+00> : vector<1x1xf32>
    %1027 = tpu.matmul %1025, %1026, %cst_550 {dimension_numbers = #tpu.dot_dimension_numbers<[1], [0], [0], [1], [0, 0, 1, 1], [], []>} : vector<1x16xf32>, vector<16x1xf32>, vector<1x1xf32> -> vector<1x1xf32>
    %cst_551 = arith.constant 2.500000e-01 : f32
    %1028 = vector.broadcast %cst_551 : f32 to vector<1x1xf32>
    %1029 = arith.mulf %1027, %1028 : vector<1x1xf32>
    %1030 = vector.extract_strided_slice %1022 {offsets = [0, 0], sizes = [16, 16], strides = [1, 1]} : vector<32x16xf32> to vector<16x16xf32>
    %cst_552 = arith.constant dense<0.000000e+00> : vector<1x16xf32>
    %1031 = tpu.matmul %1025, %1030, %cst_552 {dimension_numbers = #tpu.dot_dimension_numbers<[1], [0], [0], [1], [0, 0, 1, 1], [], []>} : vector<1x16xf32>, vector<16x16xf32>, vector<1x16xf32> -> vector<1x16xf32>
    %cst_553 = arith.constant 2.500000e-01 : f32
    %1032 = vector.broadcast %cst_553 : f32 to vector<1x16xf32>
    %1033 = arith.mulf %1031, %1032 : vector<1x16xf32>
    %cst_554 = arith.constant dense<0xFF800000> : vector<1xf32>
    %1034 = vector.multi_reduction <maximumf>, %1029, %cst_554 [1] : vector<1x1xf32> to vector<1xf32>
    %1035 = vector.shape_cast %1034 : vector<1xf32> to vector<1x1xf32>
    %cst_555 = arith.constant dense<0xFF800000> : vector<1xf32>
    %1036 = vector.multi_reduction <maximumf>, %1033, %cst_555 [1] : vector<1x16xf32> to vector<1xf32>
    %1037 = vector.shape_cast %1036 : vector<1xf32> to vector<1x1xf32>
    %1038 = arith.maximumf %1035, %1037 : vector<1x1xf32>
    %1039 = arith.subf %1029, %1038 : vector<1x1xf32>
    %1040 = math.exp %1039 : vector<1x1xf32>
    %1041 = vector.broadcast %1038 : vector<1x1xf32> to vector<1x16xf32>
    %1042 = arith.subf %1033, %1041 : vector<1x16xf32>
    %1043 = math.exp %1042 : vector<1x16xf32>
    %cst_556 = arith.constant dense<0.000000e+00> : vector<1xf32>
    %1044 = vector.multi_reduction <add>, %1040, %cst_556 [1] : vector<1x1xf32> to vector<1xf32>
    %1045 = vector.shape_cast %1044 : vector<1xf32> to vector<1x1xf32>
    %cst_557 = arith.constant dense<0.000000e+00> : vector<1xf32>
    %1046 = vector.multi_reduction <add>, %1043, %cst_557 [1] : vector<1x16xf32> to vector<1xf32>
    %1047 = vector.shape_cast %1046 : vector<1xf32> to vector<1x1xf32>
    %1048 = arith.addf %1045, %1047 : vector<1x1xf32>
    %1049 = vector.extract_strided_slice %1023 {offsets = [0, 0], sizes = [1, 16], strides = [1, 1]} : vector<1x32xf32> to vector<1x16xf32>
    %cst_558 = arith.constant dense<0.000000e+00> : vector<1x16xf32>
    %1050 = tpu.matmul %1040, %1049, %cst_558 {dimension_numbers = #tpu.dot_dimension_numbers<[1], [0], [0], [1], [0, 0, 1, 1], [], []>} : vector<1x1xf32>, vector<1x16xf32>, vector<1x16xf32> -> vector<1x16xf32>
    %1051 = vector.extract_strided_slice %1024 {offsets = [0, 0], sizes = [16, 16], strides = [1, 1]} : vector<16x32xf32> to vector<16x16xf32>
    %cst_559 = arith.constant dense<0.000000e+00> : vector<1x16xf32>
    %1052 = tpu.matmul %1043, %1051, %cst_559 {dimension_numbers = #tpu.dot_dimension_numbers<[1], [0], [0], [1], [0, 0, 1, 1], [], []>} : vector<1x16xf32>, vector<16x16xf32>, vector<1x16xf32> -> vector<1x16xf32>
    %1053 = arith.addf %1050, %1052 : vector<1x16xf32>
    %1054 = vector.broadcast %1048 : vector<1x1xf32> to vector<1x16xf32>
    %1055 = arith.divf %1053, %1054 : vector<1x16xf32>
    %1056 = vector.extract_strided_slice %1018 {offsets = [0, 16], sizes = [1, 16], strides = [1, 1]} : vector<1x32xf32> to vector<1x16xf32>
    %1057 = vector.extract_strided_slice %1020 {offsets = [16, 0], sizes = [16, 1], strides = [1, 1]} : vector<32x1xf32> to vector<16x1xf32>
    %cst_560 = arith.constant dense<0.000000e+00> : vector<1x1xf32>
    %1058 = tpu.matmul %1056, %1057, %cst_560 {dimension_numbers = #tpu.dot_dimension_numbers<[1], [0], [0], [1], [0, 0, 1, 1], [], []>} : vector<1x16xf32>, vector<16x1xf32>, vector<1x1xf32> -> vector<1x1xf32>
    %cst_561 = arith.constant 2.500000e-01 : f32
    %1059 = vector.broadcast %cst_561 : f32 to vector<1x1xf32>
    %1060 = arith.mulf %1058, %1059 : vector<1x1xf32>
    %1061 = vector.extract_strided_slice %1022 {offsets = [16, 0], sizes = [16, 16], strides = [1, 1]} : vector<32x16xf32> to vector<16x16xf32>
    %cst_562 = arith.constant dense<0.000000e+00> : vector<1x16xf32>
    %1062 = tpu.matmul %1056, %1061, %cst_562 {dimension_numbers = #tpu.dot_dimension_numbers<[1], [0], [0], [1], [0, 0, 1, 1], [], []>} : vector<1x16xf32>, vector<16x16xf32>, vector<1x16xf32> -> vector<1x16xf32>
    %cst_563 = arith.constant 2.500000e-01 : f32
    %1063 = vector.broadcast %cst_563 : f32 to vector<1x16xf32>
    %1064 = arith.mulf %1062, %1063 : vector<1x16xf32>
    %cst_564 = arith.constant dense<0xFF800000> : vector<1xf32>
    %1065 = vector.multi_reduction <maximumf>, %1060, %cst_564 [1] : vector<1x1xf32> to vector<1xf32>
    %1066 = vector.shape_cast %1065 : vector<1xf32> to vector<1x1xf32>
    %cst_565 = arith.constant dense<0xFF800000> : vector<1xf32>
    %1067 = vector.multi_reduction <maximumf>, %1064, %cst_565 [1] : vector<1x16xf32> to vector<1xf32>
    %1068 = vector.shape_cast %1067 : vector<1xf32> to vector<1x1xf32>
    %1069 = arith.maximumf %1066, %1068 : vector<1x1xf32>
    %1070 = arith.subf %1060, %1069 : vector<1x1xf32>
    %1071 = math.exp %1070 : vector<1x1xf32>
    %1072 = vector.broadcast %1069 : vector<1x1xf32> to vector<1x16xf32>
    %1073 = arith.subf %1064, %1072 : vector<1x16xf32>
    %1074 = math.exp %1073 : vector<1x16xf32>
    %cst_566 = arith.constant dense<0.000000e+00> : vector<1xf32>
    %1075 = vector.multi_reduction <add>, %1071, %cst_566 [1] : vector<1x1xf32> to vector<1xf32>
    %1076 = vector.shape_cast %1075 : vector<1xf32> to vector<1x1xf32>
    %cst_567 = arith.constant dense<0.000000e+00> : vector<1xf32>
    %1077 = vector.multi_reduction <add>, %1074, %cst_567 [1] : vector<1x16xf32> to vector<1xf32>
    %1078 = vector.shape_cast %1077 : vector<1xf32> to vector<1x1xf32>
    %1079 = arith.addf %1076, %1078 : vector<1x1xf32>
    %1080 = vector.extract_strided_slice %1023 {offsets = [0, 16], sizes = [1, 16], strides = [1, 1]} : vector<1x32xf32> to vector<1x16xf32>
    %cst_568 = arith.constant dense<0.000000e+00> : vector<1x16xf32>
    %1081 = tpu.matmul %1071, %1080, %cst_568 {dimension_numbers = #tpu.dot_dimension_numbers<[1], [0], [0], [1], [0, 0, 1, 1], [], []>} : vector<1x1xf32>, vector<1x16xf32>, vector<1x16xf32> -> vector<1x16xf32>
    %1082 = vector.extract_strided_slice %1024 {offsets = [0, 16], sizes = [16, 16], strides = [1, 1]} : vector<16x32xf32> to vector<16x16xf32>
    %cst_569 = arith.constant dense<0.000000e+00> : vector<1x16xf32>
    %1083 = tpu.matmul %1074, %1082, %cst_569 {dimension_numbers = #tpu.dot_dimension_numbers<[1], [0], [0], [1], [0, 0, 1, 1], [], []>} : vector<1x16xf32>, vector<16x16xf32>, vector<1x16xf32> -> vector<1x16xf32>
    %1084 = arith.addf %1081, %1083 : vector<1x16xf32>
    %1085 = vector.broadcast %1079 : vector<1x1xf32> to vector<1x16xf32>
    %1086 = arith.divf %1084, %1085 : vector<1x16xf32>
    %1087 = tpu.concatenate %1055, %1086 in 1 : vector<1x16xf32>, vector<1x16xf32> -> vector<1x32xf32>
    %cst_570 = arith.constant dense<0.000000e+00> : vector<1x32xf32>
    %1088 = tpu.matmul %1087, %1015, %cst_570 {dimension_numbers = #tpu.dot_dimension_numbers<[1], [0], [0], [1], [0, 0, 1, 1], [], []>} : vector<1x32xf32>, vector<32x32xf32>, vector<1x32xf32> -> vector<1x32xf32>
    %1089 = arith.addf %1088, %1017 : vector<1x32xf32>
    %1090 = arith.addf %982, %1089 : vector<1x32xf32>
    %c1_571 = arith.constant 1 : index
    %c0_572 = arith.constant 0 : index
    %c0_573 = arith.constant 0 : index
    %1091 = vector.load %arg36[%c1_571, %c0_572, %c0_573] : memref<2x1x32xf32, #tpu.memory_space<vmem>>, vector<1x1x32xf32>
    %1092 = vector.shape_cast %1091 : vector<1x1x32xf32> to vector<1x32xf32>
    %c1_574 = arith.constant 1 : index
    %c0_575 = arith.constant 0 : index
    %c0_576 = arith.constant 0 : index
    %1093 = vector.load %arg37[%c1_574, %c0_575, %c0_576] : memref<2x1x32xf32, #tpu.memory_space<vmem>>, vector<1x1x32xf32>
    %1094 = vector.shape_cast %1093 : vector<1x1x32xf32> to vector<1x32xf32>
    %cst_577 = arith.constant dense<0.000000e+00> : vector<1xf32>
    %1095 = vector.multi_reduction <add>, %984, %cst_577 [1] : vector<1x32xf32> to vector<1xf32>
    %1096 = vector.shape_cast %1095 : vector<1xf32> to vector<1x1xf32>
    %cst_578 = arith.constant 3.200000e+01 : f32
    %1097 = vector.broadcast %cst_578 : f32 to vector<1x1xf32>
    %1098 = arith.divf %1096, %1097 : vector<1x1xf32>
    %1099 = vector.broadcast %1098 : vector<1x1xf32> to vector<1x32xf32>
    %1100 = arith.subf %984, %1099 : vector<1x32xf32>
    %1101 = arith.mulf %1100, %1100 : vector<1x32xf32>
    %cst_579 = arith.constant dense<0.000000e+00> : vector<1xf32>
    %1102 = vector.multi_reduction <add>, %1101, %cst_579 [1] : vector<1x32xf32> to vector<1xf32>
    %1103 = vector.shape_cast %1102 : vector<1xf32> to vector<1x1xf32>
    %cst_580 = arith.constant 3.200000e+01 : f32
    %1104 = vector.broadcast %cst_580 : f32 to vector<1x1xf32>
    %1105 = arith.divf %1103, %1104 : vector<1x1xf32>
    %cst_581 = arith.constant 9.99999974E-6 : f32
    %1106 = vector.broadcast %cst_581 : f32 to vector<1x1xf32>
    %1107 = arith.addf %1105, %1106 : vector<1x1xf32>
    %1108 = math.rsqrt %1107 : vector<1x1xf32>
    %1109 = vector.broadcast %1108 : vector<1x1xf32> to vector<1x32xf32>
    %1110 = arith.mulf %1100, %1109 : vector<1x32xf32>
    %1111 = arith.mulf %1110, %1092 : vector<1x32xf32>
    %1112 = arith.addf %1111, %1094 : vector<1x32xf32>
    %c1_582 = arith.constant 1 : index
    %c0_583 = arith.constant 0 : index
    %c0_584 = arith.constant 0 : index
    %1113 = vector.load %arg38[%c1_582, %c0_583, %c0_584] : memref<2x32x32xf32, #tpu.memory_space<vmem>>, vector<1x32x32xf32>
    %1114 = vector.shape_cast %1113 : vector<1x32x32xf32> to vector<32x32xf32>
    %c1_585 = arith.constant 1 : index
    %c0_586 = arith.constant 0 : index
    %c0_587 = arith.constant 0 : index
    %1115 = vector.load %arg39[%c1_585, %c0_586, %c0_587] : memref<2x32x32xf32, #tpu.memory_space<vmem>>, vector<1x32x32xf32>
    %1116 = vector.shape_cast %1115 : vector<1x32x32xf32> to vector<32x32xf32>
    %c1_588 = arith.constant 1 : index
    %c0_589 = arith.constant 0 : index
    %c0_590 = arith.constant 0 : index
    %1117 = vector.load %arg40[%c1_588, %c0_589, %c0_590] : memref<2x32x32xf32, #tpu.memory_space<vmem>>, vector<1x32x32xf32>
    %1118 = vector.shape_cast %1117 : vector<1x32x32xf32> to vector<32x32xf32>
    %c1_591 = arith.constant 1 : index
    %c0_592 = arith.constant 0 : index
    %c0_593 = arith.constant 0 : index
    %1119 = vector.load %arg41[%c1_591, %c0_592, %c0_593] : memref<2x32x32xf32, #tpu.memory_space<vmem>>, vector<1x32x32xf32>
    %1120 = vector.shape_cast %1119 : vector<1x32x32xf32> to vector<32x32xf32>
    %c1_594 = arith.constant 1 : index
    %c0_595 = arith.constant 0 : index
    %c0_596 = arith.constant 0 : index
    %1121 = vector.load %arg42[%c1_594, %c0_595, %c0_596] : memref<2x1x32xf32, #tpu.memory_space<vmem>>, vector<1x1x32xf32>
    %1122 = vector.shape_cast %1121 : vector<1x1x32xf32> to vector<1x32xf32>
    %cst_597 = arith.constant dense<0.000000e+00> : vector<1x32xf32>
    %1123 = tpu.matmul %1112, %1114, %cst_597 {dimension_numbers = #tpu.dot_dimension_numbers<[1], [0], [0], [1], [0, 0, 1, 1], [], []>} : vector<1x32xf32>, vector<32x32xf32>, vector<1x32xf32> -> vector<1x32xf32>
    %1124 = tpu.transpose %1112, [1, 0] : vector<1x32xf32> -> vector<32x1xf32>
    %cst_598 = arith.constant dense<0.000000e+00> : vector<32x1xf32>
    %1125 = tpu.matmul %1116, %1124, %cst_598 {dimension_numbers = #tpu.dot_dimension_numbers<[1], [0], [0], [1], [0, 0, 1, 1], [], []>} : vector<32x32xf32>, vector<32x1xf32>, vector<32x1xf32> -> vector<32x1xf32>
    %1126 = tpu.transpose %983, [1, 0] : vector<8x32xf32> -> vector<32x8xf32>
    %cst_599 = arith.constant dense<0.000000e+00> : vector<32x8xf32>
    %1127 = tpu.matmul %1116, %1126, %cst_599 {dimension_numbers = #tpu.dot_dimension_numbers<[1], [0], [0], [1], [0, 0, 1, 1], [], []>} : vector<32x32xf32>, vector<32x8xf32>, vector<32x8xf32> -> vector<32x8xf32>
    %cst_600 = arith.constant dense<0.000000e+00> : vector<1x32xf32>
    %1128 = tpu.matmul %1112, %1118, %cst_600 {dimension_numbers = #tpu.dot_dimension_numbers<[1], [0], [0], [1], [0, 0, 1, 1], [], []>} : vector<1x32xf32>, vector<32x32xf32>, vector<1x32xf32> -> vector<1x32xf32>
    %cst_601 = arith.constant dense<0.000000e+00> : vector<8x32xf32>
    %1129 = tpu.matmul %983, %1118, %cst_601 {dimension_numbers = #tpu.dot_dimension_numbers<[1], [0], [0], [1], [0, 0, 1, 1], [], []>} : vector<8x32xf32>, vector<32x32xf32>, vector<8x32xf32> -> vector<8x32xf32>
    %1130 = vector.extract_strided_slice %1123 {offsets = [0, 0], sizes = [1, 16], strides = [1, 1]} : vector<1x32xf32> to vector<1x16xf32>
    %1131 = vector.extract_strided_slice %1125 {offsets = [0, 0], sizes = [16, 1], strides = [1, 1]} : vector<32x1xf32> to vector<16x1xf32>
    %cst_602 = arith.constant dense<0.000000e+00> : vector<1x1xf32>
    %1132 = tpu.matmul %1130, %1131, %cst_602 {dimension_numbers = #tpu.dot_dimension_numbers<[1], [0], [0], [1], [0, 0, 1, 1], [], []>} : vector<1x16xf32>, vector<16x1xf32>, vector<1x1xf32> -> vector<1x1xf32>
    %cst_603 = arith.constant 2.500000e-01 : f32
    %1133 = vector.broadcast %cst_603 : f32 to vector<1x1xf32>
    %1134 = arith.mulf %1132, %1133 : vector<1x1xf32>
    %1135 = vector.extract_strided_slice %1127 {offsets = [0, 0], sizes = [16, 8], strides = [1, 1]} : vector<32x8xf32> to vector<16x8xf32>
    %cst_604 = arith.constant dense<0.000000e+00> : vector<1x8xf32>
    %1136 = tpu.matmul %1130, %1135, %cst_604 {dimension_numbers = #tpu.dot_dimension_numbers<[1], [0], [0], [1], [0, 0, 1, 1], [], []>} : vector<1x16xf32>, vector<16x8xf32>, vector<1x8xf32> -> vector<1x8xf32>
    %cst_605 = arith.constant 2.500000e-01 : f32
    %1137 = vector.broadcast %cst_605 : f32 to vector<1x8xf32>
    %1138 = arith.mulf %1136, %1137 : vector<1x8xf32>
    %cst_606 = arith.constant dense<0xFF800000> : vector<1xf32>
    %1139 = vector.multi_reduction <maximumf>, %1134, %cst_606 [1] : vector<1x1xf32> to vector<1xf32>
    %1140 = vector.shape_cast %1139 : vector<1xf32> to vector<1x1xf32>
    %cst_607 = arith.constant dense<0xFF800000> : vector<1xf32>
    %1141 = vector.multi_reduction <maximumf>, %1138, %cst_607 [1] : vector<1x8xf32> to vector<1xf32>
    %1142 = vector.shape_cast %1141 : vector<1xf32> to vector<1x1xf32>
    %1143 = arith.maximumf %1140, %1142 : vector<1x1xf32>
    %1144 = arith.subf %1134, %1143 : vector<1x1xf32>
    %1145 = math.exp %1144 : vector<1x1xf32>
    %1146 = vector.broadcast %1143 : vector<1x1xf32> to vector<1x8xf32>
    %1147 = arith.subf %1138, %1146 : vector<1x8xf32>
    %1148 = math.exp %1147 : vector<1x8xf32>
    %cst_608 = arith.constant dense<0.000000e+00> : vector<1xf32>
    %1149 = vector.multi_reduction <add>, %1145, %cst_608 [1] : vector<1x1xf32> to vector<1xf32>
    %1150 = vector.shape_cast %1149 : vector<1xf32> to vector<1x1xf32>
    %cst_609 = arith.constant dense<0.000000e+00> : vector<1xf32>
    %1151 = vector.multi_reduction <add>, %1148, %cst_609 [1] : vector<1x8xf32> to vector<1xf32>
    %1152 = vector.shape_cast %1151 : vector<1xf32> to vector<1x1xf32>
    %1153 = arith.addf %1150, %1152 : vector<1x1xf32>
    %1154 = vector.extract_strided_slice %1128 {offsets = [0, 0], sizes = [1, 16], strides = [1, 1]} : vector<1x32xf32> to vector<1x16xf32>
    %cst_610 = arith.constant dense<0.000000e+00> : vector<1x16xf32>
    %1155 = tpu.matmul %1145, %1154, %cst_610 {dimension_numbers = #tpu.dot_dimension_numbers<[1], [0], [0], [1], [0, 0, 1, 1], [], []>} : vector<1x1xf32>, vector<1x16xf32>, vector<1x16xf32> -> vector<1x16xf32>
    %1156 = vector.extract_strided_slice %1129 {offsets = [0, 0], sizes = [8, 16], strides = [1, 1]} : vector<8x32xf32> to vector<8x16xf32>
    %cst_611 = arith.constant dense<0.000000e+00> : vector<1x16xf32>
    %1157 = tpu.matmul %1148, %1156, %cst_611 {dimension_numbers = #tpu.dot_dimension_numbers<[1], [0], [0], [1], [0, 0, 1, 1], [], []>} : vector<1x8xf32>, vector<8x16xf32>, vector<1x16xf32> -> vector<1x16xf32>
    %1158 = arith.addf %1155, %1157 : vector<1x16xf32>
    %1159 = vector.broadcast %1153 : vector<1x1xf32> to vector<1x16xf32>
    %1160 = arith.divf %1158, %1159 : vector<1x16xf32>
    %1161 = vector.extract_strided_slice %1123 {offsets = [0, 16], sizes = [1, 16], strides = [1, 1]} : vector<1x32xf32> to vector<1x16xf32>
    %1162 = vector.extract_strided_slice %1125 {offsets = [16, 0], sizes = [16, 1], strides = [1, 1]} : vector<32x1xf32> to vector<16x1xf32>
    %cst_612 = arith.constant dense<0.000000e+00> : vector<1x1xf32>
    %1163 = tpu.matmul %1161, %1162, %cst_612 {dimension_numbers = #tpu.dot_dimension_numbers<[1], [0], [0], [1], [0, 0, 1, 1], [], []>} : vector<1x16xf32>, vector<16x1xf32>, vector<1x1xf32> -> vector<1x1xf32>
    %cst_613 = arith.constant 2.500000e-01 : f32
    %1164 = vector.broadcast %cst_613 : f32 to vector<1x1xf32>
    %1165 = arith.mulf %1163, %1164 : vector<1x1xf32>
    %1166 = vector.extract_strided_slice %1127 {offsets = [16, 0], sizes = [16, 8], strides = [1, 1]} : vector<32x8xf32> to vector<16x8xf32>
    %cst_614 = arith.constant dense<0.000000e+00> : vector<1x8xf32>
    %1167 = tpu.matmul %1161, %1166, %cst_614 {dimension_numbers = #tpu.dot_dimension_numbers<[1], [0], [0], [1], [0, 0, 1, 1], [], []>} : vector<1x16xf32>, vector<16x8xf32>, vector<1x8xf32> -> vector<1x8xf32>
    %cst_615 = arith.constant 2.500000e-01 : f32
    %1168 = vector.broadcast %cst_615 : f32 to vector<1x8xf32>
    %1169 = arith.mulf %1167, %1168 : vector<1x8xf32>
    %cst_616 = arith.constant dense<0xFF800000> : vector<1xf32>
    %1170 = vector.multi_reduction <maximumf>, %1165, %cst_616 [1] : vector<1x1xf32> to vector<1xf32>
    %1171 = vector.shape_cast %1170 : vector<1xf32> to vector<1x1xf32>
    %cst_617 = arith.constant dense<0xFF800000> : vector<1xf32>
    %1172 = vector.multi_reduction <maximumf>, %1169, %cst_617 [1] : vector<1x8xf32> to vector<1xf32>
    %1173 = vector.shape_cast %1172 : vector<1xf32> to vector<1x1xf32>
    %1174 = arith.maximumf %1171, %1173 : vector<1x1xf32>
    %1175 = arith.subf %1165, %1174 : vector<1x1xf32>
    %1176 = math.exp %1175 : vector<1x1xf32>
    %1177 = vector.broadcast %1174 : vector<1x1xf32> to vector<1x8xf32>
    %1178 = arith.subf %1169, %1177 : vector<1x8xf32>
    %1179 = math.exp %1178 : vector<1x8xf32>
    %cst_618 = arith.constant dense<0.000000e+00> : vector<1xf32>
    %1180 = vector.multi_reduction <add>, %1176, %cst_618 [1] : vector<1x1xf32> to vector<1xf32>
    %1181 = vector.shape_cast %1180 : vector<1xf32> to vector<1x1xf32>
    %cst_619 = arith.constant dense<0.000000e+00> : vector<1xf32>
    %1182 = vector.multi_reduction <add>, %1179, %cst_619 [1] : vector<1x8xf32> to vector<1xf32>
    %1183 = vector.shape_cast %1182 : vector<1xf32> to vector<1x1xf32>
    %1184 = arith.addf %1181, %1183 : vector<1x1xf32>
    %1185 = vector.extract_strided_slice %1128 {offsets = [0, 16], sizes = [1, 16], strides = [1, 1]} : vector<1x32xf32> to vector<1x16xf32>
    %cst_620 = arith.constant dense<0.000000e+00> : vector<1x16xf32>
    %1186 = tpu.matmul %1176, %1185, %cst_620 {dimension_numbers = #tpu.dot_dimension_numbers<[1], [0], [0], [1], [0, 0, 1, 1], [], []>} : vector<1x1xf32>, vector<1x16xf32>, vector<1x16xf32> -> vector<1x16xf32>
    %1187 = vector.extract_strided_slice %1129 {offsets = [0, 16], sizes = [8, 16], strides = [1, 1]} : vector<8x32xf32> to vector<8x16xf32>
    %cst_621 = arith.constant dense<0.000000e+00> : vector<1x16xf32>
    %1188 = tpu.matmul %1179, %1187, %cst_621 {dimension_numbers = #tpu.dot_dimension_numbers<[1], [0], [0], [1], [0, 0, 1, 1], [], []>} : vector<1x8xf32>, vector<8x16xf32>, vector<1x16xf32> -> vector<1x16xf32>
    %1189 = arith.addf %1186, %1188 : vector<1x16xf32>
    %1190 = vector.broadcast %1184 : vector<1x1xf32> to vector<1x16xf32>
    %1191 = arith.divf %1189, %1190 : vector<1x16xf32>
    %1192 = tpu.concatenate %1160, %1191 in 1 : vector<1x16xf32>, vector<1x16xf32> -> vector<1x32xf32>
    %cst_622 = arith.constant dense<0.000000e+00> : vector<1x32xf32>
    %1193 = tpu.matmul %1192, %1120, %cst_622 {dimension_numbers = #tpu.dot_dimension_numbers<[1], [0], [0], [1], [0, 0, 1, 1], [], []>} : vector<1x32xf32>, vector<32x32xf32>, vector<1x32xf32> -> vector<1x32xf32>
    %1194 = arith.addf %1193, %1122 : vector<1x32xf32>
    %1195 = arith.addf %984, %1194 : vector<1x32xf32>
    %1196 = tpu.concatenate %1090, %983 in 0 : vector<1x32xf32>, vector<8x32xf32> -> vector<9x32xf32>
    %1197 = tpu.concatenate %1195, %985 in 0 : vector<1x32xf32>, vector<16x32xf32> -> vector<17x32xf32>
    %c0_623 = arith.constant 0 : index
    %c0_624 = arith.constant 0 : index
    %c0_625 = arith.constant 0 : index
    %1198 = vector.load %arg43[%c0_623, %c0_624, %c0_625] : memref<1x9x32xf32, #tpu.memory_space<vmem>>, vector<1x9x32xf32>
    %1199 = vector.shape_cast %1198 : vector<1x9x32xf32> to vector<9x32xf32>
    %1200 = vector.shape_cast %1196 : vector<9x32xf32> to vector<1x9x32xf32>
    tpu.vector_store %arg43[%c0_623, %c0_624, %c0_625], %1200 {strides = array<i32>} : memref<1x9x32xf32, #tpu.memory_space<vmem>>, vector<1x9x32xf32>,
    %c0_626 = arith.constant 0 : index
    %c0_627 = arith.constant 0 : index
    %c0_628 = arith.constant 0 : index
    %1201 = vector.load %arg44[%c0_626, %c0_627, %c0_628] : memref<1x17x32xf32, #tpu.memory_space<vmem>>, vector<1x17x32xf32>
    %1202 = vector.shape_cast %1201 : vector<1x17x32xf32> to vector<17x32xf32>
    %1203 = vector.shape_cast %1197 : vector<17x32xf32> to vector<1x17x32xf32>
    tpu.vector_store %arg44[%c0_626, %c0_627, %c0_628], %1203 {strides = array<i32>} : memref<1x17x32xf32, #tpu.memory_space<vmem>>, vector<1x17x32xf32>,
    return
  }
  func.func @transform_0(%arg0: i32) -> (i32, i32, i32) {
    %c0_i32 = arith.constant 0 : i32
    %c0_i32_0 = arith.constant 0 : i32
    %c0_i32_1 = arith.constant 0 : i32
    return %arg0, %c0_i32, %c0_i32_0 : i32, i32, i32
  }
  func.func @transform_1(%arg0: i32) -> (i32, i32, i32) {
    %c0_i32 = arith.constant 0 : i32
    %c0_i32_0 = arith.constant 0 : i32
    %c0_i32_1 = arith.constant 0 : i32
    return %arg0, %c0_i32, %c0_i32_0 : i32, i32, i32
  }
  func.func @transform_2(%arg0: i32) -> (i32, i32, i32) {
    %c0_i32 = arith.constant 0 : i32
    %c0_i32_0 = arith.constant 0 : i32
    %c0_i32_1 = arith.constant 0 : i32
    %c0_i32_2 = arith.constant 0 : i32
    return %c0_i32, %c0_i32_0, %c0_i32_1 : i32, i32, i32
  }
  func.func @transform_3(%arg0: i32) -> (i32, i32, i32) {
    %c0_i32 = arith.constant 0 : i32
    %c0_i32_0 = arith.constant 0 : i32
    %c0_i32_1 = arith.constant 0 : i32
    %c0_i32_2 = arith.constant 0 : i32
    return %c0_i32, %c0_i32_0, %c0_i32_1 : i32, i32, i32
  }
  func.func @transform_4(%arg0: i32) -> (i32, i32, i32) {
    %c0_i32 = arith.constant 0 : i32
    %c0_i32_0 = arith.constant 0 : i32
    %c0_i32_1 = arith.constant 0 : i32
    %c0_i32_2 = arith.constant 0 : i32
    return %c0_i32, %c0_i32_0, %c0_i32_1 : i32, i32, i32
  }
  func.func @transform_5(%arg0: i32) -> (i32, i32, i32) {
    %c0_i32 = arith.constant 0 : i32
    %c0_i32_0 = arith.constant 0 : i32
    %c0_i32_1 = arith.constant 0 : i32
    %c0_i32_2 = arith.constant 0 : i32
    return %c0_i32, %c0_i32_0, %c0_i32_1 : i32, i32, i32
  }
  func.func @transform_6(%arg0: i32) -> (i32, i32, i32) {
    %c0_i32 = arith.constant 0 : i32
    %c0_i32_0 = arith.constant 0 : i32
    %c0_i32_1 = arith.constant 0 : i32
    %c0_i32_2 = arith.constant 0 : i32
    return %c0_i32, %c0_i32_0, %c0_i32_1 : i32, i32, i32
  }
  func.func @transform_7(%arg0: i32) -> (i32, i32, i32) {
    %c0_i32 = arith.constant 0 : i32
    %c0_i32_0 = arith.constant 0 : i32
    %c0_i32_1 = arith.constant 0 : i32
    %c0_i32_2 = arith.constant 0 : i32
    return %c0_i32, %c0_i32_0, %c0_i32_1 : i32, i32, i32
  }
  func.func @transform_8(%arg0: i32) -> (i32, i32, i32) {
    %c0_i32 = arith.constant 0 : i32
    %c0_i32_0 = arith.constant 0 : i32
    %c0_i32_1 = arith.constant 0 : i32
    %c0_i32_2 = arith.constant 0 : i32
    return %c0_i32, %c0_i32_0, %c0_i32_1 : i32, i32, i32
  }
  func.func @transform_9(%arg0: i32) -> (i32, i32, i32) {
    %c0_i32 = arith.constant 0 : i32
    %c0_i32_0 = arith.constant 0 : i32
    %c0_i32_1 = arith.constant 0 : i32
    %c0_i32_2 = arith.constant 0 : i32
    return %c0_i32, %c0_i32_0, %c0_i32_1 : i32, i32, i32
  }
  func.func @transform_10(%arg0: i32) -> (i32, i32, i32) {
    %c0_i32 = arith.constant 0 : i32
    %c0_i32_0 = arith.constant 0 : i32
    %c0_i32_1 = arith.constant 0 : i32
    %c0_i32_2 = arith.constant 0 : i32
    return %c0_i32, %c0_i32_0, %c0_i32_1 : i32, i32, i32
  }
  func.func @transform_11(%arg0: i32) -> (i32, i32, i32) {
    %c0_i32 = arith.constant 0 : i32
    %c0_i32_0 = arith.constant 0 : i32
    %c0_i32_1 = arith.constant 0 : i32
    %c0_i32_2 = arith.constant 0 : i32
    return %c0_i32, %c0_i32_0, %c0_i32_1 : i32, i32, i32
  }
  func.func @transform_12(%arg0: i32) -> (i32, i32, i32) {
    %c0_i32 = arith.constant 0 : i32
    %c0_i32_0 = arith.constant 0 : i32
    %c0_i32_1 = arith.constant 0 : i32
    %c0_i32_2 = arith.constant 0 : i32
    return %c0_i32, %c0_i32_0, %c0_i32_1 : i32, i32, i32
  }
  func.func @transform_13(%arg0: i32) -> (i32, i32, i32) {
    %c0_i32 = arith.constant 0 : i32
    %c0_i32_0 = arith.constant 0 : i32
    %c0_i32_1 = arith.constant 0 : i32
    %c0_i32_2 = arith.constant 0 : i32
    return %c0_i32, %c0_i32_0, %c0_i32_1 : i32, i32, i32
  }
  func.func @transform_14(%arg0: i32) -> (i32, i32, i32) {
    %c0_i32 = arith.constant 0 : i32
    %c0_i32_0 = arith.constant 0 : i32
    %c0_i32_1 = arith.constant 0 : i32
    %c0_i32_2 = arith.constant 0 : i32
    return %c0_i32, %c0_i32_0, %c0_i32_1 : i32, i32, i32
  }
  func.func @transform_15(%arg0: i32) -> (i32, i32, i32) {
    %c0_i32 = arith.constant 0 : i32
    %c0_i32_0 = arith.constant 0 : i32
    %c0_i32_1 = arith.constant 0 : i32
    %c0_i32_2 = arith.constant 0 : i32
    return %c0_i32, %c0_i32_0, %c0_i32_1 : i32, i32, i32
  }
  func.func @transform_16(%arg0: i32) -> (i32, i32, i32) {
    %c0_i32 = arith.constant 0 : i32
    %c0_i32_0 = arith.constant 0 : i32
    %c0_i32_1 = arith.constant 0 : i32
    %c0_i32_2 = arith.constant 0 : i32
    return %c0_i32, %c0_i32_0, %c0_i32_1 : i32, i32, i32
  }
  func.func @transform_17(%arg0: i32) -> (i32, i32, i32) {
    %c0_i32 = arith.constant 0 : i32
    %c0_i32_0 = arith.constant 0 : i32
    %c0_i32_1 = arith.constant 0 : i32
    %c0_i32_2 = arith.constant 0 : i32
    return %c0_i32, %c0_i32_0, %c0_i32_1 : i32, i32, i32
  }
  func.func @transform_18(%arg0: i32) -> (i32, i32, i32) {
    %c0_i32 = arith.constant 0 : i32
    %c0_i32_0 = arith.constant 0 : i32
    %c0_i32_1 = arith.constant 0 : i32
    %c0_i32_2 = arith.constant 0 : i32
    return %c0_i32, %c0_i32_0, %c0_i32_1 : i32, i32, i32
  }
  func.func @transform_19(%arg0: i32) -> (i32, i32, i32) {
    %c0_i32 = arith.constant 0 : i32
    %c0_i32_0 = arith.constant 0 : i32
    %c0_i32_1 = arith.constant 0 : i32
    %c0_i32_2 = arith.constant 0 : i32
    return %c0_i32, %c0_i32_0, %c0_i32_1 : i32, i32, i32
  }
  func.func @transform_20(%arg0: i32) -> (i32, i32, i32) {
    %c0_i32 = arith.constant 0 : i32
    %c0_i32_0 = arith.constant 0 : i32
    %c0_i32_1 = arith.constant 0 : i32
    %c0_i32_2 = arith.constant 0 : i32
    return %c0_i32, %c0_i32_0, %c0_i32_1 : i32, i32, i32
  }
  func.func @transform_21(%arg0: i32) -> (i32, i32, i32) {
    %c0_i32 = arith.constant 0 : i32
    %c0_i32_0 = arith.constant 0 : i32
    %c0_i32_1 = arith.constant 0 : i32
    %c0_i32_2 = arith.constant 0 : i32
    return %c0_i32, %c0_i32_0, %c0_i32_1 : i32, i32, i32
  }
  func.func @transform_22(%arg0: i32) -> (i32, i32, i32) {
    %c0_i32 = arith.constant 0 : i32
    %c0_i32_0 = arith.constant 0 : i32
    %c0_i32_1 = arith.constant 0 : i32
    %c0_i32_2 = arith.constant 0 : i32
    return %c0_i32, %c0_i32_0, %c0_i32_1 : i32, i32, i32
  }
  func.func @transform_23(%arg0: i32) -> (i32, i32, i32) {
    %c0_i32 = arith.constant 0 : i32
    %c0_i32_0 = arith.constant 0 : i32
    %c0_i32_1 = arith.constant 0 : i32
    %c0_i32_2 = arith.constant 0 : i32
    return %c0_i32, %c0_i32_0, %c0_i32_1 : i32, i32, i32
  }
  func.func @transform_24(%arg0: i32) -> (i32, i32, i32) {
    %c0_i32 = arith.constant 0 : i32
    %c0_i32_0 = arith.constant 0 : i32
    %c0_i32_1 = arith.constant 0 : i32
    %c0_i32_2 = arith.constant 0 : i32
    return %c0_i32, %c0_i32_0, %c0_i32_1 : i32, i32, i32
  }
  func.func @transform_25(%arg0: i32) -> (i32, i32, i32) {
    %c0_i32 = arith.constant 0 : i32
    %c0_i32_0 = arith.constant 0 : i32
    %c0_i32_1 = arith.constant 0 : i32
    %c0_i32_2 = arith.constant 0 : i32
    return %c0_i32, %c0_i32_0, %c0_i32_1 : i32, i32, i32
  }
  func.func @transform_26(%arg0: i32) -> (i32, i32, i32) {
    %c0_i32 = arith.constant 0 : i32
    %c0_i32_0 = arith.constant 0 : i32
    %c0_i32_1 = arith.constant 0 : i32
    %c0_i32_2 = arith.constant 0 : i32
    return %c0_i32, %c0_i32_0, %c0_i32_1 : i32, i32, i32
  }
  func.func @transform_27(%arg0: i32) -> (i32, i32, i32) {
    %c0_i32 = arith.constant 0 : i32
    %c0_i32_0 = arith.constant 0 : i32
    %c0_i32_1 = arith.constant 0 : i32
    %c0_i32_2 = arith.constant 0 : i32
    return %c0_i32, %c0_i32_0, %c0_i32_1 : i32, i32, i32
  }
  func.func @transform_28(%arg0: i32) -> (i32, i32, i32) {
    %c0_i32 = arith.constant 0 : i32
    %c0_i32_0 = arith.constant 0 : i32
    %c0_i32_1 = arith.constant 0 : i32
    %c0_i32_2 = arith.constant 0 : i32
    return %c0_i32, %c0_i32_0, %c0_i32_1 : i32, i32, i32
  }
  func.func @transform_29(%arg0: i32) -> (i32, i32, i32) {
    %c0_i32 = arith.constant 0 : i32
    %c0_i32_0 = arith.constant 0 : i32
    %c0_i32_1 = arith.constant 0 : i32
    %c0_i32_2 = arith.constant 0 : i32
    return %c0_i32, %c0_i32_0, %c0_i32_1 : i32, i32, i32
  }
  func.func @transform_30(%arg0: i32) -> (i32, i32, i32) {
    %c0_i32 = arith.constant 0 : i32
    %c0_i32_0 = arith.constant 0 : i32
    %c0_i32_1 = arith.constant 0 : i32
    %c0_i32_2 = arith.constant 0 : i32
    return %c0_i32, %c0_i32_0, %c0_i32_1 : i32, i32, i32
  }
  func.func @transform_31(%arg0: i32) -> (i32, i32, i32) {
    %c0_i32 = arith.constant 0 : i32
    %c0_i32_0 = arith.constant 0 : i32
    %c0_i32_1 = arith.constant 0 : i32
    %c0_i32_2 = arith.constant 0 : i32
    return %c0_i32, %c0_i32_0, %c0_i32_1 : i32, i32, i32
  }
  func.func @transform_32(%arg0: i32) -> (i32, i32, i32) {
    %c0_i32 = arith.constant 0 : i32
    %c0_i32_0 = arith.constant 0 : i32
    %c0_i32_1 = arith.constant 0 : i32
    %c0_i32_2 = arith.constant 0 : i32
    return %c0_i32, %c0_i32_0, %c0_i32_1 : i32, i32, i32
  }
  func.func @transform_33(%arg0: i32) -> (i32, i32, i32) {
    %c0_i32 = arith.constant 0 : i32
    %c0_i32_0 = arith.constant 0 : i32
    %c0_i32_1 = arith.constant 0 : i32
    %c0_i32_2 = arith.constant 0 : i32
    return %c0_i32, %c0_i32_0, %c0_i32_1 : i32, i32, i32
  }
  func.func @transform_34(%arg0: i32) -> (i32, i32, i32) {
    %c0_i32 = arith.constant 0 : i32
    %c0_i32_0 = arith.constant 0 : i32
    %c0_i32_1 = arith.constant 0 : i32
    %c0_i32_2 = arith.constant 0 : i32
    return %c0_i32, %c0_i32_0, %c0_i32_1 : i32, i32, i32
  }
  func.func @transform_35(%arg0: i32) -> (i32, i32, i32) {
    %c0_i32 = arith.constant 0 : i32
    %c0_i32_0 = arith.constant 0 : i32
    %c0_i32_1 = arith.constant 0 : i32
    %c0_i32_2 = arith.constant 0 : i32
    return %c0_i32, %c0_i32_0, %c0_i32_1 : i32, i32, i32
  }
  func.func @transform_36(%arg0: i32) -> (i32, i32, i32) {
    %c0_i32 = arith.constant 0 : i32
    %c0_i32_0 = arith.constant 0 : i32
    %c0_i32_1 = arith.constant 0 : i32
    %c0_i32_2 = arith.constant 0 : i32
    return %c0_i32, %c0_i32_0, %c0_i32_1 : i32, i32, i32
  }
  func.func @transform_37(%arg0: i32) -> (i32, i32, i32) {
    %c0_i32 = arith.constant 0 : i32
    %c0_i32_0 = arith.constant 0 : i32
    %c0_i32_1 = arith.constant 0 : i32
    %c0_i32_2 = arith.constant 0 : i32
    return %c0_i32, %c0_i32_0, %c0_i32_1 : i32, i32, i32
  }
  func.func @transform_38(%arg0: i32) -> (i32, i32, i32) {
    %c0_i32 = arith.constant 0 : i32
    %c0_i32_0 = arith.constant 0 : i32
    %c0_i32_1 = arith.constant 0 : i32
    %c0_i32_2 = arith.constant 0 : i32
    return %c0_i32, %c0_i32_0, %c0_i32_1 : i32, i32, i32
  }
  func.func @transform_39(%arg0: i32) -> (i32, i32, i32) {
    %c0_i32 = arith.constant 0 : i32
    %c0_i32_0 = arith.constant 0 : i32
    %c0_i32_1 = arith.constant 0 : i32
    %c0_i32_2 = arith.constant 0 : i32
    return %c0_i32, %c0_i32_0, %c0_i32_1 : i32, i32, i32
  }
  func.func @transform_40(%arg0: i32) -> (i32, i32, i32) {
    %c0_i32 = arith.constant 0 : i32
    %c0_i32_0 = arith.constant 0 : i32
    %c0_i32_1 = arith.constant 0 : i32
    %c0_i32_2 = arith.constant 0 : i32
    return %c0_i32, %c0_i32_0, %c0_i32_1 : i32, i32, i32
  }
  func.func @transform_41(%arg0: i32) -> (i32, i32, i32) {
    %c0_i32 = arith.constant 0 : i32
    %c0_i32_0 = arith.constant 0 : i32
    %c0_i32_1 = arith.constant 0 : i32
    %c0_i32_2 = arith.constant 0 : i32
    return %c0_i32, %c0_i32_0, %c0_i32_1 : i32, i32, i32
  }
  func.func @transform_42(%arg0: i32) -> (i32, i32, i32) {
    %c0_i32 = arith.constant 0 : i32
    %c0_i32_0 = arith.constant 0 : i32
    %c0_i32_1 = arith.constant 0 : i32
    return %arg0, %c0_i32, %c0_i32_0 : i32, i32, i32
  }
  func.func @transform_43(%arg0: i32) -> (i32, i32, i32) {
    %c0_i32 = arith.constant 0 : i32
    %c0_i32_0 = arith.constant 0 : i32
    %c0_i32_1 = arith.constant 0 : i32
    return %arg0, %c0_i32, %c0_i32_0 : i32, i32, i32
  }
}

</mosaic_0001>

<llo_original>
// kernel: multi_scale_encoder.1
$region0: #{multi_scale_encoder.1}
  #allocation0 [shape = 'u32[]', space=smem, size = 0x4, offset = 0x4, fixed_abs, tag = 'smem constant byte address 0x4 - core index']
  #allocation1 [shape = 'u32[72,128]{1,0:T(1,128)}', space=vmem, size = 0x9000, scoped, tag = 'internal scratch']
  %s0 = inlined_call_operand.smem [shape: u32[44], index: -1, kind: input, shape index: {}]
  %s1 = sld [smem:[%s0]]
  %s2 = scalar_lea.smem %s0, 1
  %s3 = sld [smem:[%s2]]
  %s4 = scalar_lea.smem %s0, 2
  %s5 = sld [smem:[%s4]]
  %s6 = scalar_lea.smem %s0, 3
  %s7 = sld [smem:[%s6]]
  %s8 = scalar_lea.smem %s0, 4
  %s9 = sld [smem:[%s8]]
  %s10 = scalar_lea.smem %s0, 5
  %s11 = sld [smem:[%s10]]
  %s12 = scalar_lea.smem %s0, 6
  %s13 = sld [smem:[%s12]]
  %s14 = scalar_lea.smem %s0, 7
  %s15 = sld [smem:[%s14]]
  %s16 = scalar_lea.smem %s0, 8
  %s17 = sld [smem:[%s16]]
  %s18 = scalar_lea.smem %s0, 9
  %s19 = sld [smem:[%s18]]
  %s20 = scalar_lea.smem %s0, 10
  %s21 = sld [smem:[%s20]]
  %s22 = scalar_lea.smem %s0, 11
  %s23 = sld [smem:[%s22]]
  %s24 = scalar_lea.smem %s0, 12
  %s25 = sld [smem:[%s24]]
  %s26 = scalar_lea.smem %s0, 13
  %s27 = sld [smem:[%s26]]
  %s28 = scalar_lea.smem %s0, 14
  %s29 = sld [smem:[%s28]]
  %s30 = scalar_lea.smem %s0, 15
  %s31 = sld [smem:[%s30]]
  %s32 = scalar_lea.smem %s0, 16
  %s33 = sld [smem:[%s32]]
  %s34 = scalar_lea.smem %s0, 17
  %s35 = sld [smem:[%s34]]
  %s36 = scalar_lea.smem %s0, 18
  %s37 = sld [smem:[%s36]]
  %s38 = scalar_lea.smem %s0, 19
  %s39 = sld [smem:[%s38]]
  %s40 = scalar_lea.smem %s0, 20
  %s41 = sld [smem:[%s40]]
  %s42 = scalar_lea.smem %s0, 21
  %s43 = sld [smem:[%s42]]
  %s44 = scalar_lea.smem %s0, 22
  %s45 = sld [smem:[%s44]]
  %s46 = scalar_lea.smem %s0, 23
  %s47 = sld [smem:[%s46]]
  %s48 = scalar_lea.smem %s0, 24
  %s49 = sld [smem:[%s48]]
  %s50 = scalar_lea.smem %s0, 25
  %s51 = sld [smem:[%s50]]
  %s52 = scalar_lea.smem %s0, 26
  %s53 = sld [smem:[%s52]]
  %s54 = scalar_lea.smem %s0, 27
  %s55 = sld [smem:[%s54]]
  %s56 = scalar_lea.smem %s0, 28
  %s57 = sld [smem:[%s56]]
  %s58 = scalar_lea.smem %s0, 29
  %s59 = sld [smem:[%s58]]
  %s60 = scalar_lea.smem %s0, 30
  %s61 = sld [smem:[%s60]]
  %s62 = scalar_lea.smem %s0, 31
  %s63 = sld [smem:[%s62]]
  %s64 = scalar_lea.smem %s0, 32
  %s65 = sld [smem:[%s64]]
  %s66 = scalar_lea.smem %s0, 33
  %s67 = sld [smem:[%s66]]
  %s68 = scalar_lea.smem %s0, 34
  %s69 = sld [smem:[%s68]]
  %s70 = scalar_lea.smem %s0, 35
  %s71 = sld [smem:[%s70]]
  %s72 = scalar_lea.smem %s0, 36
  %s73 = sld [smem:[%s72]]
  %s74 = scalar_lea.smem %s0, 37
  %s75 = sld [smem:[%s74]]
  %s76 = scalar_lea.smem %s0, 38
  %s77 = sld [smem:[%s76]]
  %s78 = scalar_lea.smem %s0, 39
  %s79 = sld [smem:[%s78]]
  %s80 = scalar_lea.smem %s0, 40
  %s81 = sld [smem:[%s80]]
  %s82 = scalar_lea.smem %s0, 41
  %s83 = sld [smem:[%s82]]
  %s84 = scalar_lea.smem %s0, 42
  %s85 = sld [smem:[%s84]]
  %s86 = scalar_lea.smem %s0, 43
  %s87 = sld [smem:[%s86]]
  %88 = xla_tuple %s85, %s87
  %s89 = sld [smem:[#allocation0]]
  $region269: #{multi_scale_encoder.1} parent=0
    _
  %s91 = ssub.s32 1, %s89
  %s92 = scalar_select 0, %s91, %s89
  $region1: #{multi_scale_encoder.1} parent=0
    #allocation2 [shape = 'u8[65536]{0}', space=vmem, size = 0x10000, scoped, tag = 'input window, operand 7, single buffered']
    #allocation3 [shape = 's32[2]{0}', space=sflag, size = 0x8, scoped, tag = 'scoped memory for multi_scale_encoder.1']
    #allocation4 [shape = 'u8[65536]{0}', space=vmem, size = 0x10000, scoped, tag = 'input window, operand 11, single buffered']
    #allocation5 [shape = 's32[1]{0}', space=sflag, size = 0x4, scoped, tag = 'scoped memory for multi_scale_encoder.1']
    #allocation6 [shape = 'u8[32768]{0}', space=vmem, size = 0x8000, scoped, tag = 'input window, operand 18, single buffered']
    #allocation7 [shape = 'u8[32768]{0}', space=vmem, size = 0x8000, scoped, tag = 'input window, operand 19, single buffered']
    #allocation8 [shape = 's32[1]{0}', space=sflag, size = 0x4, scoped, tag = 'scoped memory for multi_scale_encoder.1']
    #allocation9 [shape = 'u8[32768]{0}', space=vmem, size = 0x8000, scoped, tag = 'input window, operand 20, single buffered']
    #allocation10 [shape = 'u8[32768]{0}', space=vmem, size = 0x8000, scoped, tag = 'input window, operand 24, single buffered']
    #allocation11 [shape = 's32[1]{0}', space=sflag, size = 0x4, scoped, tag = 'scoped memory for multi_scale_encoder.1']
    #allocation12 [shape = 'u8[1024]{0}', space=vmem, size = 0x400, scoped, tag = 'input window, operand 27, single buffered']
    #allocation13 [shape = 'u8[32768]{0}', space=vmem, size = 0x8000, scoped, tag = 'input window, operand 30, single buffered']
    #allocation14 [shape = 's32[1]{0}', space=sflag, size = 0x4, scoped, tag = 'scoped memory for multi_scale_encoder.1']
    #allocation15 [shape = 'u8[32768]{0}', space=vmem, size = 0x8000, scoped, tag = 'input window, operand 31, single buffered']
    #allocation16 [shape = 'u8[32768]{0}', space=vmem, size = 0x8000, scoped, tag = 'input window, operand 32, single buffered']
    #allocation17 [shape = 's32[1]{0}', space=sflag, size = 0x4, scoped, tag = 'scoped memory for multi_scale_encoder.1']
    #allocation18 [shape = 'u8[32768]{0}', space=vmem, size = 0x8000, scoped, tag = 'input window, operand 33, single buffered']
    #allocation19 [shape = 'u8[32768]{0}', space=vmem, size = 0x8000, scoped, tag = 'input window, operand 37, single buffered']
    #allocation20 [shape = 's32[1]{0}', space=sflag, size = 0x4, scoped, tag = 'scoped memory for multi_scale_encoder.1']
    #allocation21 [shape = 'u8[32768]{0}', space=vmem, size = 0x8000, scoped, tag = 'input window, operand 38, single buffered']
    #allocation22 [shape = 'u8[32768]{0}', space=vmem, size = 0x8000, scoped, tag = 'input window, operand 39, single buffered']
    #allocation23 [shape = 's32[1]{0}', space=sflag, size = 0x4, scoped, tag = 'scoped memory for multi_scale_encoder.1']
    #allocation24 [shape = 'u8[32768]{0}', space=vmem, size = 0x8000, scoped, tag = 'input window, operand 40, single buffered']
    %93 = vsyncpa [#allocation3], 0
    %94 = vsyncpa [#allocation5], 0
    %95 = vsyncpa [#allocation8], 0
    %96 = vsyncpa [#allocation11], 0
    %97 = vsyncpa [#allocation14], 0
    %98 = vsyncpa [#allocation17], 0
    %99 = vsyncpa [#allocation20], 0
    %100 = vsyncpa [#allocation23], 0
    loop: start=0, step=1, limit=4
    $region2: #{multi_scale_encoder.1} parent=1 // loop_pre_header
      _
    $region3: #{multi_scale_encoder.1} parent=1 // loop_header
      %s102 = sphi 0, %s106
      %p103 = scmp.ge.s32.totalorder %s102, 4
      %s112 = sphi 0, %s114
      %s115 = sphi 0, %s112
      %s116 = sphi 0, %s115
      %s132 = sphi 0, %s116
      %s138 = sphi 0, %s140
      %s141 = sphi 0, %s138
      %s142 = sphi 0, %s141
      %s158 = sphi 0, %s142
      %s162 = sphi 0, %s162
      %s164 = sphi 0, %s162
      %s165 = sphi 0, %s164
      %s179 = sphi 0, %s165
      %s183 = sphi 0, %s183
      %s185 = sphi 0, %s183
      %s186 = sphi 0, %s185
      %s200 = sphi 0, %s186
      %s204 = sphi 0, %s204
      %s206 = sphi 0, %s204
      %s207 = sphi 0, %s206
      %s221 = sphi 0, %s207
      %s225 = sphi 0, %s225
      %s227 = sphi 0, %s225
      %s228 = sphi 0, %s227
      %s242 = sphi 0, %s228
      %s246 = sphi 0, %s246
      %s248 = sphi 0, %s246
      %s249 = sphi 0, %s248
      %s263 = sphi 0, %s249
      %s267 = sphi 0, %s267
      %s269 = sphi 0, %s267
      %s270 = sphi 0, %s269
      %s284 = sphi 0, %s270
      %s288 = sphi 0, %s288
      %s290 = sphi 0, %s288
      %s291 = sphi 0, %s290
      %s305 = sphi 0, %s291
      %s309 = sphi 0, %s309
      %s311 = sphi 0, %s309
      %s312 = sphi 0, %s311
      %s326 = sphi 0, %s312
      %s330 = sphi 0, %s330
      %s332 = sphi 0, %s330
      %s333 = sphi 0, %s332
      %s347 = sphi 0, %s333
      %s351 = sphi 0, %s351
      %s353 = sphi 0, %s351
      %s354 = sphi 0, %s353
      %s368 = sphi 0, %s354
      %s372 = sphi 0, %s372
      %s374 = sphi 0, %s372
      %s375 = sphi 0, %s374
      %s389 = sphi 0, %s375
      %s393 = sphi 0, %s393
      %s395 = sphi 0, %s393
      %s396 = sphi 0, %s395
      %s410 = sphi 0, %s396
      %s414 = sphi 0, %s414
      %s416 = sphi 0, %s414
      %s417 = sphi 0, %s416
      %s431 = sphi 0, %s417
      %s435 = sphi 0, %s435
      %s437 = sphi 0, %s435
      %s438 = sphi 0, %s437
      %s452 = sphi 0, %s438
      %s456 = sphi 0, %s456
      %s458 = sphi 0, %s456
      %s459 = sphi 0, %s458
      %s473 = sphi 0, %s459
      %s477 = sphi 0, %s477
      %s479 = sphi 0, %s477
      %s480 = sphi 0, %s479
      %s494 = sphi 0, %s480
      %s498 = sphi 0, %s498
      %s500 = sphi 0, %s498
      %s501 = sphi 0, %s500
      %s515 = sphi 0, %s501
      %s519 = sphi 0, %s519
      %s521 = sphi 0, %s519
      %s522 = sphi 0, %s521
      %s536 = sphi 0, %s522
      %s540 = sphi 0, %s540
      %s542 = sphi 0, %s540
      %s543 = sphi 0, %s542
      %s557 = sphi 0, %s543
      %s561 = sphi 0, %s561
      %s563 = sphi 0, %s561
      %s564 = sphi 0, %s563
      %s578 = sphi 0, %s564
      %s582 = sphi 0, %s582
      %s584 = sphi 0, %s582
      %s585 = sphi 0, %s584
      %s599 = sphi 0, %s585
      %s603 = sphi 0, %s603
      %s605 = sphi 0, %s603
      %s606 = sphi 0, %s605
      %s620 = sphi 0, %s606
      %s624 = sphi 0, %s624
      %s626 = sphi 0, %s624
      %s627 = sphi 0, %s626
      %s641 = sphi 0, %s627
      %s645 = sphi 0, %s645
      %s647 = sphi 0, %s645
      %s648 = sphi 0, %s647
      %s662 = sphi 0, %s648
      %s666 = sphi 0, %s666
      %s668 = sphi 0, %s666
      %s669 = sphi 0, %s668
      %s683 = sphi 0, %s669
      %s687 = sphi 0, %s687
      %s689 = sphi 0, %s687
      %s690 = sphi 0, %s689
      %s704 = sphi 0, %s690
      %s708 = sphi 0, %s708
      %s710 = sphi 0, %s708
      %s711 = sphi 0, %s710
      %s725 = sphi 0, %s711
      %s729 = sphi 0, %s729
      %s731 = sphi 0, %s729
      %s732 = sphi 0, %s731
      %s746 = sphi 0, %s732
      %s750 = sphi 0, %s750
      %s752 = sphi 0, %s750
      %s753 = sphi 0, %s752
      %s767 = sphi 0, %s753
      %s771 = sphi 0, %s771
      %s773 = sphi 0, %s771
      %s774 = sphi 0, %s773
      %s788 = sphi 0, %s774
      %s792 = sphi 0, %s792
      %s794 = sphi 0, %s792
      %s795 = sphi 0, %s794
      %s809 = sphi 0, %s795
      %s813 = sphi 0, %s813
      %s815 = sphi 0, %s813
      %s816 = sphi 0, %s815
      %s830 = sphi 0, %s816
      %s834 = sphi 0, %s834
      %s836 = sphi 0, %s834
      %s837 = sphi 0, %s836
      %s851 = sphi 0, %s837
      %s855 = sphi 0, %s855
      %s857 = sphi 0, %s855
      %s858 = sphi 0, %s857
      %s872 = sphi 0, %s858
      %s876 = sphi 0, %s876
      %s878 = sphi 0, %s876
      %s879 = sphi 0, %s878
      %s893 = sphi 0, %s879
      %s897 = sphi 0, %s897
      %s899 = sphi 0, %s897
      %s900 = sphi 0, %s899
      %s914 = sphi 0, %s900
      %s918 = sphi 0, %s918
      %s920 = sphi 0, %s918
      %s921 = sphi 0, %s920
      %s935 = sphi 0, %s921
      %s939 = sphi 0, %s939
      %s941 = sphi 0, %s939
      %s942 = sphi 0, %s941
      %s956 = sphi 0, %s942
      %s960 = sphi 0, %s960
      %s962 = sphi 0, %s960
      %s963 = sphi 0, %s962
      %s977 = sphi 0, %s963
      %s981 = sphi 0, %s981
      %s983 = sphi 0, %s981
      %s984 = sphi 0, %s983
      %s998 = sphi 0, %s984
      %s1004 = sphi 0, %s1006
      %s1007 = sphi 0, %s1004
      %s1008 = sphi 0, %s1007
      %s1024 = sphi 0, %s1008
      %s1030 = sphi 0, %s1032
      %s1033 = sphi 0, %s1030
      %s1034 = sphi 0, %s1033
      %s1050 = sphi 0, %s1034
    $region4: #{multi_scale_encoder.1} parent=1 // loop_header_branch
      %105 = sbr.rel (%p103) target = $region8
    $region5: #{multi_scale_encoder.1} parent=1 // loop_body
      %s107 = ssub.s32 %s102, 1
      %s108 = ssub.s32 %s102, 2
      %s109 = sadd.s32 %s102, 1
      %s110 = ssub.s32 %s102, %s109
      %p111 = scmp.eq.s32.totalorder %s110, 0
      %s113 = sadd.s32 %s112, 1
      %s114 = scalar_select %p111, %s112, %s113
      %p117 = pneg %p111
      %p118 = scmp.eq.s32.totalorder %s102, 1
      %p119 = por %p117, %p118
      %p120 = scmp.ne.s32.totalorder %s112, %s115
      %p121 = scmp.eq.s32.totalorder %s102, 0
      %p122 = por %p120, %p121
      %p123 = scmp.ne.s32.totalorder %s112, %s115
      %p124 = scmp.eq.s32.totalorder %s107, 1
      %p125 = por %p123, %p124
      %p126 = scmp.ne.s32.totalorder %s115, %s116
      %p127 = scmp.eq.s32.totalorder %s107, 0
      %p128 = por %p126, %p127
      %p129 = scmp.ne.s32.totalorder %s115, %s116
      %p130 = scmp.eq.s32.totalorder %s108, 1
      %p131 = por %p129, %p130
      %p133 = scmp.ne.s32.totalorder %s116, %s132
      %p134 = scmp.eq.s32.totalorder %s108, 0
      %p135 = por %p133, %p134
      %s136 = ssub.s32 %s102, %s109
      %p137 = scmp.eq.s32.totalorder %s136, 0
      %s139 = sadd.s32 %s138, 1
      %s140 = scalar_select %p137, %s138, %s139
      %p143 = pneg %p137
      %p144 = scmp.eq.s32.totalorder %s102, 1
      %p145 = por %p143, %p144
      %p146 = scmp.ne.s32.totalorder %s138, %s141
      %p147 = scmp.eq.s32.totalorder %s102, 0
      %p148 = por %p146, %p147
      %p149 = scmp.ne.s32.totalorder %s138, %s141
      %p150 = scmp.eq.s32.totalorder %s107, 1
      %p151 = por %p149, %p150
      %p152 = scmp.ne.s32.totalorder %s141, %s142
      %p153 = scmp.eq.s32.totalorder %s107, 0
      %p154 = por %p152, %p153
      %p155 = scmp.ne.s32.totalorder %s141, %s142
      %p156 = scmp.eq.s32.totalorder %s108, 1
      %p157 = por %p155, %p156
      %p159 = scmp.ne.s32.totalorder %s142, %s158
      %p160 = scmp.eq.s32.totalorder %s108, 0
      %p161 = por %p159, %p160
      %s163 = sadd.s32 %s162, 1
      %p166 = scmp.eq.s32.totalorder %s102, 1
      %p167 = scmp.ne.s32.totalorder %s162, %s164
      %p168 = scmp.eq.s32.totalorder %s102, 0
      %p169 = por %p167, %p168
      %p170 = scmp.ne.s32.totalorder %s162, %s164
      %p171 = scmp.eq.s32.totalorder %s107, 1
      %p172 = por %p170, %p171
      %p173 = scmp.ne.s32.totalorder %s164, %s165
      %p174 = scmp.eq.s32.totalorder %s107, 0
      %p175 = por %p173, %p174
      %p176 = scmp.ne.s32.totalorder %s164, %s165
      %p177 = scmp.eq.s32.totalorder %s108, 1
      %p178 = por %p176, %p177
      %p180 = scmp.ne.s32.totalorder %s165, %s179
      %p181 = scmp.eq.s32.totalorder %s108, 0
      %p182 = por %p180, %p181
      %s184 = sadd.s32 %s183, 1
      %p187 = scmp.eq.s32.totalorder %s102, 1
      %p188 = scmp.ne.s32.totalorder %s183, %s185
      %p189 = scmp.eq.s32.totalorder %s102, 0
      %p190 = por %p188, %p189
      %p191 = scmp.ne.s32.totalorder %s183, %s185
      %p192 = scmp.eq.s32.totalorder %s107, 1
      %p193 = por %p191, %p192
      %p194 = scmp.ne.s32.totalorder %s185, %s186
      %p195 = scmp.eq.s32.totalorder %s107, 0
      %p196 = por %p194, %p195
      %p197 = scmp.ne.s32.totalorder %s185, %s186
      %p198 = scmp.eq.s32.totalorder %s108, 1
      %p199 = por %p197, %p198
      %p201 = scmp.ne.s32.totalorder %s186, %s200
      %p202 = scmp.eq.s32.totalorder %s108, 0
      %p203 = por %p201, %p202
      %s205 = sadd.s32 %s204, 1
      %p208 = scmp.eq.s32.totalorder %s102, 1
      %p209 = scmp.ne.s32.totalorder %s204, %s206
      %p210 = scmp.eq.s32.totalorder %s102, 0
      %p211 = por %p209, %p210
      %p212 = scmp.ne.s32.totalorder %s204, %s206
      %p213 = scmp.eq.s32.totalorder %s107, 1
      %p214 = por %p212, %p213
      %p215 = scmp.ne.s32.totalorder %s206, %s207
      %p216 = scmp.eq.s32.totalorder %s107, 0
      %p217 = por %p215, %p216
      %p218 = scmp.ne.s32.totalorder %s206, %s207
      %p219 = scmp.eq.s32.totalorder %s108, 1
      %p220 = por %p218, %p219
      %p222 = scmp.ne.s32.totalorder %s207, %s221
      %p223 = scmp.eq.s32.totalorder %s108, 0
      %p224 = por %p222, %p223
      %s226 = sadd.s32 %s225, 1
      %p229 = scmp.eq.s32.totalorder %s102, 1
      %p230 = scmp.ne.s32.totalorder %s225, %s227
      %p231 = scmp.eq.s32.totalorder %s102, 0
      %p232 = por %p230, %p231
      %p233 = scmp.ne.s32.totalorder %s225, %s227
      %p234 = scmp.eq.s32.totalorder %s107, 1
      %p235 = por %p233, %p234
      %p236 = scmp.ne.s32.totalorder %s227, %s228
      %p237 = scmp.eq.s32.totalorder %s107, 0
      %p238 = por %p236, %p237
      %p239 = scmp.ne.s32.totalorder %s227, %s228
      %p240 = scmp.eq.s32.totalorder %s108, 1
      %p241 = por %p239, %p240
      %p243 = scmp.ne.s32.totalorder %s228, %s242
      %p244 = scmp.eq.s32.totalorder %s108, 0
      %p245 = por %p243, %p244
      %s247 = sadd.s32 %s246, 1
      %p250 = scmp.eq.s32.totalorder %s102, 1
      %p251 = scmp.ne.s32.totalorder %s246, %s248
      %p252 = scmp.eq.s32.totalorder %s102, 0
      %p253 = por %p251, %p252
      %p254 = scmp.ne.s32.totalorder %s246, %s248
      %p255 = scmp.eq.s32.totalorder %s107, 1
      %p256 = por %p254, %p255
      %p257 = scmp.ne.s32.totalorder %s248, %s249
      %p258 = scmp.eq.s32.totalorder %s107, 0
      %p259 = por %p257, %p258
      %p260 = scmp.ne.s32.totalorder %s248, %s249
      %p261 = scmp.eq.s32.totalorder %s108, 1
      %p262 = por %p260, %p261
      %p264 = scmp.ne.s32.totalorder %s249, %s263
      %p265 = scmp.eq.s32.totalorder %s108, 0
      %p266 = por %p264, %p265
      %s268 = sadd.s32 %s267, 1
      %p271 = scmp.eq.s32.totalorder %s102, 1
      %p272 = scmp.ne.s32.totalorder %s267, %s269
      %p273 = scmp.eq.s32.totalorder %s102, 0
      %p274 = por %p272, %p273
      %p275 = scmp.ne.s32.totalorder %s267, %s269
      %p276 = scmp.eq.s32.totalorder %s107, 1
      %p277 = por %p275, %p276
      %p278 = scmp.ne.s32.totalorder %s269, %s270
      %p279 = scmp.eq.s32.totalorder %s107, 0
      %p280 = por %p278, %p279
      %p281 = scmp.ne.s32.totalorder %s269, %s270
      %p282 = scmp.eq.s32.totalorder %s108, 1
      %p283 = por %p281, %p282
      %p285 = scmp.ne.s32.totalorder %s270, %s284
      %p286 = scmp.eq.s32.totalorder %s108, 0
      %p287 = por %p285, %p286
      %s289 = sadd.s32 %s288, 1
      %p292 = scmp.eq.s32.totalorder %s102, 1
      %p293 = scmp.ne.s32.totalorder %s288, %s290
      %p294 = scmp.eq.s32.totalorder %s102, 0
      %p295 = por %p293, %p294
      %p296 = scmp.ne.s32.totalorder %s288, %s290
      %p297 = scmp.eq.s32.totalorder %s107, 1
      %p298 = por %p296, %p297
      %p299 = scmp.ne.s32.totalorder %s290, %s291
      %p300 = scmp.eq.s32.totalorder %s107, 0
      %p301 = por %p299, %p300
      %p302 = scmp.ne.s32.totalorder %s290, %s291
      %p303 = scmp.eq.s32.totalorder %s108, 1
      %p304 = por %p302, %p303
      %p306 = scmp.ne.s32.totalorder %s291, %s305
      %p307 = scmp.eq.s32.totalorder %s108, 0
      %p308 = por %p306, %p307
      %s310 = sadd.s32 %s309, 1
      %p313 = scmp.eq.s32.totalorder %s102, 1
      %p314 = scmp.ne.s32.totalorder %s309, %s311
      %p315 = scmp.eq.s32.totalorder %s102, 0
      %p316 = por %p314, %p315
      %p317 = scmp.ne.s32.totalorder %s309, %s311
      %p318 = scmp.eq.s32.totalorder %s107, 1
      %p319 = por %p317, %p318
      %p320 = scmp.ne.s32.totalorder %s311, %s312
      %p321 = scmp.eq.s32.totalorder %s107, 0
      %p322 = por %p320, %p321
      %p323 = scmp.ne.s32.totalorder %s311, %s312
      %p324 = scmp.eq.s32.totalorder %s108, 1
      %p325 = por %p323, %p324
      %p327 = scmp.ne.s32.totalorder %s312, %s326
      %p328 = scmp.eq.s32.totalorder %s108, 0
      %p329 = por %p327, %p328
      %s331 = sadd.s32 %s330, 1
      %p334 = scmp.eq.s32.totalorder %s102, 1
      %p335 = scmp.ne.s32.totalorder %s330, %s332
      %p336 = scmp.eq.s32.totalorder %s102, 0
      %p337 = por %p335, %p336
      %p338 = scmp.ne.s32.totalorder %s330, %s332
      %p339 = scmp.eq.s32.totalorder %s107, 1
      %p340 = por %p338, %p339
      %p341 = scmp.ne.s32.totalorder %s332, %s333
      %p342 = scmp.eq.s32.totalorder %s107, 0
      %p343 = por %p341, %p342
      %p344 = scmp.ne.s32.totalorder %s332, %s333
      %p345 = scmp.eq.s32.totalorder %s108, 1
      %p346 = por %p344, %p345
      %p348 = scmp.ne.s32.totalorder %s333, %s347
      %p349 = scmp.eq.s32.totalorder %s108, 0
      %p350 = por %p348, %p349
      %s352 = sadd.s32 %s351, 1
      %p355 = scmp.eq.s32.totalorder %s102, 1
      %p356 = scmp.ne.s32.totalorder %s351, %s353
      %p357 = scmp.eq.s32.totalorder %s102, 0
      %p358 = por %p356, %p357
      %p359 = scmp.ne.s32.totalorder %s351, %s353
      %p360 = scmp.eq.s32.totalorder %s107, 1
      %p361 = por %p359, %p360
      %p362 = scmp.ne.s32.totalorder %s353, %s354
      %p363 = scmp.eq.s32.totalorder %s107, 0
      %p364 = por %p362, %p363
      %p365 = scmp.ne.s32.totalorder %s353, %s354
      %p366 = scmp.eq.s32.totalorder %s108, 1
      %p367 = por %p365, %p366
      %p369 = scmp.ne.s32.totalorder %s354, %s368
      %p370 = scmp.eq.s32.totalorder %s108, 0
      %p371 = por %p369, %p370
      %s373 = sadd.s32 %s372, 1
      %p376 = scmp.eq.s32.totalorder %s102, 1
      %p377 = scmp.ne.s32.totalorder %s372, %s374
      %p378 = scmp.eq.s32.totalorder %s102, 0
      %p379 = por %p377, %p378
      %p380 = scmp.ne.s32.totalorder %s372, %s374
      %p381 = scmp.eq.s32.totalorder %s107, 1
      %p382 = por %p380, %p381
      %p383 = scmp.ne.s32.totalorder %s374, %s375
      %p384 = scmp.eq.s32.totalorder %s107, 0
      %p385 = por %p383, %p384
      %p386 = scmp.ne.s32.totalorder %s374, %s375
      %p387 = scmp.eq.s32.totalorder %s108, 1
      %p388 = por %p386, %p387
      %p390 = scmp.ne.s32.totalorder %s375, %s389
      %p391 = scmp.eq.s32.totalorder %s108, 0
      %p392 = por %p390, %p391
      %s394 = sadd.s32 %s393, 1
      %p397 = scmp.eq.s32.totalorder %s102, 1
      %p398 = scmp.ne.s32.totalorder %s393, %s395
      %p399 = scmp.eq.s32.totalorder %s102, 0
      %p400 = por %p398, %p399
      %p401 = scmp.ne.s32.totalorder %s393, %s395
      %p402 = scmp.eq.s32.totalorder %s107, 1
      %p403 = por %p401, %p402
      %p404 = scmp.ne.s32.totalorder %s395, %s396
      %p405 = scmp.eq.s32.totalorder %s107, 0
      %p406 = por %p404, %p405
      %p407 = scmp.ne.s32.totalorder %s395, %s396
      %p408 = scmp.eq.s32.totalorder %s108, 1
      %p409 = por %p407, %p408
      %p411 = scmp.ne.s32.totalorder %s396, %s410
      %p412 = scmp.eq.s32.totalorder %s108, 0
      %p413 = por %p411, %p412
      %s415 = sadd.s32 %s414, 1
      %p418 = scmp.eq.s32.totalorder %s102, 1
      %p419 = scmp.ne.s32.totalorder %s414, %s416
      %p420 = scmp.eq.s32.totalorder %s102, 0
      %p421 = por %p419, %p420
      %p422 = scmp.ne.s32.totalorder %s414, %s416
      %p423 = scmp.eq.s32.totalorder %s107, 1
      %p424 = por %p422, %p423
      %p425 = scmp.ne.s32.totalorder %s416, %s417
      %p426 = scmp.eq.s32.totalorder %s107, 0
      %p427 = por %p425, %p426
      %p428 = scmp.ne.s32.totalorder %s416, %s417
      %p429 = scmp.eq.s32.totalorder %s108, 1
      %p430 = por %p428, %p429
      %p432 = scmp.ne.s32.totalorder %s417, %s431
      %p433 = scmp.eq.s32.totalorder %s108, 0
      %p434 = por %p432, %p433
      %s436 = sadd.s32 %s435, 1
      %p439 = scmp.eq.s32.totalorder %s102, 1
      %p440 = scmp.ne.s32.totalorder %s435, %s437
      %p441 = scmp.eq.s32.totalorder %s102, 0
      %p442 = por %p440, %p441
      %p443 = scmp.ne.s32.totalorder %s435, %s437
      %p444 = scmp.eq.s32.totalorder %s107, 1
      %p445 = por %p443, %p444
      %p446 = scmp.ne.s32.totalorder %s437, %s438
      %p447 = scmp.eq.s32.totalorder %s107, 0
      %p448 = por %p446, %p447
      %p449 = scmp.ne.s32.totalorder %s437, %s438
      %p450 = scmp.eq.s32.totalorder %s108, 1
      %p451 = por %p449, %p450
      %p453 = scmp.ne.s32.totalorder %s438, %s452
      %p454 = scmp.eq.s32.totalorder %s108, 0
      %p455 = por %p453, %p454
      %s457 = sadd.s32 %s456, 1
      %p460 = scmp.eq.s32.totalorder %s102, 1
      %p461 = scmp.ne.s32.totalorder %s456, %s458
      %p462 = scmp.eq.s32.totalorder %s102, 0
      %p463 = por %p461, %p462
      %p464 = scmp.ne.s32.totalorder %s456, %s458
      %p465 = scmp.eq.s32.totalorder %s107, 1
      %p466 = por %p464, %p465
      %p467 = scmp.ne.s32.totalorder %s458, %s459
      %p468 = scmp.eq.s32.totalorder %s107, 0
      %p469 = por %p467, %p468
      %p470 = scmp.ne.s32.totalorder %s458, %s459
      %p471 = scmp.eq.s32.totalorder %s108, 1
      %p472 = por %p470, %p471
      %p474 = scmp.ne.s32.totalorder %s459, %s473
      %p475 = scmp.eq.s32.totalorder %s108, 0
      %p476 = por %p474, %p475
      %s478 = sadd.s32 %s477, 1
      %p481 = scmp.eq.s32.totalorder %s102, 1
      %p482 = scmp.ne.s32.totalorder %s477, %s479
      %p483 = scmp.eq.s32.totalorder %s102, 0
      %p484 = por %p482, %p483
      %p485 = scmp.ne.s32.totalorder %s477, %s479
      %p486 = scmp.eq.s32.totalorder %s107, 1
      %p487 = por %p485, %p486
      %p488 = scmp.ne.s32.totalorder %s479, %s480
      %p489 = scmp.eq.s32.totalorder %s107, 0
      %p490 = por %p488, %p489
      %p491 = scmp.ne.s32.totalorder %s479, %s480
      %p492 = scmp.eq.s32.totalorder %s108, 1
      %p493 = por %p491, %p492
      %p495 = scmp.ne.s32.totalorder %s480, %s494
      %p496 = scmp.eq.s32.totalorder %s108, 0
      %p497 = por %p495, %p496
      %s499 = sadd.s32 %s498, 1
      %p502 = scmp.eq.s32.totalorder %s102, 1
      %p503 = scmp.ne.s32.totalorder %s498, %s500
      %p504 = scmp.eq.s32.totalorder %s102, 0
      %p505 = por %p503, %p504
      %p506 = scmp.ne.s32.totalorder %s498, %s500
      %p507 = scmp.eq.s32.totalorder %s107, 1
      %p508 = por %p506, %p507
      %p509 = scmp.ne.s32.totalorder %s500, %s501
      %p510 = scmp.eq.s32.totalorder %s107, 0
      %p511 = por %p509, %p510
      %p512 = scmp.ne.s32.totalorder %s500, %s501
      %p513 = scmp.eq.s32.totalorder %s108, 1
      %p514 = por %p512, %p513
      %p516 = scmp.ne.s32.totalorder %s501, %s515
      %p517 = scmp.eq.s32.totalorder %s108, 0
      %p518 = por %p516, %p517
      %s520 = sadd.s32 %s519, 1
      %p523 = scmp.eq.s32.totalorder %s102, 1
      %p524 = scmp.ne.s32.totalorder %s519, %s521
      %p525 = scmp.eq.s32.totalorder %s102, 0
      %p526 = por %p524, %p525
      %p527 = scmp.ne.s32.totalorder %s519, %s521
      %p528 = scmp.eq.s32.totalorder %s107, 1
      %p529 = por %p527, %p528
      %p530 = scmp.ne.s32.totalorder %s521, %s522
      %p531 = scmp.eq.s32.totalorder %s107, 0
      %p532 = por %p530, %p531
      %p533 = scmp.ne.s32.totalorder %s521, %s522
      %p534 = scmp.eq.s32.totalorder %s108, 1
      %p535 = por %p533, %p534
      %p537 = scmp.ne.s32.totalorder %s522, %s536
      %p538 = scmp.eq.s32.totalorder %s108, 0
      %p539 = por %p537, %p538
      %s541 = sadd.s32 %s540, 1
      %p544 = scmp.eq.s32.totalorder %s102, 1
      %p545 = scmp.ne.s32.totalorder %s540, %s542
      %p546 = scmp.eq.s32.totalorder %s102, 0
      %p547 = por %p545, %p546
      %p548 = scmp.ne.s32.totalorder %s540, %s542
      %p549 = scmp.eq.s32.totalorder %s107, 1
      %p550 = por %p548, %p549
      %p551 = scmp.ne.s32.totalorder %s542, %s543
      %p552 = scmp.eq.s32.totalorder %s107, 0
      %p553 = por %p551, %p552
      %p554 = scmp.ne.s32.totalorder %s542, %s543
      %p555 = scmp.eq.s32.totalorder %s108, 1
      %p556 = por %p554, %p555
      %p558 = scmp.ne.s32.totalorder %s543, %s557
      %p559 = scmp.eq.s32.totalorder %s108, 0
      %p560 = por %p558, %p559
      %s562 = sadd.s32 %s561, 1
      %p565 = scmp.eq.s32.totalorder %s102, 1
      %p566 = scmp.ne.s32.totalorder %s561, %s563
      %p567 = scmp.eq.s32.totalorder %s102, 0
      %p568 = por %p566, %p567
      %p569 = scmp.ne.s32.totalorder %s561, %s563
      %p570 = scmp.eq.s32.totalorder %s107, 1
      %p571 = por %p569, %p570
      %p572 = scmp.ne.s32.totalorder %s563, %s564
      %p573 = scmp.eq.s32.totalorder %s107, 0
      %p574 = por %p572, %p573
      %p575 = scmp.ne.s32.totalorder %s563, %s564
      %p576 = scmp.eq.s32.totalorder %s108, 1
      %p577 = por %p575, %p576
      %p579 = scmp.ne.s32.totalorder %s564, %s578
      %p580 = scmp.eq.s32.totalorder %s108, 0
      %p581 = por %p579, %p580
      %s583 = sadd.s32 %s582, 1
      %p586 = scmp.eq.s32.totalorder %s102, 1
      %p587 = scmp.ne.s32.totalorder %s582, %s584
      %p588 = scmp.eq.s32.totalorder %s102, 0
      %p589 = por %p587, %p588
      %p590 = scmp.ne.s32.totalorder %s582, %s584
      %p591 = scmp.eq.s32.totalorder %s107, 1
      %p592 = por %p590, %p591
      %p593 = scmp.ne.s32.totalorder %s584, %s585
      %p594 = scmp.eq.s32.totalorder %s107, 0
      %p595 = por %p593, %p594
      %p596 = scmp.ne.s32.totalorder %s584, %s585
      %p597 = scmp.eq.s32.totalorder %s108, 1
      %p598 = por %p596, %p597
      %p600 = scmp.ne.s32.totalorder %s585, %s599
      %p601 = scmp.eq.s32.totalorder %s108, 0
      %p602 = por %p600, %p601
      %s604 = sadd.s32 %s603, 1
      %p607 = scmp.eq.s32.totalorder %s102, 1
      %p608 = scmp.ne.s32.totalorder %s603, %s605
      %p609 = scmp.eq.s32.totalorder %s102, 0
      %p610 = por %p608, %p609
      %p611 = scmp.ne.s32.totalorder %s603, %s605
      %p612 = scmp.eq.s32.totalorder %s107, 1
      %p613 = por %p611, %p612
      %p614 = scmp.ne.s32.totalorder %s605, %s606
      %p615 = scmp.eq.s32.totalorder %s107, 0
      %p616 = por %p614, %p615
      %p617 = scmp.ne.s32.totalorder %s605, %s606
      %p618 = scmp.eq.s32.totalorder %s108, 1
      %p619 = por %p617, %p618
      %p621 = scmp.ne.s32.totalorder %s606, %s620
      %p622 = scmp.eq.s32.totalorder %s108, 0
      %p623 = por %p621, %p622
      %s625 = sadd.s32 %s624, 1
      %p628 = scmp.eq.s32.totalorder %s102, 1
      %p629 = scmp.ne.s32.totalorder %s624, %s626
      %p630 = scmp.eq.s32.totalorder %s102, 0
      %p631 = por %p629, %p630
      %p632 = scmp.ne.s32.totalorder %s624, %s626
      %p633 = scmp.eq.s32.totalorder %s107, 1
      %p634 = por %p632, %p633
      %p635 = scmp.ne.s32.totalorder %s626, %s627
      %p636 = scmp.eq.s32.totalorder %s107, 0
      %p637 = por %p635, %p636
      %p638 = scmp.ne.s32.totalorder %s626, %s627
      %p639 = scmp.eq.s32.totalorder %s108, 1
      %p640 = por %p638, %p639
      %p642 = scmp.ne.s32.totalorder %s627, %s641
      %p643 = scmp.eq.s32.totalorder %s108, 0
      %p644 = por %p642, %p643
      %s646 = sadd.s32 %s645, 1
      %p649 = scmp.eq.s32.totalorder %s102, 1
      %p650 = scmp.ne.s32.totalorder %s645, %s647
      %p651 = scmp.eq.s32.totalorder %s102, 0
      %p652 = por %p650, %p651
      %p653 = scmp.ne.s32.totalorder %s645, %s647
      %p654 = scmp.eq.s32.totalorder %s107, 1
      %p655 = por %p653, %p654
      %p656 = scmp.ne.s32.totalorder %s647, %s648
      %p657 = scmp.eq.s32.totalorder %s107, 0
      %p658 = por %p656, %p657
      %p659 = scmp.ne.s32.totalorder %s647, %s648
      %p660 = scmp.eq.s32.totalorder %s108, 1
      %p661 = por %p659, %p660
      %p663 = scmp.ne.s32.totalorder %s648, %s662
      %p664 = scmp.eq.s32.totalorder %s108, 0
      %p665 = por %p663, %p664
      %s667 = sadd.s32 %s666, 1
      %p670 = scmp.eq.s32.totalorder %s102, 1
      %p671 = scmp.ne.s32.totalorder %s666, %s668
      %p672 = scmp.eq.s32.totalorder %s102, 0
      %p673 = por %p671, %p672
      %p674 = scmp.ne.s32.totalorder %s666, %s668
      %p675 = scmp.eq.s32.totalorder %s107, 1
      %p676 = por %p674, %p675
      %p677 = scmp.ne.s32.totalorder %s668, %s669
      %p678 = scmp.eq.s32.totalorder %s107, 0
      %p679 = por %p677, %p678
      %p680 = scmp.ne.s32.totalorder %s668, %s669
      %p681 = scmp.eq.s32.totalorder %s108, 1
      %p682 = por %p680, %p681
      %p684 = scmp.ne.s32.totalorder %s669, %s683
      %p685 = scmp.eq.s32.totalorder %s108, 0
      %p686 = por %p684, %p685
      %s688 = sadd.s32 %s687, 1
      %p691 = scmp.eq.s32.totalorder %s102, 1
      %p692 = scmp.ne.s32.totalorder %s687, %s689
      %p693 = scmp.eq.s32.totalorder %s102, 0
      %p694 = por %p692, %p693
      %p695 = scmp.ne.s32.totalorder %s687, %s689
      %p696 = scmp.eq.s32.totalorder %s107, 1
      %p697 = por %p695, %p696
      %p698 = scmp.ne.s32.totalorder %s689, %s690
      %p699 = scmp.eq.s32.totalorder %s107, 0
      %p700 = por %p698, %p699
      %p701 = scmp.ne.s32.totalorder %s689, %s690
      %p702 = scmp.eq.s32.totalorder %s108, 1
      %p703 = por %p701, %p702
      %p705 = scmp.ne.s32.totalorder %s690, %s704
      %p706 = scmp.eq.s32.totalorder %s108, 0
      %p707 = por %p705, %p706
      %s709 = sadd.s32 %s708, 1
      %p712 = scmp.eq.s32.totalorder %s102, 1
      %p713 = scmp.ne.s32.totalorder %s708, %s710
      %p714 = scmp.eq.s32.totalorder %s102, 0
      %p715 = por %p713, %p714
      %p716 = scmp.ne.s32.totalorder %s708, %s710
      %p717 = scmp.eq.s32.totalorder %s107, 1
      %p718 = por %p716, %p717
      %p719 = scmp.ne.s32.totalorder %s710, %s711
      %p720 = scmp.eq.s32.totalorder %s107, 0
      %p721 = por %p719, %p720
      %p722 = scmp.ne.s32.totalorder %s710, %s711
      %p723 = scmp.eq.s32.totalorder %s108, 1
      %p724 = por %p722, %p723
      %p726 = scmp.ne.s32.totalorder %s711, %s725
      %p727 = scmp.eq.s32.totalorder %s108, 0
      %p728 = por %p726, %p727
      %s730 = sadd.s32 %s729, 1
      %p733 = scmp.eq.s32.totalorder %s102, 1
      %p734 = scmp.ne.s32.totalorder %s729, %s731
      %p735 = scmp.eq.s32.totalorder %s102, 0
      %p736 = por %p734, %p735
      %p737 = scmp.ne.s32.totalorder %s729, %s731
      %p738 = scmp.eq.s32.totalorder %s107, 1
      %p739 = por %p737, %p738
      %p740 = scmp.ne.s32.totalorder %s731, %s732
      %p741 = scmp.eq.s32.totalorder %s107, 0
      %p742 = por %p740, %p741
      %p743 = scmp.ne.s32.totalorder %s731, %s732
      %p744 = scmp.eq.s32.totalorder %s108, 1
      %p745 = por %p743, %p744
      %p747 = scmp.ne.s32.totalorder %s732, %s746
      %p748 = scmp.eq.s32.totalorder %s108, 0
      %p749 = por %p747, %p748
      %s751 = sadd.s32 %s750, 1
      %p754 = scmp.eq.s32.totalorder %s102, 1
      %p755 = scmp.ne.s32.totalorder %s750, %s752
      %p756 = scmp.eq.s32.totalorder %s102, 0
      %p757 = por %p755, %p756
      %p758 = scmp.ne.s32.totalorder %s750, %s752
      %p759 = scmp.eq.s32.totalorder %s107, 1
      %p760 = por %p758, %p759
      %p761 = scmp.ne.s32.totalorder %s752, %s753
      %p762 = scmp.eq.s32.totalorder %s107, 0
      %p763 = por %p761, %p762
      %p764 = scmp.ne.s32.totalorder %s752, %s753
      %p765 = scmp.eq.s32.totalorder %s108, 1
      %p766 = por %p764, %p765
      %p768 = scmp.ne.s32.totalorder %s753, %s767
      %p769 = scmp.eq.s32.totalorder %s108, 0
      %p770 = por %p768, %p769
      %s772 = sadd.s32 %s771, 1
      %p775 = scmp.eq.s32.totalorder %s102, 1
      %p776 = scmp.ne.s32.totalorder %s771, %s773
      %p777 = scmp.eq.s32.totalorder %s102, 0
      %p778 = por %p776, %p777
      %p779 = scmp.ne.s32.totalorder %s771, %s773
      %p780 = scmp.eq.s32.totalorder %s107, 1
      %p781 = por %p779, %p780
      %p782 = scmp.ne.s32.totalorder %s773, %s774
      %p783 = scmp.eq.s32.totalorder %s107, 0
      %p784 = por %p782, %p783
      %p785 = scmp.ne.s32.totalorder %s773, %s774
      %p786 = scmp.eq.s32.totalorder %s108, 1
      %p787 = por %p785, %p786
      %p789 = scmp.ne.s32.totalorder %s774, %s788
      %p790 = scmp.eq.s32.totalorder %s108, 0
      %p791 = por %p789, %p790
      %s793 = sadd.s32 %s792, 1
      %p796 = scmp.eq.s32.totalorder %s102, 1
      %p797 = scmp.ne.s32.totalorder %s792, %s794
      %p798 = scmp.eq.s32.totalorder %s102, 0
      %p799 = por %p797, %p798
      %p800 = scmp.ne.s32.totalorder %s792, %s794
      %p801 = scmp.eq.s32.totalorder %s107, 1
      %p802 = por %p800, %p801
      %p803 = scmp.ne.s32.totalorder %s794, %s795
      %p804 = scmp.eq.s32.totalorder %s107, 0
      %p805 = por %p803, %p804
      %p806 = scmp.ne.s32.totalorder %s794, %s795
      %p807 = scmp.eq.s32.totalorder %s108, 1
      %p808 = por %p806, %p807
      %p810 = scmp.ne.s32.totalorder %s795, %s809
      %p811 = scmp.eq.s32.totalorder %s108, 0
      %p812 = por %p810, %p811
      %s814 = sadd.s32 %s813, 1
      %p817 = scmp.eq.s32.totalorder %s102, 1
      %p818 = scmp.ne.s32.totalorder %s813, %s815
      %p819 = scmp.eq.s32.totalorder %s102, 0
      %p820 = por %p818, %p819
      %p821 = scmp.ne.s32.totalorder %s813, %s815
      %p822 = scmp.eq.s32.totalorder %s107, 1
      %p823 = por %p821, %p822
      %p824 = scmp.ne.s32.totalorder %s815, %s816
      %p825 = scmp.eq.s32.totalorder %s107, 0
      %p826 = por %p824, %p825
      %p827 = scmp.ne.s32.totalorder %s815, %s816
      %p828 = scmp.eq.s32.totalorder %s108, 1
      %p829 = por %p827, %p828
      %p831 = scmp.ne.s32.totalorder %s816, %s830
      %p832 = scmp.eq.s32.totalorder %s108, 0
      %p833 = por %p831, %p832
      %s835 = sadd.s32 %s834, 1
      %p838 = scmp.eq.s32.totalorder %s102, 1
      %p839 = scmp.ne.s32.totalorder %s834, %s836
      %p840 = scmp.eq.s32.totalorder %s102, 0
      %p841 = por %p839, %p840
      %p842 = scmp.ne.s32.totalorder %s834, %s836
      %p843 = scmp.eq.s32.totalorder %s107, 1
      %p844 = por %p842, %p843
      %p845 = scmp.ne.s32.totalorder %s836, %s837
      %p846 = scmp.eq.s32.totalorder %s107, 0
      %p847 = por %p845, %p846
      %p848 = scmp.ne.s32.totalorder %s836, %s837
      %p849 = scmp.eq.s32.totalorder %s108, 1
      %p850 = por %p848, %p849
      %p852 = scmp.ne.s32.totalorder %s837, %s851
      %p853 = scmp.eq.s32.totalorder %s108, 0
      %p854 = por %p852, %p853
      %s856 = sadd.s32 %s855, 1
      %p859 = scmp.eq.s32.totalorder %s102, 1
      %p860 = scmp.ne.s32.totalorder %s855, %s857
      %p861 = scmp.eq.s32.totalorder %s102, 0
      %p862 = por %p860, %p861
      %p863 = scmp.ne.s32.totalorder %s855, %s857
      %p864 = scmp.eq.s32.totalorder %s107, 1
      %p865 = por %p863, %p864
      %p866 = scmp.ne.s32.totalorder %s857, %s858
      %p867 = scmp.eq.s32.totalorder %s107, 0
      %p868 = por %p866, %p867
      %p869 = scmp.ne.s32.totalorder %s857, %s858
      %p870 = scmp.eq.s32.totalorder %s108, 1
      %p871 = por %p869, %p870
      %p873 = scmp.ne.s32.totalorder %s858, %s872
      %p874 = scmp.eq.s32.totalorder %s108, 0
      %p875 = por %p873, %p874
      %s877 = sadd.s32 %s876, 1
      %p880 = scmp.eq.s32.totalorder %s102, 1
      %p881 = scmp.ne.s32.totalorder %s876, %s878
      %p882 = scmp.eq.s32.totalorder %s102, 0
      %p883 = por %p881, %p882
      %p884 = scmp.ne.s32.totalorder %s876, %s878
      %p885 = scmp.eq.s32.totalorder %s107, 1
      %p886 = por %p884, %p885
      %p887 = scmp.ne.s32.totalorder %s878, %s879
      %p888 = scmp.eq.s32.totalorder %s107, 0
      %p889 = por %p887, %p888
      %p890 = scmp.ne.s32.totalorder %s878, %s879
      %p891 = scmp.eq.s32.totalorder %s108, 1
      %p892 = por %p890, %p891
      %p894 = scmp.ne.s32.totalorder %s879, %s893
      %p895 = scmp.eq.s32.totalorder %s108, 0
      %p896 = por %p894, %p895
      %s898 = sadd.s32 %s897, 1
      %p901 = scmp.eq.s32.totalorder %s102, 1
      %p902 = scmp.ne.s32.totalorder %s897, %s899
      %p903 = scmp.eq.s32.totalorder %s102, 0
      %p904 = por %p902, %p903
      %p905 = scmp.ne.s32.totalorder %s897, %s899
      %p906 = scmp.eq.s32.totalorder %s107, 1
      %p907 = por %p905, %p906
      %p908 = scmp.ne.s32.totalorder %s899, %s900
      %p909 = scmp.eq.s32.totalorder %s107, 0
      %p910 = por %p908, %p909
      %p911 = scmp.ne.s32.totalorder %s899, %s900
      %p912 = scmp.eq.s32.totalorder %s108, 1
      %p913 = por %p911, %p912
      %p915 = scmp.ne.s32.totalorder %s900, %s914
      %p916 = scmp.eq.s32.totalorder %s108, 0
      %p917 = por %p915, %p916
      %s919 = sadd.s32 %s918, 1
      %p922 = scmp.eq.s32.totalorder %s102, 1
      %p923 = scmp.ne.s32.totalorder %s918, %s920
      %p924 = scmp.eq.s32.totalorder %s102, 0
      %p925 = por %p923, %p924
      %p926 = scmp.ne.s32.totalorder %s918, %s920
      %p927 = scmp.eq.s32.totalorder %s107, 1
      %p928 = por %p926, %p927
      %p929 = scmp.ne.s32.totalorder %s920, %s921
      %p930 = scmp.eq.s32.totalorder %s107, 0
      %p931 = por %p929, %p930
      %p932 = scmp.ne.s32.totalorder %s920, %s921
      %p933 = scmp.eq.s32.totalorder %s108, 1
      %p934 = por %p932, %p933
      %p936 = scmp.ne.s32.totalorder %s921, %s935
      %p937 = scmp.eq.s32.totalorder %s108, 0
      %p938 = por %p936, %p937
      %s940 = sadd.s32 %s939, 1
      %p943 = scmp.eq.s32.totalorder %s102, 1
      %p944 = scmp.ne.s32.totalorder %s939, %s941
      %p945 = scmp.eq.s32.totalorder %s102, 0
      %p946 = por %p944, %p945
      %p947 = scmp.ne.s32.totalorder %s939, %s941
      %p948 = scmp.eq.s32.totalorder %s107, 1
      %p949 = por %p947, %p948
      %p950 = scmp.ne.s32.totalorder %s941, %s942
      %p951 = scmp.eq.s32.totalorder %s107, 0
      %p952 = por %p950, %p951
      %p953 = scmp.ne.s32.totalorder %s941, %s942
      %p954 = scmp.eq.s32.totalorder %s108, 1
      %p955 = por %p953, %p954
      %p957 = scmp.ne.s32.totalorder %s942, %s956
      %p958 = scmp.eq.s32.totalorder %s108, 0
      %p959 = por %p957, %p958
      %s961 = sadd.s32 %s960, 1
      %p964 = scmp.eq.s32.totalorder %s102, 1
      %p965 = scmp.ne.s32.totalorder %s960, %s962
      %p966 = scmp.eq.s32.totalorder %s102, 0
      %p967 = por %p965, %p966
      %p968 = scmp.ne.s32.totalorder %s960, %s962
      %p969 = scmp.eq.s32.totalorder %s107, 1
      %p970 = por %p968, %p969
      %p971 = scmp.ne.s32.totalorder %s962, %s963
      %p972 = scmp.eq.s32.totalorder %s107, 0
      %p973 = por %p971, %p972
      %p974 = scmp.ne.s32.totalorder %s962, %s963
      %p975 = scmp.eq.s32.totalorder %s108, 1
      %p976 = por %p974, %p975
      %p978 = scmp.ne.s32.totalorder %s963, %s977
      %p979 = scmp.eq.s32.totalorder %s108, 0
      %p980 = por %p978, %p979
      %s982 = sadd.s32 %s981, 1
      %p985 = scmp.eq.s32.totalorder %s102, 1
      %p986 = scmp.ne.s32.totalorder %s981, %s983
      %p987 = scmp.eq.s32.totalorder %s102, 0
      %p988 = por %p986, %p987
      %p989 = scmp.ne.s32.totalorder %s981, %s983
      %p990 = scmp.eq.s32.totalorder %s107, 1
      %p991 = por %p989, %p990
      %p992 = scmp.ne.s32.totalorder %s983, %s984
      %p993 = scmp.eq.s32.totalorder %s107, 0
      %p994 = por %p992, %p993
      %p995 = scmp.ne.s32.totalorder %s983, %s984
      %p996 = scmp.eq.s32.totalorder %s108, 1
      %p997 = por %p995, %p996
      %p999 = scmp.ne.s32.totalorder %s984, %s998
      %p1000 = scmp.eq.s32.totalorder %s108, 0
      %p1001 = por %p999, %p1000
      %s1002 = ssub.s32 %s102, %s109
      %p1003 = scmp.eq.s32.totalorder %s1002, 0
      %s1005 = sadd.s32 %s1004, 1
      %s1006 = scalar_select %p1003, %s1004, %s1005
      %p1009 = pneg %p1003
      %p1010 = scmp.eq.s32.totalorder %s102, 1
      %p1011 = por %p1009, %p1010
      %p1012 = scmp.ne.s32.totalorder %s1004, %s1007
      %p1013 = scmp.eq.s32.totalorder %s102, 0
      %p1014 = por %p1012, %p1013
      %p1015 = scmp.ne.s32.totalorder %s1004, %s1007
      %p1016 = scmp.eq.s32.totalorder %s107, 1
      %p1017 = por %p1015, %p1016
      %p1018 = scmp.ne.s32.totalorder %s1007, %s1008
      %p1019 = scmp.eq.s32.totalorder %s107, 0
      %p1020 = por %p1018, %p1019
      %p1021 = scmp.ne.s32.totalorder %s1007, %s1008
      %p1022 = scmp.eq.s32.totalorder %s108, 1
      %p1023 = por %p1021, %p1022
      %p1025 = scmp.ne.s32.totalorder %s1008, %s1024
      %p1026 = scmp.eq.s32.totalorder %s108, 0
      %p1027 = por %p1025, %p1026
      %s1028 = ssub.s32 %s102, %s109
      %p1029 = scmp.eq.s32.totalorder %s1028, 0
      %s1031 = sadd.s32 %s1030, 1
      %s1032 = scalar_select %p1029, %s1030, %s1031
      %p1035 = pneg %p1029
      %p1036 = scmp.eq.s32.totalorder %s102, 1
      %p1037 = por %p1035, %p1036
      %p1038 = scmp.ne.s32.totalorder %s1030, %s1033
      %p1039 = scmp.eq.s32.totalorder %s102, 0
      %p1040 = por %p1038, %p1039
      %p1041 = scmp.ne.s32.totalorder %s1030, %s1033
      %p1042 = scmp.eq.s32.totalorder %s107, 1
      %p1043 = por %p1041, %p1042
      %p1044 = scmp.ne.s32.totalorder %s1033, %s1034
      %p1045 = scmp.eq.s32.totalorder %s107, 0
      %p1046 = por %p1044, %p1045
      %p1047 = scmp.ne.s32.totalorder %s1033, %s1034
      %p1048 = scmp.eq.s32.totalorder %s108, 1
      %p1049 = por %p1047, %p1048
      %p1051 = scmp.ne.s32.totalorder %s1034, %s1050
      %p1052 = scmp.eq.s32.totalorder %s108, 0
      %p1053 = por %p1051, %p1052
      %p1054 = scmp.le.s32.totalorder 1, %s102
      %p1055 = scmp.lt.s32.totalorder %s102, 3
      %p1056 = pnand %p1054, %p1055
      %p1057 = pneg %p1056
      // Predicated region
      $region9: #{multi_scale_encoder.1} parent=5 // pred_check
        _
      $region10: #{multi_scale_encoder.1} parent=5 // pred_check_branch
        %1059 = sbr.rel (%p1056) target = $region12
      $region11: #{multi_scale_encoder.1} parent=5 // pred_region
        %s1060 = ssub.s32 %s102, 1
        // Predicated region
        $region13: #{multi_scale_encoder.1} parent=11 // pred_check
          %p1061 = pneg %p175
        $region14: #{multi_scale_encoder.1} parent=11 // pred_check_branch
          %1063 = sbr.rel (%p1061) target = $region16
        $region15: #{multi_scale_encoder.1} parent=11 // pred_region
          _
        $region16: #{multi_scale_encoder.1} parent=11 // pred_fallthru
          _
        // Predicated region
        $region17: #{multi_scale_encoder.1} parent=11 // pred_check
          %p1064 = pneg %p196
        $region18: #{multi_scale_encoder.1} parent=11 // pred_check_branch
          %1066 = sbr.rel (%p1064) target = $region20
        $region19: #{multi_scale_encoder.1} parent=11 // pred_region
          _
        $region20: #{multi_scale_encoder.1} parent=11 // pred_fallthru
          _
        // Predicated region
        $region21: #{multi_scale_encoder.1} parent=11 // pred_check
          %p1067 = pneg %p217
        $region22: #{multi_scale_encoder.1} parent=11 // pred_check_branch
          %1069 = sbr.rel (%p1067) target = $region24
        $region23: #{multi_scale_encoder.1} parent=11 // pred_region
          _
        $region24: #{multi_scale_encoder.1} parent=11 // pred_fallthru
          _
        // Predicated region
        $region25: #{multi_scale_encoder.1} parent=11 // pred_check
          %p1070 = pneg %p238
        $region26: #{multi_scale_encoder.1} parent=11 // pred_check_branch
          %1072 = sbr.rel (%p1070) target = $region28
        $region27: #{multi_scale_encoder.1} parent=11 // pred_region
          _
        $region28: #{multi_scale_encoder.1} parent=11 // pred_fallthru
          _
        // Predicated region
        $region29: #{multi_scale_encoder.1} parent=11 // pred_check
          %p1073 = pneg %p259
        $region30: #{multi_scale_encoder.1} parent=11 // pred_check_branch
          %1075 = sbr.rel (%p1073) target = $region32
        $region31: #{multi_scale_encoder.1} parent=11 // pred_region
          _
        $region32: #{multi_scale_encoder.1} parent=11 // pred_fallthru
          _
        // Predicated region
        $region33: #{multi_scale_encoder.1} parent=11 // pred_check
          %p1076 = pneg %p280
        $region34: #{multi_scale_encoder.1} parent=11 // pred_check_branch
          %1078 = sbr.rel (%p1076) target = $region36
        $region35: #{multi_scale_encoder.1} parent=11 // pred_region
          %1080 = vsyncadd [#allocation3], 0
          %s1081 = sshll.u32 %s15, 4
          %s1082 = int_to_ptr.hbm [resolvable:$true] %s1081
          %s1083 = sshll.u32 [#allocation2], 4
          %s1084 = int_to_ptr.vmem [resolvable:$true] %s1083
          %1089 = dma.hbm_to_vmem [thread:$0]  %s1082, 2048, %s1084, [#allocation3], 128, 128, 8
        $region36: #{multi_scale_encoder.1} parent=11 // pred_fallthru
          _
        // Predicated region
        $region37: #{multi_scale_encoder.1} parent=11 // pred_check
          %p1090 = pneg %p301
        $region38: #{multi_scale_encoder.1} parent=11 // pred_check_branch
          %1092 = sbr.rel (%p1090) target = $region40
        $region39: #{multi_scale_encoder.1} parent=11 // pred_region
          _
        $region40: #{multi_scale_encoder.1} parent=11 // pred_fallthru
          _
        // Predicated region
        $region41: #{multi_scale_encoder.1} parent=11 // pred_check
          %p1093 = pneg %p322
        $region42: #{multi_scale_encoder.1} parent=11 // pred_check_branch
          %1095 = sbr.rel (%p1093) target = $region44
        $region43: #{multi_scale_encoder.1} parent=11 // pred_region
          _
        $region44: #{multi_scale_encoder.1} parent=11 // pred_fallthru
          _
        // Predicated region
        $region45: #{multi_scale_encoder.1} parent=11 // pred_check
          %p1096 = pneg %p343
        $region46: #{multi_scale_encoder.1} parent=11 // pred_check_branch
          %1098 = sbr.rel (%p1096) target = $region48
        $region47: #{multi_scale_encoder.1} parent=11 // pred_region
          _
        $region48: #{multi_scale_encoder.1} parent=11 // pred_fallthru
          _
        // Predicated region
        $region49: #{multi_scale_encoder.1} parent=11 // pred_check
          %p1099 = pneg %p364
        $region50: #{multi_scale_encoder.1} parent=11 // pred_check_branch
          %1101 = sbr.rel (%p1099) target = $region52
        $region51: #{multi_scale_encoder.1} parent=11 // pred_region
          %1103 = vsyncadd [#allocation5], 0
          %s1104 = sshll.u32 %s23, 4
          %s1105 = int_to_ptr.hbm [resolvable:$true] %s1104
          %s1106 = sshll.u32 [#allocation4], 4
          %s1107 = int_to_ptr.vmem [resolvable:$true] %s1106
          %1112 = dma.hbm_to_vmem [thread:$0]  %s1105, 2048, %s1107, [#allocation5], 128, 128, 8
        $region52: #{multi_scale_encoder.1} parent=11 // pred_fallthru
          _
        // Predicated region
        $region53: #{multi_scale_encoder.1} parent=11 // pred_check
          %p1113 = pneg %p385
        $region54: #{multi_scale_encoder.1} parent=11 // pred_check_branch
          %1115 = sbr.rel (%p1113) target = $region56
        $region55: #{multi_scale_encoder.1} parent=11 // pred_region
          _
        $region56: #{multi_scale_encoder.1} parent=11 // pred_fallthru
          _
        // Predicated region
        $region57: #{multi_scale_encoder.1} parent=11 // pred_check
          %p1116 = pneg %p406
        $region58: #{multi_scale_encoder.1} parent=11 // pred_check_branch
          %1118 = sbr.rel (%p1116) target = $region60
        $region59: #{multi_scale_encoder.1} parent=11 // pred_region
          _
        $region60: #{multi_scale_encoder.1} parent=11 // pred_fallthru
          _
        // Predicated region
        $region61: #{multi_scale_encoder.1} parent=11 // pred_check
          %p1119 = pneg %p427
        $region62: #{multi_scale_encoder.1} parent=11 // pred_check_branch
          %1121 = sbr.rel (%p1119) target = $region64
        $region63: #{multi_scale_encoder.1} parent=11 // pred_region
          _
        $region64: #{multi_scale_encoder.1} parent=11 // pred_fallthru
          _
        // Predicated region
        $region65: #{multi_scale_encoder.1} parent=11 // pred_check
          %p1122 = pneg %p448
        $region66: #{multi_scale_encoder.1} parent=11 // pred_check_branch
          %1124 = sbr.rel (%p1122) target = $region68
        $region67: #{multi_scale_encoder.1} parent=11 // pred_region
          _
        $region68: #{multi_scale_encoder.1} parent=11 // pred_fallthru
          _
        // Predicated region
        $region69: #{multi_scale_encoder.1} parent=11 // pred_check
          %p1125 = pneg %p469
        $region70: #{multi_scale_encoder.1} parent=11 // pred_check_branch
          %1127 = sbr.rel (%p1125) target = $region72
        $region71: #{multi_scale_encoder.1} parent=11 // pred_region
          _
        $region72: #{multi_scale_encoder.1} parent=11 // pred_fallthru
          _
        // Predicated region
        $region73: #{multi_scale_encoder.1} parent=11 // pred_check
          %p1128 = pneg %p490
        $region74: #{multi_scale_encoder.1} parent=11 // pred_check_branch
          %1130 = sbr.rel (%p1128) target = $region76
        $region75: #{multi_scale_encoder.1} parent=11 // pred_region
          _
        $region76: #{multi_scale_encoder.1} parent=11 // pred_fallthru
          _
        // Predicated region
        $region77: #{multi_scale_encoder.1} parent=11 // pred_check
          %p1131 = pneg %p511
        $region78: #{multi_scale_encoder.1} parent=11 // pred_check_branch
          %1133 = sbr.rel (%p1131) target = $region80
        $region79: #{multi_scale_encoder.1} parent=11 // pred_region
          %1135 = vsyncadd [#allocation5], 0
          %s1136 = sshll.u32 %s37, 4
          %s1137 = int_to_ptr.hbm [resolvable:$true] %s1136
          %s1138 = sshll.u32 [#allocation6], 4
          %s1139 = int_to_ptr.vmem [resolvable:$true] %s1138
          %1144 = dma.hbm_to_vmem [thread:$0]  %s1137, 1024, %s1139, [#allocation5], 128, 128, 8
        $region80: #{multi_scale_encoder.1} parent=11 // pred_fallthru
          _
        // Predicated region
        $region81: #{multi_scale_encoder.1} parent=11 // pred_check
          %p1145 = pneg %p532
        $region82: #{multi_scale_encoder.1} parent=11 // pred_check_branch
          %1147 = sbr.rel (%p1145) target = $region84
        $region83: #{multi_scale_encoder.1} parent=11 // pred_region
          %1149 = vsyncadd [#allocation8], 0
          %s1150 = sshll.u32 %s39, 4
          %s1151 = int_to_ptr.hbm [resolvable:$true] %s1150
          %s1152 = sshll.u32 [#allocation7], 4
          %s1153 = int_to_ptr.vmem [resolvable:$true] %s1152
          %1158 = dma.hbm_to_vmem [thread:$0]  %s1151, 1024, %s1153, [#allocation8], 128, 128, 8
        $region84: #{multi_scale_encoder.1} parent=11 // pred_fallthru
          _
        // Predicated region
        $region85: #{multi_scale_encoder.1} parent=11 // pred_check
          %p1159 = pneg %p553
        $region86: #{multi_scale_encoder.1} parent=11 // pred_check_branch
          %1161 = sbr.rel (%p1159) target = $region88
        $region87: #{multi_scale_encoder.1} parent=11 // pred_region
          %1163 = vsyncadd [#allocation8], 0
          %s1164 = sshll.u32 %s41, 4
          %s1165 = int_to_ptr.hbm [resolvable:$true] %s1164
          %s1166 = sshll.u32 [#allocation9], 4
          %s1167 = int_to_ptr.vmem [resolvable:$true] %s1166
          %1172 = dma.hbm_to_vmem [thread:$0]  %s1165, 1024, %s1167, [#allocation8], 128, 128, 8
        $region88: #{multi_scale_encoder.1} parent=11 // pred_fallthru
          _
        // Predicated region
        $region89: #{multi_scale_encoder.1} parent=11 // pred_check
          %p1173 = pneg %p574
        $region90: #{multi_scale_encoder.1} parent=11 // pred_check_branch
          %1175 = sbr.rel (%p1173) target = $region92
        $region91: #{multi_scale_encoder.1} parent=11 // pred_region
          _
        $region92: #{multi_scale_encoder.1} parent=11 // pred_fallthru
          _
        // Predicated region
        $region93: #{multi_scale_encoder.1} parent=11 // pred_check
          %p1176 = pneg %p595
        $region94: #{multi_scale_encoder.1} parent=11 // pred_check_branch
          %1178 = sbr.rel (%p1176) target = $region96
        $region95: #{multi_scale_encoder.1} parent=11 // pred_region
          _
        $region96: #{multi_scale_encoder.1} parent=11 // pred_fallthru
          _
        // Predicated region
        $region97: #{multi_scale_encoder.1} parent=11 // pred_check
          %p1179 = pneg %p616
        $region98: #{multi_scale_encoder.1} parent=11 // pred_check_branch
          %1181 = sbr.rel (%p1179) target = $region100
        $region99: #{multi_scale_encoder.1} parent=11 // pred_region
          _
        $region100: #{multi_scale_encoder.1} parent=11 // pred_fallthru
          _
        // Predicated region
        $region101: #{multi_scale_encoder.1} parent=11 // pred_check
          %p1182 = pneg %p637
        $region102: #{multi_scale_encoder.1} parent=11 // pred_check_branch
          %1184 = sbr.rel (%p1182) target = $region104
        $region103: #{multi_scale_encoder.1} parent=11 // pred_region
          %1186 = vsyncadd [#allocation11], 0
          %s1187 = sshll.u32 %s49, 4
          %s1188 = int_to_ptr.hbm [resolvable:$true] %s1187
          %s1189 = sshll.u32 [#allocation10], 4
          %s1190 = int_to_ptr.vmem [resolvable:$true] %s1189
          %1195 = dma.hbm_to_vmem [thread:$0]  %s1188, 1024, %s1190, [#allocation11], 128, 128, 8
        $region104: #{multi_scale_encoder.1} parent=11 // pred_fallthru
          _
        // Predicated region
        $region105: #{multi_scale_encoder.1} parent=11 // pred_check
          %p1196 = pneg %p658
        $region106: #{multi_scale_encoder.1} parent=11 // pred_check_branch
          %1198 = sbr.rel (%p1196) target = $region108
        $region107: #{multi_scale_encoder.1} parent=11 // pred_region
          _
        $region108: #{multi_scale_encoder.1} parent=11 // pred_fallthru
          _
        // Predicated region
        $region109: #{multi_scale_encoder.1} parent=11 // pred_check
          %p1199 = pneg %p679
        $region110: #{multi_scale_encoder.1} parent=11 // pred_check_branch
          %1201 = sbr.rel (%p1199) target = $region112
        $region111: #{multi_scale_encoder.1} parent=11 // pred_region
          _
        $region112: #{multi_scale_encoder.1} parent=11 // pred_fallthru
          _
        // Predicated region
        $region113: #{multi_scale_encoder.1} parent=11 // pred_check
          %p1202 = pneg %p700
        $region114: #{multi_scale_encoder.1} parent=11 // pred_check_branch
          %1204 = sbr.rel (%p1202) target = $region116
        $region115: #{multi_scale_encoder.1} parent=11 // pred_region
          %1206 = vsyncadd [#allocation11], 0
          %s1207 = sshll.u32 %s55, 4
          %s1208 = int_to_ptr.hbm [resolvable:$true] %s1207
          %s1209 = sshll.u32 [#allocation12], 4
          %s1210 = int_to_ptr.vmem [resolvable:$true] %s1209
          %1215 = dma.hbm_to_vmem [thread:$0]  %s1208, 32, %s1210, [#allocation11], 16, 16, 1
        $region116: #{multi_scale_encoder.1} parent=11 // pred_fallthru
          _
        // Predicated region
        $region117: #{multi_scale_encoder.1} parent=11 // pred_check
          %p1216 = pneg %p721
        $region118: #{multi_scale_encoder.1} parent=11 // pred_check_branch
          %1218 = sbr.rel (%p1216) target = $region120
        $region119: #{multi_scale_encoder.1} parent=11 // pred_region
          _
        $region120: #{multi_scale_encoder.1} parent=11 // pred_fallthru
          _
        // Predicated region
        $region121: #{multi_scale_encoder.1} parent=11 // pred_check
          %p1219 = pneg %p742
        $region122: #{multi_scale_encoder.1} parent=11 // pred_check_branch
          %1221 = sbr.rel (%p1219) target = $region124
        $region123: #{multi_scale_encoder.1} parent=11 // pred_region
          _
        $region124: #{multi_scale_encoder.1} parent=11 // pred_fallthru
          _
        // Predicated region
        $region125: #{multi_scale_encoder.1} parent=11 // pred_check
          %p1222 = pneg %p763
        $region126: #{multi_scale_encoder.1} parent=11 // pred_check_branch
          %1224 = sbr.rel (%p1222) target = $region128
        $region127: #{multi_scale_encoder.1} parent=11 // pred_region
          %1226 = vsyncadd [#allocation14], 0
          %s1227 = sshll.u32 %s61, 4
          %s1228 = int_to_ptr.hbm [resolvable:$true] %s1227
          %s1229 = sshll.u32 [#allocation13], 4
          %s1230 = int_to_ptr.vmem [resolvable:$true] %s1229
          %1235 = dma.hbm_to_vmem [thread:$0]  %s1228, 1024, %s1230, [#allocation14], 128, 128, 8
        $region128: #{multi_scale_encoder.1} parent=11 // pred_fallthru
          _
        // Predicated region
        $region129: #{multi_scale_encoder.1} parent=11 // pred_check
          %p1236 = pneg %p784
        $region130: #{multi_scale_encoder.1} parent=11 // pred_check_branch
          %1238 = sbr.rel (%p1236) target = $region132
        $region131: #{multi_scale_encoder.1} parent=11 // pred_region
          %1240 = vsyncadd [#allocation14], 0
          %s1241 = sshll.u32 %s63, 4
          %s1242 = int_to_ptr.hbm [resolvable:$true] %s1241
          %s1243 = sshll.u32 [#allocation15], 4
          %s1244 = int_to_ptr.vmem [resolvable:$true] %s1243
          %1249 = dma.hbm_to_vmem [thread:$0]  %s1242, 1024, %s1244, [#allocation14], 128, 128, 8
        $region132: #{multi_scale_encoder.1} parent=11 // pred_fallthru
          _
        // Predicated region
        $region133: #{multi_scale_encoder.1} parent=11 // pred_check
          %p1250 = pneg %p805
        $region134: #{multi_scale_encoder.1} parent=11 // pred_check_branch
          %1252 = sbr.rel (%p1250) target = $region136
        $region135: #{multi_scale_encoder.1} parent=11 // pred_region
          %1254 = vsyncadd [#allocation17], 0
          %s1255 = sshll.u32 %s65, 4
          %s1256 = int_to_ptr.hbm [resolvable:$true] %s1255
          %s1257 = sshll.u32 [#allocation16], 4
          %s1258 = int_to_ptr.vmem [resolvable:$true] %s1257
          %1263 = dma.hbm_to_vmem [thread:$0]  %s1256, 1024, %s1258, [#allocation17], 128, 128, 8
        $region136: #{multi_scale_encoder.1} parent=11 // pred_fallthru
          _
        // Predicated region
        $region137: #{multi_scale_encoder.1} parent=11 // pred_check
          %p1264 = pneg %p826
        $region138: #{multi_scale_encoder.1} parent=11 // pred_check_branch
          %1266 = sbr.rel (%p1264) target = $region140
        $region139: #{multi_scale_encoder.1} parent=11 // pred_region
          %1268 = vsyncadd [#allocation17], 0
          %s1269 = sshll.u32 %s67, 4
          %s1270 = int_to_ptr.hbm [resolvable:$true] %s1269
          %s1271 = sshll.u32 [#allocation18], 4
          %s1272 = int_to_ptr.vmem [resolvable:$true] %s1271
          %1277 = dma.hbm_to_vmem [thread:$0]  %s1270, 1024, %s1272, [#allocation17], 128, 128, 8
        $region140: #{multi_scale_encoder.1} parent=11 // pred_fallthru
          _
        // Predicated region
        $region141: #{multi_scale_encoder.1} parent=11 // pred_check
          %p1278 = pneg %p847
        $region142: #{multi_scale_encoder.1} parent=11 // pred_check_branch
          %1280 = sbr.rel (%p1278) target = $region144
        $region143: #{multi_scale_encoder.1} parent=11 // pred_region
          _
        $region144: #{multi_scale_encoder.1} parent=11 // pred_fallthru
          _
        // Predicated region
        $region145: #{multi_scale_encoder.1} parent=11 // pred_check
          %p1281 = pneg %p868
        $region146: #{multi_scale_encoder.1} parent=11 // pred_check_branch
          %1283 = sbr.rel (%p1281) target = $region148
        $region147: #{multi_scale_encoder.1} parent=11 // pred_region
          _
        $region148: #{multi_scale_encoder.1} parent=11 // pred_fallthru
          _
        // Predicated region
        $region149: #{multi_scale_encoder.1} parent=11 // pred_check
          %p1284 = pneg %p889
        $region150: #{multi_scale_encoder.1} parent=11 // pred_check_branch
          %1286 = sbr.rel (%p1284) target = $region152
        $region151: #{multi_scale_encoder.1} parent=11 // pred_region
          _
        $region152: #{multi_scale_encoder.1} parent=11 // pred_fallthru
          _
        // Predicated region
        $region153: #{multi_scale_encoder.1} parent=11 // pred_check
          %p1287 = pneg %p910
        $region154: #{multi_scale_encoder.1} parent=11 // pred_check_branch
          %1289 = sbr.rel (%p1287) target = $region156
        $region155: #{multi_scale_encoder.1} parent=11 // pred_region
          %1291 = vsyncadd [#allocation20], 0
          %s1292 = sshll.u32 %s75, 4
          %s1293 = int_to_ptr.hbm [resolvable:$true] %s1292
          %s1294 = sshll.u32 [#allocation19], 4
          %s1295 = int_to_ptr.vmem [resolvable:$true] %s1294
          %1300 = dma.hbm_to_vmem [thread:$0]  %s1293, 1024, %s1295, [#allocation20], 128, 128, 8
        $region156: #{multi_scale_encoder.1} parent=11 // pred_fallthru
          _
        // Predicated region
        $region157: #{multi_scale_encoder.1} parent=11 // pred_check
          %p1301 = pneg %p931
        $region158: #{multi_scale_encoder.1} parent=11 // pred_check_branch
          %1303 = sbr.rel (%p1301) target = $region160
        $region159: #{multi_scale_encoder.1} parent=11 // pred_region
          %1305 = vsyncadd [#allocation20], 0
          %s1306 = sshll.u32 %s77, 4
          %s1307 = int_to_ptr.hbm [resolvable:$true] %s1306
          %s1308 = sshll.u32 [#allocation21], 4
          %s1309 = int_to_ptr.vmem [resolvable:$true] %s1308
          %1314 = dma.hbm_to_vmem [thread:$0]  %s1307, 1024, %s1309, [#allocation20], 128, 128, 8
        $region160: #{multi_scale_encoder.1} parent=11 // pred_fallthru
          _
        // Predicated region
        $region161: #{multi_scale_encoder.1} parent=11 // pred_check
          %p1315 = pneg %p952
        $region162: #{multi_scale_encoder.1} parent=11 // pred_check_branch
          %1317 = sbr.rel (%p1315) target = $region164
        $region163: #{multi_scale_encoder.1} parent=11 // pred_region
          %1319 = vsyncadd [#allocation23], 0
          %s1320 = sshll.u32 %s79, 4
          %s1321 = int_to_ptr.hbm [resolvable:$true] %s1320
          %s1322 = sshll.u32 [#allocation22], 4
          %s1323 = int_to_ptr.vmem [resolvable:$true] %s1322
          %1328 = dma.hbm_to_vmem [thread:$0]  %s1321, 1024, %s1323, [#allocation23], 128, 128, 8
        $region164: #{multi_scale_encoder.1} parent=11 // pred_fallthru
          _
        // Predicated region
        $region165: #{multi_scale_encoder.1} parent=11 // pred_check
          %p1329 = pneg %p973
        $region166: #{multi_scale_encoder.1} parent=11 // pred_check_branch
          %1331 = sbr.rel (%p1329) target = $region168
        $region167: #{multi_scale_encoder.1} parent=11 // pred_region
          %1333 = vsyncadd [#allocation23], 0
          %s1334 = sshll.u32 %s81, 4
          %s1335 = int_to_ptr.hbm [resolvable:$true] %s1334
          %s1336 = sshll.u32 [#allocation24], 4
          %s1337 = int_to_ptr.vmem [resolvable:$true] %s1336
          %1342 = dma.hbm_to_vmem [thread:$0]  %s1335, 1024, %s1337, [#allocation23], 128, 128, 8
        $region168: #{multi_scale_encoder.1} parent=11 // pred_fallthru
          _
        // Predicated region
        $region169: #{multi_scale_encoder.1} parent=11 // pred_check
          %p1343 = pneg %p994
        $region170: #{multi_scale_encoder.1} parent=11 // pred_check_branch
          %1345 = sbr.rel (%p1343) target = $region172
        $region171: #{multi_scale_encoder.1} parent=11 // pred_region
          _
        $region172: #{multi_scale_encoder.1} parent=11 // pred_fallthru
          _
      $region12: #{multi_scale_encoder.1} parent=5 // pred_fallthru
        _
      %p1346 = scmp.lt.s32.totalorder %s102, 2
      // Predicated region
      $region173: #{multi_scale_encoder.1} parent=5 // pred_check
        %p1347 = pneg %p1346
      $region174: #{multi_scale_encoder.1} parent=5 // pred_check_branch
        %1349 = sbr.rel (%p1347) target = $region176
      $region175: #{multi_scale_encoder.1} parent=5 // pred_region
        // Predicated region
        $region177: #{multi_scale_encoder.1} parent=175 // pred_check
          %p1350 = pneg %p122
        $region178: #{multi_scale_encoder.1} parent=175 // pred_check_branch
          %1352 = sbr.rel (%p1350) target = $region180
        $region179: #{multi_scale_encoder.1} parent=175 // pred_region
          %p1353 = scmp.lt.s32.totalorder %s102, 1
          %s1354 = scalar_select %p1353, %s102, 1
          %s1355 = smul.addr %s1354, 2
          %s1356 = smul.addr %s1355, 8
          %s1357 = scalar_lea.vmem %s1, %s1356
        $region180: #{multi_scale_encoder.1} parent=175 // pred_fallthru
          _
        // Predicated region
        $region181: #{multi_scale_encoder.1} parent=175 // pred_check
          %p1358 = pneg %p148
        $region182: #{multi_scale_encoder.1} parent=175 // pred_check_branch
          %1360 = sbr.rel (%p1358) target = $region184
        $region183: #{multi_scale_encoder.1} parent=175 // pred_region
          %p1361 = scmp.lt.s32.totalorder %s102, 1
          %s1362 = scalar_select %p1361, %s102, 1
          %s1363 = smul.addr %s1362, 3
          %s1364 = smul.addr %s1363, 8
          %s1365 = scalar_lea.vmem %s3, %s1364
        $region184: #{multi_scale_encoder.1} parent=175 // pred_fallthru
          _
      $region176: #{multi_scale_encoder.1} parent=5 // pred_fallthru
        _
      %p1366 = scmp.le.s32.totalorder 1, %s102
      %p1367 = scmp.lt.s32.totalorder %s102, 3
      %p1368 = pnand %p1366, %p1367
      %p1369 = pneg %p1368
      // Predicated region
      $region185: #{multi_scale_encoder.1} parent=5 // pred_check
        _
      $region186: #{multi_scale_encoder.1} parent=5 // pred_check_branch
        %1371 = sbr.rel (%p1368) target = $region188
      $region187: #{multi_scale_encoder.1} parent=5 // pred_region
        %s1372 = ssub.s32 %s102, 1
        // Predicated region
        $region189: #{multi_scale_encoder.1} parent=187 // pred_check
          %p1373 = pneg %p280
        $region190: #{multi_scale_encoder.1} parent=187 // pred_check_branch
          %1375 = sbr.rel (%p1373) target = $region192
        $region191: #{multi_scale_encoder.1} parent=187 // pred_region
          %1377 = dma.done [#allocation3], 2048
        $region192: #{multi_scale_encoder.1} parent=187 // pred_fallthru
          _
        // Predicated region
        $region193: #{multi_scale_encoder.1} parent=187 // pred_check
          %p1378 = pneg %p364
        $region194: #{multi_scale_encoder.1} parent=187 // pred_check_branch
          %1380 = sbr.rel (%p1378) target = $region196
        $region195: #{multi_scale_encoder.1} parent=187 // pred_region
          %1382 = dma.done [#allocation5], 2048
        $region196: #{multi_scale_encoder.1} parent=187 // pred_fallthru
          _
        // Predicated region
        $region197: #{multi_scale_encoder.1} parent=187 // pred_check
          %p1383 = pneg %p511
        $region198: #{multi_scale_encoder.1} parent=187 // pred_check_branch
          %1385 = sbr.rel (%p1383) target = $region200
        $region199: #{multi_scale_encoder.1} parent=187 // pred_region
          %1387 = dma.done [#allocation5], 1024
        $region200: #{multi_scale_encoder.1} parent=187 // pred_fallthru
          _
        // Predicated region
        $region201: #{multi_scale_encoder.1} parent=187 // pred_check
          %p1388 = pneg %p532
        $region202: #{multi_scale_encoder.1} parent=187 // pred_check_branch
          %1390 = sbr.rel (%p1388) target = $region204
        $region203: #{multi_scale_encoder.1} parent=187 // pred_region
          %1392 = dma.done [#allocation8], 1024
        $region204: #{multi_scale_encoder.1} parent=187 // pred_fallthru
          _
        // Predicated region
        $region205: #{multi_scale_encoder.1} parent=187 // pred_check
          %p1393 = pneg %p553
        $region206: #{multi_scale_encoder.1} parent=187 // pred_check_branch
          %1395 = sbr.rel (%p1393) target = $region208
        $region207: #{multi_scale_encoder.1} parent=187 // pred_region
          %1397 = dma.done [#allocation8], 1024
        $region208: #{multi_scale_encoder.1} parent=187 // pred_fallthru
          _
        // Predicated region
        $region209: #{multi_scale_encoder.1} parent=187 // pred_check
          %p1398 = pneg %p637
        $region210: #{multi_scale_encoder.1} parent=187 // pred_check_branch
          %1400 = sbr.rel (%p1398) target = $region212
        $region211: #{multi_scale_encoder.1} parent=187 // pred_region
          %1402 = dma.done [#allocation11], 1024
        $region212: #{multi_scale_encoder.1} parent=187 // pred_fallthru
          _
        // Predicated region
        $region213: #{multi_scale_encoder.1} parent=187 // pred_check
          %p1403 = pneg %p700
        $region214: #{multi_scale_encoder.1} parent=187 // pred_check_branch
          %1405 = sbr.rel (%p1403) target = $region216
        $region215: #{multi_scale_encoder.1} parent=187 // pred_region
          %1407 = dma.done [#allocation11], 32
        $region216: #{multi_scale_encoder.1} parent=187 // pred_fallthru
          _
        // Predicated region
        $region217: #{multi_scale_encoder.1} parent=187 // pred_check
          %p1408 = pneg %p763
        $region218: #{multi_scale_encoder.1} parent=187 // pred_check_branch
          %1410 = sbr.rel (%p1408) target = $region220
        $region219: #{multi_scale_encoder.1} parent=187 // pred_region
          %1412 = dma.done [#allocation14], 1024
        $region220: #{multi_scale_encoder.1} parent=187 // pred_fallthru
          _
        // Predicated region
        $region221: #{multi_scale_encoder.1} parent=187 // pred_check
          %p1413 = pneg %p784
        $region222: #{multi_scale_encoder.1} parent=187 // pred_check_branch
          %1415 = sbr.rel (%p1413) target = $region224
        $region223: #{multi_scale_encoder.1} parent=187 // pred_region
          %1417 = dma.done [#allocation14], 1024
        $region224: #{multi_scale_encoder.1} parent=187 // pred_fallthru
          _
        // Predicated region
        $region225: #{multi_scale_encoder.1} parent=187 // pred_check
          %p1418 = pneg %p805
        $region226: #{multi_scale_encoder.1} parent=187 // pred_check_branch
          %1420 = sbr.rel (%p1418) target = $region228
        $region227: #{multi_scale_encoder.1} parent=187 // pred_region
          %1422 = dma.done [#allocation17], 1024
        $region228: #{multi_scale_encoder.1} parent=187 // pred_fallthru
          _
        // Predicated region
        $region229: #{multi_scale_encoder.1} parent=187 // pred_check
          %p1423 = pneg %p826
        $region230: #{multi_scale_encoder.1} parent=187 // pred_check_branch
          %1425 = sbr.rel (%p1423) target = $region232
        $region231: #{multi_scale_encoder.1} parent=187 // pred_region
          %1427 = dma.done [#allocation17], 1024
        $region232: #{multi_scale_encoder.1} parent=187 // pred_fallthru
          _
        // Predicated region
        $region233: #{multi_scale_encoder.1} parent=187 // pred_check
          %p1428 = pneg %p910
        $region234: #{multi_scale_encoder.1} parent=187 // pred_check_branch
          %1430 = sbr.rel (%p1428) target = $region236
        $region235: #{multi_scale_encoder.1} parent=187 // pred_region
          %1432 = dma.done [#allocation20], 1024
        $region236: #{multi_scale_encoder.1} parent=187 // pred_fallthru
          _
        // Predicated region
        $region237: #{multi_scale_encoder.1} parent=187 // pred_check
          %p1433 = pneg %p931
        $region238: #{multi_scale_encoder.1} parent=187 // pred_check_branch
          %1435 = sbr.rel (%p1433) target = $region240
        $region239: #{multi_scale_encoder.1} parent=187 // pred_region
          %1437 = dma.done [#allocation20], 1024
        $region240: #{multi_scale_encoder.1} parent=187 // pred_fallthru
          _
        // Predicated region
        $region241: #{multi_scale_encoder.1} parent=187 // pred_check
          %p1438 = pneg %p952
        $region242: #{multi_scale_encoder.1} parent=187 // pred_check_branch
          %1440 = sbr.rel (%p1438) target = $region244
        $region243: #{multi_scale_encoder.1} parent=187 // pred_region
          %1442 = dma.done [#allocation23], 1024
        $region244: #{multi_scale_encoder.1} parent=187 // pred_fallthru
          _
        // Predicated region
        $region245: #{multi_scale_encoder.1} parent=187 // pred_check
          %p1443 = pneg %p973
        $region246: #{multi_scale_encoder.1} parent=187 // pred_check_branch
          %1445 = sbr.rel (%p1443) target = $region248
        $region247: #{multi_scale_encoder.1} parent=187 // pred_region
          %1447 = dma.done [#allocation23], 1024
        $region248: #{multi_scale_encoder.1} parent=187 // pred_fallthru
          _
        %p1448 = scmp.lt.s32.totalorder %s107, 1
        %s1449 = scalar_select %p1448, %s107, 1
        %s1450 = smul.addr %s1449, 2
        %s1451 = smul.addr %s1450, 8
        %s1452 = scalar_lea.vmem %s1, %s1451
        %p1453 = pneg %p128
        %p1454 = pneg %p125
        %p1455 = scmp.lt.s32.totalorder %s107, 1
        %s1456 = scalar_select %p1455, %s107, 1
        %s1457 = smul.addr %s1456, 3
        %s1458 = smul.addr %s1457, 8
        %s1459 = scalar_lea.vmem %s3, %s1458
        %p1460 = pneg %p154
        %p1461 = pneg %p151
        %p1462 = pneg %p175
        %p1463 = pneg %p172
        %p1464 = pneg %p196
        %p1465 = pneg %p193
        %p1466 = pneg %p217
        %p1467 = pneg %p214
        %p1468 = pneg %p238
        %p1469 = pneg %p235
        %p1470 = pneg %p259
        %p1471 = pneg %p256
        %p1472 = pneg %p280
        %p1473 = pneg %p277
        %p1474 = pneg %p301
        %p1475 = pneg %p298
        %p1476 = pneg %p322
        %p1477 = pneg %p319
        %p1478 = pneg %p343
        %p1479 = pneg %p340
        %p1480 = pneg %p364
        %p1481 = pneg %p361
        %p1482 = pneg %p385
        %p1483 = pneg %p382
        %p1484 = pneg %p406
        %p1485 = pneg %p403
        %p1486 = pneg %p427
        %p1487 = pneg %p424
        %p1488 = pneg %p448
        %p1489 = pneg %p445
        %p1490 = pneg %p469
        %p1491 = pneg %p466
        %p1492 = pneg %p490
        %p1493 = pneg %p487
        %p1494 = pneg %p511
        %p1495 = pneg %p508
        %p1496 = pneg %p532
        %p1497 = pneg %p529
        %p1498 = pneg %p553
        %p1499 = pneg %p550
        %p1500 = pneg %p574
        %p1501 = pneg %p571
        %p1502 = pneg %p595
        %p1503 = pneg %p592
        %p1504 = pneg %p616
        %p1505 = pneg %p613
        %p1506 = pneg %p637
        %p1507 = pneg %p634
        %p1508 = pneg %p658
        %p1509 = pneg %p655
        %p1510 = pneg %p679
        %p1511 = pneg %p676
        %p1512 = pneg %p700
        %p1513 = pneg %p697
        %p1514 = pneg %p721
        %p1515 = pneg %p718
        %p1516 = pneg %p742
        %p1517 = pneg %p739
        %p1518 = pneg %p763
        %p1519 = pneg %p760
        %p1520 = pneg %p784
        %p1521 = pneg %p781
        %p1522 = pneg %p805
        %p1523 = pneg %p802
        %p1524 = pneg %p826
        %p1525 = pneg %p823
        %p1526 = pneg %p847
        %p1527 = pneg %p844
        %p1528 = pneg %p868
        %p1529 = pneg %p865
        %p1530 = pneg %p889
        %p1531 = pneg %p886
        %p1532 = pneg %p910
        %p1533 = pneg %p907
        %p1534 = pneg %p931
        %p1535 = pneg %p928
        %p1536 = pneg %p952
        %p1537 = pneg %p949
        %p1538 = pneg %p973
        %p1539 = pneg %p970
        %p1540 = pneg %p994
        %p1541 = pneg %p991
        %p1542 = pneg %p1020
        %p1543 = pneg %p1017
        %p1544 = scmp.lt.s32.totalorder %s107, 1
        %s1545 = scalar_select %p1544, %s107, 1
        %s1546 = smul.addr %s1545, 2
        %s1547 = smul.addr %s1546, 8
        %s1548 = scalar_lea.vmem %s85, %s1547
        %p1549 = pneg %p1046
        %p1550 = pneg %p1043
        %p1551 = scmp.lt.s32.totalorder %s107, 1
        %s1552 = scalar_select %p1551, %s107, 1
        %s1553 = smul.addr %s1552, 3
        %s1554 = smul.addr %s1553, 8
        %s1555 = scalar_lea.vmem %s87, %s1554
        %p1556 = scmp.lt.s32.totalorder %s107, 1
        %s1557 = scalar_select %p1556, %s107, 1
        %s1558 = smul.addr %s1557, 2
        %s1559 = smul.addr %s1558, 8
        %s1560 = scalar_lea.vmem %s1, %s1559
        %p1561 = scmp.lt.s32.totalorder %s107, 1
        %s1562 = scalar_select %p1561, %s107, 1
        %s1563 = smul.addr %s1562, 3
        %s1564 = smul.addr %s1563, 8
        %s1565 = scalar_lea.vmem %s3, %s1564
        %p1566 = scmp.lt.s32.totalorder %s107, 1
        %s1567 = scalar_select %p1566, %s107, 1
        %s1568 = smul.addr %s1567, 2
        %s1569 = smul.addr %s1568, 8
        %s1570 = scalar_lea.vmem %s85, %s1569
        %p1571 = scmp.lt.s32.totalorder %s107, 1
        %s1572 = scalar_select %p1571, %s107, 1
        %s1573 = smul.addr %s1572, 3
        %s1574 = smul.addr %s1573, 8
        %s1575 = scalar_lea.vmem %s87, %s1574
        %v1576 = vld [vmem:[%s1560] sm:$0xff]
        %v1577 = vld [vmem:[%s1560 + $0x8] sm:$0x1]
        %v1578 = vld [vmem:[%s1565] sm:$0xff]
        %v1579 = vld [vmem:[%s1565 + $0x8] sm:$0xff]
        %v1580 = vld [vmem:[%s1565 + $0x10] sm:$0x1]
        %v1581 = vld [vmem:[%s5] sm:$0x1]
        %v1582 = vld [vmem:[%s7] sm:$0x1]
        %vm1583 = vcmask 261120
        %v1584 = vsel %vm1583, %v1576, 0.0
        %1585 = vadd.xlane.f32.xlu0 %v1584
        %v1586 = vpop.xlane.xlu0 %1585
        %vm1587 = vcmask 253952
        %v1588 = vsel %vm1587, %v1577, 0.0
        %1589 = vadd.xlane.f32.xlu0 %v1588
        %v1590 = vpop.xlane.xlu0 %1589
        %v1591 = vrcp.pop 32.0
        %v1592 = vmul.f32 32.0, %v1591
        %v1593 = vsub.f32 1.0, %v1592
        %v1594 = vmul.f32 %v1591, %v1593
        %v1595 = vadd.f32 %v1591, %v1594
        %vm1596 = vweird.f32 %v1591
        %v1597 = vsel %vm1596, %v1591, %v1595
        %v1598 = vmul.f32 %v1586, %v1597
        %v1599 = vmul.f32 %v1590, %v1597
        %v1600 = vsub.f32 %v1576, %v1598
        %v1601 = vsub.f32 %v1577, %v1599
        %v1602 = vmul.f32 %v1600, %v1600
        %v1603 = vmul.f32 %v1601, %v1601
        %v1604 = vsel %vm1583, %v1602, 0.0
        %1605 = vadd.xlane.f32.xlu0 %v1604
        %v1606 = vpop.xlane.xlu0 %1605
        %v1607 = vsel %vm1587, %v1603, 0.0
        %1608 = vadd.xlane.f32.xlu0 %v1607
        %v1609 = vpop.xlane.xlu0 %1608
        %v1610 = vmul.f32 %v1606, %v1597
        %v1611 = vmul.f32 %v1609, %v1597
        %v1612 = vadd.f32 %v1610, 1e-05
        %v1613 = vadd.f32 %v1611, 1e-05
        %v1614 = vrsqrt.pop %v1612
        %v1615 = vmul.f32 %v1614, %v1612
        %v1616 = vmul.f32 %v1615, %v1614
        %v1617 = vmul.f32 0.5, %v1616
        %v1618 = vsub.f32 1.5, %v1617
        %v1619 = vmul.f32 %v1614, %v1618
        %vm1620 = vweird.f32 %v1612
        %vm1621 = vweird.f32 %v1614
        %vm1622 = vmor %vm1620, %vm1621
        %v1623 = vsel %vm1622, %v1614, %v1619
        %v1624 = vrsqrt.pop %v1613
        %v1625 = vmul.f32 %v1624, %v1613
        %v1626 = vmul.f32 %v1625, %v1624
        %v1627 = vmul.f32 0.5, %v1626
        %v1628 = vsub.f32 1.5, %v1627
        %v1629 = vmul.f32 %v1624, %v1628
        %vm1630 = vweird.f32 %v1613
        %vm1631 = vweird.f32 %v1624
        %vm1632 = vmor %vm1630, %vm1631
        %v1633 = vsel %vm1632, %v1624, %v1629
        %v1634 = vmul.f32 %v1600, %v1623
        %v1635 = vmul.f32 %v1601, %v1633
        %v1637 = vperm.slane %v1581, 0
        %v1639 = vmul.f32 %v1634, %v1637
        %v1640 = vmul.f32 %v1635, %v1637
        %v1642 = vperm.slane %v1582, 0
        %v1644 = vadd.f32 %v1639, %v1642
        %v1645 = vadd.f32 %v1640, %v1642
        %v1646 = vld [vmem:[%s9] sm:$0xff]
        %v1647 = vld [vmem:[%s9 + $0x8] sm:$0xff]
        %v1648 = vld [vmem:[%s9 + $0x10] sm:$0xff]
        %v1649 = vld [vmem:[%s9 + $0x18] sm:$0xff]
        %v1650 = vld [vmem:[%s11] sm:$0xff]
        %v1651 = vld [vmem:[%s11 + $0x8] sm:$0xff]
        %v1652 = vld [vmem:[%s11 + $0x10] sm:$0xff]
        %v1653 = vld [vmem:[%s11 + $0x18] sm:$0xff]
        %v1654 = vld [vmem:[%s13] sm:$0xff]
        %v1655 = vld [vmem:[%s13 + $0x8] sm:$0xff]
        %v1656 = vld [vmem:[%s13 + $0x10] sm:$0xff]
        %v1657 = vld [vmem:[%s13 + $0x18] sm:$0xff]
        %v1658 = vld [vmem:[#allocation2] sm:$0xff]
        %v1659 = vld [vmem:[#allocation2 + $0x8] sm:$0xff]
        %v1660 = vld [vmem:[#allocation2 + $0x10] sm:$0xff]
        %v1661 = vld [vmem:[#allocation2 + $0x18] sm:$0xff]
        %v1662 = vld [vmem:[%s17] sm:$0x1]
        %v1664 = vsel %vm1583, %v1644, 0
        %v1667 = vsel %vm1583, %v1645, 0
        %1669 = vmatpush.msra.mxu0 0.0
        %1670 = vmatpush.msra.mxu0 0.0
        %1671 = vmatpush.msra.mxu0 0.0
        %1672 = vmatpush.msra.mxu0 0.0
        %1673 = vmatpush.msra.mxu0 0.0
        %1674 = vmatpush.msra.mxu0 0.0
        %1675 = vmatpush.msra.mxu0 0.0
        %1676 = vmatpush.msra.mxu0 0.0
        %1677 = vmatpush.msra.mxu0 0.0
        %1678 = vmatpush.msra.mxu0 0.0
        %1679 = vmatpush.msra.mxu0 0.0
        %1680 = vmatpush.msra.mxu0 0.0
        %1681 = vmatpush.msra.mxu0 %v1649
        %1682 = vmatpush.msra.mxu0 %v1648
        %1683 = vmatpush.msra.mxu0 %v1647
        %1684 = vmatpush.msra.mxu0 %v1646
        %1685 = vmatmul.f32.gmra.mxu0 %v1664
        %v1686 = vpop.f32.mrf.mxu0
        %v1687 = vadd.f32 0.0, %v1686
        %1688 = vmatmul.f32.gmra.mxu0 %v1667
        %v1689 = vpop.f32.mrf.mxu0
        %v1690 = vadd.f32 0.0, %v1689
        %1691 = vdwg.mxu0
        %v1693 = vsel %vm1583, %v1650, 0
        %v1696 = vsel %vm1583, %v1651, 0
        %v1699 = vsel %vm1583, %v1652, 0
        %v1702 = vsel %vm1583, %v1653, 0
        %1704 = vmatpush.xpose.msra.mxu0 0.0
        %1705 = vmatpush.xpose.msra.mxu0 0.0
        %1706 = vmatpush.xpose.msra.mxu0 0.0
        %1707 = vmatpush.xpose.msra.mxu0 0.0
        %1708 = vmatpush.xpose.msra.mxu0 0.0
        %1709 = vmatpush.xpose.msra.mxu0 0.0
        %1710 = vmatpush.xpose.msra.mxu0 0.0
        %1711 = vmatpush.xpose.msra.mxu0 0.0
        %1712 = vmatpush.xpose.msra.mxu0 0.0
        %1713 = vmatpush.xpose.msra.mxu0 0.0
        %1714 = vmatpush.xpose.msra.mxu0 0.0
        %1715 = vmatpush.xpose.msra.mxu0 0.0
        %1716 = vmatpush.xpose.msra.mxu0 0.0
        %1717 = vmatpush.xpose.msra.mxu0 0.0
        %1718 = vmatpush.xpose.msra.mxu0 %v1667
        %1719 = vmatpush.xpose.msra.mxu0 %v1664
        %1720 = vmatmul.f32.gmra.mxu0 %v1693
        %v1721 = vpop.f32.mrf.mxu0
        %v1722 = vadd.f32 0.0, %v1721
        %1723 = vmatmul.f32.gmra.mxu0 %v1696
        %v1724 = vpop.f32.mrf.mxu0
        %v1725 = vadd.f32 0.0, %v1724
        %1726 = vmatmul.f32.gmra.mxu0 %v1699
        %v1727 = vpop.f32.mrf.mxu0
        %v1728 = vadd.f32 0.0, %v1727
        %1729 = vmatmul.f32.gmra.mxu0 %v1702
        %v1730 = vpop.f32.mrf.mxu0
        %v1731 = vadd.f32 0.0, %v1730
        %1732 = vdwg.mxu0
        %1733 = vmatpush.msra.mxu0 0.0
        %1734 = vmatpush.msra.mxu0 0.0
        %1735 = vmatpush.msra.mxu0 0.0
        %1736 = vmatpush.msra.mxu0 0.0
        %1737 = vmatpush.msra.mxu0 0.0
        %1738 = vmatpush.msra.mxu0 0.0
        %1739 = vmatpush.msra.mxu0 0.0
        %1740 = vmatpush.msra.mxu0 0.0
        %1741 = vmatpush.msra.mxu0 0.0
        %1742 = vmatpush.msra.mxu0 0.0
        %1743 = vmatpush.msra.mxu0 0.0
        %1744 = vmatpush.msra.mxu0 0.0
        %1745 = vmatpush.msra.mxu0 %v1657
        %1746 = vmatpush.msra.mxu0 %v1656
        %1747 = vmatpush.msra.mxu0 %v1655
        %1748 = vmatpush.msra.mxu0 %v1654
        %1749 = vmatmul.f32.gmra.mxu0 %v1664
        %v1750 = vpop.f32.mrf.mxu0
        %v1751 = vadd.f32 0.0, %v1750
        %1752 = vmatmul.f32.gmra.mxu0 %v1667
        %v1753 = vpop.f32.mrf.mxu0
        %v1754 = vadd.f32 0.0, %v1753
        %1755 = vdwg.mxu0
        %vm1756 = vcmask 130048
        %v1758 = vsel %vm1756, %v1687, 0
        %v1761 = vsel %vm1756, %v1690, 0
        %1763 = vmatpush.msra.mxu0 0.0
        %1764 = vmatpush.msra.mxu0 0.0
        %1765 = vmatpush.msra.mxu0 0.0
        %1766 = vmatpush.msra.mxu0 0.0
        %1767 = vmatpush.msra.mxu0 0.0
        %1768 = vmatpush.msra.mxu0 0.0
        %1769 = vmatpush.msra.mxu0 0.0
        %1770 = vmatpush.msra.mxu0 0.0
        %1771 = vmatpush.msra.mxu0 0.0
        %1772 = vmatpush.msra.mxu0 0.0
        %1773 = vmatpush.msra.mxu0 0.0
        %1774 = vmatpush.msra.mxu0 0.0
        %1775 = vmatpush.msra.mxu0 0.0
        %1776 = vmatpush.msra.mxu0 0.0
        %1777 = vmatpush.msra.mxu0 %v1725
        %1778 = vmatpush.msra.mxu0 %v1722
        %1779 = vmatmul.f32.gmra.mxu0 %v1758
        %v1780 = vpop.f32.mrf.mxu0
        %v1781 = vadd.f32 0.0, %v1780
        %1782 = vmatmul.f32.gmra.mxu0 %v1761
        %v1783 = vpop.f32.mrf.mxu0
        %v1784 = vadd.f32 0.0, %v1783
        %1785 = vdwg.mxu0
        %v1786 = vmul.f32 %v1781, 0.25
        %v1787 = vmul.f32 %v1784, 0.25
        %vm1788 = vcmask 72704
        %v1789 = vsel %vm1788, %v1786, -inf
        %1790 = vmax.xlane.f32.xlu0 %v1789
        %v1791 = vpop.xlane.xlu0 %1790
        %vm1792 = vcmask 65536
        %v1793 = vsel %vm1792, %v1787, -inf
        %1794 = vmax.xlane.f32.xlu0 %v1793
        %v1795 = vpop.xlane.xlu0 %1794
        %v1796 = vsub.f32 %v1786, %v1791
        %v1797 = vsub.f32 %v1787, %v1795
        %v1798 = vmul.f32 %v1796, 1.442695
        %v1799 = vpow.pop %v1798
        %v1800 = vmul.f32 %v1797, 1.442695
        %v1801 = vpow.pop %v1800
        %v1802 = vsel %vm1788, %v1799, 0.0
        %1803 = vadd.xlane.f32.xlu0 %v1802
        %v1804 = vpop.xlane.xlu0 %1803
        %v1805 = vsel %vm1792, %v1801, 0.0
        %1806 = vadd.xlane.f32.xlu0 %v1805
        %v1807 = vpop.xlane.xlu0 %1806
        %v1809 = vsel %vm1788, %v1799, 0
        %v1812 = vsel %vm1788, %v1801, 0
        %vm1814 = vcmask 1040384
        %v1816 = vsel %vm1814, %v1754, 0
        %1818 = vmatpush.msra.mxu0 0.0
        %1819 = vmatpush.msra.mxu0 0.0
        %1820 = vmatpush.msra.mxu0 0.0
        %1821 = vmatpush.msra.mxu0 0.0
        %1822 = vmatpush.msra.mxu0 0.0
        %1823 = vmatpush.msra.mxu0 0.0
        %1824 = vmatpush.msra.mxu0 0.0
        %1825 = vmatpush.msra.mxu0 0.0
        %1826 = vmatpush.msra.mxu0 0.0
        %1827 = vmatpush.msra.mxu0 0.0
        %1828 = vmatpush.msra.mxu0 0.0
        %1829 = vmatpush.msra.mxu0 0.0
        %1830 = vmatpush.msra.mxu0 0.0
        %1831 = vmatpush.msra.mxu0 0.0
        %1832 = vmatpush.msra.mxu0 %v1816
        %1833 = vmatpush.msra.mxu0 %v1751
        %1834 = vmatmul.f32.gmra.mxu0 %v1809
        %v1835 = vpop.f32.mrf.mxu0
        %v1836 = vadd.f32 0.0, %v1835
        %1837 = vmatmul.f32.gmra.mxu0 %v1812
        %v1838 = vpop.f32.mrf.mxu0
        %v1839 = vadd.f32 0.0, %v1838
        %1840 = vdwg.mxu0
        %v1841 = vrcp.pop %v1804
        %v1842 = vmul.f32 %v1804, %v1841
        %v1843 = vsub.f32 1.0, %v1842
        %v1844 = vmul.f32 %v1841, %v1843
        %v1845 = vadd.f32 %v1841, %v1844
        %vm1846 = vweird.f32 %v1804
        %vm1847 = vweird.f32 %v1841
        %vm1848 = vmor %vm1846, %vm1847
        %v1849 = vsel %vm1848, %v1841, %v1845
        %v1850 = vand.u32 2147483647, %v1804
        %vm1851 = vcmp.eq.f32.partialorder %v1850, 8.507059e+37
        %v1852 = vand.u32 %v1804, 2147483648
        %v1853 = vor.u32 1.1754944e-38, %v1852
        %v1854 = vsel %vm1851, %v1853, %v1849
        %v1855 = vmul.f32 %v1836, %v1854
        %v1856 = vrcp.pop %v1807
        %v1857 = vmul.f32 %v1807, %v1856
        %v1858 = vsub.f32 1.0, %v1857
        %v1859 = vmul.f32 %v1856, %v1858
        %v1860 = vadd.f32 %v1856, %v1859
        %vm1861 = vweird.f32 %v1807
        %vm1862 = vweird.f32 %v1856
        %vm1863 = vmor %vm1861, %vm1862
        %v1864 = vsel %vm1863, %v1856, %v1860
        %v1865 = vand.u32 2147483647, %v1807
        %vm1866 = vcmp.eq.f32.partialorder %v1865, 8.507059e+37
        %v1867 = vand.u32 %v1807, 2147483648
        %v1868 = vor.u32 1.1754944e-38, %v1867
        %v1869 = vsel %vm1866, %v1868, %v1864
        %v1870 = vmul.f32 %v1839, %v1869
        %1871 = vrot.lane.b32.xlu0 %v1687, 112
        %v1872 = vpop.permute.xlu0 %1871
        %1873 = vrot.lane.b32.xlu0 %v1690, 112
        %v1874 = vpop.permute.xlu0 %1873
        %v1875 = vsel %vm1756, %v1872, 0
        %v1877 = vsel %vm1756, %v1874, 0
        %1879 = vmatpush.msra.mxu0 0.0
        %1880 = vmatpush.msra.mxu0 0.0
        %1881 = vmatpush.msra.mxu0 0.0
        %1882 = vmatpush.msra.mxu0 0.0
        %1883 = vmatpush.msra.mxu0 0.0
        %1884 = vmatpush.msra.mxu0 0.0
        %1885 = vmatpush.msra.mxu0 0.0
        %1886 = vmatpush.msra.mxu0 0.0
        %1887 = vmatpush.msra.mxu0 0.0
        %1888 = vmatpush.msra.mxu0 0.0
        %1889 = vmatpush.msra.mxu0 0.0
        %1890 = vmatpush.msra.mxu0 0.0
        %1891 = vmatpush.msra.mxu0 0.0
        %1892 = vmatpush.msra.mxu0 0.0
        %1893 = vmatpush.msra.mxu0 %v1731
        %1894 = vmatpush.msra.mxu0 %v1728
        %1895 = vmatmul.f32.gmra.mxu0 %v1875
        %v1896 = vpop.f32.mrf.mxu0
        %v1897 = vadd.f32 0.0, %v1896
        %1898 = vmatmul.f32.gmra.mxu0 %v1877
        %v1899 = vpop.f32.mrf.mxu0
        %v1900 = vadd.f32 0.0, %v1899
        %1901 = vdwg.mxu0
        %v1902 = vmul.f32 %v1897, 0.25
        %v1903 = vmul.f32 %v1900, 0.25
        %v1904 = vsel %vm1788, %v1902, -inf
        %1905 = vmax.xlane.f32.xlu0 %v1904
        %v1906 = vpop.xlane.xlu0 %1905
        %v1907 = vsel %vm1792, %v1903, -inf
        %1908 = vmax.xlane.f32.xlu0 %v1907
        %v1909 = vpop.xlane.xlu0 %1908
        %v1910 = vsub.f32 %v1902, %v1906
        %v1911 = vsub.f32 %v1903, %v1909
        %v1912 = vmul.f32 %v1910, 1.442695
        %v1913 = vpow.pop %v1912
        %v1914 = vmul.f32 %v1911, 1.442695
        %v1915 = vpow.pop %v1914
        %v1916 = vsel %vm1788, %v1913, 0.0
        %1917 = vadd.xlane.f32.xlu0 %v1916
        %v1918 = vpop.xlane.xlu0 %1917
        %v1919 = vsel %vm1792, %v1915, 0.0
        %1920 = vadd.xlane.f32.xlu0 %v1919
        %v1921 = vpop.xlane.xlu0 %1920
        %1923 = vrot.lane.b32.xlu0 %v1751, 112
        %v1924 = vpop.permute.xlu0 %1923
        %1925 = vrot.lane.b32.xlu0 %v1754, 112
        %v1926 = vpop.permute.xlu0 %1925
        %v1929 = vsel %vm1788, %v1913, 0
        %v1932 = vsel %vm1788, %v1915, 0
        %v1934 = vsel %vm1814, %v1926, 0
        %1936 = vmatpush.msra.mxu0 0.0
        %1937 = vmatpush.msra.mxu0 0.0
        %1938 = vmatpush.msra.mxu0 0.0
        %1939 = vmatpush.msra.mxu0 0.0
        %1940 = vmatpush.msra.mxu0 0.0
        %1941 = vmatpush.msra.mxu0 0.0
        %1942 = vmatpush.msra.mxu0 0.0
        %1943 = vmatpush.msra.mxu0 0.0
        %1944 = vmatpush.msra.mxu0 0.0
        %1945 = vmatpush.msra.mxu0 0.0
        %1946 = vmatpush.msra.mxu0 0.0
        %1947 = vmatpush.msra.mxu0 0.0
        %1948 = vmatpush.msra.mxu0 0.0
        %1949 = vmatpush.msra.mxu0 0.0
        %1950 = vmatpush.msra.mxu0 %v1934
        %1951 = vmatpush.msra.mxu0 %v1924
        %1952 = vmatmul.f32.gmra.mxu0 %v1929
        %v1953 = vpop.f32.mrf.mxu0
        %v1954 = vadd.f32 0.0, %v1953
        %1955 = vmatmul.f32.gmra.mxu0 %v1932
        %v1956 = vpop.f32.mrf.mxu0
        %v1957 = vadd.f32 0.0, %v1956
        %1958 = vdwg.mxu0
        %v1959 = vrcp.pop %v1918
        %v1960 = vmul.f32 %v1918, %v1959
        %v1961 = vsub.f32 1.0, %v1960
        %v1962 = vmul.f32 %v1959, %v1961
        %v1963 = vadd.f32 %v1959, %v1962
        %vm1964 = vweird.f32 %v1918
        %vm1965 = vweird.f32 %v1959
        %vm1966 = vmor %vm1964, %vm1965
        %v1967 = vsel %vm1966, %v1959, %v1963
        %v1968 = vand.u32 2147483647, %v1918
        %vm1969 = vcmp.eq.f32.partialorder %v1968, 8.507059e+37
        %v1970 = vand.u32 %v1918, 2147483648
        %v1971 = vor.u32 1.1754944e-38, %v1970
        %v1972 = vsel %vm1969, %v1971, %v1967
        %v1973 = vmul.f32 %v1954, %v1972
        %v1974 = vrcp.pop %v1921
        %v1975 = vmul.f32 %v1921, %v1974
        %v1976 = vsub.f32 1.0, %v1975
        %v1977 = vmul.f32 %v1974, %v1976
        %v1978 = vadd.f32 %v1974, %v1977
        %vm1979 = vweird.f32 %v1921
        %vm1980 = vweird.f32 %v1974
        %vm1981 = vmor %vm1979, %vm1980
        %v1982 = vsel %vm1981, %v1974, %v1978
        %v1983 = vand.u32 2147483647, %v1921
        %vm1984 = vcmp.eq.f32.partialorder %v1983, 8.507059e+37
        %v1985 = vand.u32 %v1921, 2147483648
        %v1986 = vor.u32 1.1754944e-38, %v1985
        %v1987 = vsel %vm1984, %v1986, %v1982
        %v1988 = vmul.f32 %v1957, %v1987
        %1991 = vrot.lane.b32.xlu0 %v1973, 16
        %v1992 = vpop.permute.xlu0 %1991
        %1993 = vrot.lane.b32.xlu0 %v1988, 16
        %v1994 = vpop.permute.xlu0 %1993
        %v1997 = vsel %vm1756, %v1855, %v1992
        %v1998 = vsel %vm1756, %v1870, %v1994
        %v2000 = vperm.slane %v1662, 0
        %v2003 = vsel %vm1583, %v1997, 0
        %v2006 = vsel %vm1583, %v1998, 0
        %2008 = vmatpush.msra.mxu0 0.0
        %2009 = vmatpush.msra.mxu0 0.0
        %2010 = vmatpush.msra.mxu0 0.0
        %2011 = vmatpush.msra.mxu0 0.0
        %2012 = vmatpush.msra.mxu0 0.0
        %2013 = vmatpush.msra.mxu0 0.0
        %2014 = vmatpush.msra.mxu0 0.0
        %2015 = vmatpush.msra.mxu0 0.0
        %2016 = vmatpush.msra.mxu0 0.0
        %2017 = vmatpush.msra.mxu0 0.0
        %2018 = vmatpush.msra.mxu0 0.0
        %2019 = vmatpush.msra.mxu0 0.0
        %2020 = vmatpush.msra.mxu0 %v1661
        %2021 = vmatpush.msra.mxu0 %v1660
        %2022 = vmatpush.msra.mxu0 %v1659
        %2023 = vmatpush.msra.mxu0 %v1658
        %2024 = vmatmul.f32.gmra.mxu0 %v2003
        %v2025 = vpop.f32.mrf.mxu0
        %v2026 = vadd.f32 %v2000, %v2025
        %2027 = vmatmul.f32.gmra.mxu0 %v2006
        %v2028 = vpop.f32.mrf.mxu0
        %v2029 = vadd.f32 %v2000, %v2028
        %2030 = vdwg.mxu0
        %v2031 = vadd.f32 %v1576, %v2026
        %v2032 = vadd.f32 %v1577, %v2029
        %v2033 = vld [vmem:[%s19] sm:$0x1]
        %v2034 = vld [vmem:[%s21] sm:$0x1]
        %v2035 = vsel %vm1583, %v2031, 0.0
        %2036 = vadd.xlane.f32.xlu0 %v2035
        %v2037 = vpop.xlane.xlu0 %2036
        %v2038 = vsel %vm1587, %v2032, 0.0
        %2039 = vadd.xlane.f32.xlu0 %v2038
        %v2040 = vpop.xlane.xlu0 %2039
        %v2041 = vmul.f32 %v2037, %v1597
        %v2042 = vmul.f32 %v2040, %v1597
        %v2043 = vsub.f32 %v2031, %v2041
        %v2044 = vsub.f32 %v2032, %v2042
        %v2045 = vmul.f32 %v2043, %v2043
        %v2046 = vmul.f32 %v2044, %v2044
        %v2047 = vsel %vm1583, %v2045, 0.0
        %2048 = vadd.xlane.f32.xlu0 %v2047
        %v2049 = vpop.xlane.xlu0 %2048
        %v2050 = vsel %vm1587, %v2046, 0.0
        %2051 = vadd.xlane.f32.xlu0 %v2050
        %v2052 = vpop.xlane.xlu0 %2051
        %v2053 = vmul.f32 %v2049, %v1597
        %v2054 = vmul.f32 %v2052, %v1597
        %v2055 = vadd.f32 %v2053, 1e-05
        %v2056 = vadd.f32 %v2054, 1e-05
        %v2057 = vrsqrt.pop %v2055
        %v2058 = vmul.f32 %v2057, %v2055
        %v2059 = vmul.f32 %v2058, %v2057
        %v2060 = vmul.f32 0.5, %v2059
        %v2061 = vsub.f32 1.5, %v2060
        %v2062 = vmul.f32 %v2057, %v2061
        %vm2063 = vweird.f32 %v2055
        %vm2064 = vweird.f32 %v2057
        %vm2065 = vmor %vm2063, %vm2064
        %v2066 = vsel %vm2065, %v2057, %v2062
        %v2067 = vrsqrt.pop %v2056
        %v2068 = vmul.f32 %v2067, %v2056
        %v2069 = vmul.f32 %v2068, %v2067
        %v2070 = vmul.f32 0.5, %v2069
        %v2071 = vsub.f32 1.5, %v2070
        %v2072 = vmul.f32 %v2067, %v2071
        %vm2073 = vweird.f32 %v2056
        %vm2074 = vweird.f32 %v2067
        %vm2075 = vmor %vm2073, %vm2074
        %v2076 = vsel %vm2075, %v2067, %v2072
        %v2077 = vmul.f32 %v2043, %v2066
        %v2078 = vmul.f32 %v2044, %v2076
        %v2080 = vperm.slane %v2033, 0
        %v2082 = vmul.f32 %v2077, %v2080
        %v2083 = vmul.f32 %v2078, %v2080
        %v2085 = vperm.slane %v2034, 0
        %v2087 = vadd.f32 %v2082, %v2085
        %v2088 = vadd.f32 %v2083, %v2085
        %v2089 = vld [vmem:[#allocation4] sm:$0xff]
        %v2090 = vld [vmem:[#allocation4 + $0x8] sm:$0xff]
        %v2091 = vld [vmem:[#allocation4 + $0x10] sm:$0xff]
        %v2092 = vld [vmem:[#allocation4 + $0x18] sm:$0xff]
        %v2093 = vld [vmem:[%s25] sm:$0x1]
        %v2095 = vperm.slane %v2093, 0
        %v2098 = vsel %vm1583, %v2087, 0
        %v2101 = vsel %vm1583, %v2088, 0
        %2103 = vmatpush.msra.mxu0 0.0
        %2104 = vmatpush.msra.mxu0 0.0
        %2105 = vmatpush.msra.mxu0 0.0
        %2106 = vmatpush.msra.mxu0 0.0
        %2107 = vmatpush.msra.mxu0 0.0
        %2108 = vmatpush.msra.mxu0 0.0
        %2109 = vmatpush.msra.mxu0 0.0
        %2110 = vmatpush.msra.mxu0 0.0
        %2111 = vmatpush.msra.mxu0 0.0
        %2112 = vmatpush.msra.mxu0 0.0
        %2113 = vmatpush.msra.mxu0 0.0
        %2114 = vmatpush.msra.mxu0 0.0
        %2115 = vmatpush.msra.mxu0 %v2092
        %2116 = vmatpush.msra.mxu0 %v2091
        %2117 = vmatpush.msra.mxu0 %v2090
        %2118 = vmatpush.msra.mxu0 %v2089
        %2119 = vmatmul.f32.gmra.mxu0 %v2098
        %v2120 = vpop.f32.mrf.mxu0
        %v2121 = vadd.f32 %v2095, %v2120
        %2122 = vmatmul.f32.gmra.mxu0 %v2101
        %v2123 = vpop.f32.mrf.mxu0
        %v2124 = vadd.f32 %v2095, %v2123
        %2125 = vdwg.mxu0
        %v2126 = vmul.f32 %v2121, %v2121
        %v2127 = vmul.f32 %v2124, %v2124
        %v2128 = vmul.f32 %v2121, %v2126
        %v2129 = vmul.f32 %v2124, %v2127
        %v2130 = vmul.f32 %v2128, 0.044715
        %v2131 = vmul.f32 %v2129, 0.044715
        %v2132 = vadd.f32 %v2121, %v2130
        %v2133 = vadd.f32 %v2124, %v2131
        %v2134 = vmul.f32 %v2132, 0.7978846
        %v2135 = vmul.f32 %v2133, 0.7978846
        %v2136 = vtanh.pop %v2134
        %v2137 = vtanh.pop %v2135
        %v2138 = vadd.f32 %v2136, 1.0
        %v2139 = vadd.f32 %v2137, 1.0
        %v2140 = vmul.f32 %v2138, 0.5
        %v2141 = vmul.f32 %v2139, 0.5
        %v2142 = vmul.f32 %v2121, %v2140
        %v2143 = vmul.f32 %v2124, %v2141
        %v2144 = vld [vmem:[%s27] sm:$0xff]
        %v2145 = vld [vmem:[%s27 + $0x8] sm:$0xff]
        %v2146 = vld [vmem:[%s27 + $0x10] sm:$0xff]
        %v2147 = vld [vmem:[%s27 + $0x18] sm:$0xff]
        %v2148 = vld [vmem:[%s27 + $0x20] sm:$0xff]
        %v2149 = vld [vmem:[%s27 + $0x28] sm:$0xff]
        %v2150 = vld [vmem:[%s27 + $0x30] sm:$0xff]
        %v2151 = vld [vmem:[%s27 + $0x38] sm:$0xff]
        %vm2152 = vcmask 523264
        %v2154 = vsel %vm2152, %v2142, 0
        %v2157 = vsel %vm2152, %v2143, 0
        %2159 = vmatpush.msra.mxu0 0.0
        %2160 = vmatpush.msra.mxu0 0.0
        %2161 = vmatpush.msra.mxu0 0.0
        %2162 = vmatpush.msra.mxu0 0.0
        %2163 = vmatpush.msra.mxu0 0.0
        %2164 = vmatpush.msra.mxu0 0.0
        %2165 = vmatpush.msra.mxu0 0.0
        %2166 = vmatpush.msra.mxu0 0.0
        %2167 = vmatpush.msra.mxu0 %v2151
        %2168 = vmatpush.msra.mxu0 %v2150
        %2169 = vmatpush.msra.mxu0 %v2149
        %2170 = vmatpush.msra.mxu0 %v2148
        %2171 = vmatpush.msra.mxu0 %v2147
        %2172 = vmatpush.msra.mxu0 %v2146
        %2173 = vmatpush.msra.mxu0 %v2145
        %2174 = vmatpush.msra.mxu0 %v2144
        %2175 = vmatmul.f32.gmra.mxu0 %v2154
        %v2176 = vpop.f32.mrf.mxu0
        %v2177 = vadd.f32 0.0, %v2176
        %2178 = vmatmul.f32.gmra.mxu0 %v2157
        %v2179 = vpop.f32.mrf.mxu0
        %v2180 = vadd.f32 0.0, %v2179
        %2181 = vdwg.mxu0
        %v2182 = vadd.f32 %v2031, %v2177
        %v2183 = vadd.f32 %v2032, %v2180
        %v2184 = vld [vmem:[%s29] sm:$0x1]
        %v2186 = vperm.slane %v2184, 0
        %v2188 = vadd.f32 %v2182, %v2186
        %v2189 = vadd.f32 %v2183, %v2186
        %s2190 = scalar_lea.vmem %s5, 1
        %v2191 = vld [vmem:[%s2190] sm:$0x1]
        %s2192 = scalar_lea.vmem %s7, 1
        %v2193 = vld [vmem:[%s2192] sm:$0x1]
        %v2194 = vsel %vm1583, %v2188, 0.0
        %2195 = vadd.xlane.f32.xlu0 %v2194
        %v2196 = vpop.xlane.xlu0 %2195
        %v2197 = vsel %vm1587, %v2189, 0.0
        %2198 = vadd.xlane.f32.xlu0 %v2197
        %v2199 = vpop.xlane.xlu0 %2198
        %v2200 = vmul.f32 %v2196, %v1597
        %v2201 = vmul.f32 %v2199, %v1597
        %v2202 = vsub.f32 %v2188, %v2200
        %v2203 = vsub.f32 %v2189, %v2201
        %v2204 = vmul.f32 %v2202, %v2202
        %v2205 = vmul.f32 %v2203, %v2203
        %v2206 = vsel %vm1583, %v2204, 0.0
        %2207 = vadd.xlane.f32.xlu0 %v2206
        %v2208 = vpop.xlane.xlu0 %2207
        %v2209 = vsel %vm1587, %v2205, 0.0
        %2210 = vadd.xlane.f32.xlu0 %v2209
        %v2211 = vpop.xlane.xlu0 %2210
        %v2212 = vmul.f32 %v2208, %v1597
        %v2213 = vmul.f32 %v2211, %v1597
        %v2214 = vadd.f32 %v2212, 1e-05
        %v2215 = vadd.f32 %v2213, 1e-05
        %v2216 = vrsqrt.pop %v2214
        %v2217 = vmul.f32 %v2216, %v2214
        %v2218 = vmul.f32 %v2217, %v2216
        %v2219 = vmul.f32 0.5, %v2218
        %v2220 = vsub.f32 1.5, %v2219
        %v2221 = vmul.f32 %v2216, %v2220
        %vm2222 = vweird.f32 %v2214
        %vm2223 = vweird.f32 %v2216
        %vm2224 = vmor %vm2222, %vm2223
        %v2225 = vsel %vm2224, %v2216, %v2221
        %v2226 = vrsqrt.pop %v2215
        %v2227 = vmul.f32 %v2226, %v2215
        %v2228 = vmul.f32 %v2227, %v2226
        %v2229 = vmul.f32 0.5, %v2228
        %v2230 = vsub.f32 1.5, %v2229
        %v2231 = vmul.f32 %v2226, %v2230
        %vm2232 = vweird.f32 %v2215
        %vm2233 = vweird.f32 %v2226
        %vm2234 = vmor %vm2232, %vm2233
        %v2235 = vsel %vm2234, %v2226, %v2231
        %v2236 = vmul.f32 %v2202, %v2225
        %v2237 = vmul.f32 %v2203, %v2235
        %v2239 = vperm.slane %v2191, 0
        %v2241 = vmul.f32 %v2236, %v2239
        %v2242 = vmul.f32 %v2237, %v2239
        %v2244 = vperm.slane %v2193, 0
        %v2246 = vadd.f32 %v2241, %v2244
        %v2247 = vadd.f32 %v2242, %v2244
        %s2248 = scalar_lea.vmem %s9, 32
        %v2249 = vld [vmem:[%s2248] sm:$0xff]
        %v2250 = vld [vmem:[%s2248 + $0x8] sm:$0xff]
        %v2251 = vld [vmem:[%s2248 + $0x10] sm:$0xff]
        %v2252 = vld [vmem:[%s2248 + $0x18] sm:$0xff]
        %s2253 = scalar_lea.vmem %s11, 32
        %v2254 = vld [vmem:[%s2253] sm:$0xff]
        %v2255 = vld [vmem:[%s2253 + $0x8] sm:$0xff]
        %v2256 = vld [vmem:[%s2253 + $0x10] sm:$0xff]
        %v2257 = vld [vmem:[%s2253 + $0x18] sm:$0xff]
        %s2258 = scalar_lea.vmem %s13, 32
        %v2259 = vld [vmem:[%s2258] sm:$0xff]
        %v2260 = vld [vmem:[%s2258 + $0x8] sm:$0xff]
        %v2261 = vld [vmem:[%s2258 + $0x10] sm:$0xff]
        %v2262 = vld [vmem:[%s2258 + $0x18] sm:$0xff]
        %s2263 = scalar_lea.vmem [#allocation2], 32
        %v2264 = vld [vmem:[%s2263] sm:$0xff]
        %v2265 = vld [vmem:[%s2263 + $0x8] sm:$0xff]
        %v2266 = vld [vmem:[%s2263 + $0x10] sm:$0xff]
        %v2267 = vld [vmem:[%s2263 + $0x18] sm:$0xff]
        %s2268 = scalar_lea.vmem %s17, 1
        %v2269 = vld [vmem:[%s2268] sm:$0x1]
        %v2271 = vsel %vm1583, %v2246, 0
        %v2274 = vsel %vm1583, %v2247, 0
        %2276 = vmatpush.msra.mxu0 0.0
        %2277 = vmatpush.msra.mxu0 0.0
        %2278 = vmatpush.msra.mxu0 0.0
        %2279 = vmatpush.msra.mxu0 0.0
        %2280 = vmatpush.msra.mxu0 0.0
        %2281 = vmatpush.msra.mxu0 0.0
        %2282 = vmatpush.msra.mxu0 0.0
        %2283 = vmatpush.msra.mxu0 0.0
        %2284 = vmatpush.msra.mxu0 0.0
        %2285 = vmatpush.msra.mxu0 0.0
        %2286 = vmatpush.msra.mxu0 0.0
        %2287 = vmatpush.msra.mxu0 0.0
        %2288 = vmatpush.msra.mxu0 %v2252
        %2289 = vmatpush.msra.mxu0 %v2251
        %2290 = vmatpush.msra.mxu0 %v2250
        %2291 = vmatpush.msra.mxu0 %v2249
        %2292 = vmatmul.f32.gmra.mxu0 %v2271
        %v2293 = vpop.f32.mrf.mxu0
        %v2294 = vadd.f32 0.0, %v2293
        %2295 = vmatmul.f32.gmra.mxu0 %v2274
        %v2296 = vpop.f32.mrf.mxu0
        %v2297 = vadd.f32 0.0, %v2296
        %2298 = vdwg.mxu0
        %v2300 = vsel %vm1583, %v2254, 0
        %v2303 = vsel %vm1583, %v2255, 0
        %v2306 = vsel %vm1583, %v2256, 0
        %v2309 = vsel %vm1583, %v2257, 0
        %2311 = vmatpush.xpose.msra.mxu0 0.0
        %2312 = vmatpush.xpose.msra.mxu0 0.0
        %2313 = vmatpush.xpose.msra.mxu0 0.0
        %2314 = vmatpush.xpose.msra.mxu0 0.0
        %2315 = vmatpush.xpose.msra.mxu0 0.0
        %2316 = vmatpush.xpose.msra.mxu0 0.0
        %2317 = vmatpush.xpose.msra.mxu0 0.0
        %2318 = vmatpush.xpose.msra.mxu0 0.0
        %2319 = vmatpush.xpose.msra.mxu0 0.0
        %2320 = vmatpush.xpose.msra.mxu0 0.0
        %2321 = vmatpush.xpose.msra.mxu0 0.0
        %2322 = vmatpush.xpose.msra.mxu0 0.0
        %2323 = vmatpush.xpose.msra.mxu0 0.0
        %2324 = vmatpush.xpose.msra.mxu0 0.0
        %2325 = vmatpush.xpose.msra.mxu0 %v2274
        %2326 = vmatpush.xpose.msra.mxu0 %v2271
        %2327 = vmatmul.f32.gmra.mxu0 %v2300
        %v2328 = vpop.f32.mrf.mxu0
        %v2329 = vadd.f32 0.0, %v2328
        %2330 = vmatmul.f32.gmra.mxu0 %v2303
        %v2331 = vpop.f32.mrf.mxu0
        %v2332 = vadd.f32 0.0, %v2331
        %2333 = vmatmul.f32.gmra.mxu0 %v2306
        %v2334 = vpop.f32.mrf.mxu0
        %v2335 = vadd.f32 0.0, %v2334
        %2336 = vmatmul.f32.gmra.mxu0 %v2309
        %v2337 = vpop.f32.mrf.mxu0
        %v2338 = vadd.f32 0.0, %v2337
        %2339 = vdwg.mxu0
        %2340 = vmatpush.msra.mxu0 0.0
        %2341 = vmatpush.msra.mxu0 0.0
        %2342 = vmatpush.msra.mxu0 0.0
        %2343 = vmatpush.msra.mxu0 0.0
        %2344 = vmatpush.msra.mxu0 0.0
        %2345 = vmatpush.msra.mxu0 0.0
        %2346 = vmatpush.msra.mxu0 0.0
        %2347 = vmatpush.msra.mxu0 0.0
        %2348 = vmatpush.msra.mxu0 0.0
        %2349 = vmatpush.msra.mxu0 0.0
        %2350 = vmatpush.msra.mxu0 0.0
        %2351 = vmatpush.msra.mxu0 0.0
        %2352 = vmatpush.msra.mxu0 %v2262
        %2353 = vmatpush.msra.mxu0 %v2261
        %2354 = vmatpush.msra.mxu0 %v2260
        %2355 = vmatpush.msra.mxu0 %v2259
        %2356 = vmatmul.f32.gmra.mxu0 %v2271
        %v2357 = vpop.f32.mrf.mxu0
        %v2358 = vadd.f32 0.0, %v2357
        %2359 = vmatmul.f32.gmra.mxu0 %v2274
        %v2360 = vpop.f32.mrf.mxu0
        %v2361 = vadd.f32 0.0, %v2360
        %2362 = vdwg.mxu0
        %v2364 = vsel %vm1756, %v2294, 0
        %v2367 = vsel %vm1756, %v2297, 0
        %2369 = vmatpush.msra.mxu0 0.0
        %2370 = vmatpush.msra.mxu0 0.0
        %2371 = vmatpush.msra.mxu0 0.0
        %2372 = vmatpush.msra.mxu0 0.0
        %2373 = vmatpush.msra.mxu0 0.0
        %2374 = vmatpush.msra.mxu0 0.0
        %2375 = vmatpush.msra.mxu0 0.0
        %2376 = vmatpush.msra.mxu0 0.0
        %2377 = vmatpush.msra.mxu0 0.0
        %2378 = vmatpush.msra.mxu0 0.0
        %2379 = vmatpush.msra.mxu0 0.0
        %2380 = vmatpush.msra.mxu0 0.0
        %2381 = vmatpush.msra.mxu0 0.0
        %2382 = vmatpush.msra.mxu0 0.0
        %2383 = vmatpush.msra.mxu0 %v2332
        %2384 = vmatpush.msra.mxu0 %v2329
        %2385 = vmatmul.f32.gmra.mxu0 %v2364
        %v2386 = vpop.f32.mrf.mxu0
        %v2387 = vadd.f32 0.0, %v2386
        %2388 = vmatmul.f32.gmra.mxu0 %v2367
        %v2389 = vpop.f32.mrf.mxu0
        %v2390 = vadd.f32 0.0, %v2389
        %2391 = vdwg.mxu0
        %v2392 = vmul.f32 %v2387, 0.25
        %v2393 = vmul.f32 %v2390, 0.25
        %v2394 = vsel %vm1788, %v2392, -inf
        %2395 = vmax.xlane.f32.xlu0 %v2394
        %v2396 = vpop.xlane.xlu0 %2395
        %v2397 = vsel %vm1792, %v2393, -inf
        %2398 = vmax.xlane.f32.xlu0 %v2397
        %v2399 = vpop.xlane.xlu0 %2398
        %v2400 = vsub.f32 %v2392, %v2396
        %v2401 = vsub.f32 %v2393, %v2399
        %v2402 = vmul.f32 %v2400, 1.442695
        %v2403 = vpow.pop %v2402
        %v2404 = vmul.f32 %v2401, 1.442695
        %v2405 = vpow.pop %v2404
        %v2406 = vsel %vm1788, %v2403, 0.0
        %2407 = vadd.xlane.f32.xlu0 %v2406
        %v2408 = vpop.xlane.xlu0 %2407
        %v2409 = vsel %vm1792, %v2405, 0.0
        %2410 = vadd.xlane.f32.xlu0 %v2409
        %v2411 = vpop.xlane.xlu0 %2410
        %v2413 = vsel %vm1788, %v2403, 0
        %v2416 = vsel %vm1788, %v2405, 0
        %v2419 = vsel %vm1814, %v2361, 0
        %2421 = vmatpush.msra.mxu0 0.0
        %2422 = vmatpush.msra.mxu0 0.0
        %2423 = vmatpush.msra.mxu0 0.0
        %2424 = vmatpush.msra.mxu0 0.0
        %2425 = vmatpush.msra.mxu0 0.0
        %2426 = vmatpush.msra.mxu0 0.0
        %2427 = vmatpush.msra.mxu0 0.0
        %2428 = vmatpush.msra.mxu0 0.0
        %2429 = vmatpush.msra.mxu0 0.0
        %2430 = vmatpush.msra.mxu0 0.0
        %2431 = vmatpush.msra.mxu0 0.0
        %2432 = vmatpush.msra.mxu0 0.0
        %2433 = vmatpush.msra.mxu0 0.0
        %2434 = vmatpush.msra.mxu0 0.0
        %2435 = vmatpush.msra.mxu0 %v2419
        %2436 = vmatpush.msra.mxu0 %v2358
        %2437 = vmatmul.f32.gmra.mxu0 %v2413
        %v2438 = vpop.f32.mrf.mxu0
        %v2439 = vadd.f32 0.0, %v2438
        %2440 = vmatmul.f32.gmra.mxu0 %v2416
        %v2441 = vpop.f32.mrf.mxu0
        %v2442 = vadd.f32 0.0, %v2441
        %2443 = vdwg.mxu0
        %v2444 = vrcp.pop %v2408
        %v2445 = vmul.f32 %v2408, %v2444
        %v2446 = vsub.f32 1.0, %v2445
        %v2447 = vmul.f32 %v2444, %v2446
        %v2448 = vadd.f32 %v2444, %v2447
        %vm2449 = vweird.f32 %v2408
        %vm2450 = vweird.f32 %v2444
        %vm2451 = vmor %vm2449, %vm2450
        %v2452 = vsel %vm2451, %v2444, %v2448
        %v2453 = vand.u32 2147483647, %v2408
        %vm2454 = vcmp.eq.f32.partialorder %v2453, 8.507059e+37
        %v2455 = vand.u32 %v2408, 2147483648
        %v2456 = vor.u32 1.1754944e-38, %v2455
        %v2457 = vsel %vm2454, %v2456, %v2452
        %v2458 = vmul.f32 %v2439, %v2457
        %v2459 = vrcp.pop %v2411
        %v2460 = vmul.f32 %v2411, %v2459
        %v2461 = vsub.f32 1.0, %v2460
        %v2462 = vmul.f32 %v2459, %v2461
        %v2463 = vadd.f32 %v2459, %v2462
        %vm2464 = vweird.f32 %v2411
        %vm2465 = vweird.f32 %v2459
        %vm2466 = vmor %vm2464, %vm2465
        %v2467 = vsel %vm2466, %v2459, %v2463
        %v2468 = vand.u32 2147483647, %v2411
        %vm2469 = vcmp.eq.f32.partialorder %v2468, 8.507059e+37
        %v2470 = vand.u32 %v2411, 2147483648
        %v2471 = vor.u32 1.1754944e-38, %v2470
        %v2472 = vsel %vm2469, %v2471, %v2467
        %v2473 = vmul.f32 %v2442, %v2472
        %2474 = vrot.lane.b32.xlu0 %v2294, 112
        %v2475 = vpop.permute.xlu0 %2474
        %2476 = vrot.lane.b32.xlu0 %v2297, 112
        %v2477 = vpop.permute.xlu0 %2476
        %v2478 = vsel %vm1756, %v2475, 0
        %v2480 = vsel %vm1756, %v2477, 0
        %2482 = vmatpush.msra.mxu0 0.0
        %2483 = vmatpush.msra.mxu0 0.0
        %2484 = vmatpush.msra.mxu0 0.0
        %2485 = vmatpush.msra.mxu0 0.0
        %2486 = vmatpush.msra.mxu0 0.0
        %2487 = vmatpush.msra.mxu0 0.0
        %2488 = vmatpush.msra.mxu0 0.0
        %2489 = vmatpush.msra.mxu0 0.0
        %2490 = vmatpush.msra.mxu0 0.0
        %2491 = vmatpush.msra.mxu0 0.0
        %2492 = vmatpush.msra.mxu0 0.0
        %2493 = vmatpush.msra.mxu0 0.0
        %2494 = vmatpush.msra.mxu0 0.0
        %2495 = vmatpush.msra.mxu0 0.0
        %2496 = vmatpush.msra.mxu0 %v2338
        %2497 = vmatpush.msra.mxu0 %v2335
        %2498 = vmatmul.f32.gmra.mxu0 %v2478
        %v2499 = vpop.f32.mrf.mxu0
        %v2500 = vadd.f32 0.0, %v2499
        %2501 = vmatmul.f32.gmra.mxu0 %v2480
        %v2502 = vpop.f32.mrf.mxu0
        %v2503 = vadd.f32 0.0, %v2502
        %2504 = vdwg.mxu0
        %v2505 = vmul.f32 %v2500, 0.25
        %v2506 = vmul.f32 %v2503, 0.25
        %v2507 = vsel %vm1788, %v2505, -inf
        %2508 = vmax.xlane.f32.xlu0 %v2507
        %v2509 = vpop.xlane.xlu0 %2508
        %v2510 = vsel %vm1792, %v2506, -inf
        %2511 = vmax.xlane.f32.xlu0 %v2510
        %v2512 = vpop.xlane.xlu0 %2511
        %v2513 = vsub.f32 %v2505, %v2509
        %v2514 = vsub.f32 %v2506, %v2512
        %v2515 = vmul.f32 %v2513, 1.442695
        %v2516 = vpow.pop %v2515
        %v2517 = vmul.f32 %v2514, 1.442695
        %v2518 = vpow.pop %v2517
        %v2519 = vsel %vm1788, %v2516, 0.0
        %2520 = vadd.xlane.f32.xlu0 %v2519
        %v2521 = vpop.xlane.xlu0 %2520
        %v2522 = vsel %vm1792, %v2518, 0.0
        %2523 = vadd.xlane.f32.xlu0 %v2522
        %v2524 = vpop.xlane.xlu0 %2523
        %2526 = vrot.lane.b32.xlu0 %v2358, 112
        %v2527 = vpop.permute.xlu0 %2526
        %2528 = vrot.lane.b32.xlu0 %v2361, 112
        %v2529 = vpop.permute.xlu0 %2528
        %v2532 = vsel %vm1788, %v2516, 0
        %v2535 = vsel %vm1788, %v2518, 0
        %v2537 = vsel %vm1814, %v2529, 0
        %2539 = vmatpush.msra.mxu0 0.0
        %2540 = vmatpush.msra.mxu0 0.0
        %2541 = vmatpush.msra.mxu0 0.0
        %2542 = vmatpush.msra.mxu0 0.0
        %2543 = vmatpush.msra.mxu0 0.0
        %2544 = vmatpush.msra.mxu0 0.0
        %2545 = vmatpush.msra.mxu0 0.0
        %2546 = vmatpush.msra.mxu0 0.0
        %2547 = vmatpush.msra.mxu0 0.0
        %2548 = vmatpush.msra.mxu0 0.0
        %2549 = vmatpush.msra.mxu0 0.0
        %2550 = vmatpush.msra.mxu0 0.0
        %2551 = vmatpush.msra.mxu0 0.0
        %2552 = vmatpush.msra.mxu0 0.0
        %2553 = vmatpush.msra.mxu0 %v2537
        %2554 = vmatpush.msra.mxu0 %v2527
        %2555 = vmatmul.f32.gmra.mxu0 %v2532
        %v2556 = vpop.f32.mrf.mxu0
        %v2557 = vadd.f32 0.0, %v2556
        %2558 = vmatmul.f32.gmra.mxu0 %v2535
        %v2559 = vpop.f32.mrf.mxu0
        %v2560 = vadd.f32 0.0, %v2559
        %2561 = vdwg.mxu0
        %v2562 = vrcp.pop %v2521
        %v2563 = vmul.f32 %v2521, %v2562
        %v2564 = vsub.f32 1.0, %v2563
        %v2565 = vmul.f32 %v2562, %v2564
        %v2566 = vadd.f32 %v2562, %v2565
        %vm2567 = vweird.f32 %v2521
        %vm2568 = vweird.f32 %v2562
        %vm2569 = vmor %vm2567, %vm2568
        %v2570 = vsel %vm2569, %v2562, %v2566
        %v2571 = vand.u32 2147483647, %v2521
        %vm2572 = vcmp.eq.f32.partialorder %v2571, 8.507059e+37
        %v2573 = vand.u32 %v2521, 2147483648
        %v2574 = vor.u32 1.1754944e-38, %v2573
        %v2575 = vsel %vm2572, %v2574, %v2570
        %v2576 = vmul.f32 %v2557, %v2575
        %v2577 = vrcp.pop %v2524
        %v2578 = vmul.f32 %v2524, %v2577
        %v2579 = vsub.f32 1.0, %v2578
        %v2580 = vmul.f32 %v2577, %v2579
        %v2581 = vadd.f32 %v2577, %v2580
        %vm2582 = vweird.f32 %v2524
        %vm2583 = vweird.f32 %v2577
        %vm2584 = vmor %vm2582, %vm2583
        %v2585 = vsel %vm2584, %v2577, %v2581
        %v2586 = vand.u32 2147483647, %v2524
        %vm2587 = vcmp.eq.f32.partialorder %v2586, 8.507059e+37
        %v2588 = vand.u32 %v2524, 2147483648
        %v2589 = vor.u32 1.1754944e-38, %v2588
        %v2590 = vsel %vm2587, %v2589, %v2585
        %v2591 = vmul.f32 %v2560, %v2590
        %2594 = vrot.lane.b32.xlu0 %v2576, 16
        %v2595 = vpop.permute.xlu0 %2594
        %2596 = vrot.lane.b32.xlu0 %v2591, 16
        %v2597 = vpop.permute.xlu0 %2596
        %v2600 = vsel %vm1756, %v2458, %v2595
        %v2601 = vsel %vm1756, %v2473, %v2597
        %v2603 = vperm.slane %v2269, 0
        %v2606 = vsel %vm1583, %v2600, 0
        %v2609 = vsel %vm1583, %v2601, 0
        %2611 = vmatpush.msra.mxu0 0.0
        %2612 = vmatpush.msra.mxu0 0.0
        %2613 = vmatpush.msra.mxu0 0.0
        %2614 = vmatpush.msra.mxu0 0.0
        %2615 = vmatpush.msra.mxu0 0.0
        %2616 = vmatpush.msra.mxu0 0.0
        %2617 = vmatpush.msra.mxu0 0.0
        %2618 = vmatpush.msra.mxu0 0.0
        %2619 = vmatpush.msra.mxu0 0.0
        %2620 = vmatpush.msra.mxu0 0.0
        %2621 = vmatpush.msra.mxu0 0.0
        %2622 = vmatpush.msra.mxu0 0.0
        %2623 = vmatpush.msra.mxu0 %v2267
        %2624 = vmatpush.msra.mxu0 %v2266
        %2625 = vmatpush.msra.mxu0 %v2265
        %2626 = vmatpush.msra.mxu0 %v2264
        %2627 = vmatmul.f32.gmra.mxu0 %v2606
        %v2628 = vpop.f32.mrf.mxu0
        %v2629 = vadd.f32 %v2603, %v2628
        %2630 = vmatmul.f32.gmra.mxu0 %v2609
        %v2631 = vpop.f32.mrf.mxu0
        %v2632 = vadd.f32 %v2603, %v2631
        %2633 = vdwg.mxu0
        %v2634 = vadd.f32 %v2188, %v2629
        %v2635 = vadd.f32 %v2189, %v2632
        %s2636 = scalar_lea.vmem %s19, 1
        %v2637 = vld [vmem:[%s2636] sm:$0x1]
        %s2638 = scalar_lea.vmem %s21, 1
        %v2639 = vld [vmem:[%s2638] sm:$0x1]
        %v2640 = vsel %vm1583, %v2634, 0.0
        %2641 = vadd.xlane.f32.xlu0 %v2640
        %v2642 = vpop.xlane.xlu0 %2641
        %v2643 = vsel %vm1587, %v2635, 0.0
        %2644 = vadd.xlane.f32.xlu0 %v2643
        %v2645 = vpop.xlane.xlu0 %2644
        %v2646 = vmul.f32 %v2642, %v1597
        %v2647 = vmul.f32 %v2645, %v1597
        %v2648 = vsub.f32 %v2634, %v2646
        %v2649 = vsub.f32 %v2635, %v2647
        %v2650 = vmul.f32 %v2648, %v2648
        %v2651 = vmul.f32 %v2649, %v2649
        %v2652 = vsel %vm1583, %v2650, 0.0
        %2653 = vadd.xlane.f32.xlu0 %v2652
        %v2654 = vpop.xlane.xlu0 %2653
        %v2655 = vsel %vm1587, %v2651, 0.0
        %2656 = vadd.xlane.f32.xlu0 %v2655
        %v2657 = vpop.xlane.xlu0 %2656
        %v2658 = vmul.f32 %v2654, %v1597
        %v2659 = vmul.f32 %v2657, %v1597
        %v2660 = vadd.f32 %v2658, 1e-05
        %v2661 = vadd.f32 %v2659, 1e-05
        %v2662 = vrsqrt.pop %v2660
        %v2663 = vmul.f32 %v2662, %v2660
        %v2664 = vmul.f32 %v2663, %v2662
        %v2665 = vmul.f32 0.5, %v2664
        %v2666 = vsub.f32 1.5, %v2665
        %v2667 = vmul.f32 %v2662, %v2666
        %vm2668 = vweird.f32 %v2660
        %vm2669 = vweird.f32 %v2662
        %vm2670 = vmor %vm2668, %vm2669
        %v2671 = vsel %vm2670, %v2662, %v2667
        %v2672 = vrsqrt.pop %v2661
        %v2673 = vmul.f32 %v2672, %v2661
        %v2674 = vmul.f32 %v2673, %v2672
        %v2675 = vmul.f32 0.5, %v2674
        %v2676 = vsub.f32 1.5, %v2675
        %v2677 = vmul.f32 %v2672, %v2676
        %vm2678 = vweird.f32 %v2661
        %vm2679 = vweird.f32 %v2672
        %vm2680 = vmor %vm2678, %vm2679
        %v2681 = vsel %vm2680, %v2672, %v2677
        %v2682 = vmul.f32 %v2648, %v2671
        %v2683 = vmul.f32 %v2649, %v2681
        %v2685 = vperm.slane %v2637, 0
        %v2687 = vmul.f32 %v2682, %v2685
        %v2688 = vmul.f32 %v2683, %v2685
        %v2690 = vperm.slane %v2639, 0
        %v2692 = vadd.f32 %v2687, %v2690
        %v2693 = vadd.f32 %v2688, %v2690
        %s2694 = scalar_lea.vmem [#allocation4], 32
        %v2695 = vld [vmem:[%s2694] sm:$0xff]
        %v2696 = vld [vmem:[%s2694 + $0x8] sm:$0xff]
        %v2697 = vld [vmem:[%s2694 + $0x10] sm:$0xff]
        %v2698 = vld [vmem:[%s2694 + $0x18] sm:$0xff]
        %s2699 = scalar_lea.vmem %s25, 1
        %v2700 = vld [vmem:[%s2699] sm:$0x1]
        %v2702 = vperm.slane %v2700, 0
        %v2705 = vsel %vm1583, %v2692, 0
        %v2708 = vsel %vm1583, %v2693, 0
        %2710 = vmatpush.msra.mxu0 0.0
        %2711 = vmatpush.msra.mxu0 0.0
        %2712 = vmatpush.msra.mxu0 0.0
        %2713 = vmatpush.msra.mxu0 0.0
        %2714 = vmatpush.msra.mxu0 0.0
        %2715 = vmatpush.msra.mxu0 0.0
        %2716 = vmatpush.msra.mxu0 0.0
        %2717 = vmatpush.msra.mxu0 0.0
        %2718 = vmatpush.msra.mxu0 0.0
        %2719 = vmatpush.msra.mxu0 0.0
        %2720 = vmatpush.msra.mxu0 0.0
        %2721 = vmatpush.msra.mxu0 0.0
        %2722 = vmatpush.msra.mxu0 %v2698
        %2723 = vmatpush.msra.mxu0 %v2697
        %2724 = vmatpush.msra.mxu0 %v2696
        %2725 = vmatpush.msra.mxu0 %v2695
        %2726 = vmatmul.f32.gmra.mxu0 %v2705
        %v2727 = vpop.f32.mrf.mxu0
        %v2728 = vadd.f32 %v2702, %v2727
        %2729 = vmatmul.f32.gmra.mxu0 %v2708
        %v2730 = vpop.f32.mrf.mxu0
        %v2731 = vadd.f32 %v2702, %v2730
        %2732 = vdwg.mxu0
        %v2733 = vmul.f32 %v2728, %v2728
        %v2734 = vmul.f32 %v2731, %v2731
        %v2735 = vmul.f32 %v2728, %v2733
        %v2736 = vmul.f32 %v2731, %v2734
        %v2737 = vmul.f32 %v2735, 0.044715
        %v2738 = vmul.f32 %v2736, 0.044715
        %v2739 = vadd.f32 %v2728, %v2737
        %v2740 = vadd.f32 %v2731, %v2738
        %v2741 = vmul.f32 %v2739, 0.7978846
        %v2742 = vmul.f32 %v2740, 0.7978846
        %v2743 = vtanh.pop %v2741
        %v2744 = vtanh.pop %v2742
        %v2745 = vadd.f32 %v2743, 1.0
        %v2746 = vadd.f32 %v2744, 1.0
        %v2747 = vmul.f32 %v2745, 0.5
        %v2748 = vmul.f32 %v2746, 0.5
        %v2749 = vmul.f32 %v2728, %v2747
        %v2750 = vmul.f32 %v2731, %v2748
        %s2751 = scalar_lea.vmem %s27, 64
        %v2752 = vld [vmem:[%s2751] sm:$0xff]
        %v2753 = vld [vmem:[%s2751 + $0x8] sm:$0xff]
        %v2754 = vld [vmem:[%s2751 + $0x10] sm:$0xff]
        %v2755 = vld [vmem:[%s2751 + $0x18] sm:$0xff]
        %v2756 = vld [vmem:[%s2751 + $0x20] sm:$0xff]
        %v2757 = vld [vmem:[%s2751 + $0x28] sm:$0xff]
        %v2758 = vld [vmem:[%s2751 + $0x30] sm:$0xff]
        %v2759 = vld [vmem:[%s2751 + $0x38] sm:$0xff]
        %v2761 = vsel %vm2152, %v2749, 0
        %v2764 = vsel %vm2152, %v2750, 0
        %2766 = vmatpush.msra.mxu0 0.0
        %2767 = vmatpush.msra.mxu0 0.0
        %2768 = vmatpush.msra.mxu0 0.0
        %2769 = vmatpush.msra.mxu0 0.0
        %2770 = vmatpush.msra.mxu0 0.0
        %2771 = vmatpush.msra.mxu0 0.0
        %2772 = vmatpush.msra.mxu0 0.0
        %2773 = vmatpush.msra.mxu0 0.0
        %2774 = vmatpush.msra.mxu0 %v2759
        %2775 = vmatpush.msra.mxu0 %v2758
        %2776 = vmatpush.msra.mxu0 %v2757
        %2777 = vmatpush.msra.mxu0 %v2756
        %2778 = vmatpush.msra.mxu0 %v2755
        %2779 = vmatpush.msra.mxu0 %v2754
        %2780 = vmatpush.msra.mxu0 %v2753
        %2781 = vmatpush.msra.mxu0 %v2752
        %2782 = vmatmul.f32.gmra.mxu0 %v2761
        %v2783 = vpop.f32.mrf.mxu0
        %v2784 = vadd.f32 0.0, %v2783
        %2785 = vmatmul.f32.gmra.mxu0 %v2764
        %v2786 = vpop.f32.mrf.mxu0
        %v2787 = vadd.f32 0.0, %v2786
        %2788 = vdwg.mxu0
        %v2789 = vadd.f32 %v2634, %v2784
        %v2790 = vadd.f32 %v2635, %v2787
        %s2791 = scalar_lea.vmem %s29, 1
        %v2792 = vld [vmem:[%s2791] sm:$0x1]
        %v2794 = vperm.slane %v2792, 0
        %v2796 = vadd.f32 %v2789, %v2794
        %v2797 = vadd.f32 %v2790, %v2794
        %v2798 = vld [vmem:[%s31] sm:$0x1]
        %v2799 = vld [vmem:[%s33] sm:$0x1]
        %v2800 = vsel %vm1583, %v1578, 0.0
        %2801 = vadd.xlane.f32.xlu0 %v2800
        %v2802 = vpop.xlane.xlu0 %2801
        %v2803 = vsel %vm1583, %v1579, 0.0
        %2804 = vadd.xlane.f32.xlu0 %v2803
        %v2805 = vpop.xlane.xlu0 %2804
        %v2806 = vsel %vm1587, %v1580, 0.0
        %2807 = vadd.xlane.f32.xlu0 %v2806
        %v2808 = vpop.xlane.xlu0 %2807
        %v2809 = vmul.f32 %v2802, %v1597
        %v2810 = vmul.f32 %v2805, %v1597
        %v2811 = vmul.f32 %v2808, %v1597
        %v2812 = vsub.f32 %v1578, %v2809
        %v2813 = vsub.f32 %v1579, %v2810
        %v2814 = vsub.f32 %v1580, %v2811
        %v2815 = vmul.f32 %v2812, %v2812
        %v2816 = vmul.f32 %v2813, %v2813
        %v2817 = vmul.f32 %v2814, %v2814
        %v2818 = vsel %vm1583, %v2815, 0.0
        %2819 = vadd.xlane.f32.xlu0 %v2818
        %v2820 = vpop.xlane.xlu0 %2819
        %v2821 = vsel %vm1583, %v2816, 0.0
        %2822 = vadd.xlane.f32.xlu0 %v2821
        %v2823 = vpop.xlane.xlu0 %2822
        %v2824 = vsel %vm1587, %v2817, 0.0
        %2825 = vadd.xlane.f32.xlu0 %v2824
        %v2826 = vpop.xlane.xlu0 %2825
        %v2827 = vmul.f32 %v2820, %v1597
        %v2828 = vmul.f32 %v2823, %v1597
        %v2829 = vmul.f32 %v2826, %v1597
        %v2830 = vadd.f32 %v2827, 1e-05
        %v2831 = vadd.f32 %v2828, 1e-05
        %v2832 = vadd.f32 %v2829, 1e-05
        %v2833 = vrsqrt.pop %v2830
        %v2834 = vmul.f32 %v2833, %v2830
        %v2835 = vmul.f32 %v2834, %v2833
        %v2836 = vmul.f32 0.5, %v2835
        %v2837 = vsub.f32 1.5, %v2836
        %v2838 = vmul.f32 %v2833, %v2837
        %vm2839 = vweird.f32 %v2830
        %vm2840 = vweird.f32 %v2833
        %vm2841 = vmor %vm2839, %vm2840
        %v2842 = vsel %vm2841, %v2833, %v2838
        %v2843 = vrsqrt.pop %v2831
        %v2844 = vmul.f32 %v2843, %v2831
        %v2845 = vmul.f32 %v2844, %v2843
        %v2846 = vmul.f32 0.5, %v2845
        %v2847 = vsub.f32 1.5, %v2846
        %v2848 = vmul.f32 %v2843, %v2847
        %vm2849 = vweird.f32 %v2831
        %vm2850 = vweird.f32 %v2843
        %vm2851 = vmor %vm2849, %vm2850
        %v2852 = vsel %vm2851, %v2843, %v2848
        %v2853 = vrsqrt.pop %v2832
        %v2854 = vmul.f32 %v2853, %v2832
        %v2855 = vmul.f32 %v2854, %v2853
        %v2856 = vmul.f32 0.5, %v2855
        %v2857 = vsub.f32 1.5, %v2856
        %v2858 = vmul.f32 %v2853, %v2857
        %vm2859 = vweird.f32 %v2832
        %vm2860 = vweird.f32 %v2853
        %vm2861 = vmor %vm2859, %vm2860
        %v2862 = vsel %vm2861, %v2853, %v2858
        %v2863 = vmul.f32 %v2812, %v2842
        %v2864 = vmul.f32 %v2813, %v2852
        %v2865 = vmul.f32 %v2814, %v2862
        %v2867 = vperm.slane %v2798, 0
        %v2869 = vmul.f32 %v2863, %v2867
        %v2870 = vmul.f32 %v2864, %v2867
        %v2871 = vmul.f32 %v2865, %v2867
        %v2873 = vperm.slane %v2799, 0
        %v2875 = vadd.f32 %v2869, %v2873
        %v2876 = vadd.f32 %v2870, %v2873
        %v2877 = vadd.f32 %v2871, %v2873
        %v2878 = vld [vmem:[%s35] sm:$0xff]
        %v2879 = vld [vmem:[%s35 + $0x8] sm:$0xff]
        %v2880 = vld [vmem:[%s35 + $0x10] sm:$0xff]
        %v2881 = vld [vmem:[%s35 + $0x18] sm:$0xff]
        %v2882 = vld [vmem:[#allocation6] sm:$0xff]
        %v2883 = vld [vmem:[#allocation6 + $0x8] sm:$0xff]
        %v2884 = vld [vmem:[#allocation6 + $0x10] sm:$0xff]
        %v2885 = vld [vmem:[#allocation6 + $0x18] sm:$0xff]
        %v2886 = vld [vmem:[#allocation7] sm:$0xff]
        %v2887 = vld [vmem:[#allocation7 + $0x8] sm:$0xff]
        %v2888 = vld [vmem:[#allocation7 + $0x10] sm:$0xff]
        %v2889 = vld [vmem:[#allocation7 + $0x18] sm:$0xff]
        %v2890 = vld [vmem:[#allocation9] sm:$0xff]
        %v2891 = vld [vmem:[#allocation9 + $0x8] sm:$0xff]
        %v2892 = vld [vmem:[#allocation9 + $0x10] sm:$0xff]
        %v2893 = vld [vmem:[#allocation9 + $0x18] sm:$0xff]
        %v2894 = vld [vmem:[%s43] sm:$0x1]
        %v2896 = vsel %vm1583, %v2875, 0
        %v2899 = vsel %vm1583, %v2876, 0
        %v2902 = vsel %vm1583, %v2877, 0
        %2904 = vmatpush.msra.mxu0 0.0
        %2905 = vmatpush.msra.mxu0 0.0
        %2906 = vmatpush.msra.mxu0 0.0
        %2907 = vmatpush.msra.mxu0 0.0
        %2908 = vmatpush.msra.mxu0 0.0
        %2909 = vmatpush.msra.mxu0 0.0
        %2910 = vmatpush.msra.mxu0 0.0
        %2911 = vmatpush.msra.mxu0 0.0
        %2912 = vmatpush.msra.mxu0 0.0
        %2913 = vmatpush.msra.mxu0 0.0
        %2914 = vmatpush.msra.mxu0 0.0
        %2915 = vmatpush.msra.mxu0 0.0
        %2916 = vmatpush.msra.mxu0 %v2881
        %2917 = vmatpush.msra.mxu0 %v2880
        %2918 = vmatpush.msra.mxu0 %v2879
        %2919 = vmatpush.msra.mxu0 %v2878
        %2920 = vmatmul.f32.gmra.mxu0 %v2896
        %v2921 = vpop.f32.mrf.mxu0
        %v2922 = vadd.f32 0.0, %v2921
        %2923 = vmatmul.f32.gmra.mxu0 %v2899
        %v2924 = vpop.f32.mrf.mxu0
        %v2925 = vadd.f32 0.0, %v2924
        %2926 = vmatmul.f32.gmra.mxu0 %v2902
        %v2927 = vpop.f32.mrf.mxu0
        %v2928 = vadd.f32 0.0, %v2927
        %2929 = vdwg.mxu0
        %v2931 = vsel %vm1583, %v2882, 0
        %v2934 = vsel %vm1583, %v2883, 0
        %v2937 = vsel %vm1583, %v2884, 0
        %v2940 = vsel %vm1583, %v2885, 0
        %2942 = vmatpush.xpose.msra.mxu0 0.0
        %2943 = vmatpush.xpose.msra.mxu0 0.0
        %2944 = vmatpush.xpose.msra.mxu0 0.0
        %2945 = vmatpush.xpose.msra.mxu0 0.0
        %2946 = vmatpush.xpose.msra.mxu0 0.0
        %2947 = vmatpush.xpose.msra.mxu0 0.0
        %2948 = vmatpush.xpose.msra.mxu0 0.0
        %2949 = vmatpush.xpose.msra.mxu0 0.0
        %2950 = vmatpush.xpose.msra.mxu0 0.0
        %2951 = vmatpush.xpose.msra.mxu0 0.0
        %2952 = vmatpush.xpose.msra.mxu0 0.0
        %2953 = vmatpush.xpose.msra.mxu0 0.0
        %2954 = vmatpush.xpose.msra.mxu0 0.0
        %2955 = vmatpush.xpose.msra.mxu0 %v2902
        %2956 = vmatpush.xpose.msra.mxu0 %v2899
        %2957 = vmatpush.xpose.msra.mxu0 %v2896
        %2958 = vmatmul.f32.gmra.mxu0 %v2931
        %v2959 = vpop.f32.mrf.mxu0
        %v2960 = vadd.f32 0.0, %v2959
        %2961 = vmatmul.f32.gmra.mxu0 %v2934
        %v2962 = vpop.f32.mrf.mxu0
        %v2963 = vadd.f32 0.0, %v2962
        %2964 = vmatmul.f32.gmra.mxu0 %v2937
        %v2965 = vpop.f32.mrf.mxu0
        %v2966 = vadd.f32 0.0, %v2965
        %2967 = vmatmul.f32.gmra.mxu0 %v2940
        %v2968 = vpop.f32.mrf.mxu0
        %v2969 = vadd.f32 0.0, %v2968
        %2970 = vdwg.mxu0
        %2971 = vmatpush.msra.mxu0 0.0
        %2972 = vmatpush.msra.mxu0 0.0
        %2973 = vmatpush.msra.mxu0 0.0
        %2974 = vmatpush.msra.mxu0 0.0
        %2975 = vmatpush.msra.mxu0 0.0
        %2976 = vmatpush.msra.mxu0 0.0
        %2977 = vmatpush.msra.mxu0 0.0
        %2978 = vmatpush.msra.mxu0 0.0
        %2979 = vmatpush.msra.mxu0 0.0
        %2980 = vmatpush.msra.mxu0 0.0
        %2981 = vmatpush.msra.mxu0 0.0
        %2982 = vmatpush.msra.mxu0 0.0
        %2983 = vmatpush.msra.mxu0 %v2889
        %2984 = vmatpush.msra.mxu0 %v2888
        %2985 = vmatpush.msra.mxu0 %v2887
        %2986 = vmatpush.msra.mxu0 %v2886
        %2987 = vmatmul.f32.gmra.mxu0 %v2896
        %v2988 = vpop.f32.mrf.mxu0
        %v2989 = vadd.f32 0.0, %v2988
        %2990 = vmatmul.f32.gmra.mxu0 %v2899
        %v2991 = vpop.f32.mrf.mxu0
        %v2992 = vadd.f32 0.0, %v2991
        %2993 = vmatmul.f32.gmra.mxu0 %v2902
        %v2994 = vpop.f32.mrf.mxu0
        %v2995 = vadd.f32 0.0, %v2994
        %2996 = vdwg.mxu0
        %v2998 = vsel %vm1756, %v2922, 0
        %v3001 = vsel %vm1756, %v2925, 0
        %v3004 = vsel %vm1756, %v2928, 0
        %3006 = vmatpush.msra.mxu0 0.0
        %3007 = vmatpush.msra.mxu0 0.0
        %3008 = vmatpush.msra.mxu0 0.0
        %3009 = vmatpush.msra.mxu0 0.0
        %3010 = vmatpush.msra.mxu0 0.0
        %3011 = vmatpush.msra.mxu0 0.0
        %3012 = vmatpush.msra.mxu0 0.0
        %3013 = vmatpush.msra.mxu0 0.0
        %3014 = vmatpush.msra.mxu0 0.0
        %3015 = vmatpush.msra.mxu0 0.0
        %3016 = vmatpush.msra.mxu0 0.0
        %3017 = vmatpush.msra.mxu0 0.0
        %3018 = vmatpush.msra.mxu0 0.0
        %3019 = vmatpush.msra.mxu0 0.0
        %3020 = vmatpush.msra.mxu0 %v2963
        %3021 = vmatpush.msra.mxu0 %v2960
        %3022 = vmatmul.f32.gmra.mxu0 %v2998
        %v3023 = vpop.f32.mrf.mxu0
        %v3024 = vadd.f32 0.0, %v3023
        %3025 = vmatmul.f32.gmra.mxu0 %v3001
        %v3026 = vpop.f32.mrf.mxu0
        %v3027 = vadd.f32 0.0, %v3026
        %3028 = vmatmul.f32.gmra.mxu0 %v3004
        %v3029 = vpop.f32.mrf.mxu0
        %v3030 = vadd.f32 0.0, %v3029
        %3031 = vdwg.mxu0
        %v3032 = vmul.f32 %v3024, 0.25
        %v3033 = vmul.f32 %v3027, 0.25
        %v3034 = vmul.f32 %v3030, 0.25
        %vm3035 = vcmask 138240
        %v3036 = vsel %vm3035, %v3032, -inf
        %3037 = vmax.xlane.f32.xlu0 %v3036
        %v3038 = vpop.xlane.xlu0 %3037
        %v3039 = vsel %vm3035, %v3033, -inf
        %3040 = vmax.xlane.f32.xlu0 %v3039
        %v3041 = vpop.xlane.xlu0 %3040
        %vm3042 = vcmask 131072
        %v3043 = vsel %vm3042, %v3034, -inf
        %3044 = vmax.xlane.f32.xlu0 %v3043
        %v3045 = vpop.xlane.xlu0 %3044
        %v3046 = vsub.f32 %v3032, %v3038
        %v3047 = vsub.f32 %v3033, %v3041
        %v3048 = vsub.f32 %v3034, %v3045
        %v3049 = vmul.f32 %v3046, 1.442695
        %v3050 = vpow.pop %v3049
        %v3051 = vmul.f32 %v3047, 1.442695
        %v3052 = vpow.pop %v3051
        %v3053 = vmul.f32 %v3048, 1.442695
        %v3054 = vpow.pop %v3053
        %v3055 = vsel %vm3035, %v3050, 0.0
        %3056 = vadd.xlane.f32.xlu0 %v3055
        %v3057 = vpop.xlane.xlu0 %3056
        %v3058 = vsel %vm3035, %v3052, 0.0
        %3059 = vadd.xlane.f32.xlu0 %v3058
        %v3060 = vpop.xlane.xlu0 %3059
        %v3061 = vsel %vm3042, %v3054, 0.0
        %3062 = vadd.xlane.f32.xlu0 %v3061
        %v3063 = vpop.xlane.xlu0 %3062
        %v3065 = vsel %vm3035, %v3050, 0
        %v3068 = vsel %vm3035, %v3052, 0
        %v3071 = vsel %vm3035, %v3054, 0
        %v3074 = vsel %vm1814, %v2995, 0
        %3076 = vmatpush.msra.mxu0 0.0
        %3077 = vmatpush.msra.mxu0 0.0
        %3078 = vmatpush.msra.mxu0 0.0
        %3079 = vmatpush.msra.mxu0 0.0
        %3080 = vmatpush.msra.mxu0 0.0
        %3081 = vmatpush.msra.mxu0 0.0
        %3082 = vmatpush.msra.mxu0 0.0
        %3083 = vmatpush.msra.mxu0 0.0
        %3084 = vmatpush.msra.mxu0 0.0
        %3085 = vmatpush.msra.mxu0 0.0
        %3086 = vmatpush.msra.mxu0 0.0
        %3087 = vmatpush.msra.mxu0 0.0
        %3088 = vmatpush.msra.mxu0 0.0
        %3089 = vmatpush.msra.mxu0 %v3074
        %3090 = vmatpush.msra.mxu0 %v2992
        %3091 = vmatpush.msra.mxu0 %v2989
        %3092 = vmatmul.f32.gmra.mxu0 %v3065
        %v3093 = vpop.f32.mrf.mxu0
        %v3094 = vadd.f32 0.0, %v3093
        %3095 = vmatmul.f32.gmra.mxu0 %v3068
        %v3096 = vpop.f32.mrf.mxu0
        %v3097 = vadd.f32 0.0, %v3096
        %3098 = vmatmul.f32.gmra.mxu0 %v3071
        %v3099 = vpop.f32.mrf.mxu0
        %v3100 = vadd.f32 0.0, %v3099
        %3101 = vdwg.mxu0
        %v3102 = vrcp.pop %v3057
        %v3103 = vmul.f32 %v3057, %v3102
        %v3104 = vsub.f32 1.0, %v3103
        %v3105 = vmul.f32 %v3102, %v3104
        %v3106 = vadd.f32 %v3102, %v3105
        %vm3107 = vweird.f32 %v3057
        %vm3108 = vweird.f32 %v3102
        %vm3109 = vmor %vm3107, %vm3108
        %v3110 = vsel %vm3109, %v3102, %v3106
        %v3111 = vand.u32 2147483647, %v3057
        %vm3112 = vcmp.eq.f32.partialorder %v3111, 8.507059e+37
        %v3113 = vand.u32 %v3057, 2147483648
        %v3114 = vor.u32 1.1754944e-38, %v3113
        %v3115 = vsel %vm3112, %v3114, %v3110
        %v3116 = vmul.f32 %v3094, %v3115
        %v3117 = vrcp.pop %v3060
        %v3118 = vmul.f32 %v3060, %v3117
        %v3119 = vsub.f32 1.0, %v3118
        %v3120 = vmul.f32 %v3117, %v3119
        %v3121 = vadd.f32 %v3117, %v3120
        %vm3122 = vweird.f32 %v3060
        %vm3123 = vweird.f32 %v3117
        %vm3124 = vmor %vm3122, %vm3123
        %v3125 = vsel %vm3124, %v3117, %v3121
        %v3126 = vand.u32 2147483647, %v3060
        %vm3127 = vcmp.eq.f32.partialorder %v3126, 8.507059e+37
        %v3128 = vand.u32 %v3060, 2147483648
        %v3129 = vor.u32 1.1754944e-38, %v3128
        %v3130 = vsel %vm3127, %v3129, %v3125
        %v3131 = vmul.f32 %v3097, %v3130
        %v3132 = vrcp.pop %v3063
        %v3133 = vmul.f32 %v3063, %v3132
        %v3134 = vsub.f32 1.0, %v3133
        %v3135 = vmul.f32 %v3132, %v3134
        %v3136 = vadd.f32 %v3132, %v3135
        %vm3137 = vweird.f32 %v3063
        %vm3138 = vweird.f32 %v3132
        %vm3139 = vmor %vm3137, %vm3138
        %v3140 = vsel %vm3139, %v3132, %v3136
        %v3141 = vand.u32 2147483647, %v3063
        %vm3142 = vcmp.eq.f32.partialorder %v3141, 8.507059e+37
        %v3143 = vand.u32 %v3063, 2147483648
        %v3144 = vor.u32 1.1754944e-38, %v3143
        %v3145 = vsel %vm3142, %v3144, %v3140
        %v3146 = vmul.f32 %v3100, %v3145
        %3147 = vrot.lane.b32.xlu0 %v2922, 112
        %v3148 = vpop.permute.xlu0 %3147
        %3149 = vrot.lane.b32.xlu0 %v2925, 112
        %v3150 = vpop.permute.xlu0 %3149
        %3151 = vrot.lane.b32.xlu0 %v2928, 112
        %v3152 = vpop.permute.xlu0 %3151
        %v3153 = vsel %vm1756, %v3148, 0
        %v3155 = vsel %vm1756, %v3150, 0
        %v3157 = vsel %vm1756, %v3152, 0
        %3159 = vmatpush.msra.mxu0 0.0
        %3160 = vmatpush.msra.mxu0 0.0
        %3161 = vmatpush.msra.mxu0 0.0
        %3162 = vmatpush.msra.mxu0 0.0
        %3163 = vmatpush.msra.mxu0 0.0
        %3164 = vmatpush.msra.mxu0 0.0
        %3165 = vmatpush.msra.mxu0 0.0
        %3166 = vmatpush.msra.mxu0 0.0
        %3167 = vmatpush.msra.mxu0 0.0
        %3168 = vmatpush.msra.mxu0 0.0
        %3169 = vmatpush.msra.mxu0 0.0
        %3170 = vmatpush.msra.mxu0 0.0
        %3171 = vmatpush.msra.mxu0 0.0
        %3172 = vmatpush.msra.mxu0 0.0
        %3173 = vmatpush.msra.mxu0 %v2969
        %3174 = vmatpush.msra.mxu0 %v2966
        %3175 = vmatmul.f32.gmra.mxu0 %v3153
        %v3176 = vpop.f32.mrf.mxu0
        %v3177 = vadd.f32 0.0, %v3176
        %3178 = vmatmul.f32.gmra.mxu0 %v3155
        %v3179 = vpop.f32.mrf.mxu0
        %v3180 = vadd.f32 0.0, %v3179
        %3181 = vmatmul.f32.gmra.mxu0 %v3157
        %v3182 = vpop.f32.mrf.mxu0
        %v3183 = vadd.f32 0.0, %v3182
        %3184 = vdwg.mxu0
        %v3185 = vmul.f32 %v3177, 0.25
        %v3186 = vmul.f32 %v3180, 0.25
        %v3187 = vmul.f32 %v3183, 0.25
        %v3188 = vsel %vm3035, %v3185, -inf
        %3189 = vmax.xlane.f32.xlu0 %v3188
        %v3190 = vpop.xlane.xlu0 %3189
        %v3191 = vsel %vm3035, %v3186, -inf
        %3192 = vmax.xlane.f32.xlu0 %v3191
        %v3193 = vpop.xlane.xlu0 %3192
        %v3194 = vsel %vm3042, %v3187, -inf
        %3195 = vmax.xlane.f32.xlu0 %v3194
        %v3196 = vpop.xlane.xlu0 %3195
        %v3197 = vsub.f32 %v3185, %v3190
        %v3198 = vsub.f32 %v3186, %v3193
        %v3199 = vsub.f32 %v3187, %v3196
        %v3200 = vmul.f32 %v3197, 1.442695
        %v3201 = vpow.pop %v3200
        %v3202 = vmul.f32 %v3198, 1.442695
        %v3203 = vpow.pop %v3202
        %v3204 = vmul.f32 %v3199, 1.442695
        %v3205 = vpow.pop %v3204
        %v3206 = vsel %vm3035, %v3201, 0.0
        %3207 = vadd.xlane.f32.xlu0 %v3206
        %v3208 = vpop.xlane.xlu0 %3207
        %v3209 = vsel %vm3035, %v3203, 0.0
        %3210 = vadd.xlane.f32.xlu0 %v3209
        %v3211 = vpop.xlane.xlu0 %3210
        %v3212 = vsel %vm3042, %v3205, 0.0
        %3213 = vadd.xlane.f32.xlu0 %v3212
        %v3214 = vpop.xlane.xlu0 %3213
        %3217 = vrot.lane.b32.xlu0 %v2989, 112
        %v3218 = vpop.permute.xlu0 %3217
        %3219 = vrot.lane.b32.xlu0 %v2992, 112
        %v3220 = vpop.permute.xlu0 %3219
        %3221 = vrot.lane.b32.xlu0 %v2995, 112
        %v3222 = vpop.permute.xlu0 %3221
        %v3226 = vsel %vm3035, %v3201, 0
        %v3229 = vsel %vm3035, %v3203, 0
        %v3232 = vsel %vm3035, %v3205, 0
        %v3234 = vsel %vm1814, %v3222, 0
        %3236 = vmatpush.msra.mxu0 0.0
        %3237 = vmatpush.msra.mxu0 0.0
        %3238 = vmatpush.msra.mxu0 0.0
        %3239 = vmatpush.msra.mxu0 0.0
        %3240 = vmatpush.msra.mxu0 0.0
        %3241 = vmatpush.msra.mxu0 0.0
        %3242 = vmatpush.msra.mxu0 0.0
        %3243 = vmatpush.msra.mxu0 0.0
        %3244 = vmatpush.msra.mxu0 0.0
        %3245 = vmatpush.msra.mxu0 0.0
        %3246 = vmatpush.msra.mxu0 0.0
        %3247 = vmatpush.msra.mxu0 0.0
        %3248 = vmatpush.msra.mxu0 0.0
        %3249 = vmatpush.msra.mxu0 %v3234
        %3250 = vmatpush.msra.mxu0 %v3220
        %3251 = vmatpush.msra.mxu0 %v3218
        %3252 = vmatmul.f32.gmra.mxu0 %v3226
        %v3253 = vpop.f32.mrf.mxu0
        %v3254 = vadd.f32 0.0, %v3253
        %3255 = vmatmul.f32.gmra.mxu0 %v3229
        %v3256 = vpop.f32.mrf.mxu0
        %v3257 = vadd.f32 0.0, %v3256
        %3258 = vmatmul.f32.gmra.mxu0 %v3232
        %v3259 = vpop.f32.mrf.mxu0
        %v3260 = vadd.f32 0.0, %v3259
        %3261 = vdwg.mxu0
        %v3262 = vrcp.pop %v3208
        %v3263 = vmul.f32 %v3208, %v3262
        %v3264 = vsub.f32 1.0, %v3263
        %v3265 = vmul.f32 %v3262, %v3264
        %v3266 = vadd.f32 %v3262, %v3265
        %vm3267 = vweird.f32 %v3208
        %vm3268 = vweird.f32 %v3262
        %vm3269 = vmor %vm3267, %vm3268
        %v3270 = vsel %vm3269, %v3262, %v3266
        %v3271 = vand.u32 2147483647, %v3208
        %vm3272 = vcmp.eq.f32.partialorder %v3271, 8.507059e+37
        %v3273 = vand.u32 %v3208, 2147483648
        %v3274 = vor.u32 1.1754944e-38, %v3273
        %v3275 = vsel %vm3272, %v3274, %v3270
        %v3276 = vmul.f32 %v3254, %v3275
        %v3277 = vrcp.pop %v3211
        %v3278 = vmul.f32 %v3211, %v3277
        %v3279 = vsub.f32 1.0, %v3278
        %v3280 = vmul.f32 %v3277, %v3279
        %v3281 = vadd.f32 %v3277, %v3280
        %vm3282 = vweird.f32 %v3211
        %vm3283 = vweird.f32 %v3277
        %vm3284 = vmor %vm3282, %vm3283
        %v3285 = vsel %vm3284, %v3277, %v3281
        %v3286 = vand.u32 2147483647, %v3211
        %vm3287 = vcmp.eq.f32.partialorder %v3286, 8.507059e+37
        %v3288 = vand.u32 %v3211, 2147483648
        %v3289 = vor.u32 1.1754944e-38, %v3288
        %v3290 = vsel %vm3287, %v3289, %v3285
        %v3291 = vmul.f32 %v3257, %v3290
        %v3292 = vrcp.pop %v3214
        %v3293 = vmul.f32 %v3214, %v3292
        %v3294 = vsub.f32 1.0, %v3293
        %v3295 = vmul.f32 %v3292, %v3294
        %v3296 = vadd.f32 %v3292, %v3295
        %vm3297 = vweird.f32 %v3214
        %vm3298 = vweird.f32 %v3292
        %vm3299 = vmor %vm3297, %vm3298
        %v3300 = vsel %vm3299, %v3292, %v3296
        %v3301 = vand.u32 2147483647, %v3214
        %vm3302 = vcmp.eq.f32.partialorder %v3301, 8.507059e+37
        %v3303 = vand.u32 %v3214, 2147483648
        %v3304 = vor.u32 1.1754944e-38, %v3303
        %v3305 = vsel %vm3302, %v3304, %v3300
        %v3306 = vmul.f32 %v3260, %v3305
        %3310 = vrot.lane.b32.xlu0 %v3276, 16
        %v3311 = vpop.permute.xlu0 %3310
        %3312 = vrot.lane.b32.xlu0 %v3291, 16
        %v3313 = vpop.permute.xlu0 %3312
        %3314 = vrot.lane.b32.xlu0 %v3306, 16
        %v3315 = vpop.permute.xlu0 %3314
        %v3319 = vsel %vm1756, %v3116, %v3311
        %v3320 = vsel %vm1756, %v3131, %v3313
        %v3321 = vsel %vm1756, %v3146, %v3315
        %v3323 = vperm.slane %v2894, 0
        %v3326 = vsel %vm1583, %v3319, 0
        %v3329 = vsel %vm1583, %v3320, 0
        %v3332 = vsel %vm1583, %v3321, 0
        %3334 = vmatpush.msra.mxu0 0.0
        %3335 = vmatpush.msra.mxu0 0.0
        %3336 = vmatpush.msra.mxu0 0.0
        %3337 = vmatpush.msra.mxu0 0.0
        %3338 = vmatpush.msra.mxu0 0.0
        %3339 = vmatpush.msra.mxu0 0.0
        %3340 = vmatpush.msra.mxu0 0.0
        %3341 = vmatpush.msra.mxu0 0.0
        %3342 = vmatpush.msra.mxu0 0.0
        %3343 = vmatpush.msra.mxu0 0.0
        %3344 = vmatpush.msra.mxu0 0.0
        %3345 = vmatpush.msra.mxu0 0.0
        %3346 = vmatpush.msra.mxu0 %v2893
        %3347 = vmatpush.msra.mxu0 %v2892
        %3348 = vmatpush.msra.mxu0 %v2891
        %3349 = vmatpush.msra.mxu0 %v2890
        %3350 = vmatmul.f32.gmra.mxu0 %v3326
        %v3351 = vpop.f32.mrf.mxu0
        %v3352 = vadd.f32 %v3323, %v3351
        %3353 = vmatmul.f32.gmra.mxu0 %v3329
        %v3354 = vpop.f32.mrf.mxu0
        %v3355 = vadd.f32 %v3323, %v3354
        %3356 = vmatmul.f32.gmra.mxu0 %v3332
        %v3357 = vpop.f32.mrf.mxu0
        %v3358 = vadd.f32 %v3323, %v3357
        %3359 = vdwg.mxu0
        %v3360 = vadd.f32 %v1578, %v3352
        %v3361 = vadd.f32 %v1579, %v3355
        %v3362 = vadd.f32 %v1580, %v3358
        %v3363 = vld [vmem:[%s45] sm:$0x1]
        %v3364 = vld [vmem:[%s47] sm:$0x1]
        %v3365 = vsel %vm1583, %v3360, 0.0
        %3366 = vadd.xlane.f32.xlu0 %v3365
        %v3367 = vpop.xlane.xlu0 %3366
        %v3368 = vsel %vm1583, %v3361, 0.0
        %3369 = vadd.xlane.f32.xlu0 %v3368
        %v3370 = vpop.xlane.xlu0 %3369
        %v3371 = vsel %vm1587, %v3362, 0.0
        %3372 = vadd.xlane.f32.xlu0 %v3371
        %v3373 = vpop.xlane.xlu0 %3372
        %v3374 = vmul.f32 %v3367, %v1597
        %v3375 = vmul.f32 %v3370, %v1597
        %v3376 = vmul.f32 %v3373, %v1597
        %v3377 = vsub.f32 %v3360, %v3374
        %v3378 = vsub.f32 %v3361, %v3375
        %v3379 = vsub.f32 %v3362, %v3376
        %v3380 = vmul.f32 %v3377, %v3377
        %v3381 = vmul.f32 %v3378, %v3378
        %v3382 = vmul.f32 %v3379, %v3379
        %v3383 = vsel %vm1583, %v3380, 0.0
        %3384 = vadd.xlane.f32.xlu0 %v3383
        %v3385 = vpop.xlane.xlu0 %3384
        %v3386 = vsel %vm1583, %v3381, 0.0
        %3387 = vadd.xlane.f32.xlu0 %v3386
        %v3388 = vpop.xlane.xlu0 %3387
        %v3389 = vsel %vm1587, %v3382, 0.0
        %3390 = vadd.xlane.f32.xlu0 %v3389
        %v3391 = vpop.xlane.xlu0 %3390
        %v3392 = vmul.f32 %v3385, %v1597
        %v3393 = vmul.f32 %v3388, %v1597
        %v3394 = vmul.f32 %v3391, %v1597
        %v3395 = vadd.f32 %v3392, 1e-05
        %v3396 = vadd.f32 %v3393, 1e-05
        %v3397 = vadd.f32 %v3394, 1e-05
        %v3398 = vrsqrt.pop %v3395
        %v3399 = vmul.f32 %v3398, %v3395
        %v3400 = vmul.f32 %v3399, %v3398
        %v3401 = vmul.f32 0.5, %v3400
        %v3402 = vsub.f32 1.5, %v3401
        %v3403 = vmul.f32 %v3398, %v3402
        %vm3404 = vweird.f32 %v3395
        %vm3405 = vweird.f32 %v3398
        %vm3406 = vmor %vm3404, %vm3405
        %v3407 = vsel %vm3406, %v3398, %v3403
        %v3408 = vrsqrt.pop %v3396
        %v3409 = vmul.f32 %v3408, %v3396
        %v3410 = vmul.f32 %v3409, %v3408
        %v3411 = vmul.f32 0.5, %v3410
        %v3412 = vsub.f32 1.5, %v3411
        %v3413 = vmul.f32 %v3408, %v3412
        %vm3414 = vweird.f32 %v3396
        %vm3415 = vweird.f32 %v3408
        %vm3416 = vmor %vm3414, %vm3415
        %v3417 = vsel %vm3416, %v3408, %v3413
        %v3418 = vrsqrt.pop %v3397
        %v3419 = vmul.f32 %v3418, %v3397
        %v3420 = vmul.f32 %v3419, %v3418
        %v3421 = vmul.f32 0.5, %v3420
        %v3422 = vsub.f32 1.5, %v3421
        %v3423 = vmul.f32 %v3418, %v3422
        %vm3424 = vweird.f32 %v3397
        %vm3425 = vweird.f32 %v3418
        %vm3426 = vmor %vm3424, %vm3425
        %v3427 = vsel %vm3426, %v3418, %v3423
        %v3428 = vmul.f32 %v3377, %v3407
        %v3429 = vmul.f32 %v3378, %v3417
        %v3430 = vmul.f32 %v3379, %v3427
        %v3432 = vperm.slane %v3363, 0
        %v3434 = vmul.f32 %v3428, %v3432
        %v3435 = vmul.f32 %v3429, %v3432
        %v3436 = vmul.f32 %v3430, %v3432
        %v3438 = vperm.slane %v3364, 0
        %v3440 = vadd.f32 %v3434, %v3438
        %v3441 = vadd.f32 %v3435, %v3438
        %v3442 = vadd.f32 %v3436, %v3438
        %v3443 = vld [vmem:[#allocation10] sm:$0xff]
        %v3444 = vld [vmem:[#allocation10 + $0x8] sm:$0xff]
        %v3445 = vld [vmem:[#allocation10 + $0x10] sm:$0xff]
        %v3446 = vld [vmem:[#allocation10 + $0x18] sm:$0xff]
        %v3447 = vld [vmem:[%s51] sm:$0x1]
        %v3449 = vperm.slane %v3447, 0
        %v3452 = vsel %vm1583, %v3440, 0
        %v3455 = vsel %vm1583, %v3441, 0
        %v3458 = vsel %vm1583, %v3442, 0
        %3460 = vmatpush.msra.mxu0 0.0
        %3461 = vmatpush.msra.mxu0 0.0
        %3462 = vmatpush.msra.mxu0 0.0
        %3463 = vmatpush.msra.mxu0 0.0
        %3464 = vmatpush.msra.mxu0 0.0
        %3465 = vmatpush.msra.mxu0 0.0
        %3466 = vmatpush.msra.mxu0 0.0
        %3467 = vmatpush.msra.mxu0 0.0
        %3468 = vmatpush.msra.mxu0 0.0
        %3469 = vmatpush.msra.mxu0 0.0
        %3470 = vmatpush.msra.mxu0 0.0
        %3471 = vmatpush.msra.mxu0 0.0
        %3472 = vmatpush.msra.mxu0 %v3446
        %3473 = vmatpush.msra.mxu0 %v3445
        %3474 = vmatpush.msra.mxu0 %v3444
        %3475 = vmatpush.msra.mxu0 %v3443
        %3476 = vmatmul.f32.gmra.mxu0 %v3452
        %v3477 = vpop.f32.mrf.mxu0
        %v3478 = vadd.f32 %v3449, %v3477
        %3479 = vmatmul.f32.gmra.mxu0 %v3455
        %v3480 = vpop.f32.mrf.mxu0
        %v3481 = vadd.f32 %v3449, %v3480
        %3482 = vmatmul.f32.gmra.mxu0 %v3458
        %v3483 = vpop.f32.mrf.mxu0
        %v3484 = vadd.f32 %v3449, %v3483
        %3485 = vdwg.mxu0
        %v3486 = vmul.f32 %v3478, %v3478
        %v3487 = vmul.f32 %v3481, %v3481
        %v3488 = vmul.f32 %v3484, %v3484
        %v3489 = vmul.f32 %v3478, %v3486
        %v3490 = vmul.f32 %v3481, %v3487
        %v3491 = vmul.f32 %v3484, %v3488
        %v3492 = vmul.f32 %v3489, 0.044715
        %v3493 = vmul.f32 %v3490, 0.044715
        %v3494 = vmul.f32 %v3491, 0.044715
        %v3495 = vadd.f32 %v3478, %v3492
        %v3496 = vadd.f32 %v3481, %v3493
        %v3497 = vadd.f32 %v3484, %v3494
        %v3498 = vmul.f32 %v3495, 0.7978846
        %v3499 = vmul.f32 %v3496, 0.7978846
        %v3500 = vmul.f32 %v3497, 0.7978846
        %v3501 = vtanh.pop %v3498
        %v3502 = vtanh.pop %v3499
        %v3503 = vtanh.pop %v3500
        %v3504 = vadd.f32 %v3501, 1.0
        %v3505 = vadd.f32 %v3502, 1.0
        %v3506 = vadd.f32 %v3503, 1.0
        %v3507 = vmul.f32 %v3504, 0.5
        %v3508 = vmul.f32 %v3505, 0.5
        %v3509 = vmul.f32 %v3506, 0.5
        %v3510 = vmul.f32 %v3478, %v3507
        %v3511 = vmul.f32 %v3481, %v3508
        %v3512 = vmul.f32 %v3484, %v3509
        %v3513 = vld [vmem:[%s53] sm:$0xff]
        %v3514 = vld [vmem:[%s53 + $0x8] sm:$0xff]
        %v3515 = vld [vmem:[%s53 + $0x10] sm:$0xff]
        %v3516 = vld [vmem:[%s53 + $0x18] sm:$0xff]
        %v3517 = vld [vmem:[%s53 + $0x20] sm:$0xff]
        %v3518 = vld [vmem:[%s53 + $0x28] sm:$0xff]
        %v3519 = vld [vmem:[%s53 + $0x30] sm:$0xff]
        %v3520 = vld [vmem:[%s53 + $0x38] sm:$0xff]
        %v3522 = vsel %vm2152, %v3510, 0
        %v3525 = vsel %vm2152, %v3511, 0
        %v3528 = vsel %vm2152, %v3512, 0
        %3530 = vmatpush.msra.mxu0 0.0
        %3531 = vmatpush.msra.mxu0 0.0
        %3532 = vmatpush.msra.mxu0 0.0
        %3533 = vmatpush.msra.mxu0 0.0
        %3534 = vmatpush.msra.mxu0 0.0
        %3535 = vmatpush.msra.mxu0 0.0
        %3536 = vmatpush.msra.mxu0 0.0
        %3537 = vmatpush.msra.mxu0 0.0
        %3538 = vmatpush.msra.mxu0 %v3520
        %3539 = vmatpush.msra.mxu0 %v3519
        %3540 = vmatpush.msra.mxu0 %v3518
        %3541 = vmatpush.msra.mxu0 %v3517
        %3542 = vmatpush.msra.mxu0 %v3516
        %3543 = vmatpush.msra.mxu0 %v3515
        %3544 = vmatpush.msra.mxu0 %v3514
        %3545 = vmatpush.msra.mxu0 %v3513
        %3546 = vmatmul.f32.gmra.mxu0 %v3522
        %v3547 = vpop.f32.mrf.mxu0
        %v3548 = vadd.f32 0.0, %v3547
        %3549 = vmatmul.f32.gmra.mxu0 %v3525
        %v3550 = vpop.f32.mrf.mxu0
        %v3551 = vadd.f32 0.0, %v3550
        %3552 = vmatmul.f32.gmra.mxu0 %v3528
        %v3553 = vpop.f32.mrf.mxu0
        %v3554 = vadd.f32 0.0, %v3553
        %3555 = vdwg.mxu0
        %v3556 = vadd.f32 %v3360, %v3548
        %v3557 = vadd.f32 %v3361, %v3551
        %v3558 = vadd.f32 %v3362, %v3554
        %v3559 = vld [vmem:[#allocation12] sm:$0x1]
        %v3561 = vperm.slane %v3559, 0
        %v3563 = vadd.f32 %v3556, %v3561
        %v3564 = vadd.f32 %v3557, %v3561
        %v3565 = vadd.f32 %v3558, %v3561
        %v3566 = vld [vmem:[%s57] sm:$0x1]
        %v3567 = vld [vmem:[%s59] sm:$0x1]
        %v3568 = vsel %vm1587, %v2796, 0.0
        %3569 = vadd.xlane.f32.xlu0 %v3568
        %v3570 = vpop.xlane.xlu0 %3569
        %v3571 = vmul.f32 %v3570, %v1597
        %v3572 = vsub.f32 %v2796, %v3571
        %v3573 = vmul.f32 %v3572, %v3572
        %v3574 = vsel %vm1587, %v3573, 0.0
        %3575 = vadd.xlane.f32.xlu0 %v3574
        %v3576 = vpop.xlane.xlu0 %3575
        %v3577 = vmul.f32 %v3576, %v1597
        %v3578 = vadd.f32 %v3577, 1e-05
        %v3579 = vrsqrt.pop %v3578
        %v3580 = vmul.f32 %v3579, %v3578
        %v3581 = vmul.f32 %v3580, %v3579
        %v3582 = vmul.f32 0.5, %v3581
        %v3583 = vsub.f32 1.5, %v3582
        %v3584 = vmul.f32 %v3579, %v3583
        %vm3585 = vweird.f32 %v3578
        %vm3586 = vweird.f32 %v3579
        %vm3587 = vmor %vm3585, %vm3586
        %v3588 = vsel %vm3587, %v3579, %v3584
        %v3589 = vmul.f32 %v3572, %v3588
        %v3590 = vmul.f32 %v3589, %v3566
        %v3591 = vadd.f32 %v3590, %v3567
        %v3592 = vld [vmem:[#allocation13] sm:$0xff]
        %v3593 = vld [vmem:[#allocation13 + $0x8] sm:$0xff]
        %v3594 = vld [vmem:[#allocation13 + $0x10] sm:$0xff]
        %v3595 = vld [vmem:[#allocation13 + $0x18] sm:$0xff]
        %v3596 = vld [vmem:[#allocation15] sm:$0xff]
        %v3597 = vld [vmem:[#allocation15 + $0x8] sm:$0xff]
        %v3598 = vld [vmem:[#allocation15 + $0x10] sm:$0xff]
        %v3599 = vld [vmem:[#allocation15 + $0x18] sm:$0xff]
        %v3600 = vld [vmem:[#allocation16] sm:$0xff]
        %v3601 = vld [vmem:[#allocation16 + $0x8] sm:$0xff]
        %v3602 = vld [vmem:[#allocation16 + $0x10] sm:$0xff]
        %v3603 = vld [vmem:[#allocation16 + $0x18] sm:$0xff]
        %v3604 = vld [vmem:[#allocation18] sm:$0xff]
        %v3605 = vld [vmem:[#allocation18 + $0x8] sm:$0xff]
        %v3606 = vld [vmem:[#allocation18 + $0x10] sm:$0xff]
        %v3607 = vld [vmem:[#allocation18 + $0x18] sm:$0xff]
        %v3608 = vld [vmem:[%s69] sm:$0x1]
        %v3610 = vsel %vm1583, %v3591, 0
        %3612 = vmatpush.msra.mxu0 0.0
        %3613 = vmatpush.msra.mxu0 0.0
        %3614 = vmatpush.msra.mxu0 0.0
        %3615 = vmatpush.msra.mxu0 0.0
        %3616 = vmatpush.msra.mxu0 0.0
        %3617 = vmatpush.msra.mxu0 0.0
        %3618 = vmatpush.msra.mxu0 0.0
        %3619 = vmatpush.msra.mxu0 0.0
        %3620 = vmatpush.msra.mxu0 0.0
        %3621 = vmatpush.msra.mxu0 0.0
        %3622 = vmatpush.msra.mxu0 0.0
        %3623 = vmatpush.msra.mxu0 0.0
        %3624 = vmatpush.msra.mxu0 %v3595
        %3625 = vmatpush.msra.mxu0 %v3594
        %3626 = vmatpush.msra.mxu0 %v3593
        %3627 = vmatpush.msra.mxu0 %v3592
        %3628 = vmatmul.f32.gmra.mxu0 %v3610
        %v3629 = vpop.f32.mrf.mxu0
        %v3630 = vadd.f32 0.0, %v3629
        %3631 = vdwg.mxu0
        %v3632 = vperm.slane %v3591, 0
        %v3633 = vmul.f32 %v3596, %v3632
        %v3634 = vmul.f32 %v3597, %v3632
        %v3635 = vmul.f32 %v3598, %v3632
        %v3636 = vmul.f32 %v3599, %v3632
        %v3637 = vsel %vm1583, %v3633, 0.0
        %3638 = vadd.xlane.f32.xlu0 %v3637
        %v3639 = vpop.xlane.xlu0 %3638
        %v3640 = vsel %vm1583, %v3634, 0.0
        %3641 = vadd.xlane.f32.xlu0 %v3640
        %v3642 = vpop.xlane.xlu0 %3641
        %v3643 = vsel %vm1583, %v3635, 0.0
        %3644 = vadd.xlane.f32.xlu0 %v3643
        %v3645 = vpop.xlane.xlu0 %3644
        %v3646 = vsel %vm1583, %v3636, 0.0
        %3647 = vadd.xlane.f32.xlu0 %v3646
        %v3648 = vpop.xlane.xlu0 %3647
        %vm3652 = vcmask 1046528
        %v3653 = vrot.slane %v3563, 1
        %v3654 = vrot.slane %v3564, 1
        %v3655 = vsel %vm3652, %v3653, %v3654
        %v3656 = vrot.slane %v3565, 1
        %v3657 = vsel %vm3652, %v3654, %v3656
        %v3659 = vsel %vm1583, %v3596, 0
        %v3662 = vsel %vm1583, %v3597, 0
        %v3665 = vsel %vm1583, %v3598, 0
        %v3668 = vsel %vm1583, %v3599, 0
        %v3670 = vsel %vm1583, %v3655, 0
        %v3672 = vsel %vm1583, %v3657, 0
        %3674 = vmatpush.xpose.msra.mxu0 0.0
        %3675 = vmatpush.xpose.msra.mxu0 0.0
        %3676 = vmatpush.xpose.msra.mxu0 0.0
        %3677 = vmatpush.xpose.msra.mxu0 0.0
        %3678 = vmatpush.xpose.msra.mxu0 0.0
        %3679 = vmatpush.xpose.msra.mxu0 0.0
        %3680 = vmatpush.xpose.msra.mxu0 0.0
        %3681 = vmatpush.xpose.msra.mxu0 0.0
        %3682 = vmatpush.xpose.msra.mxu0 0.0
        %3683 = vmatpush.xpose.msra.mxu0 0.0
        %3684 = vmatpush.xpose.msra.mxu0 0.0
        %3685 = vmatpush.xpose.msra.mxu0 0.0
        %3686 = vmatpush.xpose.msra.mxu0 0.0
        %3687 = vmatpush.xpose.msra.mxu0 0.0
        %3688 = vmatpush.xpose.msra.mxu0 %v3672
        %3689 = vmatpush.xpose.msra.mxu0 %v3670
        %3690 = vmatmul.f32.gmra.mxu0 %v3659
        %v3691 = vpop.f32.mrf.mxu0
        %v3692 = vadd.f32 0.0, %v3691
        %3693 = vmatmul.f32.gmra.mxu0 %v3662
        %v3694 = vpop.f32.mrf.mxu0
        %v3695 = vadd.f32 0.0, %v3694
        %3696 = vmatmul.f32.gmra.mxu0 %v3665
        %v3697 = vpop.f32.mrf.mxu0
        %v3698 = vadd.f32 0.0, %v3697
        %3699 = vmatmul.f32.gmra.mxu0 %v3668
        %v3700 = vpop.f32.mrf.mxu0
        %v3701 = vadd.f32 0.0, %v3700
        %3702 = vdwg.mxu0
        %3703 = vmatpush.msra.mxu0 0.0
        %3704 = vmatpush.msra.mxu0 0.0
        %3705 = vmatpush.msra.mxu0 0.0
        %3706 = vmatpush.msra.mxu0 0.0
        %3707 = vmatpush.msra.mxu0 0.0
        %3708 = vmatpush.msra.mxu0 0.0
        %3709 = vmatpush.msra.mxu0 0.0
        %3710 = vmatpush.msra.mxu0 0.0
        %3711 = vmatpush.msra.mxu0 0.0
        %3712 = vmatpush.msra.mxu0 0.0
        %3713 = vmatpush.msra.mxu0 0.0
        %3714 = vmatpush.msra.mxu0 0.0
        %3715 = vmatpush.msra.mxu0 %v3603
        %3716 = vmatpush.msra.mxu0 %v3602
        %3717 = vmatpush.msra.mxu0 %v3601
        %3718 = vmatpush.msra.mxu0 %v3600
        %3719 = vmatmul.f32.gmra.mxu0 %v3610
        %v3720 = vpop.f32.mrf.mxu0
        %v3721 = vadd.f32 0.0, %v3720
        %3722 = vdwg.mxu0
        %3723 = vmatpush.msra.mxu0 0.0
        %3724 = vmatpush.msra.mxu0 0.0
        %3725 = vmatpush.msra.mxu0 0.0
        %3726 = vmatpush.msra.mxu0 0.0
        %3727 = vmatpush.msra.mxu0 0.0
        %3728 = vmatpush.msra.mxu0 0.0
        %3729 = vmatpush.msra.mxu0 0.0
        %3730 = vmatpush.msra.mxu0 0.0
        %3731 = vmatpush.msra.mxu0 0.0
        %3732 = vmatpush.msra.mxu0 0.0
        %3733 = vmatpush.msra.mxu0 0.0
        %3734 = vmatpush.msra.mxu0 0.0
        %3735 = vmatpush.msra.mxu0 %v3603
        %3736 = vmatpush.msra.mxu0 %v3602
        %3737 = vmatpush.msra.mxu0 %v3601
        %3738 = vmatpush.msra.mxu0 %v3600
        %3739 = vmatmul.f32.gmra.mxu0 %v3670
        %v3740 = vpop.f32.mrf.mxu0
        %v3741 = vadd.f32 0.0, %v3740
        %3742 = vmatmul.f32.gmra.mxu0 %v3672
        %v3743 = vpop.f32.mrf.mxu0
        %v3744 = vadd.f32 0.0, %v3743
        %3745 = vdwg.mxu0
        %v3747 = vsel %vm1756, %v3630, 0
        %3749 = vmatpush.msra.mxu0 0.0
        %3750 = vmatpush.msra.mxu0 0.0
        %3751 = vmatpush.msra.mxu0 0.0
        %3752 = vmatpush.msra.mxu0 0.0
        %3753 = vmatpush.msra.mxu0 0.0
        %3754 = vmatpush.msra.mxu0 0.0
        %3755 = vmatpush.msra.mxu0 0.0
        %3756 = vmatpush.msra.mxu0 0.0
        %3757 = vmatpush.msra.mxu0 0.0
        %3758 = vmatpush.msra.mxu0 0.0
        %3759 = vmatpush.msra.mxu0 0.0
        %3760 = vmatpush.msra.mxu0 0.0
        %3761 = vmatpush.msra.mxu0 0.0
        %3762 = vmatpush.msra.mxu0 0.0
        %3763 = vmatpush.msra.mxu0 %v3642
        %3764 = vmatpush.msra.mxu0 %v3639
        %3765 = vmatmul.f32.gmra.mxu0 %v3747
        %v3766 = vpop.f32.mrf.mxu0
        %v3767 = vadd.f32 0.0, %v3766
        %3768 = vdwg.mxu0
        %v3769 = vmul.f32 %v3767, 0.25
        %3770 = vmatpush.msra.mxu0 0.0
        %3771 = vmatpush.msra.mxu0 0.0
        %3772 = vmatpush.msra.mxu0 0.0
        %3773 = vmatpush.msra.mxu0 0.0
        %3774 = vmatpush.msra.mxu0 0.0
        %3775 = vmatpush.msra.mxu0 0.0
        %3776 = vmatpush.msra.mxu0 0.0
        %3777 = vmatpush.msra.mxu0 0.0
        %3778 = vmatpush.msra.mxu0 0.0
        %3779 = vmatpush.msra.mxu0 0.0
        %3780 = vmatpush.msra.mxu0 0.0
        %3781 = vmatpush.msra.mxu0 0.0
        %3782 = vmatpush.msra.mxu0 0.0
        %3783 = vmatpush.msra.mxu0 0.0
        %3784 = vmatpush.msra.mxu0 %v3695
        %3785 = vmatpush.msra.mxu0 %v3692
        %3786 = vmatmul.f32.gmra.mxu0 %v3747
        %v3787 = vpop.f32.mrf.mxu0
        %v3788 = vadd.f32 0.0, %v3787
        %3789 = vdwg.mxu0
        %v3790 = vmul.f32 %v3788, 0.25
        %vm3791 = vcmask 122880
        %v3792 = vsel %vm3791, %v3790, -inf
        %3793 = vmax.xlane.f32.xlu0 %v3792
        %v3794 = vpop.xlane.xlu0 %3793
        %v3795 = vmax.f32 %v3769, %v3794
        %v3796 = vsub.f32 %v3769, %v3795
        %v3797 = vmul.f32 %v3796, 1.442695
        %v3798 = vpow.pop %v3797
        %3800 = vset.pattern.permute.xlu0 0
        %3801 = vperm.xlu0 %3800, %v3795
        %v3802 = vpop.permute.xlu0 %3801
        %v3804 = vsub.f32 %v3790, %v3802
        %v3805 = vmul.f32 %v3804, 1.442695
        %v3806 = vpow.pop %v3805
        %v3807 = vadd.f32 %v3798, 0.0
        %v3808 = vsel %vm3791, %v3806, 0.0
        %3809 = vadd.xlane.f32.xlu0 %v3808
        %v3810 = vpop.xlane.xlu0 %3809
        %v3811 = vadd.f32 %v3807, %v3810
        %v3813 = vsel %vm1756, %v3806, 0
        %3815 = vmatpush.msra.mxu0 0.0
        %3816 = vmatpush.msra.mxu0 0.0
        %3817 = vmatpush.msra.mxu0 0.0
        %3818 = vmatpush.msra.mxu0 0.0
        %3819 = vmatpush.msra.mxu0 0.0
        %3820 = vmatpush.msra.mxu0 0.0
        %3821 = vmatpush.msra.mxu0 0.0
        %3822 = vmatpush.msra.mxu0 0.0
        %3823 = vmatpush.msra.mxu0 0.0
        %3824 = vmatpush.msra.mxu0 0.0
        %3825 = vmatpush.msra.mxu0 0.0
        %3826 = vmatpush.msra.mxu0 0.0
        %3827 = vmatpush.msra.mxu0 0.0
        %3828 = vmatpush.msra.mxu0 0.0
        %3829 = vmatpush.msra.mxu0 %v3744
        %3830 = vmatpush.msra.mxu0 %v3741
        %3831 = vmatmul.f32.gmra.mxu0 %v3813
        %v3832 = vpop.f32.mrf.mxu0
        %v3833 = vadd.f32 0.0, %v3832
        %3834 = vdwg.mxu0
        %vm3835 = vcmask 7168
        %v3837 = vsel %vm3835, %v3798, 0
        %v3840 = vsel %vm1814, %v3721, 0
        %3842 = vmatpush.msra.mxu0 0.0
        %3843 = vmatpush.msra.mxu0 0.0
        %3844 = vmatpush.msra.mxu0 0.0
        %3845 = vmatpush.msra.mxu0 0.0
        %3846 = vmatpush.msra.mxu0 0.0
        %3847 = vmatpush.msra.mxu0 0.0
        %3848 = vmatpush.msra.mxu0 0.0
        %3849 = vmatpush.msra.mxu0 0.0
        %3850 = vmatpush.msra.mxu0 0.0
        %3851 = vmatpush.msra.mxu0 0.0
        %3852 = vmatpush.msra.mxu0 0.0
        %3853 = vmatpush.msra.mxu0 0.0
        %3854 = vmatpush.msra.mxu0 0.0
        %3855 = vmatpush.msra.mxu0 0.0
        %3856 = vmatpush.msra.mxu0 0.0
        %3857 = vmatpush.msra.mxu0 %v3840
        %3858 = vmatmul.f32.gmra.mxu0 %v3837
        %v3859 = vpop.f32.mrf.mxu0
        %v3860 = vadd.f32 %v3833, %v3859
        %3861 = vdwg.mxu0
        %3863 = vset.pattern.permute.xlu0 0
        %3864 = vperm.xlu0 %3863, %v3811
        %v3865 = vpop.permute.xlu0 %3864
        %v3867 = vrcp.pop %v3865
        %v3868 = vmul.f32 %v3865, %v3867
        %v3869 = vsub.f32 1.0, %v3868
        %v3870 = vmul.f32 %v3867, %v3869
        %v3871 = vadd.f32 %v3867, %v3870
        %vm3872 = vweird.f32 %v3865
        %vm3873 = vweird.f32 %v3867
        %vm3874 = vmor %vm3872, %vm3873
        %v3875 = vsel %vm3874, %v3867, %v3871
        %v3876 = vand.u32 2147483647, %v3865
        %vm3877 = vcmp.eq.f32.partialorder %v3876, 8.507059e+37
        %v3878 = vand.u32 %v3865, 2147483648
        %v3879 = vor.u32 1.1754944e-38, %v3878
        %v3880 = vsel %vm3877, %v3879, %v3875
        %v3881 = vmul.f32 %v3860, %v3880
        %3882 = vrot.lane.b32.xlu0 %v3630, 112
        %v3883 = vpop.permute.xlu0 %3882
        %v3884 = vsel %vm1756, %v3883, 0
        %3886 = vmatpush.msra.mxu0 0.0
        %3887 = vmatpush.msra.mxu0 0.0
        %3888 = vmatpush.msra.mxu0 0.0
        %3889 = vmatpush.msra.mxu0 0.0
        %3890 = vmatpush.msra.mxu0 0.0
        %3891 = vmatpush.msra.mxu0 0.0
        %3892 = vmatpush.msra.mxu0 0.0
        %3893 = vmatpush.msra.mxu0 0.0
        %3894 = vmatpush.msra.mxu0 0.0
        %3895 = vmatpush.msra.mxu0 0.0
        %3896 = vmatpush.msra.mxu0 0.0
        %3897 = vmatpush.msra.mxu0 0.0
        %3898 = vmatpush.msra.mxu0 0.0
        %3899 = vmatpush.msra.mxu0 0.0
        %3900 = vmatpush.msra.mxu0 %v3648
        %3901 = vmatpush.msra.mxu0 %v3645
        %3902 = vmatmul.f32.gmra.mxu0 %v3884
        %v3903 = vpop.f32.mrf.mxu0
        %v3904 = vadd.f32 0.0, %v3903
        %3905 = vdwg.mxu0
        %v3906 = vmul.f32 %v3904, 0.25
        %3907 = vmatpush.msra.mxu0 0.0
        %3908 = vmatpush.msra.mxu0 0.0
        %3909 = vmatpush.msra.mxu0 0.0
        %3910 = vmatpush.msra.mxu0 0.0
        %3911 = vmatpush.msra.mxu0 0.0
        %3912 = vmatpush.msra.mxu0 0.0
        %3913 = vmatpush.msra.mxu0 0.0
        %3914 = vmatpush.msra.mxu0 0.0
        %3915 = vmatpush.msra.mxu0 0.0
        %3916 = vmatpush.msra.mxu0 0.0
        %3917 = vmatpush.msra.mxu0 0.0
        %3918 = vmatpush.msra.mxu0 0.0
        %3919 = vmatpush.msra.mxu0 0.0
        %3920 = vmatpush.msra.mxu0 0.0
        %3921 = vmatpush.msra.mxu0 %v3701
        %3922 = vmatpush.msra.mxu0 %v3698
        %3923 = vmatmul.f32.gmra.mxu0 %v3884
        %v3924 = vpop.f32.mrf.mxu0
        %v3925 = vadd.f32 0.0, %v3924
        %3926 = vdwg.mxu0
        %v3927 = vmul.f32 %v3925, 0.25
        %v3928 = vsel %vm3791, %v3927, -inf
        %3929 = vmax.xlane.f32.xlu0 %v3928
        %v3930 = vpop.xlane.xlu0 %3929
        %v3931 = vmax.f32 %v3906, %v3930
        %v3932 = vsub.f32 %v3906, %v3931
        %v3933 = vmul.f32 %v3932, 1.442695
        %v3934 = vpow.pop %v3933
        %3936 = vset.pattern.permute.xlu0 0
        %3937 = vperm.xlu0 %3936, %v3931
        %v3938 = vpop.permute.xlu0 %3937
        %v3940 = vsub.f32 %v3927, %v3938
        %v3941 = vmul.f32 %v3940, 1.442695
        %v3942 = vpow.pop %v3941
        %v3943 = vadd.f32 %v3934, 0.0
        %v3944 = vsel %vm3791, %v3942, 0.0
        %3945 = vadd.xlane.f32.xlu0 %v3944
        %v3946 = vpop.xlane.xlu0 %3945
        %v3947 = vadd.f32 %v3943, %v3946
        %3950 = vrot.lane.b32.xlu0 %v3741, 112
        %v3951 = vpop.permute.xlu0 %3950
        %3952 = vrot.lane.b32.xlu0 %v3744, 112
        %v3953 = vpop.permute.xlu0 %3952
        %v3957 = vsel %vm1756, %v3942, 0
        %3959 = vmatpush.msra.mxu0 0.0
        %3960 = vmatpush.msra.mxu0 0.0
        %3961 = vmatpush.msra.mxu0 0.0
        %3962 = vmatpush.msra.mxu0 0.0
        %3963 = vmatpush.msra.mxu0 0.0
        %3964 = vmatpush.msra.mxu0 0.0
        %3965 = vmatpush.msra.mxu0 0.0
        %3966 = vmatpush.msra.mxu0 0.0
        %3967 = vmatpush.msra.mxu0 0.0
        %3968 = vmatpush.msra.mxu0 0.0
        %3969 = vmatpush.msra.mxu0 0.0
        %3970 = vmatpush.msra.mxu0 0.0
        %3971 = vmatpush.msra.mxu0 0.0
        %3972 = vmatpush.msra.mxu0 0.0
        %3973 = vmatpush.msra.mxu0 %v3953
        %3974 = vmatpush.msra.mxu0 %v3951
        %3975 = vmatmul.f32.gmra.mxu0 %v3957
        %v3976 = vpop.f32.mrf.mxu0
        %v3977 = vadd.f32 0.0, %v3976
        %3978 = vdwg.mxu0
        %3979 = vrot.lane.b32.xlu0 %v3721, 112
        %v3980 = vpop.permute.xlu0 %3979
        %v3982 = vsel %vm3835, %v3934, 0
        %v3984 = vsel %vm1814, %v3980, 0
        %3986 = vmatpush.msra.mxu0 0.0
        %3987 = vmatpush.msra.mxu0 0.0
        %3988 = vmatpush.msra.mxu0 0.0
        %3989 = vmatpush.msra.mxu0 0.0
        %3990 = vmatpush.msra.mxu0 0.0
        %3991 = vmatpush.msra.mxu0 0.0
        %3992 = vmatpush.msra.mxu0 0.0
        %3993 = vmatpush.msra.mxu0 0.0
        %3994 = vmatpush.msra.mxu0 0.0
        %3995 = vmatpush.msra.mxu0 0.0
        %3996 = vmatpush.msra.mxu0 0.0
        %3997 = vmatpush.msra.mxu0 0.0
        %3998 = vmatpush.msra.mxu0 0.0
        %3999 = vmatpush.msra.mxu0 0.0
        %4000 = vmatpush.msra.mxu0 0.0
        %4001 = vmatpush.msra.mxu0 %v3984
        %4002 = vmatmul.f32.gmra.mxu0 %v3982
        %v4003 = vpop.f32.mrf.mxu0
        %v4004 = vadd.f32 %v3977, %v4003
        %4005 = vdwg.mxu0
        %4007 = vset.pattern.permute.xlu0 0
        %4008 = vperm.xlu0 %4007, %v3947
        %v4009 = vpop.permute.xlu0 %4008
        %v4011 = vrcp.pop %v4009
        %v4012 = vmul.f32 %v4009, %v4011
        %v4013 = vsub.f32 1.0, %v4012
        %v4014 = vmul.f32 %v4011, %v4013
        %v4015 = vadd.f32 %v4011, %v4014
        %vm4016 = vweird.f32 %v4009
        %vm4017 = vweird.f32 %v4011
        %vm4018 = vmor %vm4016, %vm4017
        %v4019 = vsel %vm4018, %v4011, %v4015
        %v4020 = vand.u32 2147483647, %v4009
        %vm4021 = vcmp.eq.f32.partialorder %v4020, 8.507059e+37
        %v4022 = vand.u32 %v4009, 2147483648
        %v4023 = vor.u32 1.1754944e-38, %v4022
        %v4024 = vsel %vm4021, %v4023, %v4019
        %v4025 = vmul.f32 %v4004, %v4024
        %4027 = vrot.lane.b32.xlu0 %v4025, 16
        %v4028 = vpop.permute.xlu0 %4027
        %v4030 = vsel %vm1756, %v3881, %v4028
        %v4032 = vsel %vm1583, %v4030, 0
        %4034 = vmatpush.msra.mxu0 0.0
        %4035 = vmatpush.msra.mxu0 0.0
        %4036 = vmatpush.msra.mxu0 0.0
        %4037 = vmatpush.msra.mxu0 0.0
        %4038 = vmatpush.msra.mxu0 0.0
        %4039 = vmatpush.msra.mxu0 0.0
        %4040 = vmatpush.msra.mxu0 0.0
        %4041 = vmatpush.msra.mxu0 0.0
        %4042 = vmatpush.msra.mxu0 0.0
        %4043 = vmatpush.msra.mxu0 0.0
        %4044 = vmatpush.msra.mxu0 0.0
        %4045 = vmatpush.msra.mxu0 0.0
        %4046 = vmatpush.msra.mxu0 %v3607
        %4047 = vmatpush.msra.mxu0 %v3606
        %4048 = vmatpush.msra.mxu0 %v3605
        %4049 = vmatpush.msra.mxu0 %v3604
        %4050 = vmatmul.f32.gmra.mxu0 %v4032
        %v4051 = vpop.f32.mrf.mxu0
        %v4052 = vadd.f32 %v3608, %v4051
        %4053 = vdwg.mxu0
        %v4054 = vadd.f32 %v2796, %v4052
        %v4055 = vld [vmem:[%s71] sm:$0x1]
        %v4056 = vld [vmem:[%s73] sm:$0x1]
        %v4057 = vsel %vm1587, %v3563, 0.0
        %4058 = vadd.xlane.f32.xlu0 %v4057
        %v4059 = vpop.xlane.xlu0 %4058
        %v4060 = vmul.f32 %v4059, %v1597
        %v4061 = vsub.f32 %v3563, %v4060
        %v4062 = vmul.f32 %v4061, %v4061
        %v4063 = vsel %vm1587, %v4062, 0.0
        %4064 = vadd.xlane.f32.xlu0 %v4063
        %v4065 = vpop.xlane.xlu0 %4064
        %v4066 = vmul.f32 %v4065, %v1597
        %v4067 = vadd.f32 %v4066, 1e-05
        %v4068 = vrsqrt.pop %v4067
        %v4069 = vmul.f32 %v4068, %v4067
        %v4070 = vmul.f32 %v4069, %v4068
        %v4071 = vmul.f32 0.5, %v4070
        %v4072 = vsub.f32 1.5, %v4071
        %v4073 = vmul.f32 %v4068, %v4072
        %vm4074 = vweird.f32 %v4067
        %vm4075 = vweird.f32 %v4068
        %vm4076 = vmor %vm4074, %vm4075
        %v4077 = vsel %vm4076, %v4068, %v4073
        %v4078 = vmul.f32 %v4061, %v4077
        %v4079 = vmul.f32 %v4078, %v4055
        %v4080 = vadd.f32 %v4079, %v4056
        %v4081 = vld [vmem:[#allocation19] sm:$0xff]
        %v4082 = vld [vmem:[#allocation19 + $0x8] sm:$0xff]
        %v4083 = vld [vmem:[#allocation19 + $0x10] sm:$0xff]
        %v4084 = vld [vmem:[#allocation19 + $0x18] sm:$0xff]
        %v4085 = vld [vmem:[#allocation21] sm:$0xff]
        %v4086 = vld [vmem:[#allocation21 + $0x8] sm:$0xff]
        %v4087 = vld [vmem:[#allocation21 + $0x10] sm:$0xff]
        %v4088 = vld [vmem:[#allocation21 + $0x18] sm:$0xff]
        %v4089 = vld [vmem:[#allocation22] sm:$0xff]
        %v4090 = vld [vmem:[#allocation22 + $0x8] sm:$0xff]
        %v4091 = vld [vmem:[#allocation22 + $0x10] sm:$0xff]
        %v4092 = vld [vmem:[#allocation22 + $0x18] sm:$0xff]
        %v4093 = vld [vmem:[#allocation24] sm:$0xff]
        %v4094 = vld [vmem:[#allocation24 + $0x8] sm:$0xff]
        %v4095 = vld [vmem:[#allocation24 + $0x10] sm:$0xff]
        %v4096 = vld [vmem:[#allocation24 + $0x18] sm:$0xff]
        %v4097 = vld [vmem:[%s83] sm:$0x1]
        %v4099 = vsel %vm1583, %v4080, 0
        %4101 = vmatpush.msra.mxu0 0.0
        %4102 = vmatpush.msra.mxu0 0.0
        %4103 = vmatpush.msra.mxu0 0.0
        %4104 = vmatpush.msra.mxu0 0.0
        %4105 = vmatpush.msra.mxu0 0.0
        %4106 = vmatpush.msra.mxu0 0.0
        %4107 = vmatpush.msra.mxu0 0.0
        %4108 = vmatpush.msra.mxu0 0.0
        %4109 = vmatpush.msra.mxu0 0.0
        %4110 = vmatpush.msra.mxu0 0.0
        %4111 = vmatpush.msra.mxu0 0.0
        %4112 = vmatpush.msra.mxu0 0.0
        %4113 = vmatpush.msra.mxu0 %v4084
        %4114 = vmatpush.msra.mxu0 %v4083
        %4115 = vmatpush.msra.mxu0 %v4082
        %4116 = vmatpush.msra.mxu0 %v4081
        %4117 = vmatmul.f32.gmra.mxu0 %v4099
        %v4118 = vpop.f32.mrf.mxu0
        %v4119 = vadd.f32 0.0, %v4118
        %4120 = vdwg.mxu0
        %v4121 = vperm.slane %v4080, 0
        %v4122 = vmul.f32 %v4085, %v4121
        %v4123 = vmul.f32 %v4086, %v4121
        %v4124 = vmul.f32 %v4087, %v4121
        %v4125 = vmul.f32 %v4088, %v4121
        %v4126 = vsel %vm1583, %v4122, 0.0
        %4127 = vadd.xlane.f32.xlu0 %v4126
        %v4128 = vpop.xlane.xlu0 %4127
        %v4129 = vsel %vm1583, %v4123, 0.0
        %4130 = vadd.xlane.f32.xlu0 %v4129
        %v4131 = vpop.xlane.xlu0 %4130
        %v4132 = vsel %vm1583, %v4124, 0.0
        %4133 = vadd.xlane.f32.xlu0 %v4132
        %v4134 = vpop.xlane.xlu0 %4133
        %v4135 = vsel %vm1583, %v4125, 0.0
        %4136 = vadd.xlane.f32.xlu0 %v4135
        %v4137 = vpop.xlane.xlu0 %4136
        %v4140 = vrot.slane %v2796, 1
        %v4141 = vrot.slane %v2797, 1
        %v4142 = vsel %vm3652, %v4140, %v4141
        %v4144 = vsel %vm1583, %v4085, 0
        %v4147 = vsel %vm1583, %v4086, 0
        %v4150 = vsel %vm1583, %v4087, 0
        %v4153 = vsel %vm1583, %v4088, 0
        %v4155 = vsel %vm1583, %v4142, 0
        %4157 = vmatpush.xpose.msra.mxu0 0.0
        %4158 = vmatpush.xpose.msra.mxu0 0.0
        %4159 = vmatpush.xpose.msra.mxu0 0.0
        %4160 = vmatpush.xpose.msra.mxu0 0.0
        %4161 = vmatpush.xpose.msra.mxu0 0.0
        %4162 = vmatpush.xpose.msra.mxu0 0.0
        %4163 = vmatpush.xpose.msra.mxu0 0.0
        %4164 = vmatpush.xpose.msra.mxu0 0.0
        %4165 = vmatpush.xpose.msra.mxu0 0.0
        %4166 = vmatpush.xpose.msra.mxu0 0.0
        %4167 = vmatpush.xpose.msra.mxu0 0.0
        %4168 = vmatpush.xpose.msra.mxu0 0.0
        %4169 = vmatpush.xpose.msra.mxu0 0.0
        %4170 = vmatpush.xpose.msra.mxu0 0.0
        %4171 = vmatpush.xpose.msra.mxu0 0.0
        %4172 = vmatpush.xpose.msra.mxu0 %v4155
        %4173 = vmatmul.f32.gmra.mxu0 %v4144
        %v4174 = vpop.f32.mrf.mxu0
        %v4175 = vadd.f32 0.0, %v4174
        %4176 = vmatmul.f32.gmra.mxu0 %v4147
        %v4177 = vpop.f32.mrf.mxu0
        %v4178 = vadd.f32 0.0, %v4177
        %4179 = vmatmul.f32.gmra.mxu0 %v4150
        %v4180 = vpop.f32.mrf.mxu0
        %v4181 = vadd.f32 0.0, %v4180
        %4182 = vmatmul.f32.gmra.mxu0 %v4153
        %v4183 = vpop.f32.mrf.mxu0
        %v4184 = vadd.f32 0.0, %v4183
        %4185 = vdwg.mxu0
        %4186 = vmatpush.msra.mxu0 0.0
        %4187 = vmatpush.msra.mxu0 0.0
        %4188 = vmatpush.msra.mxu0 0.0
        %4189 = vmatpush.msra.mxu0 0.0
        %4190 = vmatpush.msra.mxu0 0.0
        %4191 = vmatpush.msra.mxu0 0.0
        %4192 = vmatpush.msra.mxu0 0.0
        %4193 = vmatpush.msra.mxu0 0.0
        %4194 = vmatpush.msra.mxu0 0.0
        %4195 = vmatpush.msra.mxu0 0.0
        %4196 = vmatpush.msra.mxu0 0.0
        %4197 = vmatpush.msra.mxu0 0.0
        %4198 = vmatpush.msra.mxu0 %v4092
        %4199 = vmatpush.msra.mxu0 %v4091
        %4200 = vmatpush.msra.mxu0 %v4090
        %4201 = vmatpush.msra.mxu0 %v4089
        %4202 = vmatmul.f32.gmra.mxu0 %v4099
        %v4203 = vpop.f32.mrf.mxu0
        %v4204 = vadd.f32 0.0, %v4203
        %4205 = vdwg.mxu0
        %4206 = vmatpush.msra.mxu0 0.0
        %4207 = vmatpush.msra.mxu0 0.0
        %4208 = vmatpush.msra.mxu0 0.0
        %4209 = vmatpush.msra.mxu0 0.0
        %4210 = vmatpush.msra.mxu0 0.0
        %4211 = vmatpush.msra.mxu0 0.0
        %4212 = vmatpush.msra.mxu0 0.0
        %4213 = vmatpush.msra.mxu0 0.0
        %4214 = vmatpush.msra.mxu0 0.0
        %4215 = vmatpush.msra.mxu0 0.0
        %4216 = vmatpush.msra.mxu0 0.0
        %4217 = vmatpush.msra.mxu0 0.0
        %4218 = vmatpush.msra.mxu0 %v4092
        %4219 = vmatpush.msra.mxu0 %v4091
        %4220 = vmatpush.msra.mxu0 %v4090
        %4221 = vmatpush.msra.mxu0 %v4089
        %4222 = vmatmul.f32.gmra.mxu0 %v4155
        %v4223 = vpop.f32.mrf.mxu0
        %v4224 = vadd.f32 0.0, %v4223
        %4225 = vdwg.mxu0
        %v4227 = vsel %vm1756, %v4119, 0
        %4229 = vmatpush.msra.mxu0 0.0
        %4230 = vmatpush.msra.mxu0 0.0
        %4231 = vmatpush.msra.mxu0 0.0
        %4232 = vmatpush.msra.mxu0 0.0
        %4233 = vmatpush.msra.mxu0 0.0
        %4234 = vmatpush.msra.mxu0 0.0
        %4235 = vmatpush.msra.mxu0 0.0
        %4236 = vmatpush.msra.mxu0 0.0
        %4237 = vmatpush.msra.mxu0 0.0
        %4238 = vmatpush.msra.mxu0 0.0
        %4239 = vmatpush.msra.mxu0 0.0
        %4240 = vmatpush.msra.mxu0 0.0
        %4241 = vmatpush.msra.mxu0 0.0
        %4242 = vmatpush.msra.mxu0 0.0
        %4243 = vmatpush.msra.mxu0 %v4131
        %4244 = vmatpush.msra.mxu0 %v4128
        %4245 = vmatmul.f32.gmra.mxu0 %v4227
        %v4246 = vpop.f32.mrf.mxu0
        %v4247 = vadd.f32 0.0, %v4246
        %4248 = vdwg.mxu0
        %v4249 = vmul.f32 %v4247, 0.25
        %4250 = vmatpush.msra.mxu0 0.0
        %4251 = vmatpush.msra.mxu0 0.0
        %4252 = vmatpush.msra.mxu0 0.0
        %4253 = vmatpush.msra.mxu0 0.0
        %4254 = vmatpush.msra.mxu0 0.0
        %4255 = vmatpush.msra.mxu0 0.0
        %4256 = vmatpush.msra.mxu0 0.0
        %4257 = vmatpush.msra.mxu0 0.0
        %4258 = vmatpush.msra.mxu0 0.0
        %4259 = vmatpush.msra.mxu0 0.0
        %4260 = vmatpush.msra.mxu0 0.0
        %4261 = vmatpush.msra.mxu0 0.0
        %4262 = vmatpush.msra.mxu0 0.0
        %4263 = vmatpush.msra.mxu0 0.0
        %4264 = vmatpush.msra.mxu0 %v4178
        %4265 = vmatpush.msra.mxu0 %v4175
        %4266 = vmatmul.f32.gmra.mxu0 %v4227
        %v4267 = vpop.f32.mrf.mxu0
        %v4268 = vadd.f32 0.0, %v4267
        %4269 = vdwg.mxu0
        %v4270 = vmul.f32 %v4268, 0.25
        %vm4271 = vcmask 57344
        %v4272 = vsel %vm4271, %v4270, -inf
        %4273 = vmax.xlane.f32.xlu0 %v4272
        %v4274 = vpop.xlane.xlu0 %4273
        %v4275 = vmax.f32 %v4249, %v4274
        %v4276 = vsub.f32 %v4249, %v4275
        %v4277 = vmul.f32 %v4276, 1.442695
        %v4278 = vpow.pop %v4277
        %4280 = vset.pattern.permute.xlu0 0
        %4281 = vperm.xlu0 %4280, %v4275
        %v4282 = vpop.permute.xlu0 %4281
        %v4284 = vsub.f32 %v4270, %v4282
        %v4285 = vmul.f32 %v4284, 1.442695
        %v4286 = vpow.pop %v4285
        %v4287 = vadd.f32 %v4278, 0.0
        %v4288 = vsel %vm4271, %v4286, 0.0
        %4289 = vadd.xlane.f32.xlu0 %v4288
        %v4290 = vpop.xlane.xlu0 %4289
        %v4291 = vadd.f32 %v4287, %v4290
        %vm4292 = vcmask 64512
        %v4294 = vsel %vm4292, %v4286, 0
        %4296 = vmatpush.msra.mxu0 0.0
        %4297 = vmatpush.msra.mxu0 0.0
        %4298 = vmatpush.msra.mxu0 0.0
        %4299 = vmatpush.msra.mxu0 0.0
        %4300 = vmatpush.msra.mxu0 0.0
        %4301 = vmatpush.msra.mxu0 0.0
        %4302 = vmatpush.msra.mxu0 0.0
        %4303 = vmatpush.msra.mxu0 0.0
        %4304 = vmatpush.msra.mxu0 0.0
        %4305 = vmatpush.msra.mxu0 0.0
        %4306 = vmatpush.msra.mxu0 0.0
        %4307 = vmatpush.msra.mxu0 0.0
        %4308 = vmatpush.msra.mxu0 0.0
        %4309 = vmatpush.msra.mxu0 0.0
        %4310 = vmatpush.msra.mxu0 0.0
        %4311 = vmatpush.msra.mxu0 %v4224
        %4312 = vmatmul.f32.gmra.mxu0 %v4294
        %v4313 = vpop.f32.mrf.mxu0
        %v4314 = vadd.f32 0.0, %v4313
        %4315 = vdwg.mxu0
        %v4317 = vsel %vm3835, %v4278, 0
        %v4320 = vsel %vm1814, %v4204, 0
        %4322 = vmatpush.msra.mxu0 0.0
        %4323 = vmatpush.msra.mxu0 0.0
        %4324 = vmatpush.msra.mxu0 0.0
        %4325 = vmatpush.msra.mxu0 0.0
        %4326 = vmatpush.msra.mxu0 0.0
        %4327 = vmatpush.msra.mxu0 0.0
        %4328 = vmatpush.msra.mxu0 0.0
        %4329 = vmatpush.msra.mxu0 0.0
        %4330 = vmatpush.msra.mxu0 0.0
        %4331 = vmatpush.msra.mxu0 0.0
        %4332 = vmatpush.msra.mxu0 0.0
        %4333 = vmatpush.msra.mxu0 0.0
        %4334 = vmatpush.msra.mxu0 0.0
        %4335 = vmatpush.msra.mxu0 0.0
        %4336 = vmatpush.msra.mxu0 0.0
        %4337 = vmatpush.msra.mxu0 %v4320
        %4338 = vmatmul.f32.gmra.mxu0 %v4317
        %v4339 = vpop.f32.mrf.mxu0
        %v4340 = vadd.f32 %v4314, %v4339
        %4341 = vdwg.mxu0
        %4343 = vset.pattern.permute.xlu0 0
        %4344 = vperm.xlu0 %4343, %v4291
        %v4345 = vpop.permute.xlu0 %4344
        %v4347 = vrcp.pop %v4345
        %v4348 = vmul.f32 %v4345, %v4347
        %v4349 = vsub.f32 1.0, %v4348
        %v4350 = vmul.f32 %v4347, %v4349
        %v4351 = vadd.f32 %v4347, %v4350
        %vm4352 = vweird.f32 %v4345
        %vm4353 = vweird.f32 %v4347
        %vm4354 = vmor %vm4352, %vm4353
        %v4355 = vsel %vm4354, %v4347, %v4351
        %v4356 = vand.u32 2147483647, %v4345
        %vm4357 = vcmp.eq.f32.partialorder %v4356, 8.507059e+37
        %v4358 = vand.u32 %v4345, 2147483648
        %v4359 = vor.u32 1.1754944e-38, %v4358
        %v4360 = vsel %vm4357, %v4359, %v4355
        %v4361 = vmul.f32 %v4340, %v4360
        %4362 = vrot.lane.b32.xlu0 %v4119, 112
        %v4363 = vpop.permute.xlu0 %4362
        %v4364 = vsel %vm1756, %v4363, 0
        %4366 = vmatpush.msra.mxu0 0.0
        %4367 = vmatpush.msra.mxu0 0.0
        %4368 = vmatpush.msra.mxu0 0.0
        %4369 = vmatpush.msra.mxu0 0.0
        %4370 = vmatpush.msra.mxu0 0.0
        %4371 = vmatpush.msra.mxu0 0.0
        %4372 = vmatpush.msra.mxu0 0.0
        %4373 = vmatpush.msra.mxu0 0.0
        %4374 = vmatpush.msra.mxu0 0.0
        %4375 = vmatpush.msra.mxu0 0.0
        %4376 = vmatpush.msra.mxu0 0.0
        %4377 = vmatpush.msra.mxu0 0.0
        %4378 = vmatpush.msra.mxu0 0.0
        %4379 = vmatpush.msra.mxu0 0.0
        %4380 = vmatpush.msra.mxu0 %v4137
        %4381 = vmatpush.msra.mxu0 %v4134
        %4382 = vmatmul.f32.gmra.mxu0 %v4364
        %v4383 = vpop.f32.mrf.mxu0
        %v4384 = vadd.f32 0.0, %v4383
        %4385 = vdwg.mxu0
        %v4386 = vmul.f32 %v4384, 0.25
        %4387 = vmatpush.msra.mxu0 0.0
        %4388 = vmatpush.msra.mxu0 0.0
        %4389 = vmatpush.msra.mxu0 0.0
        %4390 = vmatpush.msra.mxu0 0.0
        %4391 = vmatpush.msra.mxu0 0.0
        %4392 = vmatpush.msra.mxu0 0.0
        %4393 = vmatpush.msra.mxu0 0.0
        %4394 = vmatpush.msra.mxu0 0.0
        %4395 = vmatpush.msra.mxu0 0.0
        %4396 = vmatpush.msra.mxu0 0.0
        %4397 = vmatpush.msra.mxu0 0.0
        %4398 = vmatpush.msra.mxu0 0.0
        %4399 = vmatpush.msra.mxu0 0.0
        %4400 = vmatpush.msra.mxu0 0.0
        %4401 = vmatpush.msra.mxu0 %v4184
        %4402 = vmatpush.msra.mxu0 %v4181
        %4403 = vmatmul.f32.gmra.mxu0 %v4364
        %v4404 = vpop.f32.mrf.mxu0
        %v4405 = vadd.f32 0.0, %v4404
        %4406 = vdwg.mxu0
        %v4407 = vmul.f32 %v4405, 0.25
        %v4408 = vsel %vm4271, %v4407, -inf
        %4409 = vmax.xlane.f32.xlu0 %v4408
        %v4410 = vpop.xlane.xlu0 %4409
        %v4411 = vmax.f32 %v4386, %v4410
        %v4412 = vsub.f32 %v4386, %v4411
        %v4413 = vmul.f32 %v4412, 1.442695
        %v4414 = vpow.pop %v4413
        %4416 = vset.pattern.permute.xlu0 0
        %4417 = vperm.xlu0 %4416, %v4411
        %v4418 = vpop.permute.xlu0 %4417
        %v4420 = vsub.f32 %v4407, %v4418
        %v4421 = vmul.f32 %v4420, 1.442695
        %v4422 = vpow.pop %v4421
        %v4423 = vadd.f32 %v4414, 0.0
        %v4424 = vsel %vm4271, %v4422, 0.0
        %4425 = vadd.xlane.f32.xlu0 %v4424
        %v4426 = vpop.xlane.xlu0 %4425
        %v4427 = vadd.f32 %v4423, %v4426
        %4429 = vrot.lane.b32.xlu0 %v4224, 112
        %v4430 = vpop.permute.xlu0 %4429
        %v4433 = vsel %vm4292, %v4422, 0
        %4435 = vmatpush.msra.mxu0 0.0
        %4436 = vmatpush.msra.mxu0 0.0
        %4437 = vmatpush.msra.mxu0 0.0
        %4438 = vmatpush.msra.mxu0 0.0
        %4439 = vmatpush.msra.mxu0 0.0
        %4440 = vmatpush.msra.mxu0 0.0
        %4441 = vmatpush.msra.mxu0 0.0
        %4442 = vmatpush.msra.mxu0 0.0
        %4443 = vmatpush.msra.mxu0 0.0
        %4444 = vmatpush.msra.mxu0 0.0
        %4445 = vmatpush.msra.mxu0 0.0
        %4446 = vmatpush.msra.mxu0 0.0
        %4447 = vmatpush.msra.mxu0 0.0
        %4448 = vmatpush.msra.mxu0 0.0
        %4449 = vmatpush.msra.mxu0 0.0
        %4450 = vmatpush.msra.mxu0 %v4430
        %4451 = vmatmul.f32.gmra.mxu0 %v4433
        %v4452 = vpop.f32.mrf.mxu0
        %v4453 = vadd.f32 0.0, %v4452
        %4454 = vdwg.mxu0
        %4455 = vrot.lane.b32.xlu0 %v4204, 112
        %v4456 = vpop.permute.xlu0 %4455
        %v4458 = vsel %vm3835, %v4414, 0
        %v4460 = vsel %vm1814, %v4456, 0
        %4462 = vmatpush.msra.mxu0 0.0
        %4463 = vmatpush.msra.mxu0 0.0
        %4464 = vmatpush.msra.mxu0 0.0
        %4465 = vmatpush.msra.mxu0 0.0
        %4466 = vmatpush.msra.mxu0 0.0
        %4467 = vmatpush.msra.mxu0 0.0
        %4468 = vmatpush.msra.mxu0 0.0
        %4469 = vmatpush.msra.mxu0 0.0
        %4470 = vmatpush.msra.mxu0 0.0
        %4471 = vmatpush.msra.mxu0 0.0
        %4472 = vmatpush.msra.mxu0 0.0
        %4473 = vmatpush.msra.mxu0 0.0
        %4474 = vmatpush.msra.mxu0 0.0
        %4475 = vmatpush.msra.mxu0 0.0
        %4476 = vmatpush.msra.mxu0 0.0
        %4477 = vmatpush.msra.mxu0 %v4460
        %4478 = vmatmul.f32.gmra.mxu0 %v4458
        %v4479 = vpop.f32.mrf.mxu0
        %v4480 = vadd.f32 %v4453, %v4479
        %4481 = vdwg.mxu0
        %4483 = vset.pattern.permute.xlu0 0
        %4484 = vperm.xlu0 %4483, %v4427
        %v4485 = vpop.permute.xlu0 %4484
        %v4487 = vrcp.pop %v4485
        %v4488 = vmul.f32 %v4485, %v4487
        %v4489 = vsub.f32 1.0, %v4488
        %v4490 = vmul.f32 %v4487, %v4489
        %v4491 = vadd.f32 %v4487, %v4490
        %vm4492 = vweird.f32 %v4485
        %vm4493 = vweird.f32 %v4487
        %vm4494 = vmor %vm4492, %vm4493
        %v4495 = vsel %vm4494, %v4487, %v4491
        %v4496 = vand.u32 2147483647, %v4485
        %vm4497 = vcmp.eq.f32.partialorder %v4496, 8.507059e+37
        %v4498 = vand.u32 %v4485, 2147483648
        %v4499 = vor.u32 1.1754944e-38, %v4498
        %v4500 = vsel %vm4497, %v4499, %v4495
        %v4501 = vmul.f32 %v4480, %v4500
        %4503 = vrot.lane.b32.xlu0 %v4501, 16
        %v4504 = vpop.permute.xlu0 %4503
        %v4506 = vsel %vm1756, %v4361, %v4504
        %v4508 = vsel %vm1583, %v4506, 0
        %4510 = vmatpush.msra.mxu0 0.0
        %4511 = vmatpush.msra.mxu0 0.0
        %4512 = vmatpush.msra.mxu0 0.0
        %4513 = vmatpush.msra.mxu0 0.0
        %4514 = vmatpush.msra.mxu0 0.0
        %4515 = vmatpush.msra.mxu0 0.0
        %4516 = vmatpush.msra.mxu0 0.0
        %4517 = vmatpush.msra.mxu0 0.0
        %4518 = vmatpush.msra.mxu0 0.0
        %4519 = vmatpush.msra.mxu0 0.0
        %4520 = vmatpush.msra.mxu0 0.0
        %4521 = vmatpush.msra.mxu0 0.0
        %4522 = vmatpush.msra.mxu0 %v4096
        %4523 = vmatpush.msra.mxu0 %v4095
        %4524 = vmatpush.msra.mxu0 %v4094
        %4525 = vmatpush.msra.mxu0 %v4093
        %4526 = vmatmul.f32.gmra.mxu0 %v4508
        %v4527 = vpop.f32.mrf.mxu0
        %v4528 = vadd.f32 %v4097, %v4527
        %4529 = vdwg.mxu0
        %v4530 = vadd.f32 %v3563, %v4528
        %v4531 = vsel %vm1814, %v4054, %v2796
        %v4532 = vsel %vm1814, %v4530, %v3563
        %s4533 = scalar_lea.vmem %s5, 2
        %v4534 = vld [vmem:[%s4533] sm:$0x1]
        %s4535 = scalar_lea.vmem %s7, 2
        %v4536 = vld [vmem:[%s4535] sm:$0x1]
        %v4537 = vsel %vm1583, %v4531, 0.0
        %4538 = vadd.xlane.f32.xlu0 %v4537
        %v4539 = vpop.xlane.xlu0 %4538
        %v4540 = vsel %vm1587, %v2797, 0.0
        %4541 = vadd.xlane.f32.xlu0 %v4540
        %v4542 = vpop.xlane.xlu0 %4541
        %v4543 = vmul.f32 %v4539, %v1597
        %v4544 = vmul.f32 %v4542, %v1597
        %v4545 = vsub.f32 %v4531, %v4543
        %v4546 = vsub.f32 %v2797, %v4544
        %v4547 = vmul.f32 %v4545, %v4545
        %v4548 = vmul.f32 %v4546, %v4546
        %v4549 = vsel %vm1583, %v4547, 0.0
        %4550 = vadd.xlane.f32.xlu0 %v4549
        %v4551 = vpop.xlane.xlu0 %4550
        %v4552 = vsel %vm1587, %v4548, 0.0
        %4553 = vadd.xlane.f32.xlu0 %v4552
        %v4554 = vpop.xlane.xlu0 %4553
        %v4555 = vmul.f32 %v4551, %v1597
        %v4556 = vmul.f32 %v4554, %v1597
        %v4557 = vadd.f32 %v4555, 1e-05
        %v4558 = vadd.f32 %v4556, 1e-05
        %v4559 = vrsqrt.pop %v4557
        %v4560 = vmul.f32 %v4559, %v4557
        %v4561 = vmul.f32 %v4560, %v4559
        %v4562 = vmul.f32 0.5, %v4561
        %v4563 = vsub.f32 1.5, %v4562
        %v4564 = vmul.f32 %v4559, %v4563
        %vm4565 = vweird.f32 %v4557
        %vm4566 = vweird.f32 %v4559
        %vm4567 = vmor %vm4565, %vm4566
        %v4568 = vsel %vm4567, %v4559, %v4564
        %v4569 = vrsqrt.pop %v4558
        %v4570 = vmul.f32 %v4569, %v4558
        %v4571 = vmul.f32 %v4570, %v4569
        %v4572 = vmul.f32 0.5, %v4571
        %v4573 = vsub.f32 1.5, %v4572
        %v4574 = vmul.f32 %v4569, %v4573
        %vm4575 = vweird.f32 %v4558
        %vm4576 = vweird.f32 %v4569
        %vm4577 = vmor %vm4575, %vm4576
        %v4578 = vsel %vm4577, %v4569, %v4574
        %v4579 = vmul.f32 %v4545, %v4568
        %v4580 = vmul.f32 %v4546, %v4578
        %v4582 = vperm.slane %v4534, 0
        %v4584 = vmul.f32 %v4579, %v4582
        %v4585 = vmul.f32 %v4580, %v4582
        %v4587 = vperm.slane %v4536, 0
        %v4589 = vadd.f32 %v4584, %v4587
        %v4590 = vadd.f32 %v4585, %v4587
        %s4591 = scalar_lea.vmem %s9, 64
        %v4592 = vld [vmem:[%s4591] sm:$0xff]
        %v4593 = vld [vmem:[%s4591 + $0x8] sm:$0xff]
        %v4594 = vld [vmem:[%s4591 + $0x10] sm:$0xff]
        %v4595 = vld [vmem:[%s4591 + $0x18] sm:$0xff]
        %s4596 = scalar_lea.vmem %s11, 64
        %v4597 = vld [vmem:[%s4596] sm:$0xff]
        %v4598 = vld [vmem:[%s4596 + $0x8] sm:$0xff]
        %v4599 = vld [vmem:[%s4596 + $0x10] sm:$0xff]
        %v4600 = vld [vmem:[%s4596 + $0x18] sm:$0xff]
        %s4601 = scalar_lea.vmem %s13, 64
        %v4602 = vld [vmem:[%s4601] sm:$0xff]
        %v4603 = vld [vmem:[%s4601 + $0x8] sm:$0xff]
        %v4604 = vld [vmem:[%s4601 + $0x10] sm:$0xff]
        %v4605 = vld [vmem:[%s4601 + $0x18] sm:$0xff]
        %s4606 = scalar_lea.vmem [#allocation2], 64
        %v4607 = vld [vmem:[%s4606] sm:$0xff]
        %v4608 = vld [vmem:[%s4606 + $0x8] sm:$0xff]
        %v4609 = vld [vmem:[%s4606 + $0x10] sm:$0xff]
        %v4610 = vld [vmem:[%s4606 + $0x18] sm:$0xff]
        %s4611 = scalar_lea.vmem %s17, 2
        %v4612 = vld [vmem:[%s4611] sm:$0x1]
        %v4614 = vsel %vm1583, %v4589, 0
        %v4617 = vsel %vm1583, %v4590, 0
        %4619 = vmatpush.msra.mxu0 0.0
        %4620 = vmatpush.msra.mxu0 0.0
        %4621 = vmatpush.msra.mxu0 0.0
        %4622 = vmatpush.msra.mxu0 0.0
        %4623 = vmatpush.msra.mxu0 0.0
        %4624 = vmatpush.msra.mxu0 0.0
        %4625 = vmatpush.msra.mxu0 0.0
        %4626 = vmatpush.msra.mxu0 0.0
        %4627 = vmatpush.msra.mxu0 0.0
        %4628 = vmatpush.msra.mxu0 0.0
        %4629 = vmatpush.msra.mxu0 0.0
        %4630 = vmatpush.msra.mxu0 0.0
        %4631 = vmatpush.msra.mxu0 %v4595
        %4632 = vmatpush.msra.mxu0 %v4594
        %4633 = vmatpush.msra.mxu0 %v4593
        %4634 = vmatpush.msra.mxu0 %v4592
        %4635 = vmatmul.f32.gmra.mxu0 %v4614
        %v4636 = vpop.f32.mrf.mxu0
        %v4637 = vadd.f32 0.0, %v4636
        %4638 = vmatmul.f32.gmra.mxu0 %v4617
        %v4639 = vpop.f32.mrf.mxu0
        %v4640 = vadd.f32 0.0, %v4639
        %4641 = vdwg.mxu0
        %v4643 = vsel %vm1583, %v4597, 0
        %v4646 = vsel %vm1583, %v4598, 0
        %v4649 = vsel %vm1583, %v4599, 0
        %v4652 = vsel %vm1583, %v4600, 0
        %4654 = vmatpush.xpose.msra.mxu0 0.0
        %4655 = vmatpush.xpose.msra.mxu0 0.0
        %4656 = vmatpush.xpose.msra.mxu0 0.0
        %4657 = vmatpush.xpose.msra.mxu0 0.0
        %4658 = vmatpush.xpose.msra.mxu0 0.0
        %4659 = vmatpush.xpose.msra.mxu0 0.0
        %4660 = vmatpush.xpose.msra.mxu0 0.0
        %4661 = vmatpush.xpose.msra.mxu0 0.0
        %4662 = vmatpush.xpose.msra.mxu0 0.0
        %4663 = vmatpush.xpose.msra.mxu0 0.0
        %4664 = vmatpush.xpose.msra.mxu0 0.0
        %4665 = vmatpush.xpose.msra.mxu0 0.0
        %4666 = vmatpush.xpose.msra.mxu0 0.0
        %4667 = vmatpush.xpose.msra.mxu0 0.0
        %4668 = vmatpush.xpose.msra.mxu0 %v4617
        %4669 = vmatpush.xpose.msra.mxu0 %v4614
        %4670 = vmatmul.f32.gmra.mxu0 %v4643
        %v4671 = vpop.f32.mrf.mxu0
        %v4672 = vadd.f32 0.0, %v4671
        %4673 = vmatmul.f32.gmra.mxu0 %v4646
        %v4674 = vpop.f32.mrf.mxu0
        %v4675 = vadd.f32 0.0, %v4674
        %4676 = vmatmul.f32.gmra.mxu0 %v4649
        %v4677 = vpop.f32.mrf.mxu0
        %v4678 = vadd.f32 0.0, %v4677
        %4679 = vmatmul.f32.gmra.mxu0 %v4652
        %v4680 = vpop.f32.mrf.mxu0
        %v4681 = vadd.f32 0.0, %v4680
        %4682 = vdwg.mxu0
        %4683 = vmatpush.msra.mxu0 0.0
        %4684 = vmatpush.msra.mxu0 0.0
        %4685 = vmatpush.msra.mxu0 0.0
        %4686 = vmatpush.msra.mxu0 0.0
        %4687 = vmatpush.msra.mxu0 0.0
        %4688 = vmatpush.msra.mxu0 0.0
        %4689 = vmatpush.msra.mxu0 0.0
        %4690 = vmatpush.msra.mxu0 0.0
        %4691 = vmatpush.msra.mxu0 0.0
        %4692 = vmatpush.msra.mxu0 0.0
        %4693 = vmatpush.msra.mxu0 0.0
        %4694 = vmatpush.msra.mxu0 0.0
        %4695 = vmatpush.msra.mxu0 %v4605
        %4696 = vmatpush.msra.mxu0 %v4604
        %4697 = vmatpush.msra.mxu0 %v4603
        %4698 = vmatpush.msra.mxu0 %v4602
        %4699 = vmatmul.f32.gmra.mxu0 %v4614
        %v4700 = vpop.f32.mrf.mxu0
        %v4701 = vadd.f32 0.0, %v4700
        %4702 = vmatmul.f32.gmra.mxu0 %v4617
        %v4703 = vpop.f32.mrf.mxu0
        %v4704 = vadd.f32 0.0, %v4703
        %4705 = vdwg.mxu0
        %v4707 = vsel %vm1756, %v4637, 0
        %v4710 = vsel %vm1756, %v4640, 0
        %4712 = vmatpush.msra.mxu0 0.0
        %4713 = vmatpush.msra.mxu0 0.0
        %4714 = vmatpush.msra.mxu0 0.0
        %4715 = vmatpush.msra.mxu0 0.0
        %4716 = vmatpush.msra.mxu0 0.0
        %4717 = vmatpush.msra.mxu0 0.0
        %4718 = vmatpush.msra.mxu0 0.0
        %4719 = vmatpush.msra.mxu0 0.0
        %4720 = vmatpush.msra.mxu0 0.0
        %4721 = vmatpush.msra.mxu0 0.0
        %4722 = vmatpush.msra.mxu0 0.0
        %4723 = vmatpush.msra.mxu0 0.0
        %4724 = vmatpush.msra.mxu0 0.0
        %4725 = vmatpush.msra.mxu0 0.0
        %4726 = vmatpush.msra.mxu0 %v4675
        %4727 = vmatpush.msra.mxu0 %v4672
        %4728 = vmatmul.f32.gmra.mxu0 %v4707
        %v4729 = vpop.f32.mrf.mxu0
        %v4730 = vadd.f32 0.0, %v4729
        %4731 = vmatmul.f32.gmra.mxu0 %v4710
        %v4732 = vpop.f32.mrf.mxu0
        %v4733 = vadd.f32 0.0, %v4732
        %4734 = vdwg.mxu0
        %v4735 = vmul.f32 %v4730, 0.25
        %v4736 = vmul.f32 %v4733, 0.25
        %v4737 = vsel %vm1788, %v4735, -inf
        %4738 = vmax.xlane.f32.xlu0 %v4737
        %v4739 = vpop.xlane.xlu0 %4738
        %v4740 = vsel %vm1792, %v4736, -inf
        %4741 = vmax.xlane.f32.xlu0 %v4740
        %v4742 = vpop.xlane.xlu0 %4741
        %v4743 = vsub.f32 %v4735, %v4739
        %v4744 = vsub.f32 %v4736, %v4742
        %v4745 = vmul.f32 %v4743, 1.442695
        %v4746 = vpow.pop %v4745
        %v4747 = vmul.f32 %v4744, 1.442695
        %v4748 = vpow.pop %v4747
        %v4749 = vsel %vm1788, %v4746, 0.0
        %4750 = vadd.xlane.f32.xlu0 %v4749
        %v4751 = vpop.xlane.xlu0 %4750
        %v4752 = vsel %vm1792, %v4748, 0.0
        %4753 = vadd.xlane.f32.xlu0 %v4752
        %v4754 = vpop.xlane.xlu0 %4753
        %v4756 = vsel %vm1788, %v4746, 0
        %v4759 = vsel %vm1788, %v4748, 0
        %v4762 = vsel %vm1814, %v4704, 0
        %4764 = vmatpush.msra.mxu0 0.0
        %4765 = vmatpush.msra.mxu0 0.0
        %4766 = vmatpush.msra.mxu0 0.0
        %4767 = vmatpush.msra.mxu0 0.0
        %4768 = vmatpush.msra.mxu0 0.0
        %4769 = vmatpush.msra.mxu0 0.0
        %4770 = vmatpush.msra.mxu0 0.0
        %4771 = vmatpush.msra.mxu0 0.0
        %4772 = vmatpush.msra.mxu0 0.0
        %4773 = vmatpush.msra.mxu0 0.0
        %4774 = vmatpush.msra.mxu0 0.0
        %4775 = vmatpush.msra.mxu0 0.0
        %4776 = vmatpush.msra.mxu0 0.0
        %4777 = vmatpush.msra.mxu0 0.0
        %4778 = vmatpush.msra.mxu0 %v4762
        %4779 = vmatpush.msra.mxu0 %v4701
        %4780 = vmatmul.f32.gmra.mxu0 %v4756
        %v4781 = vpop.f32.mrf.mxu0
        %v4782 = vadd.f32 0.0, %v4781
        %4783 = vmatmul.f32.gmra.mxu0 %v4759
        %v4784 = vpop.f32.mrf.mxu0
        %v4785 = vadd.f32 0.0, %v4784
        %4786 = vdwg.mxu0
        %v4787 = vrcp.pop %v4751
        %v4788 = vmul.f32 %v4751, %v4787
        %v4789 = vsub.f32 1.0, %v4788
        %v4790 = vmul.f32 %v4787, %v4789
        %v4791 = vadd.f32 %v4787, %v4790
        %vm4792 = vweird.f32 %v4751
        %vm4793 = vweird.f32 %v4787
        %vm4794 = vmor %vm4792, %vm4793
        %v4795 = vsel %vm4794, %v4787, %v4791
        %v4796 = vand.u32 2147483647, %v4751
        %vm4797 = vcmp.eq.f32.partialorder %v4796, 8.507059e+37
        %v4798 = vand.u32 %v4751, 2147483648
        %v4799 = vor.u32 1.1754944e-38, %v4798
        %v4800 = vsel %vm4797, %v4799, %v4795
        %v4801 = vmul.f32 %v4782, %v4800
        %v4802 = vrcp.pop %v4754
        %v4803 = vmul.f32 %v4754, %v4802
        %v4804 = vsub.f32 1.0, %v4803
        %v4805 = vmul.f32 %v4802, %v4804
        %v4806 = vadd.f32 %v4802, %v4805
        %vm4807 = vweird.f32 %v4754
        %vm4808 = vweird.f32 %v4802
        %vm4809 = vmor %vm4807, %vm4808
        %v4810 = vsel %vm4809, %v4802, %v4806
        %v4811 = vand.u32 2147483647, %v4754
        %vm4812 = vcmp.eq.f32.partialorder %v4811, 8.507059e+37
        %v4813 = vand.u32 %v4754, 2147483648
        %v4814 = vor.u32 1.1754944e-38, %v4813
        %v4815 = vsel %vm4812, %v4814, %v4810
        %v4816 = vmul.f32 %v4785, %v4815
        %4817 = vrot.lane.b32.xlu0 %v4637, 112
        %v4818 = vpop.permute.xlu0 %4817
        %4819 = vrot.lane.b32.xlu0 %v4640, 112
        %v4820 = vpop.permute.xlu0 %4819
        %v4821 = vsel %vm1756, %v4818, 0
        %v4823 = vsel %vm1756, %v4820, 0
        %4825 = vmatpush.msra.mxu0 0.0
        %4826 = vmatpush.msra.mxu0 0.0
        %4827 = vmatpush.msra.mxu0 0.0
        %4828 = vmatpush.msra.mxu0 0.0
        %4829 = vmatpush.msra.mxu0 0.0
        %4830 = vmatpush.msra.mxu0 0.0
        %4831 = vmatpush.msra.mxu0 0.0
        %4832 = vmatpush.msra.mxu0 0.0
        %4833 = vmatpush.msra.mxu0 0.0
        %4834 = vmatpush.msra.mxu0 0.0
        %4835 = vmatpush.msra.mxu0 0.0
        %4836 = vmatpush.msra.mxu0 0.0
        %4837 = vmatpush.msra.mxu0 0.0
        %4838 = vmatpush.msra.mxu0 0.0
        %4839 = vmatpush.msra.mxu0 %v4681
        %4840 = vmatpush.msra.mxu0 %v4678
        %4841 = vmatmul.f32.gmra.mxu0 %v4821
        %v4842 = vpop.f32.mrf.mxu0
        %v4843 = vadd.f32 0.0, %v4842
        %4844 = vmatmul.f32.gmra.mxu0 %v4823
        %v4845 = vpop.f32.mrf.mxu0
        %v4846 = vadd.f32 0.0, %v4845
        %4847 = vdwg.mxu0
        %v4848 = vmul.f32 %v4843, 0.25
        %v4849 = vmul.f32 %v4846, 0.25
        %v4850 = vsel %vm1788, %v4848, -inf
        %4851 = vmax.xlane.f32.xlu0 %v4850
        %v4852 = vpop.xlane.xlu0 %4851
        %v4853 = vsel %vm1792, %v4849, -inf
        %4854 = vmax.xlane.f32.xlu0 %v4853
        %v4855 = vpop.xlane.xlu0 %4854
        %v4856 = vsub.f32 %v4848, %v4852
        %v4857 = vsub.f32 %v4849, %v4855
        %v4858 = vmul.f32 %v4856, 1.442695
        %v4859 = vpow.pop %v4858
        %v4860 = vmul.f32 %v4857, 1.442695
        %v4861 = vpow.pop %v4860
        %v4862 = vsel %vm1788, %v4859, 0.0
        %4863 = vadd.xlane.f32.xlu0 %v4862
        %v4864 = vpop.xlane.xlu0 %4863
        %v4865 = vsel %vm1792, %v4861, 0.0
        %4866 = vadd.xlane.f32.xlu0 %v4865
        %v4867 = vpop.xlane.xlu0 %4866
        %4869 = vrot.lane.b32.xlu0 %v4701, 112
        %v4870 = vpop.permute.xlu0 %4869
        %4871 = vrot.lane.b32.xlu0 %v4704, 112
        %v4872 = vpop.permute.xlu0 %4871
        %v4875 = vsel %vm1788, %v4859, 0
        %v4878 = vsel %vm1788, %v4861, 0
        %v4880 = vsel %vm1814, %v4872, 0
        %4882 = vmatpush.msra.mxu0 0.0
        %4883 = vmatpush.msra.mxu0 0.0
        %4884 = vmatpush.msra.mxu0 0.0
        %4885 = vmatpush.msra.mxu0 0.0
        %4886 = vmatpush.msra.mxu0 0.0
        %4887 = vmatpush.msra.mxu0 0.0
        %4888 = vmatpush.msra.mxu0 0.0
        %4889 = vmatpush.msra.mxu0 0.0
        %4890 = vmatpush.msra.mxu0 0.0
        %4891 = vmatpush.msra.mxu0 0.0
        %4892 = vmatpush.msra.mxu0 0.0
        %4893 = vmatpush.msra.mxu0 0.0
        %4894 = vmatpush.msra.mxu0 0.0
        %4895 = vmatpush.msra.mxu0 0.0
        %4896 = vmatpush.msra.mxu0 %v4880
        %4897 = vmatpush.msra.mxu0 %v4870
        %4898 = vmatmul.f32.gmra.mxu0 %v4875
        %v4899 = vpop.f32.mrf.mxu0
        %v4900 = vadd.f32 0.0, %v4899
        %4901 = vmatmul.f32.gmra.mxu0 %v4878
        %v4902 = vpop.f32.mrf.mxu0
        %v4903 = vadd.f32 0.0, %v4902
        %4904 = vdwg.mxu0
        %v4905 = vrcp.pop %v4864
        %v4906 = vmul.f32 %v4864, %v4905
        %v4907 = vsub.f32 1.0, %v4906
        %v4908 = vmul.f32 %v4905, %v4907
        %v4909 = vadd.f32 %v4905, %v4908
        %vm4910 = vweird.f32 %v4864
        %vm4911 = vweird.f32 %v4905
        %vm4912 = vmor %vm4910, %vm4911
        %v4913 = vsel %vm4912, %v4905, %v4909
        %v4914 = vand.u32 2147483647, %v4864
        %vm4915 = vcmp.eq.f32.partialorder %v4914, 8.507059e+37
        %v4916 = vand.u32 %v4864, 2147483648
        %v4917 = vor.u32 1.1754944e-38, %v4916
        %v4918 = vsel %vm4915, %v4917, %v4913
        %v4919 = vmul.f32 %v4900, %v4918
        %v4920 = vrcp.pop %v4867
        %v4921 = vmul.f32 %v4867, %v4920
        %v4922 = vsub.f32 1.0, %v4921
        %v4923 = vmul.f32 %v4920, %v4922
        %v4924 = vadd.f32 %v4920, %v4923
        %vm4925 = vweird.f32 %v4867
        %vm4926 = vweird.f32 %v4920
        %vm4927 = vmor %vm4925, %vm4926
        %v4928 = vsel %vm4927, %v4920, %v4924
        %v4929 = vand.u32 2147483647, %v4867
        %vm4930 = vcmp.eq.f32.partialorder %v4929, 8.507059e+37
        %v4931 = vand.u32 %v4867, 2147483648
        %v4932 = vor.u32 1.1754944e-38, %v4931
        %v4933 = vsel %vm4930, %v4932, %v4928
        %v4934 = vmul.f32 %v4903, %v4933
        %4937 = vrot.lane.b32.xlu0 %v4919, 16
        %v4938 = vpop.permute.xlu0 %4937
        %4939 = vrot.lane.b32.xlu0 %v4934, 16
        %v4940 = vpop.permute.xlu0 %4939
        %v4943 = vsel %vm1756, %v4801, %v4938
        %v4944 = vsel %vm1756, %v4816, %v4940
        %v4946 = vperm.slane %v4612, 0
        %v4949 = vsel %vm1583, %v4943, 0
        %v4952 = vsel %vm1583, %v4944, 0
        %4954 = vmatpush.msra.mxu0 0.0
        %4955 = vmatpush.msra.mxu0 0.0
        %4956 = vmatpush.msra.mxu0 0.0
        %4957 = vmatpush.msra.mxu0 0.0
        %4958 = vmatpush.msra.mxu0 0.0
        %4959 = vmatpush.msra.mxu0 0.0
        %4960 = vmatpush.msra.mxu0 0.0
        %4961 = vmatpush.msra.mxu0 0.0
        %4962 = vmatpush.msra.mxu0 0.0
        %4963 = vmatpush.msra.mxu0 0.0
        %4964 = vmatpush.msra.mxu0 0.0
        %4965 = vmatpush.msra.mxu0 0.0
        %4966 = vmatpush.msra.mxu0 %v4610
        %4967 = vmatpush.msra.mxu0 %v4609
        %4968 = vmatpush.msra.mxu0 %v4608
        %4969 = vmatpush.msra.mxu0 %v4607
        %4970 = vmatmul.f32.gmra.mxu0 %v4949
        %v4971 = vpop.f32.mrf.mxu0
        %v4972 = vadd.f32 %v4946, %v4971
        %4973 = vmatmul.f32.gmra.mxu0 %v4952
        %v4974 = vpop.f32.mrf.mxu0
        %v4975 = vadd.f32 %v4946, %v4974
        %4976 = vdwg.mxu0
        %v4977 = vadd.f32 %v4531, %v4972
        %v4978 = vadd.f32 %v2797, %v4975
        %s4979 = scalar_lea.vmem %s19, 2
        %v4980 = vld [vmem:[%s4979] sm:$0x1]
        %s4981 = scalar_lea.vmem %s21, 2
        %v4982 = vld [vmem:[%s4981] sm:$0x1]
        %v4983 = vsel %vm1583, %v4977, 0.0
        %4984 = vadd.xlane.f32.xlu0 %v4983
        %v4985 = vpop.xlane.xlu0 %4984
        %v4986 = vsel %vm1587, %v4978, 0.0
        %4987 = vadd.xlane.f32.xlu0 %v4986
        %v4988 = vpop.xlane.xlu0 %4987
        %v4989 = vmul.f32 %v4985, %v1597
        %v4990 = vmul.f32 %v4988, %v1597
        %v4991 = vsub.f32 %v4977, %v4989
        %v4992 = vsub.f32 %v4978, %v4990
        %v4993 = vmul.f32 %v4991, %v4991
        %v4994 = vmul.f32 %v4992, %v4992
        %v4995 = vsel %vm1583, %v4993, 0.0
        %4996 = vadd.xlane.f32.xlu0 %v4995
        %v4997 = vpop.xlane.xlu0 %4996
        %v4998 = vsel %vm1587, %v4994, 0.0
        %4999 = vadd.xlane.f32.xlu0 %v4998
        %v5000 = vpop.xlane.xlu0 %4999
        %v5001 = vmul.f32 %v4997, %v1597
        %v5002 = vmul.f32 %v5000, %v1597
        %v5003 = vadd.f32 %v5001, 1e-05
        %v5004 = vadd.f32 %v5002, 1e-05
        %v5005 = vrsqrt.pop %v5003
        %v5006 = vmul.f32 %v5005, %v5003
        %v5007 = vmul.f32 %v5006, %v5005
        %v5008 = vmul.f32 0.5, %v5007
        %v5009 = vsub.f32 1.5, %v5008
        %v5010 = vmul.f32 %v5005, %v5009
        %vm5011 = vweird.f32 %v5003
        %vm5012 = vweird.f32 %v5005
        %vm5013 = vmor %vm5011, %vm5012
        %v5014 = vsel %vm5013, %v5005, %v5010
        %v5015 = vrsqrt.pop %v5004
        %v5016 = vmul.f32 %v5015, %v5004
        %v5017 = vmul.f32 %v5016, %v5015
        %v5018 = vmul.f32 0.5, %v5017
        %v5019 = vsub.f32 1.5, %v5018
        %v5020 = vmul.f32 %v5015, %v5019
        %vm5021 = vweird.f32 %v5004
        %vm5022 = vweird.f32 %v5015
        %vm5023 = vmor %vm5021, %vm5022
        %v5024 = vsel %vm5023, %v5015, %v5020
        %v5025 = vmul.f32 %v4991, %v5014
        %v5026 = vmul.f32 %v4992, %v5024
        %v5028 = vperm.slane %v4980, 0
        %v5030 = vmul.f32 %v5025, %v5028
        %v5031 = vmul.f32 %v5026, %v5028
        %v5033 = vperm.slane %v4982, 0
        %v5035 = vadd.f32 %v5030, %v5033
        %v5036 = vadd.f32 %v5031, %v5033
        %s5037 = scalar_lea.vmem [#allocation4], 64
        %v5038 = vld [vmem:[%s5037] sm:$0xff]
        %v5039 = vld [vmem:[%s5037 + $0x8] sm:$0xff]
        %v5040 = vld [vmem:[%s5037 + $0x10] sm:$0xff]
        %v5041 = vld [vmem:[%s5037 + $0x18] sm:$0xff]
        %s5042 = scalar_lea.vmem %s25, 2
        %v5043 = vld [vmem:[%s5042] sm:$0x1]
        %v5045 = vperm.slane %v5043, 0
        %v5048 = vsel %vm1583, %v5035, 0
        %v5051 = vsel %vm1583, %v5036, 0
        %5053 = vmatpush.msra.mxu0 0.0
        %5054 = vmatpush.msra.mxu0 0.0
        %5055 = vmatpush.msra.mxu0 0.0
        %5056 = vmatpush.msra.mxu0 0.0
        %5057 = vmatpush.msra.mxu0 0.0
        %5058 = vmatpush.msra.mxu0 0.0
        %5059 = vmatpush.msra.mxu0 0.0
        %5060 = vmatpush.msra.mxu0 0.0
        %5061 = vmatpush.msra.mxu0 0.0
        %5062 = vmatpush.msra.mxu0 0.0
        %5063 = vmatpush.msra.mxu0 0.0
        %5064 = vmatpush.msra.mxu0 0.0
        %5065 = vmatpush.msra.mxu0 %v5041
        %5066 = vmatpush.msra.mxu0 %v5040
        %5067 = vmatpush.msra.mxu0 %v5039
        %5068 = vmatpush.msra.mxu0 %v5038
        %5069 = vmatmul.f32.gmra.mxu0 %v5048
        %v5070 = vpop.f32.mrf.mxu0
        %v5071 = vadd.f32 %v5045, %v5070
        %5072 = vmatmul.f32.gmra.mxu0 %v5051
        %v5073 = vpop.f32.mrf.mxu0
        %v5074 = vadd.f32 %v5045, %v5073
        %5075 = vdwg.mxu0
        %v5076 = vmul.f32 %v5071, %v5071
        %v5077 = vmul.f32 %v5074, %v5074
        %v5078 = vmul.f32 %v5071, %v5076
        %v5079 = vmul.f32 %v5074, %v5077
        %v5080 = vmul.f32 %v5078, 0.044715
        %v5081 = vmul.f32 %v5079, 0.044715
        %v5082 = vadd.f32 %v5071, %v5080
        %v5083 = vadd.f32 %v5074, %v5081
        %v5084 = vmul.f32 %v5082, 0.7978846
        %v5085 = vmul.f32 %v5083, 0.7978846
        %v5086 = vtanh.pop %v5084
        %v5087 = vtanh.pop %v5085
        %v5088 = vadd.f32 %v5086, 1.0
        %v5089 = vadd.f32 %v5087, 1.0
        %v5090 = vmul.f32 %v5088, 0.5
        %v5091 = vmul.f32 %v5089, 0.5
        %v5092 = vmul.f32 %v5071, %v5090
        %v5093 = vmul.f32 %v5074, %v5091
        %s5094 = scalar_lea.vmem %s27, 128
        %v5095 = vld [vmem:[%s5094] sm:$0xff]
        %v5096 = vld [vmem:[%s5094 + $0x8] sm:$0xff]
        %v5097 = vld [vmem:[%s5094 + $0x10] sm:$0xff]
        %v5098 = vld [vmem:[%s5094 + $0x18] sm:$0xff]
        %v5099 = vld [vmem:[%s5094 + $0x20] sm:$0xff]
        %v5100 = vld [vmem:[%s5094 + $0x28] sm:$0xff]
        %v5101 = vld [vmem:[%s5094 + $0x30] sm:$0xff]
        %v5102 = vld [vmem:[%s5094 + $0x38] sm:$0xff]
        %v5104 = vsel %vm2152, %v5092, 0
        %v5107 = vsel %vm2152, %v5093, 0
        %5109 = vmatpush.msra.mxu0 0.0
        %5110 = vmatpush.msra.mxu0 0.0
        %5111 = vmatpush.msra.mxu0 0.0
        %5112 = vmatpush.msra.mxu0 0.0
        %5113 = vmatpush.msra.mxu0 0.0
        %5114 = vmatpush.msra.mxu0 0.0
        %5115 = vmatpush.msra.mxu0 0.0
        %5116 = vmatpush.msra.mxu0 0.0
        %5117 = vmatpush.msra.mxu0 %v5102
        %5118 = vmatpush.msra.mxu0 %v5101
        %5119 = vmatpush.msra.mxu0 %v5100
        %5120 = vmatpush.msra.mxu0 %v5099
        %5121 = vmatpush.msra.mxu0 %v5098
        %5122 = vmatpush.msra.mxu0 %v5097
        %5123 = vmatpush.msra.mxu0 %v5096
        %5124 = vmatpush.msra.mxu0 %v5095
        %5125 = vmatmul.f32.gmra.mxu0 %v5104
        %v5126 = vpop.f32.mrf.mxu0
        %v5127 = vadd.f32 0.0, %v5126
        %5128 = vmatmul.f32.gmra.mxu0 %v5107
        %v5129 = vpop.f32.mrf.mxu0
        %v5130 = vadd.f32 0.0, %v5129
        %5131 = vdwg.mxu0
        %v5132 = vadd.f32 %v4977, %v5127
        %v5133 = vadd.f32 %v4978, %v5130
        %s5134 = scalar_lea.vmem %s29, 2
        %v5135 = vld [vmem:[%s5134] sm:$0x1]
        %v5137 = vperm.slane %v5135, 0
        %v5139 = vadd.f32 %v5132, %v5137
        %v5140 = vadd.f32 %v5133, %v5137
        %s5141 = scalar_lea.vmem %s5, 3
        %v5142 = vld [vmem:[%s5141] sm:$0x1]
        %s5143 = scalar_lea.vmem %s7, 3
        %v5144 = vld [vmem:[%s5143] sm:$0x1]
        %v5145 = vsel %vm1583, %v5139, 0.0
        %5146 = vadd.xlane.f32.xlu0 %v5145
        %v5147 = vpop.xlane.xlu0 %5146
        %v5148 = vsel %vm1587, %v5140, 0.0
        %5149 = vadd.xlane.f32.xlu0 %v5148
        %v5150 = vpop.xlane.xlu0 %5149
        %v5151 = vmul.f32 %v5147, %v1597
        %v5152 = vmul.f32 %v5150, %v1597
        %v5153 = vsub.f32 %v5139, %v5151
        %v5154 = vsub.f32 %v5140, %v5152
        %v5155 = vmul.f32 %v5153, %v5153
        %v5156 = vmul.f32 %v5154, %v5154
        %v5157 = vsel %vm1583, %v5155, 0.0
        %5158 = vadd.xlane.f32.xlu0 %v5157
        %v5159 = vpop.xlane.xlu0 %5158
        %v5160 = vsel %vm1587, %v5156, 0.0
        %5161 = vadd.xlane.f32.xlu0 %v5160
        %v5162 = vpop.xlane.xlu0 %5161
        %v5163 = vmul.f32 %v5159, %v1597
        %v5164 = vmul.f32 %v5162, %v1597
        %v5165 = vadd.f32 %v5163, 1e-05
        %v5166 = vadd.f32 %v5164, 1e-05
        %v5167 = vrsqrt.pop %v5165
        %v5168 = vmul.f32 %v5167, %v5165
        %v5169 = vmul.f32 %v5168, %v5167
        %v5170 = vmul.f32 0.5, %v5169
        %v5171 = vsub.f32 1.5, %v5170
        %v5172 = vmul.f32 %v5167, %v5171
        %vm5173 = vweird.f32 %v5165
        %vm5174 = vweird.f32 %v5167
        %vm5175 = vmor %vm5173, %vm5174
        %v5176 = vsel %vm5175, %v5167, %v5172
        %v5177 = vrsqrt.pop %v5166
        %v5178 = vmul.f32 %v5177, %v5166
        %v5179 = vmul.f32 %v5178, %v5177
        %v5180 = vmul.f32 0.5, %v5179
        %v5181 = vsub.f32 1.5, %v5180
        %v5182 = vmul.f32 %v5177, %v5181
        %vm5183 = vweird.f32 %v5166
        %vm5184 = vweird.f32 %v5177
        %vm5185 = vmor %vm5183, %vm5184
        %v5186 = vsel %vm5185, %v5177, %v5182
        %v5187 = vmul.f32 %v5153, %v5176
        %v5188 = vmul.f32 %v5154, %v5186
        %v5190 = vperm.slane %v5142, 0
        %v5192 = vmul.f32 %v5187, %v5190
        %v5193 = vmul.f32 %v5188, %v5190
        %v5195 = vperm.slane %v5144, 0
        %v5197 = vadd.f32 %v5192, %v5195
        %v5198 = vadd.f32 %v5193, %v5195
        %s5199 = scalar_lea.vmem %s9, 96
        %v5200 = vld [vmem:[%s5199] sm:$0xff]
        %v5201 = vld [vmem:[%s5199 + $0x8] sm:$0xff]
        %v5202 = vld [vmem:[%s5199 + $0x10] sm:$0xff]
        %v5203 = vld [vmem:[%s5199 + $0x18] sm:$0xff]
        %s5204 = scalar_lea.vmem %s11, 96
        %v5205 = vld [vmem:[%s5204] sm:$0xff]
        %v5206 = vld [vmem:[%s5204 + $0x8] sm:$0xff]
        %v5207 = vld [vmem:[%s5204 + $0x10] sm:$0xff]
        %v5208 = vld [vmem:[%s5204 + $0x18] sm:$0xff]
        %s5209 = scalar_lea.vmem %s13, 96
        %v5210 = vld [vmem:[%s5209] sm:$0xff]
        %v5211 = vld [vmem:[%s5209 + $0x8] sm:$0xff]
        %v5212 = vld [vmem:[%s5209 + $0x10] sm:$0xff]
        %v5213 = vld [vmem:[%s5209 + $0x18] sm:$0xff]
        %s5214 = scalar_lea.vmem [#allocation2], 96
        %v5215 = vld [vmem:[%s5214] sm:$0xff]
        %v5216 = vld [vmem:[%s5214 + $0x8] sm:$0xff]
        %v5217 = vld [vmem:[%s5214 + $0x10] sm:$0xff]
        %v5218 = vld [vmem:[%s5214 + $0x18] sm:$0xff]
        %s5219 = scalar_lea.vmem %s17, 3
        %v5220 = vld [vmem:[%s5219] sm:$0x1]
        %v5222 = vsel %vm1583, %v5197, 0
        %v5225 = vsel %vm1583, %v5198, 0
        %5227 = vmatpush.msra.mxu0 0.0
        %5228 = vmatpush.msra.mxu0 0.0
        %5229 = vmatpush.msra.mxu0 0.0
        %5230 = vmatpush.msra.mxu0 0.0
        %5231 = vmatpush.msra.mxu0 0.0
        %5232 = vmatpush.msra.mxu0 0.0
        %5233 = vmatpush.msra.mxu0 0.0
        %5234 = vmatpush.msra.mxu0 0.0
        %5235 = vmatpush.msra.mxu0 0.0
        %5236 = vmatpush.msra.mxu0 0.0
        %5237 = vmatpush.msra.mxu0 0.0
        %5238 = vmatpush.msra.mxu0 0.0
        %5239 = vmatpush.msra.mxu0 %v5203
        %5240 = vmatpush.msra.mxu0 %v5202
        %5241 = vmatpush.msra.mxu0 %v5201
        %5242 = vmatpush.msra.mxu0 %v5200
        %5243 = vmatmul.f32.gmra.mxu0 %v5222
        %v5244 = vpop.f32.mrf.mxu0
        %v5245 = vadd.f32 0.0, %v5244
        %5246 = vmatmul.f32.gmra.mxu0 %v5225
        %v5247 = vpop.f32.mrf.mxu0
        %v5248 = vadd.f32 0.0, %v5247
        %5249 = vdwg.mxu0
        %v5251 = vsel %vm1583, %v5205, 0
        %v5254 = vsel %vm1583, %v5206, 0
        %v5257 = vsel %vm1583, %v5207, 0
        %v5260 = vsel %vm1583, %v5208, 0
        %5262 = vmatpush.xpose.msra.mxu0 0.0
        %5263 = vmatpush.xpose.msra.mxu0 0.0
        %5264 = vmatpush.xpose.msra.mxu0 0.0
        %5265 = vmatpush.xpose.msra.mxu0 0.0
        %5266 = vmatpush.xpose.msra.mxu0 0.0
        %5267 = vmatpush.xpose.msra.mxu0 0.0
        %5268 = vmatpush.xpose.msra.mxu0 0.0
        %5269 = vmatpush.xpose.msra.mxu0 0.0
        %5270 = vmatpush.xpose.msra.mxu0 0.0
        %5271 = vmatpush.xpose.msra.mxu0 0.0
        %5272 = vmatpush.xpose.msra.mxu0 0.0
        %5273 = vmatpush.xpose.msra.mxu0 0.0
        %5274 = vmatpush.xpose.msra.mxu0 0.0
        %5275 = vmatpush.xpose.msra.mxu0 0.0
        %5276 = vmatpush.xpose.msra.mxu0 %v5225
        %5277 = vmatpush.xpose.msra.mxu0 %v5222
        %5278 = vmatmul.f32.gmra.mxu0 %v5251
        %v5279 = vpop.f32.mrf.mxu0
        %v5280 = vadd.f32 0.0, %v5279
        %5281 = vmatmul.f32.gmra.mxu0 %v5254
        %v5282 = vpop.f32.mrf.mxu0
        %v5283 = vadd.f32 0.0, %v5282
        %5284 = vmatmul.f32.gmra.mxu0 %v5257
        %v5285 = vpop.f32.mrf.mxu0
        %v5286 = vadd.f32 0.0, %v5285
        %5287 = vmatmul.f32.gmra.mxu0 %v5260
        %v5288 = vpop.f32.mrf.mxu0
        %v5289 = vadd.f32 0.0, %v5288
        %5290 = vdwg.mxu0
        %5291 = vmatpush.msra.mxu0 0.0
        %5292 = vmatpush.msra.mxu0 0.0
        %5293 = vmatpush.msra.mxu0 0.0
        %5294 = vmatpush.msra.mxu0 0.0
        %5295 = vmatpush.msra.mxu0 0.0
        %5296 = vmatpush.msra.mxu0 0.0
        %5297 = vmatpush.msra.mxu0 0.0
        %5298 = vmatpush.msra.mxu0 0.0
        %5299 = vmatpush.msra.mxu0 0.0
        %5300 = vmatpush.msra.mxu0 0.0
        %5301 = vmatpush.msra.mxu0 0.0
        %5302 = vmatpush.msra.mxu0 0.0
        %5303 = vmatpush.msra.mxu0 %v5213
        %5304 = vmatpush.msra.mxu0 %v5212
        %5305 = vmatpush.msra.mxu0 %v5211
        %5306 = vmatpush.msra.mxu0 %v5210
        %5307 = vmatmul.f32.gmra.mxu0 %v5222
        %v5308 = vpop.f32.mrf.mxu0
        %v5309 = vadd.f32 0.0, %v5308
        %5310 = vmatmul.f32.gmra.mxu0 %v5225
        %v5311 = vpop.f32.mrf.mxu0
        %v5312 = vadd.f32 0.0, %v5311
        %5313 = vdwg.mxu0
        %v5315 = vsel %vm1756, %v5245, 0
        %v5318 = vsel %vm1756, %v5248, 0
        %5320 = vmatpush.msra.mxu0 0.0
        %5321 = vmatpush.msra.mxu0 0.0
        %5322 = vmatpush.msra.mxu0 0.0
        %5323 = vmatpush.msra.mxu0 0.0
        %5324 = vmatpush.msra.mxu0 0.0
        %5325 = vmatpush.msra.mxu0 0.0
        %5326 = vmatpush.msra.mxu0 0.0
        %5327 = vmatpush.msra.mxu0 0.0
        %5328 = vmatpush.msra.mxu0 0.0
        %5329 = vmatpush.msra.mxu0 0.0
        %5330 = vmatpush.msra.mxu0 0.0
        %5331 = vmatpush.msra.mxu0 0.0
        %5332 = vmatpush.msra.mxu0 0.0
        %5333 = vmatpush.msra.mxu0 0.0
        %5334 = vmatpush.msra.mxu0 %v5283
        %5335 = vmatpush.msra.mxu0 %v5280
        %5336 = vmatmul.f32.gmra.mxu0 %v5315
        %v5337 = vpop.f32.mrf.mxu0
        %v5338 = vadd.f32 0.0, %v5337
        %5339 = vmatmul.f32.gmra.mxu0 %v5318
        %v5340 = vpop.f32.mrf.mxu0
        %v5341 = vadd.f32 0.0, %v5340
        %5342 = vdwg.mxu0
        %v5343 = vmul.f32 %v5338, 0.25
        %v5344 = vmul.f32 %v5341, 0.25
        %v5345 = vsel %vm1788, %v5343, -inf
        %5346 = vmax.xlane.f32.xlu0 %v5345
        %v5347 = vpop.xlane.xlu0 %5346
        %v5348 = vsel %vm1792, %v5344, -inf
        %5349 = vmax.xlane.f32.xlu0 %v5348
        %v5350 = vpop.xlane.xlu0 %5349
        %v5351 = vsub.f32 %v5343, %v5347
        %v5352 = vsub.f32 %v5344, %v5350
        %v5353 = vmul.f32 %v5351, 1.442695
        %v5354 = vpow.pop %v5353
        %v5355 = vmul.f32 %v5352, 1.442695
        %v5356 = vpow.pop %v5355
        %v5357 = vsel %vm1788, %v5354, 0.0
        %5358 = vadd.xlane.f32.xlu0 %v5357
        %v5359 = vpop.xlane.xlu0 %5358
        %v5360 = vsel %vm1792, %v5356, 0.0
        %5361 = vadd.xlane.f32.xlu0 %v5360
        %v5362 = vpop.xlane.xlu0 %5361
        %v5364 = vsel %vm1788, %v5354, 0
        %v5367 = vsel %vm1788, %v5356, 0
        %v5370 = vsel %vm1814, %v5312, 0
        %5372 = vmatpush.msra.mxu0 0.0
        %5373 = vmatpush.msra.mxu0 0.0
        %5374 = vmatpush.msra.mxu0 0.0
        %5375 = vmatpush.msra.mxu0 0.0
        %5376 = vmatpush.msra.mxu0 0.0
        %5377 = vmatpush.msra.mxu0 0.0
        %5378 = vmatpush.msra.mxu0 0.0
        %5379 = vmatpush.msra.mxu0 0.0
        %5380 = vmatpush.msra.mxu0 0.0
        %5381 = vmatpush.msra.mxu0 0.0
        %5382 = vmatpush.msra.mxu0 0.0
        %5383 = vmatpush.msra.mxu0 0.0
        %5384 = vmatpush.msra.mxu0 0.0
        %5385 = vmatpush.msra.mxu0 0.0
        %5386 = vmatpush.msra.mxu0 %v5370
        %5387 = vmatpush.msra.mxu0 %v5309
        %5388 = vmatmul.f32.gmra.mxu0 %v5364
        %v5389 = vpop.f32.mrf.mxu0
        %v5390 = vadd.f32 0.0, %v5389
        %5391 = vmatmul.f32.gmra.mxu0 %v5367
        %v5392 = vpop.f32.mrf.mxu0
        %v5393 = vadd.f32 0.0, %v5392
        %5394 = vdwg.mxu0
        %v5395 = vrcp.pop %v5359
        %v5396 = vmul.f32 %v5359, %v5395
        %v5397 = vsub.f32 1.0, %v5396
        %v5398 = vmul.f32 %v5395, %v5397
        %v5399 = vadd.f32 %v5395, %v5398
        %vm5400 = vweird.f32 %v5359
        %vm5401 = vweird.f32 %v5395
        %vm5402 = vmor %vm5400, %vm5401
        %v5403 = vsel %vm5402, %v5395, %v5399
        %v5404 = vand.u32 2147483647, %v5359
        %vm5405 = vcmp.eq.f32.partialorder %v5404, 8.507059e+37
        %v5406 = vand.u32 %v5359, 2147483648
        %v5407 = vor.u32 1.1754944e-38, %v5406
        %v5408 = vsel %vm5405, %v5407, %v5403
        %v5409 = vmul.f32 %v5390, %v5408
        %v5410 = vrcp.pop %v5362
        %v5411 = vmul.f32 %v5362, %v5410
        %v5412 = vsub.f32 1.0, %v5411
        %v5413 = vmul.f32 %v5410, %v5412
        %v5414 = vadd.f32 %v5410, %v5413
        %vm5415 = vweird.f32 %v5362
        %vm5416 = vweird.f32 %v5410
        %vm5417 = vmor %vm5415, %vm5416
        %v5418 = vsel %vm5417, %v5410, %v5414
        %v5419 = vand.u32 2147483647, %v5362
        %vm5420 = vcmp.eq.f32.partialorder %v5419, 8.507059e+37
        %v5421 = vand.u32 %v5362, 2147483648
        %v5422 = vor.u32 1.1754944e-38, %v5421
        %v5423 = vsel %vm5420, %v5422, %v5418
        %v5424 = vmul.f32 %v5393, %v5423
        %5425 = vrot.lane.b32.xlu0 %v5245, 112
        %v5426 = vpop.permute.xlu0 %5425
        %5427 = vrot.lane.b32.xlu0 %v5248, 112
        %v5428 = vpop.permute.xlu0 %5427
        %v5429 = vsel %vm1756, %v5426, 0
        %v5431 = vsel %vm1756, %v5428, 0
        %5433 = vmatpush.msra.mxu0 0.0
        %5434 = vmatpush.msra.mxu0 0.0
        %5435 = vmatpush.msra.mxu0 0.0
        %5436 = vmatpush.msra.mxu0 0.0
        %5437 = vmatpush.msra.mxu0 0.0
        %5438 = vmatpush.msra.mxu0 0.0
        %5439 = vmatpush.msra.mxu0 0.0
        %5440 = vmatpush.msra.mxu0 0.0
        %5441 = vmatpush.msra.mxu0 0.0
        %5442 = vmatpush.msra.mxu0 0.0
        %5443 = vmatpush.msra.mxu0 0.0
        %5444 = vmatpush.msra.mxu0 0.0
        %5445 = vmatpush.msra.mxu0 0.0
        %5446 = vmatpush.msra.mxu0 0.0
        %5447 = vmatpush.msra.mxu0 %v5289
        %5448 = vmatpush.msra.mxu0 %v5286
        %5449 = vmatmul.f32.gmra.mxu0 %v5429
        %v5450 = vpop.f32.mrf.mxu0
        %v5451 = vadd.f32 0.0, %v5450
        %5452 = vmatmul.f32.gmra.mxu0 %v5431
        %v5453 = vpop.f32.mrf.mxu0
        %v5454 = vadd.f32 0.0, %v5453
        %5455 = vdwg.mxu0
        %v5456 = vmul.f32 %v5451, 0.25
        %v5457 = vmul.f32 %v5454, 0.25
        %v5458 = vsel %vm1788, %v5456, -inf
        %5459 = vmax.xlane.f32.xlu0 %v5458
        %v5460 = vpop.xlane.xlu0 %5459
        %v5461 = vsel %vm1792, %v5457, -inf
        %5462 = vmax.xlane.f32.xlu0 %v5461
        %v5463 = vpop.xlane.xlu0 %5462
        %v5464 = vsub.f32 %v5456, %v5460
        %v5465 = vsub.f32 %v5457, %v5463
        %v5466 = vmul.f32 %v5464, 1.442695
        %v5467 = vpow.pop %v5466
        %v5468 = vmul.f32 %v5465, 1.442695
        %v5469 = vpow.pop %v5468
        %v5470 = vsel %vm1788, %v5467, 0.0
        %5471 = vadd.xlane.f32.xlu0 %v5470
        %v5472 = vpop.xlane.xlu0 %5471
        %v5473 = vsel %vm1792, %v5469, 0.0
        %5474 = vadd.xlane.f32.xlu0 %v5473
        %v5475 = vpop.xlane.xlu0 %5474
        %5477 = vrot.lane.b32.xlu0 %v5309, 112
        %v5478 = vpop.permute.xlu0 %5477
        %5479 = vrot.lane.b32.xlu0 %v5312, 112
        %v5480 = vpop.permute.xlu0 %5479
        %v5483 = vsel %vm1788, %v5467, 0
        %v5486 = vsel %vm1788, %v5469, 0
        %v5488 = vsel %vm1814, %v5480, 0
        %5490 = vmatpush.msra.mxu0 0.0
        %5491 = vmatpush.msra.mxu0 0.0
        %5492 = vmatpush.msra.mxu0 0.0
        %5493 = vmatpush.msra.mxu0 0.0
        %5494 = vmatpush.msra.mxu0 0.0
        %5495 = vmatpush.msra.mxu0 0.0
        %5496 = vmatpush.msra.mxu0 0.0
        %5497 = vmatpush.msra.mxu0 0.0
        %5498 = vmatpush.msra.mxu0 0.0
        %5499 = vmatpush.msra.mxu0 0.0
        %5500 = vmatpush.msra.mxu0 0.0
        %5501 = vmatpush.msra.mxu0 0.0
        %5502 = vmatpush.msra.mxu0 0.0
        %5503 = vmatpush.msra.mxu0 0.0
        %5504 = vmatpush.msra.mxu0 %v5488
        %5505 = vmatpush.msra.mxu0 %v5478
        %5506 = vmatmul.f32.gmra.mxu0 %v5483
        %v5507 = vpop.f32.mrf.mxu0
        %v5508 = vadd.f32 0.0, %v5507
        %5509 = vmatmul.f32.gmra.mxu0 %v5486
        %v5510 = vpop.f32.mrf.mxu0
        %v5511 = vadd.f32 0.0, %v5510
        %5512 = vdwg.mxu0
        %v5513 = vrcp.pop %v5472
        %v5514 = vmul.f32 %v5472, %v5513
        %v5515 = vsub.f32 1.0, %v5514
        %v5516 = vmul.f32 %v5513, %v5515
        %v5517 = vadd.f32 %v5513, %v5516
        %vm5518 = vweird.f32 %v5472
        %vm5519 = vweird.f32 %v5513
        %vm5520 = vmor %vm5518, %vm5519
        %v5521 = vsel %vm5520, %v5513, %v5517
        %v5522 = vand.u32 2147483647, %v5472
        %vm5523 = vcmp.eq.f32.partialorder %v5522, 8.507059e+37
        %v5524 = vand.u32 %v5472, 2147483648
        %v5525 = vor.u32 1.1754944e-38, %v5524
        %v5526 = vsel %vm5523, %v5525, %v5521
        %v5527 = vmul.f32 %v5508, %v5526
        %v5528 = vrcp.pop %v5475
        %v5529 = vmul.f32 %v5475, %v5528
        %v5530 = vsub.f32 1.0, %v5529
        %v5531 = vmul.f32 %v5528, %v5530
        %v5532 = vadd.f32 %v5528, %v5531
        %vm5533 = vweird.f32 %v5475
        %vm5534 = vweird.f32 %v5528
        %vm5535 = vmor %vm5533, %vm5534
        %v5536 = vsel %vm5535, %v5528, %v5532
        %v5537 = vand.u32 2147483647, %v5475
        %vm5538 = vcmp.eq.f32.partialorder %v5537, 8.507059e+37
        %v5539 = vand.u32 %v5475, 2147483648
        %v5540 = vor.u32 1.1754944e-38, %v5539
        %v5541 = vsel %vm5538, %v5540, %v5536
        %v5542 = vmul.f32 %v5511, %v5541
        %5545 = vrot.lane.b32.xlu0 %v5527, 16
        %v5546 = vpop.permute.xlu0 %5545
        %5547 = vrot.lane.b32.xlu0 %v5542, 16
        %v5548 = vpop.permute.xlu0 %5547
        %v5551 = vsel %vm1756, %v5409, %v5546
        %v5552 = vsel %vm1756, %v5424, %v5548
        %v5554 = vperm.slane %v5220, 0
        %v5557 = vsel %vm1583, %v5551, 0
        %v5560 = vsel %vm1583, %v5552, 0
        %5562 = vmatpush.msra.mxu0 0.0
        %5563 = vmatpush.msra.mxu0 0.0
        %5564 = vmatpush.msra.mxu0 0.0
        %5565 = vmatpush.msra.mxu0 0.0
        %5566 = vmatpush.msra.mxu0 0.0
        %5567 = vmatpush.msra.mxu0 0.0
        %5568 = vmatpush.msra.mxu0 0.0
        %5569 = vmatpush.msra.mxu0 0.0
        %5570 = vmatpush.msra.mxu0 0.0
        %5571 = vmatpush.msra.mxu0 0.0
        %5572 = vmatpush.msra.mxu0 0.0
        %5573 = vmatpush.msra.mxu0 0.0
        %5574 = vmatpush.msra.mxu0 %v5218
        %5575 = vmatpush.msra.mxu0 %v5217
        %5576 = vmatpush.msra.mxu0 %v5216
        %5577 = vmatpush.msra.mxu0 %v5215
        %5578 = vmatmul.f32.gmra.mxu0 %v5557
        %v5579 = vpop.f32.mrf.mxu0
        %v5580 = vadd.f32 %v5554, %v5579
        %5581 = vmatmul.f32.gmra.mxu0 %v5560
        %v5582 = vpop.f32.mrf.mxu0
        %v5583 = vadd.f32 %v5554, %v5582
        %5584 = vdwg.mxu0
        %v5585 = vadd.f32 %v5139, %v5580
        %v5586 = vadd.f32 %v5140, %v5583
        %s5587 = scalar_lea.vmem %s19, 3
        %v5588 = vld [vmem:[%s5587] sm:$0x1]
        %s5589 = scalar_lea.vmem %s21, 3
        %v5590 = vld [vmem:[%s5589] sm:$0x1]
        %v5591 = vsel %vm1583, %v5585, 0.0
        %5592 = vadd.xlane.f32.xlu0 %v5591
        %v5593 = vpop.xlane.xlu0 %5592
        %v5594 = vsel %vm1587, %v5586, 0.0
        %5595 = vadd.xlane.f32.xlu0 %v5594
        %v5596 = vpop.xlane.xlu0 %5595
        %v5597 = vmul.f32 %v5593, %v1597
        %v5598 = vmul.f32 %v5596, %v1597
        %v5599 = vsub.f32 %v5585, %v5597
        %v5600 = vsub.f32 %v5586, %v5598
        %v5601 = vmul.f32 %v5599, %v5599
        %v5602 = vmul.f32 %v5600, %v5600
        %v5603 = vsel %vm1583, %v5601, 0.0
        %5604 = vadd.xlane.f32.xlu0 %v5603
        %v5605 = vpop.xlane.xlu0 %5604
        %v5606 = vsel %vm1587, %v5602, 0.0
        %5607 = vadd.xlane.f32.xlu0 %v5606
        %v5608 = vpop.xlane.xlu0 %5607
        %v5609 = vmul.f32 %v5605, %v1597
        %v5610 = vmul.f32 %v5608, %v1597
        %v5611 = vadd.f32 %v5609, 1e-05
        %v5612 = vadd.f32 %v5610, 1e-05
        %v5613 = vrsqrt.pop %v5611
        %v5614 = vmul.f32 %v5613, %v5611
        %v5615 = vmul.f32 %v5614, %v5613
        %v5616 = vmul.f32 0.5, %v5615
        %v5617 = vsub.f32 1.5, %v5616
        %v5618 = vmul.f32 %v5613, %v5617
        %vm5619 = vweird.f32 %v5611
        %vm5620 = vweird.f32 %v5613
        %vm5621 = vmor %vm5619, %vm5620
        %v5622 = vsel %vm5621, %v5613, %v5618
        %v5623 = vrsqrt.pop %v5612
        %v5624 = vmul.f32 %v5623, %v5612
        %v5625 = vmul.f32 %v5624, %v5623
        %v5626 = vmul.f32 0.5, %v5625
        %v5627 = vsub.f32 1.5, %v5626
        %v5628 = vmul.f32 %v5623, %v5627
        %vm5629 = vweird.f32 %v5612
        %vm5630 = vweird.f32 %v5623
        %vm5631 = vmor %vm5629, %vm5630
        %v5632 = vsel %vm5631, %v5623, %v5628
        %v5633 = vmul.f32 %v5599, %v5622
        %v5634 = vmul.f32 %v5600, %v5632
        %v5636 = vperm.slane %v5588, 0
        %v5638 = vmul.f32 %v5633, %v5636
        %v5639 = vmul.f32 %v5634, %v5636
        %v5641 = vperm.slane %v5590, 0
        %v5643 = vadd.f32 %v5638, %v5641
        %v5644 = vadd.f32 %v5639, %v5641
        %s5645 = scalar_lea.vmem [#allocation4], 96
        %v5646 = vld [vmem:[%s5645] sm:$0xff]
        %v5647 = vld [vmem:[%s5645 + $0x8] sm:$0xff]
        %v5648 = vld [vmem:[%s5645 + $0x10] sm:$0xff]
        %v5649 = vld [vmem:[%s5645 + $0x18] sm:$0xff]
        %s5650 = scalar_lea.vmem %s25, 3
        %v5651 = vld [vmem:[%s5650] sm:$0x1]
        %v5653 = vperm.slane %v5651, 0
        %v5656 = vsel %vm1583, %v5643, 0
        %v5659 = vsel %vm1583, %v5644, 0
        %5661 = vmatpush.msra.mxu0 0.0
        %5662 = vmatpush.msra.mxu0 0.0
        %5663 = vmatpush.msra.mxu0 0.0
        %5664 = vmatpush.msra.mxu0 0.0
        %5665 = vmatpush.msra.mxu0 0.0
        %5666 = vmatpush.msra.mxu0 0.0
        %5667 = vmatpush.msra.mxu0 0.0
        %5668 = vmatpush.msra.mxu0 0.0
        %5669 = vmatpush.msra.mxu0 0.0
        %5670 = vmatpush.msra.mxu0 0.0
        %5671 = vmatpush.msra.mxu0 0.0
        %5672 = vmatpush.msra.mxu0 0.0
        %5673 = vmatpush.msra.mxu0 %v5649
        %5674 = vmatpush.msra.mxu0 %v5648
        %5675 = vmatpush.msra.mxu0 %v5647
        %5676 = vmatpush.msra.mxu0 %v5646
        %5677 = vmatmul.f32.gmra.mxu0 %v5656
        %v5678 = vpop.f32.mrf.mxu0
        %v5679 = vadd.f32 %v5653, %v5678
        %5680 = vmatmul.f32.gmra.mxu0 %v5659
        %v5681 = vpop.f32.mrf.mxu0
        %v5682 = vadd.f32 %v5653, %v5681
        %5683 = vdwg.mxu0
        %v5684 = vmul.f32 %v5679, %v5679
        %v5685 = vmul.f32 %v5682, %v5682
        %v5686 = vmul.f32 %v5679, %v5684
        %v5687 = vmul.f32 %v5682, %v5685
        %v5688 = vmul.f32 %v5686, 0.044715
        %v5689 = vmul.f32 %v5687, 0.044715
        %v5690 = vadd.f32 %v5679, %v5688
        %v5691 = vadd.f32 %v5682, %v5689
        %v5692 = vmul.f32 %v5690, 0.7978846
        %v5693 = vmul.f32 %v5691, 0.7978846
        %v5694 = vtanh.pop %v5692
        %v5695 = vtanh.pop %v5693
        %v5696 = vadd.f32 %v5694, 1.0
        %v5697 = vadd.f32 %v5695, 1.0
        %v5698 = vmul.f32 %v5696, 0.5
        %v5699 = vmul.f32 %v5697, 0.5
        %v5700 = vmul.f32 %v5679, %v5698
        %v5701 = vmul.f32 %v5682, %v5699
        %s5702 = scalar_lea.vmem %s27, 192
        %v5703 = vld [vmem:[%s5702] sm:$0xff]
        %v5704 = vld [vmem:[%s5702 + $0x8] sm:$0xff]
        %v5705 = vld [vmem:[%s5702 + $0x10] sm:$0xff]
        %v5706 = vld [vmem:[%s5702 + $0x18] sm:$0xff]
        %v5707 = vld [vmem:[%s5702 + $0x20] sm:$0xff]
        %v5708 = vld [vmem:[%s5702 + $0x28] sm:$0xff]
        %v5709 = vld [vmem:[%s5702 + $0x30] sm:$0xff]
        %v5710 = vld [vmem:[%s5702 + $0x38] sm:$0xff]
        %v5712 = vsel %vm2152, %v5700, 0
        %v5715 = vsel %vm2152, %v5701, 0
        %5717 = vmatpush.msra.mxu0 0.0
        %5718 = vmatpush.msra.mxu0 0.0
        %5719 = vmatpush.msra.mxu0 0.0
        %5720 = vmatpush.msra.mxu0 0.0
        %5721 = vmatpush.msra.mxu0 0.0
        %5722 = vmatpush.msra.mxu0 0.0
        %5723 = vmatpush.msra.mxu0 0.0
        %5724 = vmatpush.msra.mxu0 0.0
        %5725 = vmatpush.msra.mxu0 %v5710
        %5726 = vmatpush.msra.mxu0 %v5709
        %5727 = vmatpush.msra.mxu0 %v5708
        %5728 = vmatpush.msra.mxu0 %v5707
        %5729 = vmatpush.msra.mxu0 %v5706
        %5730 = vmatpush.msra.mxu0 %v5705
        %5731 = vmatpush.msra.mxu0 %v5704
        %5732 = vmatpush.msra.mxu0 %v5703
        %5733 = vmatmul.f32.gmra.mxu0 %v5712
        %v5734 = vpop.f32.mrf.mxu0
        %v5735 = vadd.f32 0.0, %v5734
        %5736 = vmatmul.f32.gmra.mxu0 %v5715
        %v5737 = vpop.f32.mrf.mxu0
        %v5738 = vadd.f32 0.0, %v5737
        %5739 = vdwg.mxu0
        %v5740 = vadd.f32 %v5585, %v5735
        %v5741 = vadd.f32 %v5586, %v5738
        %s5742 = scalar_lea.vmem %s29, 3
        %v5743 = vld [vmem:[%s5742] sm:$0x1]
        %v5745 = vperm.slane %v5743, 0
        %v5747 = vadd.f32 %v5740, %v5745
        %v5748 = vadd.f32 %v5741, %v5745
        %s5749 = scalar_lea.vmem %s31, 1
        %v5750 = vld [vmem:[%s5749] sm:$0x1]
        %s5751 = scalar_lea.vmem %s33, 1
        %v5752 = vld [vmem:[%s5751] sm:$0x1]
        %v5753 = vsel %vm1583, %v4532, 0.0
        %5754 = vadd.xlane.f32.xlu0 %v5753
        %v5755 = vpop.xlane.xlu0 %5754
        %v5756 = vsel %vm1583, %v3564, 0.0
        %5757 = vadd.xlane.f32.xlu0 %v5756
        %v5758 = vpop.xlane.xlu0 %5757
        %v5759 = vsel %vm1587, %v3565, 0.0
        %5760 = vadd.xlane.f32.xlu0 %v5759
        %v5761 = vpop.xlane.xlu0 %5760
        %v5762 = vmul.f32 %v5755, %v1597
        %v5763 = vmul.f32 %v5758, %v1597
        %v5764 = vmul.f32 %v5761, %v1597
        %v5765 = vsub.f32 %v4532, %v5762
        %v5766 = vsub.f32 %v3564, %v5763
        %v5767 = vsub.f32 %v3565, %v5764
        %v5768 = vmul.f32 %v5765, %v5765
        %v5769 = vmul.f32 %v5766, %v5766
        %v5770 = vmul.f32 %v5767, %v5767
        %v5771 = vsel %vm1583, %v5768, 0.0
        %5772 = vadd.xlane.f32.xlu0 %v5771
        %v5773 = vpop.xlane.xlu0 %5772
        %v5774 = vsel %vm1583, %v5769, 0.0
        %5775 = vadd.xlane.f32.xlu0 %v5774
        %v5776 = vpop.xlane.xlu0 %5775
        %v5777 = vsel %vm1587, %v5770, 0.0
        %5778 = vadd.xlane.f32.xlu0 %v5777
        %v5779 = vpop.xlane.xlu0 %5778
        %v5780 = vmul.f32 %v5773, %v1597
        %v5781 = vmul.f32 %v5776, %v1597
        %v5782 = vmul.f32 %v5779, %v1597
        %v5783 = vadd.f32 %v5780, 1e-05
        %v5784 = vadd.f32 %v5781, 1e-05
        %v5785 = vadd.f32 %v5782, 1e-05
        %v5786 = vrsqrt.pop %v5783
        %v5787 = vmul.f32 %v5786, %v5783
        %v5788 = vmul.f32 %v5787, %v5786
        %v5789 = vmul.f32 0.5, %v5788
        %v5790 = vsub.f32 1.5, %v5789
        %v5791 = vmul.f32 %v5786, %v5790
        %vm5792 = vweird.f32 %v5783
        %vm5793 = vweird.f32 %v5786
        %vm5794 = vmor %vm5792, %vm5793
        %v5795 = vsel %vm5794, %v5786, %v5791
        %v5796 = vrsqrt.pop %v5784
        %v5797 = vmul.f32 %v5796, %v5784
        %v5798 = vmul.f32 %v5797, %v5796
        %v5799 = vmul.f32 0.5, %v5798
        %v5800 = vsub.f32 1.5, %v5799
        %v5801 = vmul.f32 %v5796, %v5800
        %vm5802 = vweird.f32 %v5784
        %vm5803 = vweird.f32 %v5796
        %vm5804 = vmor %vm5802, %vm5803
        %v5805 = vsel %vm5804, %v5796, %v5801
        %v5806 = vrsqrt.pop %v5785
        %v5807 = vmul.f32 %v5806, %v5785
        %v5808 = vmul.f32 %v5807, %v5806
        %v5809 = vmul.f32 0.5, %v5808
        %v5810 = vsub.f32 1.5, %v5809
        %v5811 = vmul.f32 %v5806, %v5810
        %vm5812 = vweird.f32 %v5785
        %vm5813 = vweird.f32 %v5806
        %vm5814 = vmor %vm5812, %vm5813
        %v5815 = vsel %vm5814, %v5806, %v5811
        %v5816 = vmul.f32 %v5765, %v5795
        %v5817 = vmul.f32 %v5766, %v5805
        %v5818 = vmul.f32 %v5767, %v5815
        %v5820 = vperm.slane %v5750, 0
        %v5822 = vmul.f32 %v5816, %v5820
        %v5823 = vmul.f32 %v5817, %v5820
        %v5824 = vmul.f32 %v5818, %v5820
        %v5826 = vperm.slane %v5752, 0
        %v5828 = vadd.f32 %v5822, %v5826
        %v5829 = vadd.f32 %v5823, %v5826
        %v5830 = vadd.f32 %v5824, %v5826
        %s5831 = scalar_lea.vmem %s35, 32
        %v5832 = vld [vmem:[%s5831] sm:$0xff]
        %v5833 = vld [vmem:[%s5831 + $0x8] sm:$0xff]
        %v5834 = vld [vmem:[%s5831 + $0x10] sm:$0xff]
        %v5835 = vld [vmem:[%s5831 + $0x18] sm:$0xff]
        %s5836 = scalar_lea.vmem [#allocation6], 32
        %v5837 = vld [vmem:[%s5836] sm:$0xff]
        %v5838 = vld [vmem:[%s5836 + $0x8] sm:$0xff]
        %v5839 = vld [vmem:[%s5836 + $0x10] sm:$0xff]
        %v5840 = vld [vmem:[%s5836 + $0x18] sm:$0xff]
        %s5841 = scalar_lea.vmem [#allocation7], 32
        %v5842 = vld [vmem:[%s5841] sm:$0xff]
        %v5843 = vld [vmem:[%s5841 + $0x8] sm:$0xff]
        %v5844 = vld [vmem:[%s5841 + $0x10] sm:$0xff]
        %v5845 = vld [vmem:[%s5841 + $0x18] sm:$0xff]
        %s5846 = scalar_lea.vmem [#allocation9], 32
        %v5847 = vld [vmem:[%s5846] sm:$0xff]
        %v5848 = vld [vmem:[%s5846 + $0x8] sm:$0xff]
        %v5849 = vld [vmem:[%s5846 + $0x10] sm:$0xff]
        %v5850 = vld [vmem:[%s5846 + $0x18] sm:$0xff]
        %s5851 = scalar_lea.vmem %s43, 1
        %v5852 = vld [vmem:[%s5851] sm:$0x1]
        %v5854 = vsel %vm1583, %v5828, 0
        %v5857 = vsel %vm1583, %v5829, 0
        %v5860 = vsel %vm1583, %v5830, 0
        %5862 = vmatpush.msra.mxu0 0.0
        %5863 = vmatpush.msra.mxu0 0.0
        %5864 = vmatpush.msra.mxu0 0.0
        %5865 = vmatpush.msra.mxu0 0.0
        %5866 = vmatpush.msra.mxu0 0.0
        %5867 = vmatpush.msra.mxu0 0.0
        %5868 = vmatpush.msra.mxu0 0.0
        %5869 = vmatpush.msra.mxu0 0.0
        %5870 = vmatpush.msra.mxu0 0.0
        %5871 = vmatpush.msra.mxu0 0.0
        %5872 = vmatpush.msra.mxu0 0.0
        %5873 = vmatpush.msra.mxu0 0.0
        %5874 = vmatpush.msra.mxu0 %v5835
        %5875 = vmatpush.msra.mxu0 %v5834
        %5876 = vmatpush.msra.mxu0 %v5833
        %5877 = vmatpush.msra.mxu0 %v5832
        %5878 = vmatmul.f32.gmra.mxu0 %v5854
        %v5879 = vpop.f32.mrf.mxu0
        %v5880 = vadd.f32 0.0, %v5879
        %5881 = vmatmul.f32.gmra.mxu0 %v5857
        %v5882 = vpop.f32.mrf.mxu0
        %v5883 = vadd.f32 0.0, %v5882
        %5884 = vmatmul.f32.gmra.mxu0 %v5860
        %v5885 = vpop.f32.mrf.mxu0
        %v5886 = vadd.f32 0.0, %v5885
        %5887 = vdwg.mxu0
        %v5889 = vsel %vm1583, %v5837, 0
        %v5892 = vsel %vm1583, %v5838, 0
        %v5895 = vsel %vm1583, %v5839, 0
        %v5898 = vsel %vm1583, %v5840, 0
        %5900 = vmatpush.xpose.msra.mxu0 0.0
        %5901 = vmatpush.xpose.msra.mxu0 0.0
        %5902 = vmatpush.xpose.msra.mxu0 0.0
        %5903 = vmatpush.xpose.msra.mxu0 0.0
        %5904 = vmatpush.xpose.msra.mxu0 0.0
        %5905 = vmatpush.xpose.msra.mxu0 0.0
        %5906 = vmatpush.xpose.msra.mxu0 0.0
        %5907 = vmatpush.xpose.msra.mxu0 0.0
        %5908 = vmatpush.xpose.msra.mxu0 0.0
        %5909 = vmatpush.xpose.msra.mxu0 0.0
        %5910 = vmatpush.xpose.msra.mxu0 0.0
        %5911 = vmatpush.xpose.msra.mxu0 0.0
        %5912 = vmatpush.xpose.msra.mxu0 0.0
        %5913 = vmatpush.xpose.msra.mxu0 %v5860
        %5914 = vmatpush.xpose.msra.mxu0 %v5857
        %5915 = vmatpush.xpose.msra.mxu0 %v5854
        %5916 = vmatmul.f32.gmra.mxu0 %v5889
        %v5917 = vpop.f32.mrf.mxu0
        %v5918 = vadd.f32 0.0, %v5917
        %5919 = vmatmul.f32.gmra.mxu0 %v5892
        %v5920 = vpop.f32.mrf.mxu0
        %v5921 = vadd.f32 0.0, %v5920
        %5922 = vmatmul.f32.gmra.mxu0 %v5895
        %v5923 = vpop.f32.mrf.mxu0
        %v5924 = vadd.f32 0.0, %v5923
        %5925 = vmatmul.f32.gmra.mxu0 %v5898
        %v5926 = vpop.f32.mrf.mxu0
        %v5927 = vadd.f32 0.0, %v5926
        %5928 = vdwg.mxu0
        %5929 = vmatpush.msra.mxu0 0.0
        %5930 = vmatpush.msra.mxu0 0.0
        %5931 = vmatpush.msra.mxu0 0.0
        %5932 = vmatpush.msra.mxu0 0.0
        %5933 = vmatpush.msra.mxu0 0.0
        %5934 = vmatpush.msra.mxu0 0.0
        %5935 = vmatpush.msra.mxu0 0.0
        %5936 = vmatpush.msra.mxu0 0.0
        %5937 = vmatpush.msra.mxu0 0.0
        %5938 = vmatpush.msra.mxu0 0.0
        %5939 = vmatpush.msra.mxu0 0.0
        %5940 = vmatpush.msra.mxu0 0.0
        %5941 = vmatpush.msra.mxu0 %v5845
        %5942 = vmatpush.msra.mxu0 %v5844
        %5943 = vmatpush.msra.mxu0 %v5843
        %5944 = vmatpush.msra.mxu0 %v5842
        %5945 = vmatmul.f32.gmra.mxu0 %v5854
        %v5946 = vpop.f32.mrf.mxu0
        %v5947 = vadd.f32 0.0, %v5946
        %5948 = vmatmul.f32.gmra.mxu0 %v5857
        %v5949 = vpop.f32.mrf.mxu0
        %v5950 = vadd.f32 0.0, %v5949
        %5951 = vmatmul.f32.gmra.mxu0 %v5860
        %v5952 = vpop.f32.mrf.mxu0
        %v5953 = vadd.f32 0.0, %v5952
        %5954 = vdwg.mxu0
        %v5956 = vsel %vm1756, %v5880, 0
        %v5959 = vsel %vm1756, %v5883, 0
        %v5962 = vsel %vm1756, %v5886, 0
        %5964 = vmatpush.msra.mxu0 0.0
        %5965 = vmatpush.msra.mxu0 0.0
        %5966 = vmatpush.msra.mxu0 0.0
        %5967 = vmatpush.msra.mxu0 0.0
        %5968 = vmatpush.msra.mxu0 0.0
        %5969 = vmatpush.msra.mxu0 0.0
        %5970 = vmatpush.msra.mxu0 0.0
        %5971 = vmatpush.msra.mxu0 0.0
        %5972 = vmatpush.msra.mxu0 0.0
        %5973 = vmatpush.msra.mxu0 0.0
        %5974 = vmatpush.msra.mxu0 0.0
        %5975 = vmatpush.msra.mxu0 0.0
        %5976 = vmatpush.msra.mxu0 0.0
        %5977 = vmatpush.msra.mxu0 0.0
        %5978 = vmatpush.msra.mxu0 %v5921
        %5979 = vmatpush.msra.mxu0 %v5918
        %5980 = vmatmul.f32.gmra.mxu0 %v5956
        %v5981 = vpop.f32.mrf.mxu0
        %v5982 = vadd.f32 0.0, %v5981
        %5983 = vmatmul.f32.gmra.mxu0 %v5959
        %v5984 = vpop.f32.mrf.mxu0
        %v5985 = vadd.f32 0.0, %v5984
        %5986 = vmatmul.f32.gmra.mxu0 %v5962
        %v5987 = vpop.f32.mrf.mxu0
        %v5988 = vadd.f32 0.0, %v5987
        %5989 = vdwg.mxu0
        %v5990 = vmul.f32 %v5982, 0.25
        %v5991 = vmul.f32 %v5985, 0.25
        %v5992 = vmul.f32 %v5988, 0.25
        %v5993 = vsel %vm3035, %v5990, -inf
        %5994 = vmax.xlane.f32.xlu0 %v5993
        %v5995 = vpop.xlane.xlu0 %5994
        %v5996 = vsel %vm3035, %v5991, -inf
        %5997 = vmax.xlane.f32.xlu0 %v5996
        %v5998 = vpop.xlane.xlu0 %5997
        %v5999 = vsel %vm3042, %v5992, -inf
        %6000 = vmax.xlane.f32.xlu0 %v5999
        %v6001 = vpop.xlane.xlu0 %6000
        %v6002 = vsub.f32 %v5990, %v5995
        %v6003 = vsub.f32 %v5991, %v5998
        %v6004 = vsub.f32 %v5992, %v6001
        %v6005 = vmul.f32 %v6002, 1.442695
        %v6006 = vpow.pop %v6005
        %v6007 = vmul.f32 %v6003, 1.442695
        %v6008 = vpow.pop %v6007
        %v6009 = vmul.f32 %v6004, 1.442695
        %v6010 = vpow.pop %v6009
        %v6011 = vsel %vm3035, %v6006, 0.0
        %6012 = vadd.xlane.f32.xlu0 %v6011
        %v6013 = vpop.xlane.xlu0 %6012
        %v6014 = vsel %vm3035, %v6008, 0.0
        %6015 = vadd.xlane.f32.xlu0 %v6014
        %v6016 = vpop.xlane.xlu0 %6015
        %v6017 = vsel %vm3042, %v6010, 0.0
        %6018 = vadd.xlane.f32.xlu0 %v6017
        %v6019 = vpop.xlane.xlu0 %6018
        %v6021 = vsel %vm3035, %v6006, 0
        %v6024 = vsel %vm3035, %v6008, 0
        %v6027 = vsel %vm3035, %v6010, 0
        %v6030 = vsel %vm1814, %v5953, 0
        %6032 = vmatpush.msra.mxu0 0.0
        %6033 = vmatpush.msra.mxu0 0.0
        %6034 = vmatpush.msra.mxu0 0.0
        %6035 = vmatpush.msra.mxu0 0.0
        %6036 = vmatpush.msra.mxu0 0.0
        %6037 = vmatpush.msra.mxu0 0.0
        %6038 = vmatpush.msra.mxu0 0.0
        %6039 = vmatpush.msra.mxu0 0.0
        %6040 = vmatpush.msra.mxu0 0.0
        %6041 = vmatpush.msra.mxu0 0.0
        %6042 = vmatpush.msra.mxu0 0.0
        %6043 = vmatpush.msra.mxu0 0.0
        %6044 = vmatpush.msra.mxu0 0.0
        %6045 = vmatpush.msra.mxu0 %v6030
        %6046 = vmatpush.msra.mxu0 %v5950
        %6047 = vmatpush.msra.mxu0 %v5947
        %6048 = vmatmul.f32.gmra.mxu0 %v6021
        %v6049 = vpop.f32.mrf.mxu0
        %v6050 = vadd.f32 0.0, %v6049
        %6051 = vmatmul.f32.gmra.mxu0 %v6024
        %v6052 = vpop.f32.mrf.mxu0
        %v6053 = vadd.f32 0.0, %v6052
        %6054 = vmatmul.f32.gmra.mxu0 %v6027
        %v6055 = vpop.f32.mrf.mxu0
        %v6056 = vadd.f32 0.0, %v6055
        %6057 = vdwg.mxu0
        %v6058 = vrcp.pop %v6013
        %v6059 = vmul.f32 %v6013, %v6058
        %v6060 = vsub.f32 1.0, %v6059
        %v6061 = vmul.f32 %v6058, %v6060
        %v6062 = vadd.f32 %v6058, %v6061
        %vm6063 = vweird.f32 %v6013
        %vm6064 = vweird.f32 %v6058
        %vm6065 = vmor %vm6063, %vm6064
        %v6066 = vsel %vm6065, %v6058, %v6062
        %v6067 = vand.u32 2147483647, %v6013
        %vm6068 = vcmp.eq.f32.partialorder %v6067, 8.507059e+37
        %v6069 = vand.u32 %v6013, 2147483648
        %v6070 = vor.u32 1.1754944e-38, %v6069
        %v6071 = vsel %vm6068, %v6070, %v6066
        %v6072 = vmul.f32 %v6050, %v6071
        %v6073 = vrcp.pop %v6016
        %v6074 = vmul.f32 %v6016, %v6073
        %v6075 = vsub.f32 1.0, %v6074
        %v6076 = vmul.f32 %v6073, %v6075
        %v6077 = vadd.f32 %v6073, %v6076
        %vm6078 = vweird.f32 %v6016
        %vm6079 = vweird.f32 %v6073
        %vm6080 = vmor %vm6078, %vm6079
        %v6081 = vsel %vm6080, %v6073, %v6077
        %v6082 = vand.u32 2147483647, %v6016
        %vm6083 = vcmp.eq.f32.partialorder %v6082, 8.507059e+37
        %v6084 = vand.u32 %v6016, 2147483648
        %v6085 = vor.u32 1.1754944e-38, %v6084
        %v6086 = vsel %vm6083, %v6085, %v6081
        %v6087 = vmul.f32 %v6053, %v6086
        %v6088 = vrcp.pop %v6019
        %v6089 = vmul.f32 %v6019, %v6088
        %v6090 = vsub.f32 1.0, %v6089
        %v6091 = vmul.f32 %v6088, %v6090
        %v6092 = vadd.f32 %v6088, %v6091
        %vm6093 = vweird.f32 %v6019
        %vm6094 = vweird.f32 %v6088
        %vm6095 = vmor %vm6093, %vm6094
        %v6096 = vsel %vm6095, %v6088, %v6092
        %v6097 = vand.u32 2147483647, %v6019
        %vm6098 = vcmp.eq.f32.partialorder %v6097, 8.507059e+37
        %v6099 = vand.u32 %v6019, 2147483648
        %v6100 = vor.u32 1.1754944e-38, %v6099
        %v6101 = vsel %vm6098, %v6100, %v6096
        %v6102 = vmul.f32 %v6056, %v6101
        %6103 = vrot.lane.b32.xlu0 %v5880, 112
        %v6104 = vpop.permute.xlu0 %6103
        %6105 = vrot.lane.b32.xlu0 %v5883, 112
        %v6106 = vpop.permute.xlu0 %6105
        %6107 = vrot.lane.b32.xlu0 %v5886, 112
        %v6108 = vpop.permute.xlu0 %6107
        %v6109 = vsel %vm1756, %v6104, 0
        %v6111 = vsel %vm1756, %v6106, 0
        %v6113 = vsel %vm1756, %v6108, 0
        %6115 = vmatpush.msra.mxu0 0.0
        %6116 = vmatpush.msra.mxu0 0.0
        %6117 = vmatpush.msra.mxu0 0.0
        %6118 = vmatpush.msra.mxu0 0.0
        %6119 = vmatpush.msra.mxu0 0.0
        %6120 = vmatpush.msra.mxu0 0.0
        %6121 = vmatpush.msra.mxu0 0.0
        %6122 = vmatpush.msra.mxu0 0.0
        %6123 = vmatpush.msra.mxu0 0.0
        %6124 = vmatpush.msra.mxu0 0.0
        %6125 = vmatpush.msra.mxu0 0.0
        %6126 = vmatpush.msra.mxu0 0.0
        %6127 = vmatpush.msra.mxu0 0.0
        %6128 = vmatpush.msra.mxu0 0.0
        %6129 = vmatpush.msra.mxu0 %v5927
        %6130 = vmatpush.msra.mxu0 %v5924
        %6131 = vmatmul.f32.gmra.mxu0 %v6109
        %v6132 = vpop.f32.mrf.mxu0
        %v6133 = vadd.f32 0.0, %v6132
        %6134 = vmatmul.f32.gmra.mxu0 %v6111
        %v6135 = vpop.f32.mrf.mxu0
        %v6136 = vadd.f32 0.0, %v6135
        %6137 = vmatmul.f32.gmra.mxu0 %v6113
        %v6138 = vpop.f32.mrf.mxu0
        %v6139 = vadd.f32 0.0, %v6138
        %6140 = vdwg.mxu0
        %v6141 = vmul.f32 %v6133, 0.25
        %v6142 = vmul.f32 %v6136, 0.25
        %v6143 = vmul.f32 %v6139, 0.25
        %v6144 = vsel %vm3035, %v6141, -inf
        %6145 = vmax.xlane.f32.xlu0 %v6144
        %v6146 = vpop.xlane.xlu0 %6145
        %v6147 = vsel %vm3035, %v6142, -inf
        %6148 = vmax.xlane.f32.xlu0 %v6147
        %v6149 = vpop.xlane.xlu0 %6148
        %v6150 = vsel %vm3042, %v6143, -inf
        %6151 = vmax.xlane.f32.xlu0 %v6150
        %v6152 = vpop.xlane.xlu0 %6151
        %v6153 = vsub.f32 %v6141, %v6146
        %v6154 = vsub.f32 %v6142, %v6149
        %v6155 = vsub.f32 %v6143, %v6152
        %v6156 = vmul.f32 %v6153, 1.442695
        %v6157 = vpow.pop %v6156
        %v6158 = vmul.f32 %v6154, 1.442695
        %v6159 = vpow.pop %v6158
        %v6160 = vmul.f32 %v6155, 1.442695
        %v6161 = vpow.pop %v6160
        %v6162 = vsel %vm3035, %v6157, 0.0
        %6163 = vadd.xlane.f32.xlu0 %v6162
        %v6164 = vpop.xlane.xlu0 %6163
        %v6165 = vsel %vm3035, %v6159, 0.0
        %6166 = vadd.xlane.f32.xlu0 %v6165
        %v6167 = vpop.xlane.xlu0 %6166
        %v6168 = vsel %vm3042, %v6161, 0.0
        %6169 = vadd.xlane.f32.xlu0 %v6168
        %v6170 = vpop.xlane.xlu0 %6169
        %6173 = vrot.lane.b32.xlu0 %v5947, 112
        %v6174 = vpop.permute.xlu0 %6173
        %6175 = vrot.lane.b32.xlu0 %v5950, 112
        %v6176 = vpop.permute.xlu0 %6175
        %6177 = vrot.lane.b32.xlu0 %v5953, 112
        %v6178 = vpop.permute.xlu0 %6177
        %v6182 = vsel %vm3035, %v6157, 0
        %v6185 = vsel %vm3035, %v6159, 0
        %v6188 = vsel %vm3035, %v6161, 0
        %v6190 = vsel %vm1814, %v6178, 0
        %6192 = vmatpush.msra.mxu0 0.0
        %6193 = vmatpush.msra.mxu0 0.0
        %6194 = vmatpush.msra.mxu0 0.0
        %6195 = vmatpush.msra.mxu0 0.0
        %6196 = vmatpush.msra.mxu0 0.0
        %6197 = vmatpush.msra.mxu0 0.0
        %6198 = vmatpush.msra.mxu0 0.0
        %6199 = vmatpush.msra.mxu0 0.0
        %6200 = vmatpush.msra.mxu0 0.0
        %6201 = vmatpush.msra.mxu0 0.0
        %6202 = vmatpush.msra.mxu0 0.0
        %6203 = vmatpush.msra.mxu0 0.0
        %6204 = vmatpush.msra.mxu0 0.0
        %6205 = vmatpush.msra.mxu0 %v6190
        %6206 = vmatpush.msra.mxu0 %v6176
        %6207 = vmatpush.msra.mxu0 %v6174
        %6208 = vmatmul.f32.gmra.mxu0 %v6182
        %v6209 = vpop.f32.mrf.mxu0
        %v6210 = vadd.f32 0.0, %v6209
        %6211 = vmatmul.f32.gmra.mxu0 %v6185
        %v6212 = vpop.f32.mrf.mxu0
        %v6213 = vadd.f32 0.0, %v6212
        %6214 = vmatmul.f32.gmra.mxu0 %v6188
        %v6215 = vpop.f32.mrf.mxu0
        %v6216 = vadd.f32 0.0, %v6215
        %6217 = vdwg.mxu0
        %v6218 = vrcp.pop %v6164
        %v6219 = vmul.f32 %v6164, %v6218
        %v6220 = vsub.f32 1.0, %v6219
        %v6221 = vmul.f32 %v6218, %v6220
        %v6222 = vadd.f32 %v6218, %v6221
        %vm6223 = vweird.f32 %v6164
        %vm6224 = vweird.f32 %v6218
        %vm6225 = vmor %vm6223, %vm6224
        %v6226 = vsel %vm6225, %v6218, %v6222
        %v6227 = vand.u32 2147483647, %v6164
        %vm6228 = vcmp.eq.f32.partialorder %v6227, 8.507059e+37
        %v6229 = vand.u32 %v6164, 2147483648
        %v6230 = vor.u32 1.1754944e-38, %v6229
        %v6231 = vsel %vm6228, %v6230, %v6226
        %v6232 = vmul.f32 %v6210, %v6231
        %v6233 = vrcp.pop %v6167
        %v6234 = vmul.f32 %v6167, %v6233
        %v6235 = vsub.f32 1.0, %v6234
        %v6236 = vmul.f32 %v6233, %v6235
        %v6237 = vadd.f32 %v6233, %v6236
        %vm6238 = vweird.f32 %v6167
        %vm6239 = vweird.f32 %v6233
        %vm6240 = vmor %vm6238, %vm6239
        %v6241 = vsel %vm6240, %v6233, %v6237
        %v6242 = vand.u32 2147483647, %v6167
        %vm6243 = vcmp.eq.f32.partialorder %v6242, 8.507059e+37
        %v6244 = vand.u32 %v6167, 2147483648
        %v6245 = vor.u32 1.1754944e-38, %v6244
        %v6246 = vsel %vm6243, %v6245, %v6241
        %v6247 = vmul.f32 %v6213, %v6246
        %v6248 = vrcp.pop %v6170
        %v6249 = vmul.f32 %v6170, %v6248
        %v6250 = vsub.f32 1.0, %v6249
        %v6251 = vmul.f32 %v6248, %v6250
        %v6252 = vadd.f32 %v6248, %v6251
        %vm6253 = vweird.f32 %v6170
        %vm6254 = vweird.f32 %v6248
        %vm6255 = vmor %vm6253, %vm6254
        %v6256 = vsel %vm6255, %v6248, %v6252
        %v6257 = vand.u32 2147483647, %v6170
        %vm6258 = vcmp.eq.f32.partialorder %v6257, 8.507059e+37
        %v6259 = vand.u32 %v6170, 2147483648
        %v6260 = vor.u32 1.1754944e-38, %v6259
        %v6261 = vsel %vm6258, %v6260, %v6256
        %v6262 = vmul.f32 %v6216, %v6261
        %6266 = vrot.lane.b32.xlu0 %v6232, 16
        %v6267 = vpop.permute.xlu0 %6266
        %6268 = vrot.lane.b32.xlu0 %v6247, 16
        %v6269 = vpop.permute.xlu0 %6268
        %6270 = vrot.lane.b32.xlu0 %v6262, 16
        %v6271 = vpop.permute.xlu0 %6270
        %v6275 = vsel %vm1756, %v6072, %v6267
        %v6276 = vsel %vm1756, %v6087, %v6269
        %v6277 = vsel %vm1756, %v6102, %v6271
        %v6279 = vperm.slane %v5852, 0
        %v6282 = vsel %vm1583, %v6275, 0
        %v6285 = vsel %vm1583, %v6276, 0
        %v6288 = vsel %vm1583, %v6277, 0
        %6290 = vmatpush.msra.mxu0 0.0
        %6291 = vmatpush.msra.mxu0 0.0
        %6292 = vmatpush.msra.mxu0 0.0
        %6293 = vmatpush.msra.mxu0 0.0
        %6294 = vmatpush.msra.mxu0 0.0
        %6295 = vmatpush.msra.mxu0 0.0
        %6296 = vmatpush.msra.mxu0 0.0
        %6297 = vmatpush.msra.mxu0 0.0
        %6298 = vmatpush.msra.mxu0 0.0
        %6299 = vmatpush.msra.mxu0 0.0
        %6300 = vmatpush.msra.mxu0 0.0
        %6301 = vmatpush.msra.mxu0 0.0
        %6302 = vmatpush.msra.mxu0 %v5850
        %6303 = vmatpush.msra.mxu0 %v5849
        %6304 = vmatpush.msra.mxu0 %v5848
        %6305 = vmatpush.msra.mxu0 %v5847
        %6306 = vmatmul.f32.gmra.mxu0 %v6282
        %v6307 = vpop.f32.mrf.mxu0
        %v6308 = vadd.f32 %v6279, %v6307
        %6309 = vmatmul.f32.gmra.mxu0 %v6285
        %v6310 = vpop.f32.mrf.mxu0
        %v6311 = vadd.f32 %v6279, %v6310
        %6312 = vmatmul.f32.gmra.mxu0 %v6288
        %v6313 = vpop.f32.mrf.mxu0
        %v6314 = vadd.f32 %v6279, %v6313
        %6315 = vdwg.mxu0
        %v6316 = vadd.f32 %v4532, %v6308
        %v6317 = vadd.f32 %v3564, %v6311
        %v6318 = vadd.f32 %v3565, %v6314
        %s6319 = scalar_lea.vmem %s45, 1
        %v6320 = vld [vmem:[%s6319] sm:$0x1]
        %s6321 = scalar_lea.vmem %s47, 1
        %v6322 = vld [vmem:[%s6321] sm:$0x1]
        %v6323 = vsel %vm1583, %v6316, 0.0
        %6324 = vadd.xlane.f32.xlu0 %v6323
        %v6325 = vpop.xlane.xlu0 %6324
        %v6326 = vsel %vm1583, %v6317, 0.0
        %6327 = vadd.xlane.f32.xlu0 %v6326
        %v6328 = vpop.xlane.xlu0 %6327
        %v6329 = vsel %vm1587, %v6318, 0.0
        %6330 = vadd.xlane.f32.xlu0 %v6329
        %v6331 = vpop.xlane.xlu0 %6330
        %v6332 = vmul.f32 %v6325, %v1597
        %v6333 = vmul.f32 %v6328, %v1597
        %v6334 = vmul.f32 %v6331, %v1597
        %v6335 = vsub.f32 %v6316, %v6332
        %v6336 = vsub.f32 %v6317, %v6333
        %v6337 = vsub.f32 %v6318, %v6334
        %v6338 = vmul.f32 %v6335, %v6335
        %v6339 = vmul.f32 %v6336, %v6336
        %v6340 = vmul.f32 %v6337, %v6337
        %v6341 = vsel %vm1583, %v6338, 0.0
        %6342 = vadd.xlane.f32.xlu0 %v6341
        %v6343 = vpop.xlane.xlu0 %6342
        %v6344 = vsel %vm1583, %v6339, 0.0
        %6345 = vadd.xlane.f32.xlu0 %v6344
        %v6346 = vpop.xlane.xlu0 %6345
        %v6347 = vsel %vm1587, %v6340, 0.0
        %6348 = vadd.xlane.f32.xlu0 %v6347
        %v6349 = vpop.xlane.xlu0 %6348
        %v6350 = vmul.f32 %v6343, %v1597
        %v6351 = vmul.f32 %v6346, %v1597
        %v6352 = vmul.f32 %v6349, %v1597
        %v6353 = vadd.f32 %v6350, 1e-05
        %v6354 = vadd.f32 %v6351, 1e-05
        %v6355 = vadd.f32 %v6352, 1e-05
        %v6356 = vrsqrt.pop %v6353
        %v6357 = vmul.f32 %v6356, %v6353
        %v6358 = vmul.f32 %v6357, %v6356
        %v6359 = vmul.f32 0.5, %v6358
        %v6360 = vsub.f32 1.5, %v6359
        %v6361 = vmul.f32 %v6356, %v6360
        %vm6362 = vweird.f32 %v6353
        %vm6363 = vweird.f32 %v6356
        %vm6364 = vmor %vm6362, %vm6363
        %v6365 = vsel %vm6364, %v6356, %v6361
        %v6366 = vrsqrt.pop %v6354
        %v6367 = vmul.f32 %v6366, %v6354
        %v6368 = vmul.f32 %v6367, %v6366
        %v6369 = vmul.f32 0.5, %v6368
        %v6370 = vsub.f32 1.5, %v6369
        %v6371 = vmul.f32 %v6366, %v6370
        %vm6372 = vweird.f32 %v6354
        %vm6373 = vweird.f32 %v6366
        %vm6374 = vmor %vm6372, %vm6373
        %v6375 = vsel %vm6374, %v6366, %v6371
        %v6376 = vrsqrt.pop %v6355
        %v6377 = vmul.f32 %v6376, %v6355
        %v6378 = vmul.f32 %v6377, %v6376
        %v6379 = vmul.f32 0.5, %v6378
        %v6380 = vsub.f32 1.5, %v6379
        %v6381 = vmul.f32 %v6376, %v6380
        %vm6382 = vweird.f32 %v6355
        %vm6383 = vweird.f32 %v6376
        %vm6384 = vmor %vm6382, %vm6383
        %v6385 = vsel %vm6384, %v6376, %v6381
        %v6386 = vmul.f32 %v6335, %v6365
        %v6387 = vmul.f32 %v6336, %v6375
        %v6388 = vmul.f32 %v6337, %v6385
        %v6390 = vperm.slane %v6320, 0
        %v6392 = vmul.f32 %v6386, %v6390
        %v6393 = vmul.f32 %v6387, %v6390
        %v6394 = vmul.f32 %v6388, %v6390
        %v6396 = vperm.slane %v6322, 0
        %v6398 = vadd.f32 %v6392, %v6396
        %v6399 = vadd.f32 %v6393, %v6396
        %v6400 = vadd.f32 %v6394, %v6396
        %s6401 = scalar_lea.vmem [#allocation10], 32
        %v6402 = vld [vmem:[%s6401] sm:$0xff]
        %v6403 = vld [vmem:[%s6401 + $0x8] sm:$0xff]
        %v6404 = vld [vmem:[%s6401 + $0x10] sm:$0xff]
        %v6405 = vld [vmem:[%s6401 + $0x18] sm:$0xff]
        %s6406 = scalar_lea.vmem %s51, 1
        %v6407 = vld [vmem:[%s6406] sm:$0x1]
        %v6409 = vperm.slane %v6407, 0
        %v6412 = vsel %vm1583, %v6398, 0
        %v6415 = vsel %vm1583, %v6399, 0
        %v6418 = vsel %vm1583, %v6400, 0
        %6420 = vmatpush.msra.mxu0 0.0
        %6421 = vmatpush.msra.mxu0 0.0
        %6422 = vmatpush.msra.mxu0 0.0
        %6423 = vmatpush.msra.mxu0 0.0
        %6424 = vmatpush.msra.mxu0 0.0
        %6425 = vmatpush.msra.mxu0 0.0
        %6426 = vmatpush.msra.mxu0 0.0
        %6427 = vmatpush.msra.mxu0 0.0
        %6428 = vmatpush.msra.mxu0 0.0
        %6429 = vmatpush.msra.mxu0 0.0
        %6430 = vmatpush.msra.mxu0 0.0
        %6431 = vmatpush.msra.mxu0 0.0
        %6432 = vmatpush.msra.mxu0 %v6405
        %6433 = vmatpush.msra.mxu0 %v6404
        %6434 = vmatpush.msra.mxu0 %v6403
        %6435 = vmatpush.msra.mxu0 %v6402
        %6436 = vmatmul.f32.gmra.mxu0 %v6412
        %v6437 = vpop.f32.mrf.mxu0
        %v6438 = vadd.f32 %v6409, %v6437
        %6439 = vmatmul.f32.gmra.mxu0 %v6415
        %v6440 = vpop.f32.mrf.mxu0
        %v6441 = vadd.f32 %v6409, %v6440
        %6442 = vmatmul.f32.gmra.mxu0 %v6418
        %v6443 = vpop.f32.mrf.mxu0
        %v6444 = vadd.f32 %v6409, %v6443
        %6445 = vdwg.mxu0
        %v6446 = vmul.f32 %v6438, %v6438
        %v6447 = vmul.f32 %v6441, %v6441
        %v6448 = vmul.f32 %v6444, %v6444
        %v6449 = vmul.f32 %v6438, %v6446
        %v6450 = vmul.f32 %v6441, %v6447
        %v6451 = vmul.f32 %v6444, %v6448
        %v6452 = vmul.f32 %v6449, 0.044715
        %v6453 = vmul.f32 %v6450, 0.044715
        %v6454 = vmul.f32 %v6451, 0.044715
        %v6455 = vadd.f32 %v6438, %v6452
        %v6456 = vadd.f32 %v6441, %v6453
        %v6457 = vadd.f32 %v6444, %v6454
        %v6458 = vmul.f32 %v6455, 0.7978846
        %v6459 = vmul.f32 %v6456, 0.7978846
        %v6460 = vmul.f32 %v6457, 0.7978846
        %v6461 = vtanh.pop %v6458
        %v6462 = vtanh.pop %v6459
        %v6463 = vtanh.pop %v6460
        %v6464 = vadd.f32 %v6461, 1.0
        %v6465 = vadd.f32 %v6462, 1.0
        %v6466 = vadd.f32 %v6463, 1.0
        %v6467 = vmul.f32 %v6464, 0.5
        %v6468 = vmul.f32 %v6465, 0.5
        %v6469 = vmul.f32 %v6466, 0.5
        %v6470 = vmul.f32 %v6438, %v6467
        %v6471 = vmul.f32 %v6441, %v6468
        %v6472 = vmul.f32 %v6444, %v6469
        %s6473 = scalar_lea.vmem %s53, 64
        %v6474 = vld [vmem:[%s6473] sm:$0xff]
        %v6475 = vld [vmem:[%s6473 + $0x8] sm:$0xff]
        %v6476 = vld [vmem:[%s6473 + $0x10] sm:$0xff]
        %v6477 = vld [vmem:[%s6473 + $0x18] sm:$0xff]
        %v6478 = vld [vmem:[%s6473 + $0x20] sm:$0xff]
        %v6479 = vld [vmem:[%s6473 + $0x28] sm:$0xff]
        %v6480 = vld [vmem:[%s6473 + $0x30] sm:$0xff]
        %v6481 = vld [vmem:[%s6473 + $0x38] sm:$0xff]
        %v6483 = vsel %vm2152, %v6470, 0
        %v6486 = vsel %vm2152, %v6471, 0
        %v6489 = vsel %vm2152, %v6472, 0
        %6491 = vmatpush.msra.mxu0 0.0
        %6492 = vmatpush.msra.mxu0 0.0
        %6493 = vmatpush.msra.mxu0 0.0
        %6494 = vmatpush.msra.mxu0 0.0
        %6495 = vmatpush.msra.mxu0 0.0
        %6496 = vmatpush.msra.mxu0 0.0
        %6497 = vmatpush.msra.mxu0 0.0
        %6498 = vmatpush.msra.mxu0 0.0
        %6499 = vmatpush.msra.mxu0 %v6481
        %6500 = vmatpush.msra.mxu0 %v6480
        %6501 = vmatpush.msra.mxu0 %v6479
        %6502 = vmatpush.msra.mxu0 %v6478
        %6503 = vmatpush.msra.mxu0 %v6477
        %6504 = vmatpush.msra.mxu0 %v6476
        %6505 = vmatpush.msra.mxu0 %v6475
        %6506 = vmatpush.msra.mxu0 %v6474
        %6507 = vmatmul.f32.gmra.mxu0 %v6483
        %v6508 = vpop.f32.mrf.mxu0
        %v6509 = vadd.f32 0.0, %v6508
        %6510 = vmatmul.f32.gmra.mxu0 %v6486
        %v6511 = vpop.f32.mrf.mxu0
        %v6512 = vadd.f32 0.0, %v6511
        %6513 = vmatmul.f32.gmra.mxu0 %v6489
        %v6514 = vpop.f32.mrf.mxu0
        %v6515 = vadd.f32 0.0, %v6514
        %6516 = vdwg.mxu0
        %v6517 = vadd.f32 %v6316, %v6509
        %v6518 = vadd.f32 %v6317, %v6512
        %v6519 = vadd.f32 %v6318, %v6515
        %s6520 = scalar_lea.vmem [#allocation12], 1
        %v6521 = vld [vmem:[%s6520] sm:$0x1]
        %v6523 = vperm.slane %v6521, 0
        %v6525 = vadd.f32 %v6517, %v6523
        %v6526 = vadd.f32 %v6518, %v6523
        %v6527 = vadd.f32 %v6519, %v6523
        %s6528 = scalar_lea.vmem %s57, 1
        %v6529 = vld [vmem:[%s6528] sm:$0x1]
        %s6530 = scalar_lea.vmem %s59, 1
        %v6531 = vld [vmem:[%s6530] sm:$0x1]
        %v6532 = vsel %vm1587, %v5747, 0.0
        %6533 = vadd.xlane.f32.xlu0 %v6532
        %v6534 = vpop.xlane.xlu0 %6533
        %v6535 = vmul.f32 %v6534, %v1597
        %v6536 = vsub.f32 %v5747, %v6535
        %v6537 = vmul.f32 %v6536, %v6536
        %v6538 = vsel %vm1587, %v6537, 0.0
        %6539 = vadd.xlane.f32.xlu0 %v6538
        %v6540 = vpop.xlane.xlu0 %6539
        %v6541 = vmul.f32 %v6540, %v1597
        %v6542 = vadd.f32 %v6541, 1e-05
        %v6543 = vrsqrt.pop %v6542
        %v6544 = vmul.f32 %v6543, %v6542
        %v6545 = vmul.f32 %v6544, %v6543
        %v6546 = vmul.f32 0.5, %v6545
        %v6547 = vsub.f32 1.5, %v6546
        %v6548 = vmul.f32 %v6543, %v6547
        %vm6549 = vweird.f32 %v6542
        %vm6550 = vweird.f32 %v6543
        %vm6551 = vmor %vm6549, %vm6550
        %v6552 = vsel %vm6551, %v6543, %v6548
        %v6553 = vmul.f32 %v6536, %v6552
        %v6554 = vmul.f32 %v6553, %v6529
        %v6555 = vadd.f32 %v6554, %v6531
        %s6556 = scalar_lea.vmem [#allocation13], 32
        %v6557 = vld [vmem:[%s6556] sm:$0xff]
        %v6558 = vld [vmem:[%s6556 + $0x8] sm:$0xff]
        %v6559 = vld [vmem:[%s6556 + $0x10] sm:$0xff]
        %v6560 = vld [vmem:[%s6556 + $0x18] sm:$0xff]
        %s6561 = scalar_lea.vmem [#allocation15], 32
        %v6562 = vld [vmem:[%s6561] sm:$0xff]
        %v6563 = vld [vmem:[%s6561 + $0x8] sm:$0xff]
        %v6564 = vld [vmem:[%s6561 + $0x10] sm:$0xff]
        %v6565 = vld [vmem:[%s6561 + $0x18] sm:$0xff]
        %s6566 = scalar_lea.vmem [#allocation16], 32
        %v6567 = vld [vmem:[%s6566] sm:$0xff]
        %v6568 = vld [vmem:[%s6566 + $0x8] sm:$0xff]
        %v6569 = vld [vmem:[%s6566 + $0x10] sm:$0xff]
        %v6570 = vld [vmem:[%s6566 + $0x18] sm:$0xff]
        %s6571 = scalar_lea.vmem [#allocation18], 32
        %v6572 = vld [vmem:[%s6571] sm:$0xff]
        %v6573 = vld [vmem:[%s6571 + $0x8] sm:$0xff]
        %v6574 = vld [vmem:[%s6571 + $0x10] sm:$0xff]
        %v6575 = vld [vmem:[%s6571 + $0x18] sm:$0xff]
        %s6576 = scalar_lea.vmem %s69, 1
        %v6577 = vld [vmem:[%s6576] sm:$0x1]
        %v6579 = vsel %vm1583, %v6555, 0
        %6581 = vmatpush.msra.mxu0 0.0
        %6582 = vmatpush.msra.mxu0 0.0
        %6583 = vmatpush.msra.mxu0 0.0
        %6584 = vmatpush.msra.mxu0 0.0
        %6585 = vmatpush.msra.mxu0 0.0
        %6586 = vmatpush.msra.mxu0 0.0
        %6587 = vmatpush.msra.mxu0 0.0
        %6588 = vmatpush.msra.mxu0 0.0
        %6589 = vmatpush.msra.mxu0 0.0
        %6590 = vmatpush.msra.mxu0 0.0
        %6591 = vmatpush.msra.mxu0 0.0
        %6592 = vmatpush.msra.mxu0 0.0
        %6593 = vmatpush.msra.mxu0 %v6560
        %6594 = vmatpush.msra.mxu0 %v6559
        %6595 = vmatpush.msra.mxu0 %v6558
        %6596 = vmatpush.msra.mxu0 %v6557
        %6597 = vmatmul.f32.gmra.mxu0 %v6579
        %v6598 = vpop.f32.mrf.mxu0
        %v6599 = vadd.f32 0.0, %v6598
        %6600 = vdwg.mxu0
        %v6601 = vperm.slane %v6555, 0
        %v6602 = vmul.f32 %v6562, %v6601
        %v6603 = vmul.f32 %v6563, %v6601
        %v6604 = vmul.f32 %v6564, %v6601
        %v6605 = vmul.f32 %v6565, %v6601
        %v6606 = vsel %vm1583, %v6602, 0.0
        %6607 = vadd.xlane.f32.xlu0 %v6606
        %v6608 = vpop.xlane.xlu0 %6607
        %v6609 = vsel %vm1583, %v6603, 0.0
        %6610 = vadd.xlane.f32.xlu0 %v6609
        %v6611 = vpop.xlane.xlu0 %6610
        %v6612 = vsel %vm1583, %v6604, 0.0
        %6613 = vadd.xlane.f32.xlu0 %v6612
        %v6614 = vpop.xlane.xlu0 %6613
        %v6615 = vsel %vm1583, %v6605, 0.0
        %6616 = vadd.xlane.f32.xlu0 %v6615
        %v6617 = vpop.xlane.xlu0 %6616
        %v6621 = vrot.slane %v6525, 1
        %v6622 = vrot.slane %v6526, 1
        %v6623 = vsel %vm3652, %v6621, %v6622
        %v6624 = vrot.slane %v6527, 1
        %v6625 = vsel %vm3652, %v6622, %v6624
        %v6627 = vsel %vm1583, %v6562, 0
        %v6630 = vsel %vm1583, %v6563, 0
        %v6633 = vsel %vm1583, %v6564, 0
        %v6636 = vsel %vm1583, %v6565, 0
        %v6638 = vsel %vm1583, %v6623, 0
        %v6640 = vsel %vm1583, %v6625, 0
        %6642 = vmatpush.xpose.msra.mxu0 0.0
        %6643 = vmatpush.xpose.msra.mxu0 0.0
        %6644 = vmatpush.xpose.msra.mxu0 0.0
        %6645 = vmatpush.xpose.msra.mxu0 0.0
        %6646 = vmatpush.xpose.msra.mxu0 0.0
        %6647 = vmatpush.xpose.msra.mxu0 0.0
        %6648 = vmatpush.xpose.msra.mxu0 0.0
        %6649 = vmatpush.xpose.msra.mxu0 0.0
        %6650 = vmatpush.xpose.msra.mxu0 0.0
        %6651 = vmatpush.xpose.msra.mxu0 0.0
        %6652 = vmatpush.xpose.msra.mxu0 0.0
        %6653 = vmatpush.xpose.msra.mxu0 0.0
        %6654 = vmatpush.xpose.msra.mxu0 0.0
        %6655 = vmatpush.xpose.msra.mxu0 0.0
        %6656 = vmatpush.xpose.msra.mxu0 %v6640
        %6657 = vmatpush.xpose.msra.mxu0 %v6638
        %6658 = vmatmul.f32.gmra.mxu0 %v6627
        %v6659 = vpop.f32.mrf.mxu0
        %v6660 = vadd.f32 0.0, %v6659
        %6661 = vmatmul.f32.gmra.mxu0 %v6630
        %v6662 = vpop.f32.mrf.mxu0
        %v6663 = vadd.f32 0.0, %v6662
        %6664 = vmatmul.f32.gmra.mxu0 %v6633
        %v6665 = vpop.f32.mrf.mxu0
        %v6666 = vadd.f32 0.0, %v6665
        %6667 = vmatmul.f32.gmra.mxu0 %v6636
        %v6668 = vpop.f32.mrf.mxu0
        %v6669 = vadd.f32 0.0, %v6668
        %6670 = vdwg.mxu0
        %6671 = vmatpush.msra.mxu0 0.0
        %6672 = vmatpush.msra.mxu0 0.0
        %6673 = vmatpush.msra.mxu0 0.0
        %6674 = vmatpush.msra.mxu0 0.0
        %6675 = vmatpush.msra.mxu0 0.0
        %6676 = vmatpush.msra.mxu0 0.0
        %6677 = vmatpush.msra.mxu0 0.0
        %6678 = vmatpush.msra.mxu0 0.0
        %6679 = vmatpush.msra.mxu0 0.0
        %6680 = vmatpush.msra.mxu0 0.0
        %6681 = vmatpush.msra.mxu0 0.0
        %6682 = vmatpush.msra.mxu0 0.0
        %6683 = vmatpush.msra.mxu0 %v6570
        %6684 = vmatpush.msra.mxu0 %v6569
        %6685 = vmatpush.msra.mxu0 %v6568
        %6686 = vmatpush.msra.mxu0 %v6567
        %6687 = vmatmul.f32.gmra.mxu0 %v6579
        %v6688 = vpop.f32.mrf.mxu0
        %v6689 = vadd.f32 0.0, %v6688
        %6690 = vdwg.mxu0
        %6691 = vmatpush.msra.mxu0 0.0
        %6692 = vmatpush.msra.mxu0 0.0
        %6693 = vmatpush.msra.mxu0 0.0
        %6694 = vmatpush.msra.mxu0 0.0
        %6695 = vmatpush.msra.mxu0 0.0
        %6696 = vmatpush.msra.mxu0 0.0
        %6697 = vmatpush.msra.mxu0 0.0
        %6698 = vmatpush.msra.mxu0 0.0
        %6699 = vmatpush.msra.mxu0 0.0
        %6700 = vmatpush.msra.mxu0 0.0
        %6701 = vmatpush.msra.mxu0 0.0
        %6702 = vmatpush.msra.mxu0 0.0
        %6703 = vmatpush.msra.mxu0 %v6570
        %6704 = vmatpush.msra.mxu0 %v6569
        %6705 = vmatpush.msra.mxu0 %v6568
        %6706 = vmatpush.msra.mxu0 %v6567
        %6707 = vmatmul.f32.gmra.mxu0 %v6638
        %v6708 = vpop.f32.mrf.mxu0
        %v6709 = vadd.f32 0.0, %v6708
        %6710 = vmatmul.f32.gmra.mxu0 %v6640
        %v6711 = vpop.f32.mrf.mxu0
        %v6712 = vadd.f32 0.0, %v6711
        %6713 = vdwg.mxu0
        %v6715 = vsel %vm1756, %v6599, 0
        %6717 = vmatpush.msra.mxu0 0.0
        %6718 = vmatpush.msra.mxu0 0.0
        %6719 = vmatpush.msra.mxu0 0.0
        %6720 = vmatpush.msra.mxu0 0.0
        %6721 = vmatpush.msra.mxu0 0.0
        %6722 = vmatpush.msra.mxu0 0.0
        %6723 = vmatpush.msra.mxu0 0.0
        %6724 = vmatpush.msra.mxu0 0.0
        %6725 = vmatpush.msra.mxu0 0.0
        %6726 = vmatpush.msra.mxu0 0.0
        %6727 = vmatpush.msra.mxu0 0.0
        %6728 = vmatpush.msra.mxu0 0.0
        %6729 = vmatpush.msra.mxu0 0.0
        %6730 = vmatpush.msra.mxu0 0.0
        %6731 = vmatpush.msra.mxu0 %v6611
        %6732 = vmatpush.msra.mxu0 %v6608
        %6733 = vmatmul.f32.gmra.mxu0 %v6715
        %v6734 = vpop.f32.mrf.mxu0
        %v6735 = vadd.f32 0.0, %v6734
        %6736 = vdwg.mxu0
        %v6737 = vmul.f32 %v6735, 0.25
        %6738 = vmatpush.msra.mxu0 0.0
        %6739 = vmatpush.msra.mxu0 0.0
        %6740 = vmatpush.msra.mxu0 0.0
        %6741 = vmatpush.msra.mxu0 0.0
        %6742 = vmatpush.msra.mxu0 0.0
        %6743 = vmatpush.msra.mxu0 0.0
        %6744 = vmatpush.msra.mxu0 0.0
        %6745 = vmatpush.msra.mxu0 0.0
        %6746 = vmatpush.msra.mxu0 0.0
        %6747 = vmatpush.msra.mxu0 0.0
        %6748 = vmatpush.msra.mxu0 0.0
        %6749 = vmatpush.msra.mxu0 0.0
        %6750 = vmatpush.msra.mxu0 0.0
        %6751 = vmatpush.msra.mxu0 0.0
        %6752 = vmatpush.msra.mxu0 %v6663
        %6753 = vmatpush.msra.mxu0 %v6660
        %6754 = vmatmul.f32.gmra.mxu0 %v6715
        %v6755 = vpop.f32.mrf.mxu0
        %v6756 = vadd.f32 0.0, %v6755
        %6757 = vdwg.mxu0
        %v6758 = vmul.f32 %v6756, 0.25
        %v6759 = vsel %vm3791, %v6758, -inf
        %6760 = vmax.xlane.f32.xlu0 %v6759
        %v6761 = vpop.xlane.xlu0 %6760
        %v6762 = vmax.f32 %v6737, %v6761
        %v6763 = vsub.f32 %v6737, %v6762
        %v6764 = vmul.f32 %v6763, 1.442695
        %v6765 = vpow.pop %v6764
        %6767 = vset.pattern.permute.xlu0 0
        %6768 = vperm.xlu0 %6767, %v6762
        %v6769 = vpop.permute.xlu0 %6768
        %v6771 = vsub.f32 %v6758, %v6769
        %v6772 = vmul.f32 %v6771, 1.442695
        %v6773 = vpow.pop %v6772
        %v6774 = vadd.f32 %v6765, 0.0
        %v6775 = vsel %vm3791, %v6773, 0.0
        %6776 = vadd.xlane.f32.xlu0 %v6775
        %v6777 = vpop.xlane.xlu0 %6776
        %v6778 = vadd.f32 %v6774, %v6777
        %v6780 = vsel %vm1756, %v6773, 0
        %6782 = vmatpush.msra.mxu0 0.0
        %6783 = vmatpush.msra.mxu0 0.0
        %6784 = vmatpush.msra.mxu0 0.0
        %6785 = vmatpush.msra.mxu0 0.0
        %6786 = vmatpush.msra.mxu0 0.0
        %6787 = vmatpush.msra.mxu0 0.0
        %6788 = vmatpush.msra.mxu0 0.0
        %6789 = vmatpush.msra.mxu0 0.0
        %6790 = vmatpush.msra.mxu0 0.0
        %6791 = vmatpush.msra.mxu0 0.0
        %6792 = vmatpush.msra.mxu0 0.0
        %6793 = vmatpush.msra.mxu0 0.0
        %6794 = vmatpush.msra.mxu0 0.0
        %6795 = vmatpush.msra.mxu0 0.0
        %6796 = vmatpush.msra.mxu0 %v6712
        %6797 = vmatpush.msra.mxu0 %v6709
        %6798 = vmatmul.f32.gmra.mxu0 %v6780
        %v6799 = vpop.f32.mrf.mxu0
        %v6800 = vadd.f32 0.0, %v6799
        %6801 = vdwg.mxu0
        %v6803 = vsel %vm3835, %v6765, 0
        %v6806 = vsel %vm1814, %v6689, 0
        %6808 = vmatpush.msra.mxu0 0.0
        %6809 = vmatpush.msra.mxu0 0.0
        %6810 = vmatpush.msra.mxu0 0.0
        %6811 = vmatpush.msra.mxu0 0.0
        %6812 = vmatpush.msra.mxu0 0.0
        %6813 = vmatpush.msra.mxu0 0.0
        %6814 = vmatpush.msra.mxu0 0.0
        %6815 = vmatpush.msra.mxu0 0.0
        %6816 = vmatpush.msra.mxu0 0.0
        %6817 = vmatpush.msra.mxu0 0.0
        %6818 = vmatpush.msra.mxu0 0.0
        %6819 = vmatpush.msra.mxu0 0.0
        %6820 = vmatpush.msra.mxu0 0.0
        %6821 = vmatpush.msra.mxu0 0.0
        %6822 = vmatpush.msra.mxu0 0.0
        %6823 = vmatpush.msra.mxu0 %v6806
        %6824 = vmatmul.f32.gmra.mxu0 %v6803
        %v6825 = vpop.f32.mrf.mxu0
        %v6826 = vadd.f32 %v6800, %v6825
        %6827 = vdwg.mxu0
        %6829 = vset.pattern.permute.xlu0 0
        %6830 = vperm.xlu0 %6829, %v6778
        %v6831 = vpop.permute.xlu0 %6830
        %v6833 = vrcp.pop %v6831
        %v6834 = vmul.f32 %v6831, %v6833
        %v6835 = vsub.f32 1.0, %v6834
        %v6836 = vmul.f32 %v6833, %v6835
        %v6837 = vadd.f32 %v6833, %v6836
        %vm6838 = vweird.f32 %v6831
        %vm6839 = vweird.f32 %v6833
        %vm6840 = vmor %vm6838, %vm6839
        %v6841 = vsel %vm6840, %v6833, %v6837
        %v6842 = vand.u32 2147483647, %v6831
        %vm6843 = vcmp.eq.f32.partialorder %v6842, 8.507059e+37
        %v6844 = vand.u32 %v6831, 2147483648
        %v6845 = vor.u32 1.1754944e-38, %v6844
        %v6846 = vsel %vm6843, %v6845, %v6841
        %v6847 = vmul.f32 %v6826, %v6846
        %6848 = vrot.lane.b32.xlu0 %v6599, 112
        %v6849 = vpop.permute.xlu0 %6848
        %v6850 = vsel %vm1756, %v6849, 0
        %6852 = vmatpush.msra.mxu0 0.0
        %6853 = vmatpush.msra.mxu0 0.0
        %6854 = vmatpush.msra.mxu0 0.0
        %6855 = vmatpush.msra.mxu0 0.0
        %6856 = vmatpush.msra.mxu0 0.0
        %6857 = vmatpush.msra.mxu0 0.0
        %6858 = vmatpush.msra.mxu0 0.0
        %6859 = vmatpush.msra.mxu0 0.0
        %6860 = vmatpush.msra.mxu0 0.0
        %6861 = vmatpush.msra.mxu0 0.0
        %6862 = vmatpush.msra.mxu0 0.0
        %6863 = vmatpush.msra.mxu0 0.0
        %6864 = vmatpush.msra.mxu0 0.0
        %6865 = vmatpush.msra.mxu0 0.0
        %6866 = vmatpush.msra.mxu0 %v6617
        %6867 = vmatpush.msra.mxu0 %v6614
        %6868 = vmatmul.f32.gmra.mxu0 %v6850
        %v6869 = vpop.f32.mrf.mxu0
        %v6870 = vadd.f32 0.0, %v6869
        %6871 = vdwg.mxu0
        %v6872 = vmul.f32 %v6870, 0.25
        %6873 = vmatpush.msra.mxu0 0.0
        %6874 = vmatpush.msra.mxu0 0.0
        %6875 = vmatpush.msra.mxu0 0.0
        %6876 = vmatpush.msra.mxu0 0.0
        %6877 = vmatpush.msra.mxu0 0.0
        %6878 = vmatpush.msra.mxu0 0.0
        %6879 = vmatpush.msra.mxu0 0.0
        %6880 = vmatpush.msra.mxu0 0.0
        %6881 = vmatpush.msra.mxu0 0.0
        %6882 = vmatpush.msra.mxu0 0.0
        %6883 = vmatpush.msra.mxu0 0.0
        %6884 = vmatpush.msra.mxu0 0.0
        %6885 = vmatpush.msra.mxu0 0.0
        %6886 = vmatpush.msra.mxu0 0.0
        %6887 = vmatpush.msra.mxu0 %v6669
        %6888 = vmatpush.msra.mxu0 %v6666
        %6889 = vmatmul.f32.gmra.mxu0 %v6850
        %v6890 = vpop.f32.mrf.mxu0
        %v6891 = vadd.f32 0.0, %v6890
        %6892 = vdwg.mxu0
        %v6893 = vmul.f32 %v6891, 0.25
        %v6894 = vsel %vm3791, %v6893, -inf
        %6895 = vmax.xlane.f32.xlu0 %v6894
        %v6896 = vpop.xlane.xlu0 %6895
        %v6897 = vmax.f32 %v6872, %v6896
        %v6898 = vsub.f32 %v6872, %v6897
        %v6899 = vmul.f32 %v6898, 1.442695
        %v6900 = vpow.pop %v6899
        %6902 = vset.pattern.permute.xlu0 0
        %6903 = vperm.xlu0 %6902, %v6897
        %v6904 = vpop.permute.xlu0 %6903
        %v6906 = vsub.f32 %v6893, %v6904
        %v6907 = vmul.f32 %v6906, 1.442695
        %v6908 = vpow.pop %v6907
        %v6909 = vadd.f32 %v6900, 0.0
        %v6910 = vsel %vm3791, %v6908, 0.0
        %6911 = vadd.xlane.f32.xlu0 %v6910
        %v6912 = vpop.xlane.xlu0 %6911
        %v6913 = vadd.f32 %v6909, %v6912
        %6916 = vrot.lane.b32.xlu0 %v6709, 112
        %v6917 = vpop.permute.xlu0 %6916
        %6918 = vrot.lane.b32.xlu0 %v6712, 112
        %v6919 = vpop.permute.xlu0 %6918
        %v6923 = vsel %vm1756, %v6908, 0
        %6925 = vmatpush.msra.mxu0 0.0
        %6926 = vmatpush.msra.mxu0 0.0
        %6927 = vmatpush.msra.mxu0 0.0
        %6928 = vmatpush.msra.mxu0 0.0
        %6929 = vmatpush.msra.mxu0 0.0
        %6930 = vmatpush.msra.mxu0 0.0
        %6931 = vmatpush.msra.mxu0 0.0
        %6932 = vmatpush.msra.mxu0 0.0
        %6933 = vmatpush.msra.mxu0 0.0
        %6934 = vmatpush.msra.mxu0 0.0
        %6935 = vmatpush.msra.mxu0 0.0
        %6936 = vmatpush.msra.mxu0 0.0
        %6937 = vmatpush.msra.mxu0 0.0
        %6938 = vmatpush.msra.mxu0 0.0
        %6939 = vmatpush.msra.mxu0 %v6919
        %6940 = vmatpush.msra.mxu0 %v6917
        %6941 = vmatmul.f32.gmra.mxu0 %v6923
        %v6942 = vpop.f32.mrf.mxu0
        %v6943 = vadd.f32 0.0, %v6942
        %6944 = vdwg.mxu0
        %6945 = vrot.lane.b32.xlu0 %v6689, 112
        %v6946 = vpop.permute.xlu0 %6945
        %v6948 = vsel %vm3835, %v6900, 0
        %v6950 = vsel %vm1814, %v6946, 0
        %6952 = vmatpush.msra.mxu0 0.0
        %6953 = vmatpush.msra.mxu0 0.0
        %6954 = vmatpush.msra.mxu0 0.0
        %6955 = vmatpush.msra.mxu0 0.0
        %6956 = vmatpush.msra.mxu0 0.0
        %6957 = vmatpush.msra.mxu0 0.0
        %6958 = vmatpush.msra.mxu0 0.0
        %6959 = vmatpush.msra.mxu0 0.0
        %6960 = vmatpush.msra.mxu0 0.0
        %6961 = vmatpush.msra.mxu0 0.0
        %6962 = vmatpush.msra.mxu0 0.0
        %6963 = vmatpush.msra.mxu0 0.0
        %6964 = vmatpush.msra.mxu0 0.0
        %6965 = vmatpush.msra.mxu0 0.0
        %6966 = vmatpush.msra.mxu0 0.0
        %6967 = vmatpush.msra.mxu0 %v6950
        %6968 = vmatmul.f32.gmra.mxu0 %v6948
        %v6969 = vpop.f32.mrf.mxu0
        %v6970 = vadd.f32 %v6943, %v6969
        %6971 = vdwg.mxu0
        %6973 = vset.pattern.permute.xlu0 0
        %6974 = vperm.xlu0 %6973, %v6913
        %v6975 = vpop.permute.xlu0 %6974
        %v6977 = vrcp.pop %v6975
        %v6978 = vmul.f32 %v6975, %v6977
        %v6979 = vsub.f32 1.0, %v6978
        %v6980 = vmul.f32 %v6977, %v6979
        %v6981 = vadd.f32 %v6977, %v6980
        %vm6982 = vweird.f32 %v6975
        %vm6983 = vweird.f32 %v6977
        %vm6984 = vmor %vm6982, %vm6983
        %v6985 = vsel %vm6984, %v6977, %v6981
        %v6986 = vand.u32 2147483647, %v6975
        %vm6987 = vcmp.eq.f32.partialorder %v6986, 8.507059e+37
        %v6988 = vand.u32 %v6975, 2147483648
        %v6989 = vor.u32 1.1754944e-38, %v6988
        %v6990 = vsel %vm6987, %v6989, %v6985
        %v6991 = vmul.f32 %v6970, %v6990
        %6993 = vrot.lane.b32.xlu0 %v6991, 16
        %v6994 = vpop.permute.xlu0 %6993
        %v6996 = vsel %vm1756, %v6847, %v6994
        %v6998 = vsel %vm1583, %v6996, 0
        %7000 = vmatpush.msra.mxu0 0.0
        %7001 = vmatpush.msra.mxu0 0.0
        %7002 = vmatpush.msra.mxu0 0.0
        %7003 = vmatpush.msra.mxu0 0.0
        %7004 = vmatpush.msra.mxu0 0.0
        %7005 = vmatpush.msra.mxu0 0.0
        %7006 = vmatpush.msra.mxu0 0.0
        %7007 = vmatpush.msra.mxu0 0.0
        %7008 = vmatpush.msra.mxu0 0.0
        %7009 = vmatpush.msra.mxu0 0.0
        %7010 = vmatpush.msra.mxu0 0.0
        %7011 = vmatpush.msra.mxu0 0.0
        %7012 = vmatpush.msra.mxu0 %v6575
        %7013 = vmatpush.msra.mxu0 %v6574
        %7014 = vmatpush.msra.mxu0 %v6573
        %7015 = vmatpush.msra.mxu0 %v6572
        %7016 = vmatmul.f32.gmra.mxu0 %v6998
        %v7017 = vpop.f32.mrf.mxu0
        %v7018 = vadd.f32 %v6577, %v7017
        %7019 = vdwg.mxu0
        %v7020 = vadd.f32 %v5747, %v7018
        %s7021 = scalar_lea.vmem %s71, 1
        %v7022 = vld [vmem:[%s7021] sm:$0x1]
        %s7023 = scalar_lea.vmem %s73, 1
        %v7024 = vld [vmem:[%s7023] sm:$0x1]
        %v7025 = vsel %vm1587, %v6525, 0.0
        %7026 = vadd.xlane.f32.xlu0 %v7025
        %v7027 = vpop.xlane.xlu0 %7026
        %v7028 = vmul.f32 %v7027, %v1597
        %v7029 = vsub.f32 %v6525, %v7028
        %v7030 = vmul.f32 %v7029, %v7029
        %v7031 = vsel %vm1587, %v7030, 0.0
        %7032 = vadd.xlane.f32.xlu0 %v7031
        %v7033 = vpop.xlane.xlu0 %7032
        %v7034 = vmul.f32 %v7033, %v1597
        %v7035 = vadd.f32 %v7034, 1e-05
        %v7036 = vrsqrt.pop %v7035
        %v7037 = vmul.f32 %v7036, %v7035
        %v7038 = vmul.f32 %v7037, %v7036
        %v7039 = vmul.f32 0.5, %v7038
        %v7040 = vsub.f32 1.5, %v7039
        %v7041 = vmul.f32 %v7036, %v7040
        %vm7042 = vweird.f32 %v7035
        %vm7043 = vweird.f32 %v7036
        %vm7044 = vmor %vm7042, %vm7043
        %v7045 = vsel %vm7044, %v7036, %v7041
        %v7046 = vmul.f32 %v7029, %v7045
        %v7047 = vmul.f32 %v7046, %v7022
        %v7048 = vadd.f32 %v7047, %v7024
        %s7049 = scalar_lea.vmem [#allocation19], 32
        %v7050 = vld [vmem:[%s7049] sm:$0xff]
        %v7051 = vld [vmem:[%s7049 + $0x8] sm:$0xff]
        %v7052 = vld [vmem:[%s7049 + $0x10] sm:$0xff]
        %v7053 = vld [vmem:[%s7049 + $0x18] sm:$0xff]
        %s7054 = scalar_lea.vmem [#allocation21], 32
        %v7055 = vld [vmem:[%s7054] sm:$0xff]
        %v7056 = vld [vmem:[%s7054 + $0x8] sm:$0xff]
        %v7057 = vld [vmem:[%s7054 + $0x10] sm:$0xff]
        %v7058 = vld [vmem:[%s7054 + $0x18] sm:$0xff]
        %s7059 = scalar_lea.vmem [#allocation22], 32
        %v7060 = vld [vmem:[%s7059] sm:$0xff]
        %v7061 = vld [vmem:[%s7059 + $0x8] sm:$0xff]
        %v7062 = vld [vmem:[%s7059 + $0x10] sm:$0xff]
        %v7063 = vld [vmem:[%s7059 + $0x18] sm:$0xff]
        %s7064 = scalar_lea.vmem [#allocation24], 32
        %v7065 = vld [vmem:[%s7064] sm:$0xff]
        %v7066 = vld [vmem:[%s7064 + $0x8] sm:$0xff]
        %v7067 = vld [vmem:[%s7064 + $0x10] sm:$0xff]
        %v7068 = vld [vmem:[%s7064 + $0x18] sm:$0xff]
        %s7069 = scalar_lea.vmem %s83, 1
        %v7070 = vld [vmem:[%s7069] sm:$0x1]
        %v7072 = vsel %vm1583, %v7048, 0
        %7074 = vmatpush.msra.mxu0 0.0
        %7075 = vmatpush.msra.mxu0 0.0
        %7076 = vmatpush.msra.mxu0 0.0
        %7077 = vmatpush.msra.mxu0 0.0
        %7078 = vmatpush.msra.mxu0 0.0
        %7079 = vmatpush.msra.mxu0 0.0
        %7080 = vmatpush.msra.mxu0 0.0
        %7081 = vmatpush.msra.mxu0 0.0
        %7082 = vmatpush.msra.mxu0 0.0
        %7083 = vmatpush.msra.mxu0 0.0
        %7084 = vmatpush.msra.mxu0 0.0
        %7085 = vmatpush.msra.mxu0 0.0
        %7086 = vmatpush.msra.mxu0 %v7053
        %7087 = vmatpush.msra.mxu0 %v7052
        %7088 = vmatpush.msra.mxu0 %v7051
        %7089 = vmatpush.msra.mxu0 %v7050
        %7090 = vmatmul.f32.gmra.mxu0 %v7072
        %v7091 = vpop.f32.mrf.mxu0
        %v7092 = vadd.f32 0.0, %v7091
        %7093 = vdwg.mxu0
        %v7094 = vperm.slane %v7048, 0
        %v7095 = vmul.f32 %v7055, %v7094
        %v7096 = vmul.f32 %v7056, %v7094
        %v7097 = vmul.f32 %v7057, %v7094
        %v7098 = vmul.f32 %v7058, %v7094
        %v7099 = vsel %vm1583, %v7095, 0.0
        %7100 = vadd.xlane.f32.xlu0 %v7099
        %v7101 = vpop.xlane.xlu0 %7100
        %v7102 = vsel %vm1583, %v7096, 0.0
        %7103 = vadd.xlane.f32.xlu0 %v7102
        %v7104 = vpop.xlane.xlu0 %7103
        %v7105 = vsel %vm1583, %v7097, 0.0
        %7106 = vadd.xlane.f32.xlu0 %v7105
        %v7107 = vpop.xlane.xlu0 %7106
        %v7108 = vsel %vm1583, %v7098, 0.0
        %7109 = vadd.xlane.f32.xlu0 %v7108
        %v7110 = vpop.xlane.xlu0 %7109
        %v7113 = vrot.slane %v5747, 1
        %v7114 = vrot.slane %v5748, 1
        %v7115 = vsel %vm3652, %v7113, %v7114
        %v7117 = vsel %vm1583, %v7055, 0
        %v7120 = vsel %vm1583, %v7056, 0
        %v7123 = vsel %vm1583, %v7057, 0
        %v7126 = vsel %vm1583, %v7058, 0
        %v7128 = vsel %vm1583, %v7115, 0
        %7130 = vmatpush.xpose.msra.mxu0 0.0
        %7131 = vmatpush.xpose.msra.mxu0 0.0
        %7132 = vmatpush.xpose.msra.mxu0 0.0
        %7133 = vmatpush.xpose.msra.mxu0 0.0
        %7134 = vmatpush.xpose.msra.mxu0 0.0
        %7135 = vmatpush.xpose.msra.mxu0 0.0
        %7136 = vmatpush.xpose.msra.mxu0 0.0
        %7137 = vmatpush.xpose.msra.mxu0 0.0
        %7138 = vmatpush.xpose.msra.mxu0 0.0
        %7139 = vmatpush.xpose.msra.mxu0 0.0
        %7140 = vmatpush.xpose.msra.mxu0 0.0
        %7141 = vmatpush.xpose.msra.mxu0 0.0
        %7142 = vmatpush.xpose.msra.mxu0 0.0
        %7143 = vmatpush.xpose.msra.mxu0 0.0
        %7144 = vmatpush.xpose.msra.mxu0 0.0
        %7145 = vmatpush.xpose.msra.mxu0 %v7128
        %7146 = vmatmul.f32.gmra.mxu0 %v7117
        %v7147 = vpop.f32.mrf.mxu0
        %v7148 = vadd.f32 0.0, %v7147
        %7149 = vmatmul.f32.gmra.mxu0 %v7120
        %v7150 = vpop.f32.mrf.mxu0
        %v7151 = vadd.f32 0.0, %v7150
        %7152 = vmatmul.f32.gmra.mxu0 %v7123
        %v7153 = vpop.f32.mrf.mxu0
        %v7154 = vadd.f32 0.0, %v7153
        %7155 = vmatmul.f32.gmra.mxu0 %v7126
        %v7156 = vpop.f32.mrf.mxu0
        %v7157 = vadd.f32 0.0, %v7156
        %7158 = vdwg.mxu0
        %7159 = vmatpush.msra.mxu0 0.0
        %7160 = vmatpush.msra.mxu0 0.0
        %7161 = vmatpush.msra.mxu0 0.0
        %7162 = vmatpush.msra.mxu0 0.0
        %7163 = vmatpush.msra.mxu0 0.0
        %7164 = vmatpush.msra.mxu0 0.0
        %7165 = vmatpush.msra.mxu0 0.0
        %7166 = vmatpush.msra.mxu0 0.0
        %7167 = vmatpush.msra.mxu0 0.0
        %7168 = vmatpush.msra.mxu0 0.0
        %7169 = vmatpush.msra.mxu0 0.0
        %7170 = vmatpush.msra.mxu0 0.0
        %7171 = vmatpush.msra.mxu0 %v7063
        %7172 = vmatpush.msra.mxu0 %v7062
        %7173 = vmatpush.msra.mxu0 %v7061
        %7174 = vmatpush.msra.mxu0 %v7060
        %7175 = vmatmul.f32.gmra.mxu0 %v7072
        %v7176 = vpop.f32.mrf.mxu0
        %v7177 = vadd.f32 0.0, %v7176
        %7178 = vdwg.mxu0
        %7179 = vmatpush.msra.mxu0 0.0
        %7180 = vmatpush.msra.mxu0 0.0
        %7181 = vmatpush.msra.mxu0 0.0
        %7182 = vmatpush.msra.mxu0 0.0
        %7183 = vmatpush.msra.mxu0 0.0
        %7184 = vmatpush.msra.mxu0 0.0
        %7185 = vmatpush.msra.mxu0 0.0
        %7186 = vmatpush.msra.mxu0 0.0
        %7187 = vmatpush.msra.mxu0 0.0
        %7188 = vmatpush.msra.mxu0 0.0
        %7189 = vmatpush.msra.mxu0 0.0
        %7190 = vmatpush.msra.mxu0 0.0
        %7191 = vmatpush.msra.mxu0 %v7063
        %7192 = vmatpush.msra.mxu0 %v7062
        %7193 = vmatpush.msra.mxu0 %v7061
        %7194 = vmatpush.msra.mxu0 %v7060
        %7195 = vmatmul.f32.gmra.mxu0 %v7128
        %v7196 = vpop.f32.mrf.mxu0
        %v7197 = vadd.f32 0.0, %v7196
        %7198 = vdwg.mxu0
        %v7200 = vsel %vm1756, %v7092, 0
        %7202 = vmatpush.msra.mxu0 0.0
        %7203 = vmatpush.msra.mxu0 0.0
        %7204 = vmatpush.msra.mxu0 0.0
        %7205 = vmatpush.msra.mxu0 0.0
        %7206 = vmatpush.msra.mxu0 0.0
        %7207 = vmatpush.msra.mxu0 0.0
        %7208 = vmatpush.msra.mxu0 0.0
        %7209 = vmatpush.msra.mxu0 0.0
        %7210 = vmatpush.msra.mxu0 0.0
        %7211 = vmatpush.msra.mxu0 0.0
        %7212 = vmatpush.msra.mxu0 0.0
        %7213 = vmatpush.msra.mxu0 0.0
        %7214 = vmatpush.msra.mxu0 0.0
        %7215 = vmatpush.msra.mxu0 0.0
        %7216 = vmatpush.msra.mxu0 %v7104
        %7217 = vmatpush.msra.mxu0 %v7101
        %7218 = vmatmul.f32.gmra.mxu0 %v7200
        %v7219 = vpop.f32.mrf.mxu0
        %v7220 = vadd.f32 0.0, %v7219
        %7221 = vdwg.mxu0
        %v7222 = vmul.f32 %v7220, 0.25
        %7223 = vmatpush.msra.mxu0 0.0
        %7224 = vmatpush.msra.mxu0 0.0
        %7225 = vmatpush.msra.mxu0 0.0
        %7226 = vmatpush.msra.mxu0 0.0
        %7227 = vmatpush.msra.mxu0 0.0
        %7228 = vmatpush.msra.mxu0 0.0
        %7229 = vmatpush.msra.mxu0 0.0
        %7230 = vmatpush.msra.mxu0 0.0
        %7231 = vmatpush.msra.mxu0 0.0
        %7232 = vmatpush.msra.mxu0 0.0
        %7233 = vmatpush.msra.mxu0 0.0
        %7234 = vmatpush.msra.mxu0 0.0
        %7235 = vmatpush.msra.mxu0 0.0
        %7236 = vmatpush.msra.mxu0 0.0
        %7237 = vmatpush.msra.mxu0 %v7151
        %7238 = vmatpush.msra.mxu0 %v7148
        %7239 = vmatmul.f32.gmra.mxu0 %v7200
        %v7240 = vpop.f32.mrf.mxu0
        %v7241 = vadd.f32 0.0, %v7240
        %7242 = vdwg.mxu0
        %v7243 = vmul.f32 %v7241, 0.25
        %v7244 = vsel %vm4271, %v7243, -inf
        %7245 = vmax.xlane.f32.xlu0 %v7244
        %v7246 = vpop.xlane.xlu0 %7245
        %v7247 = vmax.f32 %v7222, %v7246
        %v7248 = vsub.f32 %v7222, %v7247
        %v7249 = vmul.f32 %v7248, 1.442695
        %v7250 = vpow.pop %v7249
        %7252 = vset.pattern.permute.xlu0 0
        %7253 = vperm.xlu0 %7252, %v7247
        %v7254 = vpop.permute.xlu0 %7253
        %v7256 = vsub.f32 %v7243, %v7254
        %v7257 = vmul.f32 %v7256, 1.442695
        %v7258 = vpow.pop %v7257
        %v7259 = vadd.f32 %v7250, 0.0
        %v7260 = vsel %vm4271, %v7258, 0.0
        %7261 = vadd.xlane.f32.xlu0 %v7260
        %v7262 = vpop.xlane.xlu0 %7261
        %v7263 = vadd.f32 %v7259, %v7262
        %v7265 = vsel %vm4292, %v7258, 0
        %7267 = vmatpush.msra.mxu0 0.0
        %7268 = vmatpush.msra.mxu0 0.0
        %7269 = vmatpush.msra.mxu0 0.0
        %7270 = vmatpush.msra.mxu0 0.0
        %7271 = vmatpush.msra.mxu0 0.0
        %7272 = vmatpush.msra.mxu0 0.0
        %7273 = vmatpush.msra.mxu0 0.0
        %7274 = vmatpush.msra.mxu0 0.0
        %7275 = vmatpush.msra.mxu0 0.0
        %7276 = vmatpush.msra.mxu0 0.0
        %7277 = vmatpush.msra.mxu0 0.0
        %7278 = vmatpush.msra.mxu0 0.0
        %7279 = vmatpush.msra.mxu0 0.0
        %7280 = vmatpush.msra.mxu0 0.0
        %7281 = vmatpush.msra.mxu0 0.0
        %7282 = vmatpush.msra.mxu0 %v7197
        %7283 = vmatmul.f32.gmra.mxu0 %v7265
        %v7284 = vpop.f32.mrf.mxu0
        %v7285 = vadd.f32 0.0, %v7284
        %7286 = vdwg.mxu0
        %v7288 = vsel %vm3835, %v7250, 0
        %v7291 = vsel %vm1814, %v7177, 0
        %7293 = vmatpush.msra.mxu0 0.0
        %7294 = vmatpush.msra.mxu0 0.0
        %7295 = vmatpush.msra.mxu0 0.0
        %7296 = vmatpush.msra.mxu0 0.0
        %7297 = vmatpush.msra.mxu0 0.0
        %7298 = vmatpush.msra.mxu0 0.0
        %7299 = vmatpush.msra.mxu0 0.0
        %7300 = vmatpush.msra.mxu0 0.0
        %7301 = vmatpush.msra.mxu0 0.0
        %7302 = vmatpush.msra.mxu0 0.0
        %7303 = vmatpush.msra.mxu0 0.0
        %7304 = vmatpush.msra.mxu0 0.0
        %7305 = vmatpush.msra.mxu0 0.0
        %7306 = vmatpush.msra.mxu0 0.0
        %7307 = vmatpush.msra.mxu0 0.0
        %7308 = vmatpush.msra.mxu0 %v7291
        %7309 = vmatmul.f32.gmra.mxu0 %v7288
        %v7310 = vpop.f32.mrf.mxu0
        %v7311 = vadd.f32 %v7285, %v7310
        %7312 = vdwg.mxu0
        %7314 = vset.pattern.permute.xlu0 0
        %7315 = vperm.xlu0 %7314, %v7263
        %v7316 = vpop.permute.xlu0 %7315
        %v7318 = vrcp.pop %v7316
        %v7319 = vmul.f32 %v7316, %v7318
        %v7320 = vsub.f32 1.0, %v7319
        %v7321 = vmul.f32 %v7318, %v7320
        %v7322 = vadd.f32 %v7318, %v7321
        %vm7323 = vweird.f32 %v7316
        %vm7324 = vweird.f32 %v7318
        %vm7325 = vmor %vm7323, %vm7324
        %v7326 = vsel %vm7325, %v7318, %v7322
        %v7327 = vand.u32 2147483647, %v7316
        %vm7328 = vcmp.eq.f32.partialorder %v7327, 8.507059e+37
        %v7329 = vand.u32 %v7316, 2147483648
        %v7330 = vor.u32 1.1754944e-38, %v7329
        %v7331 = vsel %vm7328, %v7330, %v7326
        %v7332 = vmul.f32 %v7311, %v7331
        %7333 = vrot.lane.b32.xlu0 %v7092, 112
        %v7334 = vpop.permute.xlu0 %7333
        %v7335 = vsel %vm1756, %v7334, 0
        %7337 = vmatpush.msra.mxu0 0.0
        %7338 = vmatpush.msra.mxu0 0.0
        %7339 = vmatpush.msra.mxu0 0.0
        %7340 = vmatpush.msra.mxu0 0.0
        %7341 = vmatpush.msra.mxu0 0.0
        %7342 = vmatpush.msra.mxu0 0.0
        %7343 = vmatpush.msra.mxu0 0.0
        %7344 = vmatpush.msra.mxu0 0.0
        %7345 = vmatpush.msra.mxu0 0.0
        %7346 = vmatpush.msra.mxu0 0.0
        %7347 = vmatpush.msra.mxu0 0.0
        %7348 = vmatpush.msra.mxu0 0.0
        %7349 = vmatpush.msra.mxu0 0.0
        %7350 = vmatpush.msra.mxu0 0.0
        %7351 = vmatpush.msra.mxu0 %v7110
        %7352 = vmatpush.msra.mxu0 %v7107
        %7353 = vmatmul.f32.gmra.mxu0 %v7335
        %v7354 = vpop.f32.mrf.mxu0
        %v7355 = vadd.f32 0.0, %v7354
        %7356 = vdwg.mxu0
        %v7357 = vmul.f32 %v7355, 0.25
        %7358 = vmatpush.msra.mxu0 0.0
        %7359 = vmatpush.msra.mxu0 0.0
        %7360 = vmatpush.msra.mxu0 0.0
        %7361 = vmatpush.msra.mxu0 0.0
        %7362 = vmatpush.msra.mxu0 0.0
        %7363 = vmatpush.msra.mxu0 0.0
        %7364 = vmatpush.msra.mxu0 0.0
        %7365 = vmatpush.msra.mxu0 0.0
        %7366 = vmatpush.msra.mxu0 0.0
        %7367 = vmatpush.msra.mxu0 0.0
        %7368 = vmatpush.msra.mxu0 0.0
        %7369 = vmatpush.msra.mxu0 0.0
        %7370 = vmatpush.msra.mxu0 0.0
        %7371 = vmatpush.msra.mxu0 0.0
        %7372 = vmatpush.msra.mxu0 %v7157
        %7373 = vmatpush.msra.mxu0 %v7154
        %7374 = vmatmul.f32.gmra.mxu0 %v7335
        %v7375 = vpop.f32.mrf.mxu0
        %v7376 = vadd.f32 0.0, %v7375
        %7377 = vdwg.mxu0
        %v7378 = vmul.f32 %v7376, 0.25
        %v7379 = vsel %vm4271, %v7378, -inf
        %7380 = vmax.xlane.f32.xlu0 %v7379
        %v7381 = vpop.xlane.xlu0 %7380
        %v7382 = vmax.f32 %v7357, %v7381
        %v7383 = vsub.f32 %v7357, %v7382
        %v7384 = vmul.f32 %v7383, 1.442695
        %v7385 = vpow.pop %v7384
        %7387 = vset.pattern.permute.xlu0 0
        %7388 = vperm.xlu0 %7387, %v7382
        %v7389 = vpop.permute.xlu0 %7388
        %v7391 = vsub.f32 %v7378, %v7389
        %v7392 = vmul.f32 %v7391, 1.442695
        %v7393 = vpow.pop %v7392
        %v7394 = vadd.f32 %v7385, 0.0
        %v7395 = vsel %vm4271, %v7393, 0.0
        %7396 = vadd.xlane.f32.xlu0 %v7395
        %v7397 = vpop.xlane.xlu0 %7396
        %v7398 = vadd.f32 %v7394, %v7397
        %7400 = vrot.lane.b32.xlu0 %v7197, 112
        %v7401 = vpop.permute.xlu0 %7400
        %v7404 = vsel %vm4292, %v7393, 0
        %7406 = vmatpush.msra.mxu0 0.0
        %7407 = vmatpush.msra.mxu0 0.0
        %7408 = vmatpush.msra.mxu0 0.0
        %7409 = vmatpush.msra.mxu0 0.0
        %7410 = vmatpush.msra.mxu0 0.0
        %7411 = vmatpush.msra.mxu0 0.0
        %7412 = vmatpush.msra.mxu0 0.0
        %7413 = vmatpush.msra.mxu0 0.0
        %7414 = vmatpush.msra.mxu0 0.0
        %7415 = vmatpush.msra.mxu0 0.0
        %7416 = vmatpush.msra.mxu0 0.0
        %7417 = vmatpush.msra.mxu0 0.0
        %7418 = vmatpush.msra.mxu0 0.0
        %7419 = vmatpush.msra.mxu0 0.0
        %7420 = vmatpush.msra.mxu0 0.0
        %7421 = vmatpush.msra.mxu0 %v7401
        %7422 = vmatmul.f32.gmra.mxu0 %v7404
        %v7423 = vpop.f32.mrf.mxu0
        %v7424 = vadd.f32 0.0, %v7423
        %7425 = vdwg.mxu0
        %7426 = vrot.lane.b32.xlu0 %v7177, 112
        %v7427 = vpop.permute.xlu0 %7426
        %v7429 = vsel %vm3835, %v7385, 0
        %v7431 = vsel %vm1814, %v7427, 0
        %7433 = vmatpush.msra.mxu0 0.0
        %7434 = vmatpush.msra.mxu0 0.0
        %7435 = vmatpush.msra.mxu0 0.0
        %7436 = vmatpush.msra.mxu0 0.0
        %7437 = vmatpush.msra.mxu0 0.0
        %7438 = vmatpush.msra.mxu0 0.0
        %7439 = vmatpush.msra.mxu0 0.0
        %7440 = vmatpush.msra.mxu0 0.0
        %7441 = vmatpush.msra.mxu0 0.0
        %7442 = vmatpush.msra.mxu0 0.0
        %7443 = vmatpush.msra.mxu0 0.0
        %7444 = vmatpush.msra.mxu0 0.0
        %7445 = vmatpush.msra.mxu0 0.0
        %7446 = vmatpush.msra.mxu0 0.0
        %7447 = vmatpush.msra.mxu0 0.0
        %7448 = vmatpush.msra.mxu0 %v7431
        %7449 = vmatmul.f32.gmra.mxu0 %v7429
        %v7450 = vpop.f32.mrf.mxu0
        %v7451 = vadd.f32 %v7424, %v7450
        %7452 = vdwg.mxu0
        %7454 = vset.pattern.permute.xlu0 0
        %7455 = vperm.xlu0 %7454, %v7398
        %v7456 = vpop.permute.xlu0 %7455
        %v7458 = vrcp.pop %v7456
        %v7459 = vmul.f32 %v7456, %v7458
        %v7460 = vsub.f32 1.0, %v7459
        %v7461 = vmul.f32 %v7458, %v7460
        %v7462 = vadd.f32 %v7458, %v7461
        %vm7463 = vweird.f32 %v7456
        %vm7464 = vweird.f32 %v7458
        %vm7465 = vmor %vm7463, %vm7464
        %v7466 = vsel %vm7465, %v7458, %v7462
        %v7467 = vand.u32 2147483647, %v7456
        %vm7468 = vcmp.eq.f32.partialorder %v7467, 8.507059e+37
        %v7469 = vand.u32 %v7456, 2147483648
        %v7470 = vor.u32 1.1754944e-38, %v7469
        %v7471 = vsel %vm7468, %v7470, %v7466
        %v7472 = vmul.f32 %v7451, %v7471
        %7474 = vrot.lane.b32.xlu0 %v7472, 16
        %v7475 = vpop.permute.xlu0 %7474
        %v7477 = vsel %vm1756, %v7332, %v7475
        %v7479 = vsel %vm1583, %v7477, 0
        %7481 = vmatpush.msra.mxu0 0.0
        %7482 = vmatpush.msra.mxu0 0.0
        %7483 = vmatpush.msra.mxu0 0.0
        %7484 = vmatpush.msra.mxu0 0.0
        %7485 = vmatpush.msra.mxu0 0.0
        %7486 = vmatpush.msra.mxu0 0.0
        %7487 = vmatpush.msra.mxu0 0.0
        %7488 = vmatpush.msra.mxu0 0.0
        %7489 = vmatpush.msra.mxu0 0.0
        %7490 = vmatpush.msra.mxu0 0.0
        %7491 = vmatpush.msra.mxu0 0.0
        %7492 = vmatpush.msra.mxu0 0.0
        %7493 = vmatpush.msra.mxu0 %v7068
        %7494 = vmatpush.msra.mxu0 %v7067
        %7495 = vmatpush.msra.mxu0 %v7066
        %7496 = vmatpush.msra.mxu0 %v7065
        %7497 = vmatmul.f32.gmra.mxu0 %v7479
        %v7498 = vpop.f32.mrf.mxu0
        %v7499 = vadd.f32 %v7070, %v7498
        %7500 = vdwg.mxu0
        %v7501 = vadd.f32 %v6525, %v7499
        %v7502 = vsel %vm1814, %v7020, %v5747
        %v7503 = vsel %vm1814, %v7501, %v6525
        %7504 = vst.msk [vmem:[%s1570] sm:$0xff] %vm1583, %v7502
        %7505 = vst.msk [vmem:[%s1570 + $0x8] sm:$0x1] %vm1587, %v5748
        %7506 = vst.msk [vmem:[%s1575] sm:$0xff] %vm1583, %v7503
        %7507 = vst.msk [vmem:[%s1575 + $0x8] sm:$0xff] %vm1583, %v6526
        %7508 = vst.msk [vmem:[%s1575 + $0x10] sm:$0x1] %vm1587, %v6527
        %p7509 = scmp.lt.s32.totalorder %s107, 1
        %s7510 = scalar_select %p7509, %s107, 1
        %s7511 = smul.addr %s7510, 2
        %s7512 = smul.addr %s7511, 8
        %s7513 = scalar_lea.vmem %s85, %s7512
        %p7514 = scmp.lt.s32.totalorder %s107, 1
        %s7515 = scalar_select %p7514, %s107, 1
        %s7516 = smul.addr %s7515, 3
        %s7517 = smul.addr %s7516, 8
        %s7518 = scalar_lea.vmem %s87, %s7517
        // Predicated region
        $region249: #{multi_scale_encoder.1} parent=187 // pred_check
          %p7519 = pneg %p1017
        $region250: #{multi_scale_encoder.1} parent=187 // pred_check_branch
          %7521 = sbr.rel (%p7519) target = $region252
        $region251: #{multi_scale_encoder.1} parent=187 // pred_region
          _
        $region252: #{multi_scale_encoder.1} parent=187 // pred_fallthru
          _
        // Predicated region
        $region253: #{multi_scale_encoder.1} parent=187 // pred_check
          %p7522 = pneg %p1043
        $region254: #{multi_scale_encoder.1} parent=187 // pred_check_branch
          %7524 = sbr.rel (%p7522) target = $region256
        $region255: #{multi_scale_encoder.1} parent=187 // pred_region
          _
        $region256: #{multi_scale_encoder.1} parent=187 // pred_fallthru
          _
      $region188: #{multi_scale_encoder.1} parent=5 // pred_fallthru
        _
      %p7525 = scmp.le.s32.totalorder 2, %s102
      // Predicated region
      $region257: #{multi_scale_encoder.1} parent=5 // pred_check
        %p7526 = pneg %p7525
      $region258: #{multi_scale_encoder.1} parent=5 // pred_check_branch
        %7528 = sbr.rel (%p7526) target = $region260
      $region259: #{multi_scale_encoder.1} parent=5 // pred_region
        %s7529 = ssub.s32 %s102, 2
        // Predicated region
        $region261: #{multi_scale_encoder.1} parent=259 // pred_check
          %p7530 = pneg %p1023
        $region262: #{multi_scale_encoder.1} parent=259 // pred_check_branch
          %7532 = sbr.rel (%p7530) target = $region264
        $region263: #{multi_scale_encoder.1} parent=259 // pred_region
          %p7533 = scmp.lt.s32.totalorder %s108, 1
          %s7534 = scalar_select %p7533, %s108, 1
          %s7535 = smul.addr %s7534, 2
          %s7536 = smul.addr %s7535, 8
          %s7537 = scalar_lea.vmem %s85, %s7536
        $region264: #{multi_scale_encoder.1} parent=259 // pred_fallthru
          _
        // Predicated region
        $region265: #{multi_scale_encoder.1} parent=259 // pred_check
          %p7538 = pneg %p1049
        $region266: #{multi_scale_encoder.1} parent=259 // pred_check_branch
          %7540 = sbr.rel (%p7538) target = $region268
        $region267: #{multi_scale_encoder.1} parent=259 // pred_region
          %p7541 = scmp.lt.s32.totalorder %s108, 1
          %s7542 = scalar_select %p7541, %s108, 1
          %s7543 = smul.addr %s7542, 3
          %s7544 = smul.addr %s7543, 8
          %s7545 = scalar_lea.vmem %s87, %s7544
        $region268: #{multi_scale_encoder.1} parent=259 // pred_fallthru
          _
      $region260: #{multi_scale_encoder.1} parent=5 // pred_fallthru
        _
    $region6: #{multi_scale_encoder.1} parent=1 // loop_footer
      %s106 = sadd.s32 1, %s102
    $region7: #{multi_scale_encoder.1} parent=1 // loop_footer_branch
      %101 = sbr.rel target = $region3
    $region8: #{multi_scale_encoder.1} parent=1 // loop_exit
      _
    %7546 = vsyncpa [#allocation3], 1
    %s7547 = scalar_lea.sflag [#allocation3], 1
    %7548 = vsyncpa %s7547, 1
    %7549 = vsyncpa [#allocation5], 1
    %7550 = vsyncpa [#allocation8], 1
    %7551 = vsyncpa [#allocation11], 1
    %7552 = vsyncpa [#allocation14], 1
    %7553 = vsyncpa [#allocation17], 1
    %7554 = vsyncpa [#allocation20], 1
    %7555 = vsyncpa [#allocation23], 1

</llo_original>
